<compile_context>
chip_gen: v6e
topology: v6e:2x2x1
jax: 0.10.0
libtpu: 0.0.40
codegen_flags: <defaults>
</compile_context>

<pallas_src>
import functools

import jax
import jax.numpy as jnp
import numpy as np
from jax.experimental import pallas as pl
from jax.experimental.pallas import tpu as pltpu

_SUBLANE = 8
_N_W1_CHUNKS = 4                       # w1 streamed in 4 equal chunks, 2-slot pipeline
_VMEM_LIMIT = 24 * 1024 * 1024         # peak VMEM use ~10 MiB


def _round_up(v, m):
    return ((v + m - 1) // m) * m


def _padded_positions(seq_len):
    # positions 0 .. seq_len+3 are used (pos 0 = conv zero pad; each of the three
    # MaxPool1d(k=2,s=1,p=1) adds one position); rounded so w1 streams in equal chunks.
    return _round_up(seq_len + 4, _N_W1_CHUNKS)


def _slot_count(n_samples):
    # samples live in sublane-aligned "slots" so every per-position slab is an
    # aligned (SS, C) block and all shifts are by a multiple of 8 rows.
    return _round_up(max(n_samples, 1), _SUBLANE)


# ----------------------------- fused kernel body ---------------------------

def _shift_down(x, k):
    # out[r] = x[r - k]; zero rows shifted in at the top.
    return jnp.concatenate([jnp.zeros((k, x.shape[1]), x.dtype), x[:-k, :]], axis=0)


def _shift_up(x, k):
    # out[r] = x[r + k]; zero rows shifted in at the bottom.
    return jnp.concatenate([x[k:, :], jnp.zeros((k, x.shape[1]), x.dtype)], axis=0)


def _network(x_ref, mask_refs, conv_refs, b1_ref, w2_ref, b2_ref, w3_ref, b3_ref,
             w1_hbm, feat_buf, w1_buf, w1_sem, *, ss, n_chunks, chunk_p):
    """Encoder (3x Conv1d+BN+ReLU+MaxPool) + 3-layer MLP.  Returns (SS, 128) f32.

    Row layout of every activation: row = position*SS + sample_slot.  Position 0
    and positions beyond the current valid length are kept exactly zero, so
    sublane shifts by SS implement the conv / pool zero padding for free (the
    zero stand-in for torch's -inf pool padding is exact because the pooled
    values are post-ReLU, i.e. >= 0).
    """
    # ---- start streaming w1 (the big FC1 weight) while the conv stack runs ----
    def w1_copy(c):
        slot = c % 2
        return pltpu.make_async_copy(
            w1_hbm.at[pl.ds(c * chunk_p, chunk_p)], w1_buf.at[slot], w1_sem.at[slot])

    w1_copy(0).start()
    if n_chunks > 1:
        w1_copy(1).start()

    # ---- conv encoder --------------------------------------------------------
    h = x_ref[...]                                            # (P*SS, Cin)
    for (w_ref, scale_ref, shift_ref), mask_ref in zip(conv_refs, mask_refs):
        # Conv1d(k=3, pad=1) as three accumulated MXU matmuls on shifted views.
        y = (jnp.dot(_shift_down(h, ss), w_ref[0], preferred_element_type=jnp.float32)
             + jnp.dot(h, w_ref[1], preferred_element_type=jnp.float32)
             + jnp.dot(_shift_up(h, ss), w_ref[2], preferred_element_type=jnp.float32))
        # BatchNorm1d (eval, folded affine) + ReLU, then zero pad/filler rows.
        y = jnp.maximum(y * scale_ref[...] + shift_ref[...], 0.0) * mask_ref[...]
        # MaxPool1d(k=2, s=1, p=1): out[pos] = max(y[pos-1], y[pos]).
        h = jnp.maximum(_shift_down(y, ss), y)

    feat_buf[...] = h                                         # (P*SS, 256), pads are zero

    # ---- FC1: h1[slot] = b1 + sum_pos feat[pos, slot, :] @ w1e[pos] ----------
    h1 = jnp.zeros((ss, 512), jnp.float32) + b1_ref[...]
    for c in range(n_chunks):
        slot = c % 2
        w1_copy(c).wait()
        for j in range(chunk_p):
            p = c * chunk_p + j
            slab = feat_buf[p * ss:(p + 1) * ss, :]           # aligned (SS, 256)
            h1 = h1 + jnp.dot(slab, w1_buf[slot, j],
                              preferred_element_type=jnp.float32)
        if c + 2 < n_chunks:
            w1_copy(c + 2).start()                            # refill the freed slot
    h1 = jnp.maximum(h1, 0.0)
    # TODO(synk): Dropout(0.5) is identity in eval mode; training-mode stochastic
    # dropout is not implemented here.
    h2 = jnp.maximum(jnp.dot(h1, w2_ref[...], preferred_element_type=jnp.float32)
                     + b2_ref[...], 0.0)
    return jnp.dot(h2, w3_ref[...], preferred_element_type=jnp.float32) + b3_ref[...]


def _embed_kernel(x_ref, m0, m1, m2, wc0, s0, t0, wc1, s1, t1, wc2, s2, t2,
                  b1, w2, b2, w3, b3, w1_hbm,
                  emb_ref, feat_buf, w1_buf, w1_sem,
                  *, batch, ss, n_chunks, chunk_p):
    emb = _network(x_ref, (m0, m1, m2),
                   ((wc0, s0, t0), (wc1, s1, t1), (wc2, s2, t2)),
                   b1, w2, b2, w3, b3, w1_hbm, feat_buf, w1_buf, w1_sem,
                   ss=ss, n_chunks=n_chunks, chunk_p=chunk_p)
    emb_ref[...] = emb[0:batch, :]


def _pair_kernel(x_ref, m0, m1, m2, wc0, s0, t0, wc1, s1, t1, wc2, s2, t2,
                 b1, w2, b2, w3, b3, dw, db, w1_hbm,
                 sim_ref, feat_buf, w1_buf, w1_sem,
                 *, batch, ss, n_chunks, chunk_p):
    emb = _network(x_ref, (m0, m1, m2),
                   ((wc0, s0, t0), (wc1, s1, t1), (wc2, s2, t2)),
                   b1, w2, b2, w3, b3, w1_hbm, feat_buf, w1_buf, w1_sem,
                   ss=ss, n_chunks=n_chunks, chunk_p=chunk_p)
    # torch.pairwise_distance(p=2, eps=1e-6, keepdim=True): ||e1 - e2 + eps||_2
    d = emb[0:batch, :] - emb[batch:2 * batch, :] + 1e-6
    dist = jnp.sqrt(jnp.sum(d * d, axis=-1, keepdims=True))   # (B, 1)
    z = dist * dw[...] + db[...]                               # Linear(1, 1)
    sim_ref[...] = 1.0 / (1.0 + jnp.exp(-z))                   # Sigmoid


# ----------------------------- wrappers -------------------------------------

def _full_spec(shape):
    nd = len(shape)
    return pl.BlockSpec(shape, lambda i, nd=nd: (0,) * nd)


def _prep_input(x, n_pos, ss):
    # x: (S, L0, C) -> (P*SS, C), row = pos*SS + slot; data at pos 1..L0, else zero.
    s, l0, c = x.shape
    buf = jnp.zeros((n_pos, ss, c), x.dtype)
    buf = buf.at[1:1 + l0, :s, :].set(jnp.transpose(x, (1, 0, 2)))
    return buf.reshape(n_pos * ss, c)


def _make_masks(n_pos, ss, lengths):
    pos = np.repeat(np.arange(n_pos), ss)
    return tuple(
        jnp.asarray(((pos >= 1) & (pos <= L)).astype(np.float32).reshape(n_pos * ss, 1))
        for L in lengths)


def _weight_args(packed):
    return (packed["wc0"], packed["scale0"], packed["shift0"],
            packed["wc1"], packed["scale1"], packed["shift1"],
            packed["wc2"], packed["scale2"], packed["shift2"],
            packed["b1"], packed["w2"], packed["b2"],
            packed["w3"], packed["b3"])


def _call(kernel, args, out_shape, n_pos, ss, chunk_p):
    in_specs = [_full_spec(a.shape) for a in args[:-1]]
    in_specs.append(pl.BlockSpec(memory_space=pl.ANY))         # w1e stays in HBM
    return pl.pallas_call(
        kernel,
        out_shape=out_shape,
        grid_spec=pltpu.PrefetchScalarGridSpec(
            num_scalar_prefetch=0, grid=(1,),
            in_specs=in_specs,
            out_specs=_full_spec(out_shape.shape),
            scratch_shapes=[
                pltpu.VMEM((n_pos * ss, 256), jnp.float32),         # feat_buf
                pltpu.VMEM((2, chunk_p, 256, 512), jnp.float32),    # w1 double buffer
                pltpu.SemaphoreType.DMA((2,)),
            ]),
        compiler_params=pltpu.CompilerParams(
            dimension_semantics=("arbitrary",),
            vmem_limit_bytes=_VMEM_LIMIT),
    )(*args)


def forward_one(packed, x):
    # x: (B, seq, C) f32 -> embeddings (B, 128) f32.
    b, seq, _ = x.shape
    ss = _slot_count(b)
    n_pos = _padded_positions(seq)
    chunk_p = n_pos // _N_W1_CHUNKS
    masks = _make_masks(n_pos, ss, (seq, seq + 1, seq + 2))
    args = (_prep_input(x, n_pos, ss),) + masks + _weight_args(packed) + (packed["w1e"],)
    kernel = functools.partial(_embed_kernel, batch=b, ss=ss,
                               n_chunks=_N_W1_CHUNKS, chunk_p=chunk_p)
    return _call(kernel, args, jax.ShapeDtypeStruct((b, 128), jnp.float32),
                 n_pos, ss, chunk_p)


def siamese_forward(packed, x1, x2=None):
    if x2 is None:
        return forward_one(packed, x1)
    b, seq, _ = x1.shape
    x = jnp.concatenate([x1, x2], axis=0)     # both branches folded into the batch
    ss = _slot_count(2 * b)
    n_pos = _padded_positions(seq)
    chunk_p = n_pos // _N_W1_CHUNKS
    masks = _make_masks(n_pos, ss, (seq, seq + 1, seq + 2))
    args = ((_prep_input(x, n_pos, ss),) + masks + _weight_args(packed)
            + (packed["dw"], packed["db"], packed["w1e"]))
    kernel = functools.partial(_pair_kernel, batch=b, ss=ss,
                               n_chunks=_N_W1_CHUNKS, chunk_p=chunk_p)
    return _call(kernel, args, jax.ShapeDtypeStruct((b, 1), jnp.float32),
                 n_pos, ss, chunk_p)


# ----------------------------- parameters -----------------------------------

def init_params(seq_len, in_channels, key):
    """Random parameters in PyTorch convention: conv taps (3, Cin, Cout), BN in
    eval mode (running stats folded), w1 rows in torch's channel-major flatten."""
    feature_size = 256 * (seq_len + 3)     # each MaxPool1d(k=2,s=1,p=1) adds +1
    keys = jax.random.split(key, 20)

    def nrm(k, shape, scale):
        return scale * jax.random.normal(k, shape, jnp.float32)

    eps = 1e-5
    params = {}
    chans = [in_channels, 64, 128, 256]
    ki = 0
    for i in range(3):
        cin, cout = chans[i], chans[i + 1]
        w = nrm(keys[ki], (3, cin, cout), 0.1); ki += 1
        cbias = nrm(keys[ki], (1, cout), 0.1); ki += 1
        gamma = 1.0 + nrm(keys[ki], (1, cout), 0.1); ki += 1
        beta = nrm(keys[ki], (1, cout), 0.1); ki += 1
        run_mean = jnp.zeros((1, cout), jnp.float32)
        run_var = jnp.ones((1, cout), jnp.float32)
        scale = gamma / jnp.sqrt(run_var + eps)
        shift = (cbias - run_mean) * scale + beta   # conv bias folded into BN shift
        params[f"conv{i}"] = (w, scale, shift)

    params["w1"] = nrm(keys[ki], (feature_size, 512), 0.02); ki += 1
    params["b1"] = nrm(keys[ki], (1, 512), 0.02); ki += 1
    params["w2"] = nrm(keys[ki], (512, 256), 0.02); ki += 1
    params["b2"] = nrm(keys[ki], (1, 256), 0.02); ki += 1
    params["w3"] = nrm(keys[ki], (256, 128), 0.02); ki += 1
    params["b3"] = nrm(keys[ki], (1, 128), 0.02); ki += 1
    params["dw"] = jnp.array([[0.5]], jnp.float32)
    params["db"] = jnp.array([[-0.1]], jnp.float32)
    return params


def pack_params(params, seq_len):
    """One-time host-side repacking for the fused kernel.

    FC1's weight becomes (P, 256, 512): position p holds torch rows c*Lf+(p-1);
    position 0 (the conv-pad row) and alignment-filler positions hold zeros, so
    the flatten is absorbed into accumulated per-position matmuls.  Kept f32
    (bf16 risks the tolerance through the 4864-wide contraction).
    """
    n_pos = _padded_positions(seq_len)
    lf = seq_len + 3
    packed = {}
    for i in range(3):
        w, scale, shift = params[f"conv{i}"]
        packed[f"wc{i}"] = w                             # (3, Cin, Cout)
        packed[f"scale{i}"] = scale
        packed[f"shift{i}"] = shift
    w1 = params["w1"].reshape(256, lf, 512)              # [c, l, f] (torch idx c*Lf+l)
    w1e = jnp.zeros((n_pos, 256, 512), jnp.float32)
    w1e = w1e.at[1:lf + 1].set(jnp.transpose(w1, (1, 0, 2)))   # [p=l+1, c, f]
    packed["w1e"] = w1e
    for name in ("b1", "w2", "b2", "w3", "b3", "dw", "db"):
        packed[name] = params[name]
    return packed


# ----------------------------- pure-JAX reference ---------------------------

def _reference_forward_one(params, x):
    h = x
    for i in range(3):
        w, scale, shift = params[f"conv{i}"]
        B, L, _ = h.shape
        xp = jnp.pad(h, ((0, 0), (1, 1), (0, 0)))
        y = (jnp.einsum("blc,cd->bld", xp[:, 0:L, :], w[0])
             + jnp.einsum("blc,cd->bld", xp[:, 1:L + 1, :], w[1])
             + jnp.einsum("blc,cd->bld", xp[:, 2:L + 2, :], w[2]))
        y = jnp.maximum(y * scale[None] + shift[None], 0.0)
        neg = jnp.full((B, 1, y.shape[-1]), -jnp.inf, jnp.float32)
        h = jnp.maximum(jnp.concatenate([neg, y], axis=1),
                        jnp.concatenate([y, neg], axis=1))
    feat = jnp.transpose(h, (0, 2, 1)).reshape(h.shape[0], -1)  # torch view(B,-1) on (N,C,L)
    h1 = jnp.maximum(feat @ params["w1"] + params["b1"], 0.0)
    h2 = jnp.maximum(h1 @ params["w2"] + params["b2"], 0.0)
    return h2 @ params["w3"] + params["b3"]


def _reference_forward(params, x1, x2):
    e1 = _reference_forward_one(params, x1)
    e2 = _reference_forward_one(params, x2)
    d = e1 - e2 + 1e-6
    dist = jnp.sqrt(jnp.sum(d * d, axis=-1, keepdims=True))
    return jax.nn.sigmoid(dist * params["dw"] + params["db"])


# ----------------------------- main ------------------------------------------

if __name__ == "__main__":
    B, SEQ, C = 2, 16, 4   # input_shape = (sequence_length=16, in_channels=4)
    key = jax.random.PRNGKey(0)
    kx1, kx2, kp = jax.random.split(key, 3)
    x1 = jax.random.normal(kx1, (B, SEQ, C), jnp.float32)
    x2 = jax.random.normal(kx2, (B, SEQ, C), jnp.float32)

    params = init_params(SEQ, C, kp)
    packed = pack_params(params, SEQ)

    # Pair path (similarity head).
    sim = jax.block_until_ready(siamese_forward(packed, x1, x2))
    ref = _reference_forward(params, x1, x2)
    np.testing.assert_allclose(np.asarray(sim), np.asarray(ref),
                               rtol=5e-3, atol=5e-3)
    assert sim.shape == (B, 1) and np.isfinite(np.asarray(sim)).all()

    # Single-branch path (embeddings), i.e. forward(x1, None).
    emb = jax.block_until_ready(forward_one(packed, x1))
    ref_emb = _reference_forward_one(params, x1)
    np.testing.assert_allclose(np.asarray(emb), np.asarray(ref_emb),
                               rtol=5e-3, atol=5e-3)

    print("KERNEL_OK")
</pallas_src>

<mosaic_0001>
module attributes {stable_mosaic.version = 11 : i64} {
  func.func @_pair_kernel(%arg0: i32, %arg1: memref<160x4xf32, #tpu.memory_space<vmem>>, %arg2: memref<160x1xf32, #tpu.memory_space<vmem>>, %arg3: memref<160x1xf32, #tpu.memory_space<vmem>>, %arg4: memref<160x1xf32, #tpu.memory_space<vmem>>, %arg5: memref<3x4x64xf32, #tpu.memory_space<vmem>>, %arg6: memref<1x64xf32, #tpu.memory_space<vmem>>, %arg7: memref<1x64xf32, #tpu.memory_space<vmem>>, %arg8: memref<3x64x128xf32, #tpu.memory_space<vmem>>, %arg9: memref<1x128xf32, #tpu.memory_space<vmem>>, %arg10: memref<1x128xf32, #tpu.memory_space<vmem>>, %arg11: memref<3x128x256xf32, #tpu.memory_space<vmem>>, %arg12: memref<1x256xf32, #tpu.memory_space<vmem>>, %arg13: memref<1x256xf32, #tpu.memory_space<vmem>>, %arg14: memref<1x512xf32, #tpu.memory_space<vmem>>, %arg15: memref<512x256xf32, #tpu.memory_space<vmem>>, %arg16: memref<1x256xf32, #tpu.memory_space<vmem>>, %arg17: memref<256x128xf32, #tpu.memory_space<vmem>>, %arg18: memref<1x128xf32, #tpu.memory_space<vmem>>, %arg19: memref<1x1xf32, #tpu.memory_space<vmem>>, %arg20: memref<1x1xf32, #tpu.memory_space<vmem>>, %arg21: memref<20x256x512xf32, #tpu.memory_space<any>>, %arg22: memref<2x1xf32, #tpu.memory_space<vmem>>, %arg23: memref<160x256xf32, #tpu.memory_space<vmem>>, %arg24: memref<2x5x256x512xf32, #tpu.memory_space<vmem>>, %arg25: memref<2x!tpu.dma_semaphore, #tpu.memory_space<semaphore_mem>>) attributes {dimension_semantics = [#tpu.dimension_semantics<arbitrary>], iteration_bounds = array<i64: 1>, scalar_prefetch = 0 : i64, scratch_operands = 3 : i64, tpu.core_type = #tpu.core_type<tc>, window_params = [{pipeline_mode = #tpu.pipeline_mode<synchronous>, transform_indices = @transform_0, window_bounds = array<i64: 160, 4>}, {pipeline_mode = #tpu.pipeline_mode<synchronous>, transform_indices = @transform_1, window_bounds = array<i64: 160, 1>}, {pipeline_mode = #tpu.pipeline_mode<synchronous>, transform_indices = @transform_2, window_bounds = array<i64: 160, 1>}, {pipeline_mode = #tpu.pipeline_mode<synchronous>, transform_indices = @transform_3, window_bounds = array<i64: 160, 1>}, {pipeline_mode = #tpu.pipeline_mode<synchronous>, transform_indices = @transform_4, window_bounds = array<i64: 3, 4, 64>}, {pipeline_mode = #tpu.pipeline_mode<synchronous>, transform_indices = @transform_5, window_bounds = array<i64: 1, 64>}, {pipeline_mode = #tpu.pipeline_mode<synchronous>, transform_indices = @transform_6, window_bounds = array<i64: 1, 64>}, {pipeline_mode = #tpu.pipeline_mode<synchronous>, transform_indices = @transform_7, window_bounds = array<i64: 3, 64, 128>}, {pipeline_mode = #tpu.pipeline_mode<synchronous>, transform_indices = @transform_8, window_bounds = array<i64: 1, 128>}, {pipeline_mode = #tpu.pipeline_mode<synchronous>, transform_indices = @transform_9, window_bounds = array<i64: 1, 128>}, {pipeline_mode = #tpu.pipeline_mode<synchronous>, transform_indices = @transform_10, window_bounds = array<i64: 3, 128, 256>}, {pipeline_mode = #tpu.pipeline_mode<synchronous>, transform_indices = @transform_11, window_bounds = array<i64: 1, 256>}, {pipeline_mode = #tpu.pipeline_mode<synchronous>, transform_indices = @transform_12, window_bounds = array<i64: 1, 256>}, {pipeline_mode = #tpu.pipeline_mode<synchronous>, transform_indices = @transform_13, window_bounds = array<i64: 1, 512>}, {pipeline_mode = #tpu.pipeline_mode<synchronous>, transform_indices = @transform_14, window_bounds = array<i64: 512, 256>}, {pipeline_mode = #tpu.pipeline_mode<synchronous>, transform_indices = @transform_15, window_bounds = array<i64: 1, 256>}, {pipeline_mode = #tpu.pipeline_mode<synchronous>, transform_indices = @transform_16, window_bounds = array<i64: 256, 128>}, {pipeline_mode = #tpu.pipeline_mode<synchronous>, transform_indices = @transform_17, window_bounds = array<i64: 1, 128>}, {pipeline_mode = #tpu.pipeline_mode<synchronous>, transform_indices = @transform_18, window_bounds = array<i64: 1, 1>}, {pipeline_mode = #tpu.pipeline_mode<synchronous>, transform_indices = @transform_19, window_bounds = array<i64: 1, 1>}, {}, {pipeline_mode = #tpu.pipeline_mode<synchronous>, transform_indices = @transform_21, window_bounds = array<i64: 2, 1>}]} {
    %c0_i32 = arith.constant 0 : i32
    %c0_i32_0 = arith.constant 0 : i32
    %c0_i32_1 = arith.constant 0 : i32
    %c0_i32_2 = arith.constant 0 : i32
    %c0_i32_3 = arith.constant 0 : i32
    %0 = tpu.memref_slice %arg21[%c0_i32_1, %c0_i32_2, %c0_i32_3] : memref<20x256x512xf32, #tpu.memory_space<any>> -> memref<5x256x512xf32, #tpu.memory_space<any>>
    %c0_i32_4 = arith.constant 0 : i32
    %c0_i32_5 = arith.constant 0 : i32
    %c0_i32_6 = arith.constant 0 : i32
    %1 = tpu.memref_slice %arg24[%c0_i32, %c0_i32_4, %c0_i32_5, %c0_i32_6] : memref<2x5x256x512xf32, #tpu.memory_space<vmem>> -> memref<1x5x256x512xf32, #tpu.memory_space<vmem>>
    %2 = tpu.memref_squeeze %1 : memref<1x5x256x512xf32, #tpu.memory_space<vmem>> -> memref<5x256x512xf32, #tpu.memory_space<vmem>>
    %3 = tpu.memref_slice %arg25[%c0_i32_0] : memref<2x!tpu.dma_semaphore, #tpu.memory_space<semaphore_mem>> -> memref<1x!tpu.dma_semaphore, #tpu.memory_space<semaphore_mem>>
    %4 = tpu.memref_squeeze %3 : memref<1x!tpu.dma_semaphore, #tpu.memory_space<semaphore_mem>> -> memref<!tpu.dma_semaphore, #tpu.memory_space<semaphore_mem>>
    tpu.enqueue_dma source(%0 : memref<5x256x512xf32, #tpu.memory_space<any>>) target(%2 : memref<5x256x512xf32, #tpu.memory_space<vmem>>) target_semaphore(%4 : memref<!tpu.dma_semaphore, #tpu.memory_space<semaphore_mem>>)
    %c1_i32 = arith.constant 1 : i32
    %c1_i32_7 = arith.constant 1 : i32
    %c5_i32 = arith.constant 5 : i32
    %c0_i32_8 = arith.constant 0 : i32
    %c0_i32_9 = arith.constant 0 : i32
    %5 = tpu.memref_slice %arg21[%c5_i32, %c0_i32_8, %c0_i32_9] : memref<20x256x512xf32, #tpu.memory_space<any>> -> memref<5x256x512xf32, #tpu.memory_space<any>>
    %c0_i32_10 = arith.constant 0 : i32
    %c0_i32_11 = arith.constant 0 : i32
    %c0_i32_12 = arith.constant 0 : i32
    %6 = tpu.memref_slice %arg24[%c1_i32, %c0_i32_10, %c0_i32_11, %c0_i32_12] : memref<2x5x256x512xf32, #tpu.memory_space<vmem>> -> memref<1x5x256x512xf32, #tpu.memory_space<vmem>>
    %7 = tpu.memref_squeeze %6 : memref<1x5x256x512xf32, #tpu.memory_space<vmem>> -> memref<5x256x512xf32, #tpu.memory_space<vmem>>
    %8 = tpu.memref_slice %arg25[%c1_i32_7] : memref<2x!tpu.dma_semaphore, #tpu.memory_space<semaphore_mem>> -> memref<1x!tpu.dma_semaphore, #tpu.memory_space<semaphore_mem>>
    %9 = tpu.memref_squeeze %8 : memref<1x!tpu.dma_semaphore, #tpu.memory_space<semaphore_mem>> -> memref<!tpu.dma_semaphore, #tpu.memory_space<semaphore_mem>>
    tpu.enqueue_dma source(%5 : memref<5x256x512xf32, #tpu.memory_space<any>>) target(%7 : memref<5x256x512xf32, #tpu.memory_space<vmem>>) target_semaphore(%9 : memref<!tpu.dma_semaphore, #tpu.memory_space<semaphore_mem>>)
    %c0 = arith.constant 0 : index
    %c0_13 = arith.constant 0 : index
    %10 = vector.load %arg1[%c0, %c0_13] : memref<160x4xf32, #tpu.memory_space<vmem>>, vector<160x4xf32>
    %cst = arith.constant 0.000000e+00 : f32
    %11 = vector.broadcast %cst : f32 to vector<8x4xf32>
    %12 = vector.extract_strided_slice %10 {offsets = [0, 0], sizes = [152, 4], strides = [1, 1]} : vector<160x4xf32> to vector<152x4xf32>
    %13 = tpu.concatenate %11, %12 in 0 : vector<8x4xf32>, vector<152x4xf32> -> vector<160x4xf32>
    %c0_14 = arith.constant 0 : index
    %c0_15 = arith.constant 0 : index
    %c0_16 = arith.constant 0 : index
    %14 = vector.load %arg5[%c0_14, %c0_15, %c0_16] : memref<3x4x64xf32, #tpu.memory_space<vmem>>, vector<1x4x64xf32>
    %15 = vector.shape_cast %14 : vector<1x4x64xf32> to vector<4x64xf32>
    %cst_17 = arith.constant dense<0.000000e+00> : vector<160x64xf32>
    %16 = tpu.matmul %13, %15, %cst_17 {dimension_numbers = #tpu.dot_dimension_numbers<[1], [0], [0], [1], [0, 0, 1, 1], [], []>} : vector<160x4xf32>, vector<4x64xf32>, vector<160x64xf32> -> vector<160x64xf32>
    %c1 = arith.constant 1 : index
    %c0_18 = arith.constant 0 : index
    %c0_19 = arith.constant 0 : index
    %17 = vector.load %arg5[%c1, %c0_18, %c0_19] : memref<3x4x64xf32, #tpu.memory_space<vmem>>, vector<1x4x64xf32>
    %18 = vector.shape_cast %17 : vector<1x4x64xf32> to vector<4x64xf32>
    %cst_20 = arith.constant dense<0.000000e+00> : vector<160x64xf32>
    %19 = tpu.matmul %10, %18, %cst_20 {dimension_numbers = #tpu.dot_dimension_numbers<[1], [0], [0], [1], [0, 0, 1, 1], [], []>} : vector<160x4xf32>, vector<4x64xf32>, vector<160x64xf32> -> vector<160x64xf32>
    %20 = arith.addf %16, %19 : vector<160x64xf32>
    %21 = vector.extract_strided_slice %10 {offsets = [8, 0], sizes = [152, 4], strides = [1, 1]} : vector<160x4xf32> to vector<152x4xf32>
    %cst_21 = arith.constant 0.000000e+00 : f32
    %22 = vector.broadcast %cst_21 : f32 to vector<8x4xf32>
    %23 = tpu.concatenate %21, %22 in 0 : vector<152x4xf32>, vector<8x4xf32> -> vector<160x4xf32>
    %c2 = arith.constant 2 : index
    %c0_22 = arith.constant 0 : index
    %c0_23 = arith.constant 0 : index
    %24 = vector.load %arg5[%c2, %c0_22, %c0_23] : memref<3x4x64xf32, #tpu.memory_space<vmem>>, vector<1x4x64xf32>
    %25 = vector.shape_cast %24 : vector<1x4x64xf32> to vector<4x64xf32>
    %cst_24 = arith.constant dense<0.000000e+00> : vector<160x64xf32>
    %26 = tpu.matmul %23, %25, %cst_24 {dimension_numbers = #tpu.dot_dimension_numbers<[1], [0], [0], [1], [0, 0, 1, 1], [], []>} : vector<160x4xf32>, vector<4x64xf32>, vector<160x64xf32> -> vector<160x64xf32>
    %27 = arith.addf %20, %26 : vector<160x64xf32>
    %c0_25 = arith.constant 0 : index
    %c0_26 = arith.constant 0 : index
    %28 = vector.load %arg6[%c0_25, %c0_26] : memref<1x64xf32, #tpu.memory_space<vmem>>, vector<1x64xf32>
    %29 = vector.broadcast %28 : vector<1x64xf32> to vector<160x64xf32>
    %30 = arith.mulf %27, %29 : vector<160x64xf32>
    %c0_27 = arith.constant 0 : index
    %c0_28 = arith.constant 0 : index
    %31 = vector.load %arg7[%c0_27, %c0_28] : memref<1x64xf32, #tpu.memory_space<vmem>>, vector<1x64xf32>
    %32 = vector.broadcast %31 : vector<1x64xf32> to vector<160x64xf32>
    %33 = arith.addf %30, %32 : vector<160x64xf32>
    %cst_29 = arith.constant 0.000000e+00 : f32
    %34 = vector.broadcast %cst_29 : f32 to vector<160x64xf32>
    %35 = arith.maximumf %33, %34 : vector<160x64xf32>
    %c0_30 = arith.constant 0 : index
    %c0_31 = arith.constant 0 : index
    %36 = vector.load %arg2[%c0_30, %c0_31] : memref<160x1xf32, #tpu.memory_space<vmem>>, vector<160x1xf32>
    %37 = vector.broadcast %36 : vector<160x1xf32> to vector<160x64xf32>
    %38 = arith.mulf %35, %37 : vector<160x64xf32>
    %cst_32 = arith.constant 0.000000e+00 : f32
    %39 = vector.broadcast %cst_32 : f32 to vector<8x64xf32>
    %40 = vector.extract_strided_slice %38 {offsets = [0, 0], sizes = [152, 64], strides = [1, 1]} : vector<160x64xf32> to vector<152x64xf32>
    %41 = tpu.concatenate %39, %40 in 0 : vector<8x64xf32>, vector<152x64xf32> -> vector<160x64xf32>
    %42 = arith.maximumf %41, %38 : vector<160x64xf32>
    %cst_33 = arith.constant 0.000000e+00 : f32
    %43 = vector.broadcast %cst_33 : f32 to vector<8x64xf32>
    %44 = vector.extract_strided_slice %42 {offsets = [0, 0], sizes = [152, 64], strides = [1, 1]} : vector<160x64xf32> to vector<152x64xf32>
    %45 = tpu.concatenate %43, %44 in 0 : vector<8x64xf32>, vector<152x64xf32> -> vector<160x64xf32>
    %c0_34 = arith.constant 0 : index
    %c0_35 = arith.constant 0 : index
    %c0_36 = arith.constant 0 : index
    %46 = vector.load %arg8[%c0_34, %c0_35, %c0_36] : memref<3x64x128xf32, #tpu.memory_space<vmem>>, vector<1x64x128xf32>
    %47 = vector.shape_cast %46 : vector<1x64x128xf32> to vector<64x128xf32>
    %cst_37 = arith.constant dense<0.000000e+00> : vector<160x128xf32>
    %48 = tpu.matmul %45, %47, %cst_37 {dimension_numbers = #tpu.dot_dimension_numbers<[1], [0], [0], [1], [0, 0, 1, 1], [], []>} : vector<160x64xf32>, vector<64x128xf32>, vector<160x128xf32> -> vector<160x128xf32>
    %c1_38 = arith.constant 1 : index
    %c0_39 = arith.constant 0 : index
    %c0_40 = arith.constant 0 : index
    %49 = vector.load %arg8[%c1_38, %c0_39, %c0_40] : memref<3x64x128xf32, #tpu.memory_space<vmem>>, vector<1x64x128xf32>
    %50 = vector.shape_cast %49 : vector<1x64x128xf32> to vector<64x128xf32>
    %cst_41 = arith.constant dense<0.000000e+00> : vector<160x128xf32>
    %51 = tpu.matmul %42, %50, %cst_41 {dimension_numbers = #tpu.dot_dimension_numbers<[1], [0], [0], [1], [0, 0, 1, 1], [], []>} : vector<160x64xf32>, vector<64x128xf32>, vector<160x128xf32> -> vector<160x128xf32>
    %52 = arith.addf %48, %51 : vector<160x128xf32>
    %53 = vector.extract_strided_slice %42 {offsets = [8, 0], sizes = [152, 64], strides = [1, 1]} : vector<160x64xf32> to vector<152x64xf32>
    %cst_42 = arith.constant 0.000000e+00 : f32
    %54 = vector.broadcast %cst_42 : f32 to vector<8x64xf32>
    %55 = tpu.concatenate %53, %54 in 0 : vector<152x64xf32>, vector<8x64xf32> -> vector<160x64xf32>
    %c2_43 = arith.constant 2 : index
    %c0_44 = arith.constant 0 : index
    %c0_45 = arith.constant 0 : index
    %56 = vector.load %arg8[%c2_43, %c0_44, %c0_45] : memref<3x64x128xf32, #tpu.memory_space<vmem>>, vector<1x64x128xf32>
    %57 = vector.shape_cast %56 : vector<1x64x128xf32> to vector<64x128xf32>
    %cst_46 = arith.constant dense<0.000000e+00> : vector<160x128xf32>
    %58 = tpu.matmul %55, %57, %cst_46 {dimension_numbers = #tpu.dot_dimension_numbers<[1], [0], [0], [1], [0, 0, 1, 1], [], []>} : vector<160x64xf32>, vector<64x128xf32>, vector<160x128xf32> -> vector<160x128xf32>
    %59 = arith.addf %52, %58 : vector<160x128xf32>
    %c0_47 = arith.constant 0 : index
    %c0_48 = arith.constant 0 : index
    %60 = vector.load %arg9[%c0_47, %c0_48] : memref<1x128xf32, #tpu.memory_space<vmem>>, vector<1x128xf32>
    %61 = vector.broadcast %60 : vector<1x128xf32> to vector<160x128xf32>
    %62 = arith.mulf %59, %61 : vector<160x128xf32>
    %c0_49 = arith.constant 0 : index
    %c0_50 = arith.constant 0 : index
    %63 = vector.load %arg10[%c0_49, %c0_50] : memref<1x128xf32, #tpu.memory_space<vmem>>, vector<1x128xf32>
    %64 = vector.broadcast %63 : vector<1x128xf32> to vector<160x128xf32>
    %65 = arith.addf %62, %64 : vector<160x128xf32>
    %cst_51 = arith.constant 0.000000e+00 : f32
    %66 = vector.broadcast %cst_51 : f32 to vector<160x128xf32>
    %67 = arith.maximumf %65, %66 : vector<160x128xf32>
    %c0_52 = arith.constant 0 : index
    %c0_53 = arith.constant 0 : index
    %68 = vector.load %arg3[%c0_52, %c0_53] : memref<160x1xf32, #tpu.memory_space<vmem>>, vector<160x1xf32>
    %69 = vector.broadcast %68 : vector<160x1xf32> to vector<160x128xf32>
    %70 = arith.mulf %67, %69 : vector<160x128xf32>
    %cst_54 = arith.constant 0.000000e+00 : f32
    %71 = vector.broadcast %cst_54 : f32 to vector<8x128xf32>
    %72 = vector.extract_strided_slice %70 {offsets = [0, 0], sizes = [152, 128], strides = [1, 1]} : vector<160x128xf32> to vector<152x128xf32>
    %73 = tpu.concatenate %71, %72 in 0 : vector<8x128xf32>, vector<152x128xf32> -> vector<160x128xf32>
    %74 = arith.maximumf %73, %70 : vector<160x128xf32>
    %cst_55 = arith.constant 0.000000e+00 : f32
    %75 = vector.broadcast %cst_55 : f32 to vector<8x128xf32>
    %76 = vector.extract_strided_slice %74 {offsets = [0, 0], sizes = [152, 128], strides = [1, 1]} : vector<160x128xf32> to vector<152x128xf32>
    %77 = tpu.concatenate %75, %76 in 0 : vector<8x128xf32>, vector<152x128xf32> -> vector<160x128xf32>
    %c0_56 = arith.constant 0 : index
    %c0_57 = arith.constant 0 : index
    %c0_58 = arith.constant 0 : index
    %78 = vector.load %arg11[%c0_56, %c0_57, %c0_58] : memref<3x128x256xf32, #tpu.memory_space<vmem>>, vector<1x128x256xf32>
    %79 = vector.shape_cast %78 : vector<1x128x256xf32> to vector<128x256xf32>
    %cst_59 = arith.constant dense<0.000000e+00> : vector<160x256xf32>
    %80 = tpu.matmul %77, %79, %cst_59 {dimension_numbers = #tpu.dot_dimension_numbers<[1], [0], [0], [1], [0, 0, 1, 1], [], []>} : vector<160x128xf32>, vector<128x256xf32>, vector<160x256xf32> -> vector<160x256xf32>
    %c1_60 = arith.constant 1 : index
    %c0_61 = arith.constant 0 : index
    %c0_62 = arith.constant 0 : index
    %81 = vector.load %arg11[%c1_60, %c0_61, %c0_62] : memref<3x128x256xf32, #tpu.memory_space<vmem>>, vector<1x128x256xf32>
    %82 = vector.shape_cast %81 : vector<1x128x256xf32> to vector<128x256xf32>
    %cst_63 = arith.constant dense<0.000000e+00> : vector<160x256xf32>
    %83 = tpu.matmul %74, %82, %cst_63 {dimension_numbers = #tpu.dot_dimension_numbers<[1], [0], [0], [1], [0, 0, 1, 1], [], []>} : vector<160x128xf32>, vector<128x256xf32>, vector<160x256xf32> -> vector<160x256xf32>
    %84 = arith.addf %80, %83 : vector<160x256xf32>
    %85 = vector.extract_strided_slice %74 {offsets = [8, 0], sizes = [152, 128], strides = [1, 1]} : vector<160x128xf32> to vector<152x128xf32>
    %cst_64 = arith.constant 0.000000e+00 : f32
    %86 = vector.broadcast %cst_64 : f32 to vector<8x128xf32>
    %87 = tpu.concatenate %85, %86 in 0 : vector<152x128xf32>, vector<8x128xf32> -> vector<160x128xf32>
    %c2_65 = arith.constant 2 : index
    %c0_66 = arith.constant 0 : index
    %c0_67 = arith.constant 0 : index
    %88 = vector.load %arg11[%c2_65, %c0_66, %c0_67] : memref<3x128x256xf32, #tpu.memory_space<vmem>>, vector<1x128x256xf32>
    %89 = vector.shape_cast %88 : vector<1x128x256xf32> to vector<128x256xf32>
    %cst_68 = arith.constant dense<0.000000e+00> : vector<160x256xf32>
    %90 = tpu.matmul %87, %89, %cst_68 {dimension_numbers = #tpu.dot_dimension_numbers<[1], [0], [0], [1], [0, 0, 1, 1], [], []>} : vector<160x128xf32>, vector<128x256xf32>, vector<160x256xf32> -> vector<160x256xf32>
    %91 = arith.addf %84, %90 : vector<160x256xf32>
    %c0_69 = arith.constant 0 : index
    %c0_70 = arith.constant 0 : index
    %92 = vector.load %arg12[%c0_69, %c0_70] : memref<1x256xf32, #tpu.memory_space<vmem>>, vector<1x256xf32>
    %93 = vector.broadcast %92 : vector<1x256xf32> to vector<160x256xf32>
    %94 = arith.mulf %91, %93 : vector<160x256xf32>
    %c0_71 = arith.constant 0 : index
    %c0_72 = arith.constant 0 : index
    %95 = vector.load %arg13[%c0_71, %c0_72] : memref<1x256xf32, #tpu.memory_space<vmem>>, vector<1x256xf32>
    %96 = vector.broadcast %95 : vector<1x256xf32> to vector<160x256xf32>
    %97 = arith.addf %94, %96 : vector<160x256xf32>
    %cst_73 = arith.constant 0.000000e+00 : f32
    %98 = vector.broadcast %cst_73 : f32 to vector<160x256xf32>
    %99 = arith.maximumf %97, %98 : vector<160x256xf32>
    %c0_74 = arith.constant 0 : index
    %c0_75 = arith.constant 0 : index
    %100 = vector.load %arg4[%c0_74, %c0_75] : memref<160x1xf32, #tpu.memory_space<vmem>>, vector<160x1xf32>
    %101 = vector.broadcast %100 : vector<160x1xf32> to vector<160x256xf32>
    %102 = arith.mulf %99, %101 : vector<160x256xf32>
    %cst_76 = arith.constant 0.000000e+00 : f32
    %103 = vector.broadcast %cst_76 : f32 to vector<8x256xf32>
    %104 = vector.extract_strided_slice %102 {offsets = [0, 0], sizes = [152, 256], strides = [1, 1]} : vector<160x256xf32> to vector<152x256xf32>
    %105 = tpu.concatenate %103, %104 in 0 : vector<8x256xf32>, vector<152x256xf32> -> vector<160x256xf32>
    %106 = arith.maximumf %105, %102 : vector<160x256xf32>
    %c0_77 = arith.constant 0 : index
    %c0_78 = arith.constant 0 : index
    %107 = vector.load %arg23[%c0_77, %c0_78] : memref<160x256xf32, #tpu.memory_space<vmem>>, vector<160x256xf32>
    tpu.vector_store %arg23[%c0_77, %c0_78], %106 {strides = array<i32>} : memref<160x256xf32, #tpu.memory_space<vmem>>, vector<160x256xf32>,
    %cst_79 = arith.constant 0.000000e+00 : f32
    %108 = vector.broadcast %cst_79 : f32 to vector<8x512xf32>
    %c0_80 = arith.constant 0 : index
    %c0_81 = arith.constant 0 : index
    %109 = vector.load %arg14[%c0_80, %c0_81] : memref<1x512xf32, #tpu.memory_space<vmem>>, vector<1x512xf32>
    %110 = vector.broadcast %109 : vector<1x512xf32> to vector<8x512xf32>
    %111 = arith.addf %108, %110 : vector<8x512xf32>
    %c0_i32_82 = arith.constant 0 : i32
    %c0_i32_83 = arith.constant 0 : i32
    %c0_i32_84 = arith.constant 0 : i32
    %c0_i32_85 = arith.constant 0 : i32
    %c0_i32_86 = arith.constant 0 : i32
    %112 = tpu.memref_slice %arg21[%c0_i32_84, %c0_i32_85, %c0_i32_86] : memref<20x256x512xf32, #tpu.memory_space<any>> -> memref<5x256x512xf32, #tpu.memory_space<any>>
    %c0_i32_87 = arith.constant 0 : i32
    %c0_i32_88 = arith.constant 0 : i32
    %c0_i32_89 = arith.constant 0 : i32
    %113 = tpu.memref_slice %arg24[%c0_i32_82, %c0_i32_87, %c0_i32_88, %c0_i32_89] : memref<2x5x256x512xf32, #tpu.memory_space<vmem>> -> memref<1x5x256x512xf32, #tpu.memory_space<vmem>>
    %114 = tpu.memref_squeeze %113 : memref<1x5x256x512xf32, #tpu.memory_space<vmem>> -> memref<5x256x512xf32, #tpu.memory_space<vmem>>
    %115 = tpu.memref_slice %arg25[%c0_i32_83] : memref<2x!tpu.dma_semaphore, #tpu.memory_space<semaphore_mem>> -> memref<1x!tpu.dma_semaphore, #tpu.memory_space<semaphore_mem>>
    %116 = tpu.memref_squeeze %115 : memref<1x!tpu.dma_semaphore, #tpu.memory_space<semaphore_mem>> -> memref<!tpu.dma_semaphore, #tpu.memory_space<semaphore_mem>>
    tpu.wait_dma2 semaphore(%116 : memref<!tpu.dma_semaphore, #tpu.memory_space<semaphore_mem>>) src(%112 : memref<5x256x512xf32, #tpu.memory_space<any>>) dst(%114 : memref<5x256x512xf32, #tpu.memory_space<vmem>>)
    %c0_90 = arith.constant 0 : index
    %c0_91 = arith.constant 0 : index
    %117 = vector.load %arg23[%c0_90, %c0_91] : memref<160x256xf32, #tpu.memory_space<vmem>>, vector<8x256xf32>
    %c0_92 = arith.constant 0 : index
    %c0_93 = arith.constant 0 : index
    %c0_94 = arith.constant 0 : index
    %c0_95 = arith.constant 0 : index
    %118 = vector.load %arg24[%c0_92, %c0_93, %c0_94, %c0_95] : memref<2x5x256x512xf32, #tpu.memory_space<vmem>>, vector<1x1x256x512xf32>
    %119 = vector.shape_cast %118 : vector<1x1x256x512xf32> to vector<256x512xf32>
    %cst_96 = arith.constant dense<0.000000e+00> : vector<8x512xf32>
    %120 = tpu.matmul %117, %119, %cst_96 {dimension_numbers = #tpu.dot_dimension_numbers<[1], [0], [0], [1], [0, 0, 1, 1], [], []>} : vector<8x256xf32>, vector<256x512xf32>, vector<8x512xf32> -> vector<8x512xf32>
    %121 = arith.addf %111, %120 : vector<8x512xf32>
    %c8 = arith.constant 8 : index
    %c0_97 = arith.constant 0 : index
    %122 = vector.load %arg23[%c8, %c0_97] : memref<160x256xf32, #tpu.memory_space<vmem>>, vector<8x256xf32>
    %c0_98 = arith.constant 0 : index
    %c1_99 = arith.constant 1 : index
    %c0_100 = arith.constant 0 : index
    %c0_101 = arith.constant 0 : index
    %123 = vector.load %arg24[%c0_98, %c1_99, %c0_100, %c0_101] : memref<2x5x256x512xf32, #tpu.memory_space<vmem>>, vector<1x1x256x512xf32>
    %124 = vector.shape_cast %123 : vector<1x1x256x512xf32> to vector<256x512xf32>
    %cst_102 = arith.constant dense<0.000000e+00> : vector<8x512xf32>
    %125 = tpu.matmul %122, %124, %cst_102 {dimension_numbers = #tpu.dot_dimension_numbers<[1], [0], [0], [1], [0, 0, 1, 1], [], []>} : vector<8x256xf32>, vector<256x512xf32>, vector<8x512xf32> -> vector<8x512xf32>
    %126 = arith.addf %121, %125 : vector<8x512xf32>
    %c16 = arith.constant 16 : index
    %c0_103 = arith.constant 0 : index
    %127 = vector.load %arg23[%c16, %c0_103] : memref<160x256xf32, #tpu.memory_space<vmem>>, vector<8x256xf32>
    %c0_104 = arith.constant 0 : index
    %c2_105 = arith.constant 2 : index
    %c0_106 = arith.constant 0 : index
    %c0_107 = arith.constant 0 : index
    %128 = vector.load %arg24[%c0_104, %c2_105, %c0_106, %c0_107] : memref<2x5x256x512xf32, #tpu.memory_space<vmem>>, vector<1x1x256x512xf32>
    %129 = vector.shape_cast %128 : vector<1x1x256x512xf32> to vector<256x512xf32>
    %cst_108 = arith.constant dense<0.000000e+00> : vector<8x512xf32>
    %130 = tpu.matmul %127, %129, %cst_108 {dimension_numbers = #tpu.dot_dimension_numbers<[1], [0], [0], [1], [0, 0, 1, 1], [], []>} : vector<8x256xf32>, vector<256x512xf32>, vector<8x512xf32> -> vector<8x512xf32>
    %131 = arith.addf %126, %130 : vector<8x512xf32>
    %c24 = arith.constant 24 : index
    %c0_109 = arith.constant 0 : index
    %132 = vector.load %arg23[%c24, %c0_109] : memref<160x256xf32, #tpu.memory_space<vmem>>, vector<8x256xf32>
    %c0_110 = arith.constant 0 : index
    %c3 = arith.constant 3 : index
    %c0_111 = arith.constant 0 : index
    %c0_112 = arith.constant 0 : index
    %133 = vector.load %arg24[%c0_110, %c3, %c0_111, %c0_112] : memref<2x5x256x512xf32, #tpu.memory_space<vmem>>, vector<1x1x256x512xf32>
    %134 = vector.shape_cast %133 : vector<1x1x256x512xf32> to vector<256x512xf32>
    %cst_113 = arith.constant dense<0.000000e+00> : vector<8x512xf32>
    %135 = tpu.matmul %132, %134, %cst_113 {dimension_numbers = #tpu.dot_dimension_numbers<[1], [0], [0], [1], [0, 0, 1, 1], [], []>} : vector<8x256xf32>, vector<256x512xf32>, vector<8x512xf32> -> vector<8x512xf32>
    %136 = arith.addf %131, %135 : vector<8x512xf32>
    %c32 = arith.constant 32 : index
    %c0_114 = arith.constant 0 : index
    %137 = vector.load %arg23[%c32, %c0_114] : memref<160x256xf32, #tpu.memory_space<vmem>>, vector<8x256xf32>
    %c0_115 = arith.constant 0 : index
    %c4 = arith.constant 4 : index
    %c0_116 = arith.constant 0 : index
    %c0_117 = arith.constant 0 : index
    %138 = vector.load %arg24[%c0_115, %c4, %c0_116, %c0_117] : memref<2x5x256x512xf32, #tpu.memory_space<vmem>>, vector<1x1x256x512xf32>
    %139 = vector.shape_cast %138 : vector<1x1x256x512xf32> to vector<256x512xf32>
    %cst_118 = arith.constant dense<0.000000e+00> : vector<8x512xf32>
    %140 = tpu.matmul %137, %139, %cst_118 {dimension_numbers = #tpu.dot_dimension_numbers<[1], [0], [0], [1], [0, 0, 1, 1], [], []>} : vector<8x256xf32>, vector<256x512xf32>, vector<8x512xf32> -> vector<8x512xf32>
    %141 = arith.addf %136, %140 : vector<8x512xf32>
    %c0_i32_119 = arith.constant 0 : i32
    %c0_i32_120 = arith.constant 0 : i32
    %c10_i32 = arith.constant 10 : i32
    %c0_i32_121 = arith.constant 0 : i32
    %c0_i32_122 = arith.constant 0 : i32
    %142 = tpu.memref_slice %arg21[%c10_i32, %c0_i32_121, %c0_i32_122] : memref<20x256x512xf32, #tpu.memory_space<any>> -> memref<5x256x512xf32, #tpu.memory_space<any>>
    %c0_i32_123 = arith.constant 0 : i32
    %c0_i32_124 = arith.constant 0 : i32
    %c0_i32_125 = arith.constant 0 : i32
    %143 = tpu.memref_slice %arg24[%c0_i32_119, %c0_i32_123, %c0_i32_124, %c0_i32_125] : memref<2x5x256x512xf32, #tpu.memory_space<vmem>> -> memref<1x5x256x512xf32, #tpu.memory_space<vmem>>
    %144 = tpu.memref_squeeze %143 : memref<1x5x256x512xf32, #tpu.memory_space<vmem>> -> memref<5x256x512xf32, #tpu.memory_space<vmem>>
    %145 = tpu.memref_slice %arg25[%c0_i32_120] : memref<2x!tpu.dma_semaphore, #tpu.memory_space<semaphore_mem>> -> memref<1x!tpu.dma_semaphore, #tpu.memory_space<semaphore_mem>>
    %146 = tpu.memref_squeeze %145 : memref<1x!tpu.dma_semaphore, #tpu.memory_space<semaphore_mem>> -> memref<!tpu.dma_semaphore, #tpu.memory_space<semaphore_mem>>
    tpu.enqueue_dma source(%142 : memref<5x256x512xf32, #tpu.memory_space<any>>) target(%144 : memref<5x256x512xf32, #tpu.memory_space<vmem>>) target_semaphore(%146 : memref<!tpu.dma_semaphore, #tpu.memory_space<semaphore_mem>>)
    %c1_i32_126 = arith.constant 1 : i32
    %c1_i32_127 = arith.constant 1 : i32
    %c5_i32_128 = arith.constant 5 : i32
    %c0_i32_129 = arith.constant 0 : i32
    %c0_i32_130 = arith.constant 0 : i32
    %147 = tpu.memref_slice %arg21[%c5_i32_128, %c0_i32_129, %c0_i32_130] : memref<20x256x512xf32, #tpu.memory_space<any>> -> memref<5x256x512xf32, #tpu.memory_space<any>>
    %c0_i32_131 = arith.constant 0 : i32
    %c0_i32_132 = arith.constant 0 : i32
    %c0_i32_133 = arith.constant 0 : i32
    %148 = tpu.memref_slice %arg24[%c1_i32_126, %c0_i32_131, %c0_i32_132, %c0_i32_133] : memref<2x5x256x512xf32, #tpu.memory_space<vmem>> -> memref<1x5x256x512xf32, #tpu.memory_space<vmem>>
    %149 = tpu.memref_squeeze %148 : memref<1x5x256x512xf32, #tpu.memory_space<vmem>> -> memref<5x256x512xf32, #tpu.memory_space<vmem>>
    %150 = tpu.memref_slice %arg25[%c1_i32_127] : memref<2x!tpu.dma_semaphore, #tpu.memory_space<semaphore_mem>> -> memref<1x!tpu.dma_semaphore, #tpu.memory_space<semaphore_mem>>
    %151 = tpu.memref_squeeze %150 : memref<1x!tpu.dma_semaphore, #tpu.memory_space<semaphore_mem>> -> memref<!tpu.dma_semaphore, #tpu.memory_space<semaphore_mem>>
    tpu.wait_dma2 semaphore(%151 : memref<!tpu.dma_semaphore, #tpu.memory_space<semaphore_mem>>) src(%147 : memref<5x256x512xf32, #tpu.memory_space<any>>) dst(%149 : memref<5x256x512xf32, #tpu.memory_space<vmem>>)
    %c40 = arith.constant 40 : index
    %c0_134 = arith.constant 0 : index
    %152 = vector.load %arg23[%c40, %c0_134] : memref<160x256xf32, #tpu.memory_space<vmem>>, vector<8x256xf32>
    %c1_135 = arith.constant 1 : index
    %c0_136 = arith.constant 0 : index
    %c0_137 = arith.constant 0 : index
    %c0_138 = arith.constant 0 : index
    %153 = vector.load %arg24[%c1_135, %c0_136, %c0_137, %c0_138] : memref<2x5x256x512xf32, #tpu.memory_space<vmem>>, vector<1x1x256x512xf32>
    %154 = vector.shape_cast %153 : vector<1x1x256x512xf32> to vector<256x512xf32>
    %cst_139 = arith.constant dense<0.000000e+00> : vector<8x512xf32>
    %155 = tpu.matmul %152, %154, %cst_139 {dimension_numbers = #tpu.dot_dimension_numbers<[1], [0], [0], [1], [0, 0, 1, 1], [], []>} : vector<8x256xf32>, vector<256x512xf32>, vector<8x512xf32> -> vector<8x512xf32>
    %156 = arith.addf %141, %155 : vector<8x512xf32>
    %c48 = arith.constant 48 : index
    %c0_140 = arith.constant 0 : index
    %157 = vector.load %arg23[%c48, %c0_140] : memref<160x256xf32, #tpu.memory_space<vmem>>, vector<8x256xf32>
    %c1_141 = arith.constant 1 : index
    %c1_142 = arith.constant 1 : index
    %c0_143 = arith.constant 0 : index
    %c0_144 = arith.constant 0 : index
    %158 = vector.load %arg24[%c1_141, %c1_142, %c0_143, %c0_144] : memref<2x5x256x512xf32, #tpu.memory_space<vmem>>, vector<1x1x256x512xf32>
    %159 = vector.shape_cast %158 : vector<1x1x256x512xf32> to vector<256x512xf32>
    %cst_145 = arith.constant dense<0.000000e+00> : vector<8x512xf32>
    %160 = tpu.matmul %157, %159, %cst_145 {dimension_numbers = #tpu.dot_dimension_numbers<[1], [0], [0], [1], [0, 0, 1, 1], [], []>} : vector<8x256xf32>, vector<256x512xf32>, vector<8x512xf32> -> vector<8x512xf32>
    %161 = arith.addf %156, %160 : vector<8x512xf32>
    %c56 = arith.constant 56 : index
    %c0_146 = arith.constant 0 : index
    %162 = vector.load %arg23[%c56, %c0_146] : memref<160x256xf32, #tpu.memory_space<vmem>>, vector<8x256xf32>
    %c1_147 = arith.constant 1 : index
    %c2_148 = arith.constant 2 : index
    %c0_149 = arith.constant 0 : index
    %c0_150 = arith.constant 0 : index
    %163 = vector.load %arg24[%c1_147, %c2_148, %c0_149, %c0_150] : memref<2x5x256x512xf32, #tpu.memory_space<vmem>>, vector<1x1x256x512xf32>
    %164 = vector.shape_cast %163 : vector<1x1x256x512xf32> to vector<256x512xf32>
    %cst_151 = arith.constant dense<0.000000e+00> : vector<8x512xf32>
    %165 = tpu.matmul %162, %164, %cst_151 {dimension_numbers = #tpu.dot_dimension_numbers<[1], [0], [0], [1], [0, 0, 1, 1], [], []>} : vector<8x256xf32>, vector<256x512xf32>, vector<8x512xf32> -> vector<8x512xf32>
    %166 = arith.addf %161, %165 : vector<8x512xf32>
    %c64 = arith.constant 64 : index
    %c0_152 = arith.constant 0 : index
    %167 = vector.load %arg23[%c64, %c0_152] : memref<160x256xf32, #tpu.memory_space<vmem>>, vector<8x256xf32>
    %c1_153 = arith.constant 1 : index
    %c3_154 = arith.constant 3 : index
    %c0_155 = arith.constant 0 : index
    %c0_156 = arith.constant 0 : index
    %168 = vector.load %arg24[%c1_153, %c3_154, %c0_155, %c0_156] : memref<2x5x256x512xf32, #tpu.memory_space<vmem>>, vector<1x1x256x512xf32>
    %169 = vector.shape_cast %168 : vector<1x1x256x512xf32> to vector<256x512xf32>
    %cst_157 = arith.constant dense<0.000000e+00> : vector<8x512xf32>
    %170 = tpu.matmul %167, %169, %cst_157 {dimension_numbers = #tpu.dot_dimension_numbers<[1], [0], [0], [1], [0, 0, 1, 1], [], []>} : vector<8x256xf32>, vector<256x512xf32>, vector<8x512xf32> -> vector<8x512xf32>
    %171 = arith.addf %166, %170 : vector<8x512xf32>
    %c72 = arith.constant 72 : index
    %c0_158 = arith.constant 0 : index
    %172 = vector.load %arg23[%c72, %c0_158] : memref<160x256xf32, #tpu.memory_space<vmem>>, vector<8x256xf32>
    %c1_159 = arith.constant 1 : index
    %c4_160 = arith.constant 4 : index
    %c0_161 = arith.constant 0 : index
    %c0_162 = arith.constant 0 : index
    %173 = vector.load %arg24[%c1_159, %c4_160, %c0_161, %c0_162] : memref<2x5x256x512xf32, #tpu.memory_space<vmem>>, vector<1x1x256x512xf32>
    %174 = vector.shape_cast %173 : vector<1x1x256x512xf32> to vector<256x512xf32>
    %cst_163 = arith.constant dense<0.000000e+00> : vector<8x512xf32>
    %175 = tpu.matmul %172, %174, %cst_163 {dimension_numbers = #tpu.dot_dimension_numbers<[1], [0], [0], [1], [0, 0, 1, 1], [], []>} : vector<8x256xf32>, vector<256x512xf32>, vector<8x512xf32> -> vector<8x512xf32>
    %176 = arith.addf %171, %175 : vector<8x512xf32>
    %c1_i32_164 = arith.constant 1 : i32
    %c1_i32_165 = arith.constant 1 : i32
    %c15_i32 = arith.constant 15 : i32
    %c0_i32_166 = arith.constant 0 : i32
    %c0_i32_167 = arith.constant 0 : i32
    %177 = tpu.memref_slice %arg21[%c15_i32, %c0_i32_166, %c0_i32_167] : memref<20x256x512xf32, #tpu.memory_space<any>> -> memref<5x256x512xf32, #tpu.memory_space<any>>
    %c0_i32_168 = arith.constant 0 : i32
    %c0_i32_169 = arith.constant 0 : i32
    %c0_i32_170 = arith.constant 0 : i32
    %178 = tpu.memref_slice %arg24[%c1_i32_164, %c0_i32_168, %c0_i32_169, %c0_i32_170] : memref<2x5x256x512xf32, #tpu.memory_space<vmem>> -> memref<1x5x256x512xf32, #tpu.memory_space<vmem>>
    %179 = tpu.memref_squeeze %178 : memref<1x5x256x512xf32, #tpu.memory_space<vmem>> -> memref<5x256x512xf32, #tpu.memory_space<vmem>>
    %180 = tpu.memref_slice %arg25[%c1_i32_165] : memref<2x!tpu.dma_semaphore, #tpu.memory_space<semaphore_mem>> -> memref<1x!tpu.dma_semaphore, #tpu.memory_space<semaphore_mem>>
    %181 = tpu.memref_squeeze %180 : memref<1x!tpu.dma_semaphore, #tpu.memory_space<semaphore_mem>> -> memref<!tpu.dma_semaphore, #tpu.memory_space<semaphore_mem>>
    tpu.enqueue_dma source(%177 : memref<5x256x512xf32, #tpu.memory_space<any>>) target(%179 : memref<5x256x512xf32, #tpu.memory_space<vmem>>) target_semaphore(%181 : memref<!tpu.dma_semaphore, #tpu.memory_space<semaphore_mem>>)
    %c0_i32_171 = arith.constant 0 : i32
    %c0_i32_172 = arith.constant 0 : i32
    %c10_i32_173 = arith.constant 10 : i32
    %c0_i32_174 = arith.constant 0 : i32
    %c0_i32_175 = arith.constant 0 : i32
    %182 = tpu.memref_slice %arg21[%c10_i32_173, %c0_i32_174, %c0_i32_175] : memref<20x256x512xf32, #tpu.memory_space<any>> -> memref<5x256x512xf32, #tpu.memory_space<any>>
    %c0_i32_176 = arith.constant 0 : i32
    %c0_i32_177 = arith.constant 0 : i32
    %c0_i32_178 = arith.constant 0 : i32
    %183 = tpu.memref_slice %arg24[%c0_i32_171, %c0_i32_176, %c0_i32_177, %c0_i32_178] : memref<2x5x256x512xf32, #tpu.memory_space<vmem>> -> memref<1x5x256x512xf32, #tpu.memory_space<vmem>>
    %184 = tpu.memref_squeeze %183 : memref<1x5x256x512xf32, #tpu.memory_space<vmem>> -> memref<5x256x512xf32, #tpu.memory_space<vmem>>
    %185 = tpu.memref_slice %arg25[%c0_i32_172] : memref<2x!tpu.dma_semaphore, #tpu.memory_space<semaphore_mem>> -> memref<1x!tpu.dma_semaphore, #tpu.memory_space<semaphore_mem>>
    %186 = tpu.memref_squeeze %185 : memref<1x!tpu.dma_semaphore, #tpu.memory_space<semaphore_mem>> -> memref<!tpu.dma_semaphore, #tpu.memory_space<semaphore_mem>>
    tpu.wait_dma2 semaphore(%186 : memref<!tpu.dma_semaphore, #tpu.memory_space<semaphore_mem>>) src(%182 : memref<5x256x512xf32, #tpu.memory_space<any>>) dst(%184 : memref<5x256x512xf32, #tpu.memory_space<vmem>>)
    %c80 = arith.constant 80 : index
    %c0_179 = arith.constant 0 : index
    %187 = vector.load %arg23[%c80, %c0_179] : memref<160x256xf32, #tpu.memory_space<vmem>>, vector<8x256xf32>
    %c0_180 = arith.constant 0 : index
    %c0_181 = arith.constant 0 : index
    %c0_182 = arith.constant 0 : index
    %c0_183 = arith.constant 0 : index
    %188 = vector.load %arg24[%c0_180, %c0_181, %c0_182, %c0_183] : memref<2x5x256x512xf32, #tpu.memory_space<vmem>>, vector<1x1x256x512xf32>
    %189 = vector.shape_cast %188 : vector<1x1x256x512xf32> to vector<256x512xf32>
    %cst_184 = arith.constant dense<0.000000e+00> : vector<8x512xf32>
    %190 = tpu.matmul %187, %189, %cst_184 {dimension_numbers = #tpu.dot_dimension_numbers<[1], [0], [0], [1], [0, 0, 1, 1], [], []>} : vector<8x256xf32>, vector<256x512xf32>, vector<8x512xf32> -> vector<8x512xf32>
    %191 = arith.addf %176, %190 : vector<8x512xf32>
    %c88 = arith.constant 88 : index
    %c0_185 = arith.constant 0 : index
    %192 = vector.load %arg23[%c88, %c0_185] : memref<160x256xf32, #tpu.memory_space<vmem>>, vector<8x256xf32>
    %c0_186 = arith.constant 0 : index
    %c1_187 = arith.constant 1 : index
    %c0_188 = arith.constant 0 : index
    %c0_189 = arith.constant 0 : index
    %193 = vector.load %arg24[%c0_186, %c1_187, %c0_188, %c0_189] : memref<2x5x256x512xf32, #tpu.memory_space<vmem>>, vector<1x1x256x512xf32>
    %194 = vector.shape_cast %193 : vector<1x1x256x512xf32> to vector<256x512xf32>
    %cst_190 = arith.constant dense<0.000000e+00> : vector<8x512xf32>
    %195 = tpu.matmul %192, %194, %cst_190 {dimension_numbers = #tpu.dot_dimension_numbers<[1], [0], [0], [1], [0, 0, 1, 1], [], []>} : vector<8x256xf32>, vector<256x512xf32>, vector<8x512xf32> -> vector<8x512xf32>
    %196 = arith.addf %191, %195 : vector<8x512xf32>
    %c96 = arith.constant 96 : index
    %c0_191 = arith.constant 0 : index
    %197 = vector.load %arg23[%c96, %c0_191] : memref<160x256xf32, #tpu.memory_space<vmem>>, vector<8x256xf32>
    %c0_192 = arith.constant 0 : index
    %c2_193 = arith.constant 2 : index
    %c0_194 = arith.constant 0 : index
    %c0_195 = arith.constant 0 : index
    %198 = vector.load %arg24[%c0_192, %c2_193, %c0_194, %c0_195] : memref<2x5x256x512xf32, #tpu.memory_space<vmem>>, vector<1x1x256x512xf32>
    %199 = vector.shape_cast %198 : vector<1x1x256x512xf32> to vector<256x512xf32>
    %cst_196 = arith.constant dense<0.000000e+00> : vector<8x512xf32>
    %200 = tpu.matmul %197, %199, %cst_196 {dimension_numbers = #tpu.dot_dimension_numbers<[1], [0], [0], [1], [0, 0, 1, 1], [], []>} : vector<8x256xf32>, vector<256x512xf32>, vector<8x512xf32> -> vector<8x512xf32>
    %201 = arith.addf %196, %200 : vector<8x512xf32>
    %c104 = arith.constant 104 : index
    %c0_197 = arith.constant 0 : index
    %202 = vector.load %arg23[%c104, %c0_197] : memref<160x256xf32, #tpu.memory_space<vmem>>, vector<8x256xf32>
    %c0_198 = arith.constant 0 : index
    %c3_199 = arith.constant 3 : index
    %c0_200 = arith.constant 0 : index
    %c0_201 = arith.constant 0 : index
    %203 = vector.load %arg24[%c0_198, %c3_199, %c0_200, %c0_201] : memref<2x5x256x512xf32, #tpu.memory_space<vmem>>, vector<1x1x256x512xf32>
    %204 = vector.shape_cast %203 : vector<1x1x256x512xf32> to vector<256x512xf32>
    %cst_202 = arith.constant dense<0.000000e+00> : vector<8x512xf32>
    %205 = tpu.matmul %202, %204, %cst_202 {dimension_numbers = #tpu.dot_dimension_numbers<[1], [0], [0], [1], [0, 0, 1, 1], [], []>} : vector<8x256xf32>, vector<256x512xf32>, vector<8x512xf32> -> vector<8x512xf32>
    %206 = arith.addf %201, %205 : vector<8x512xf32>
    %c112 = arith.constant 112 : index
    %c0_203 = arith.constant 0 : index
    %207 = vector.load %arg23[%c112, %c0_203] : memref<160x256xf32, #tpu.memory_space<vmem>>, vector<8x256xf32>
    %c0_204 = arith.constant 0 : index
    %c4_205 = arith.constant 4 : index
    %c0_206 = arith.constant 0 : index
    %c0_207 = arith.constant 0 : index
    %208 = vector.load %arg24[%c0_204, %c4_205, %c0_206, %c0_207] : memref<2x5x256x512xf32, #tpu.memory_space<vmem>>, vector<1x1x256x512xf32>
    %209 = vector.shape_cast %208 : vector<1x1x256x512xf32> to vector<256x512xf32>
    %cst_208 = arith.constant dense<0.000000e+00> : vector<8x512xf32>
    %210 = tpu.matmul %207, %209, %cst_208 {dimension_numbers = #tpu.dot_dimension_numbers<[1], [0], [0], [1], [0, 0, 1, 1], [], []>} : vector<8x256xf32>, vector<256x512xf32>, vector<8x512xf32> -> vector<8x512xf32>
    %211 = arith.addf %206, %210 : vector<8x512xf32>
    %c1_i32_209 = arith.constant 1 : i32
    %c1_i32_210 = arith.constant 1 : i32
    %c15_i32_211 = arith.constant 15 : i32
    %c0_i32_212 = arith.constant 0 : i32
    %c0_i32_213 = arith.constant 0 : i32
    %212 = tpu.memref_slice %arg21[%c15_i32_211, %c0_i32_212, %c0_i32_213] : memref<20x256x512xf32, #tpu.memory_space<any>> -> memref<5x256x512xf32, #tpu.memory_space<any>>
    %c0_i32_214 = arith.constant 0 : i32
    %c0_i32_215 = arith.constant 0 : i32
    %c0_i32_216 = arith.constant 0 : i32
    %213 = tpu.memref_slice %arg24[%c1_i32_209, %c0_i32_214, %c0_i32_215, %c0_i32_216] : memref<2x5x256x512xf32, #tpu.memory_space<vmem>> -> memref<1x5x256x512xf32, #tpu.memory_space<vmem>>
    %214 = tpu.memref_squeeze %213 : memref<1x5x256x512xf32, #tpu.memory_space<vmem>> -> memref<5x256x512xf32, #tpu.memory_space<vmem>>
    %215 = tpu.memref_slice %arg25[%c1_i32_210] : memref<2x!tpu.dma_semaphore, #tpu.memory_space<semaphore_mem>> -> memref<1x!tpu.dma_semaphore, #tpu.memory_space<semaphore_mem>>
    %216 = tpu.memref_squeeze %215 : memref<1x!tpu.dma_semaphore, #tpu.memory_space<semaphore_mem>> -> memref<!tpu.dma_semaphore, #tpu.memory_space<semaphore_mem>>
    tpu.wait_dma2 semaphore(%216 : memref<!tpu.dma_semaphore, #tpu.memory_space<semaphore_mem>>) src(%212 : memref<5x256x512xf32, #tpu.memory_space<any>>) dst(%214 : memref<5x256x512xf32, #tpu.memory_space<vmem>>)
    %c120 = arith.constant 120 : index
    %c0_217 = arith.constant 0 : index
    %217 = vector.load %arg23[%c120, %c0_217] : memref<160x256xf32, #tpu.memory_space<vmem>>, vector<8x256xf32>
    %c1_218 = arith.constant 1 : index
    %c0_219 = arith.constant 0 : index
    %c0_220 = arith.constant 0 : index
    %c0_221 = arith.constant 0 : index
    %218 = vector.load %arg24[%c1_218, %c0_219, %c0_220, %c0_221] : memref<2x5x256x512xf32, #tpu.memory_space<vmem>>, vector<1x1x256x512xf32>
    %219 = vector.shape_cast %218 : vector<1x1x256x512xf32> to vector<256x512xf32>
    %cst_222 = arith.constant dense<0.000000e+00> : vector<8x512xf32>
    %220 = tpu.matmul %217, %219, %cst_222 {dimension_numbers = #tpu.dot_dimension_numbers<[1], [0], [0], [1], [0, 0, 1, 1], [], []>} : vector<8x256xf32>, vector<256x512xf32>, vector<8x512xf32> -> vector<8x512xf32>
    %221 = arith.addf %211, %220 : vector<8x512xf32>
    %c128 = arith.constant 128 : index
    %c0_223 = arith.constant 0 : index
    %222 = vector.load %arg23[%c128, %c0_223] : memref<160x256xf32, #tpu.memory_space<vmem>>, vector<8x256xf32>
    %c1_224 = arith.constant 1 : index
    %c1_225 = arith.constant 1 : index
    %c0_226 = arith.constant 0 : index
    %c0_227 = arith.constant 0 : index
    %223 = vector.load %arg24[%c1_224, %c1_225, %c0_226, %c0_227] : memref<2x5x256x512xf32, #tpu.memory_space<vmem>>, vector<1x1x256x512xf32>
    %224 = vector.shape_cast %223 : vector<1x1x256x512xf32> to vector<256x512xf32>
    %cst_228 = arith.constant dense<0.000000e+00> : vector<8x512xf32>
    %225 = tpu.matmul %222, %224, %cst_228 {dimension_numbers = #tpu.dot_dimension_numbers<[1], [0], [0], [1], [0, 0, 1, 1], [], []>} : vector<8x256xf32>, vector<256x512xf32>, vector<8x512xf32> -> vector<8x512xf32>
    %226 = arith.addf %221, %225 : vector<8x512xf32>
    %c136 = arith.constant 136 : index
    %c0_229 = arith.constant 0 : index
    %227 = vector.load %arg23[%c136, %c0_229] : memref<160x256xf32, #tpu.memory_space<vmem>>, vector<8x256xf32>
    %c1_230 = arith.constant 1 : index
    %c2_231 = arith.constant 2 : index
    %c0_232 = arith.constant 0 : index
    %c0_233 = arith.constant 0 : index
    %228 = vector.load %arg24[%c1_230, %c2_231, %c0_232, %c0_233] : memref<2x5x256x512xf32, #tpu.memory_space<vmem>>, vector<1x1x256x512xf32>
    %229 = vector.shape_cast %228 : vector<1x1x256x512xf32> to vector<256x512xf32>
    %cst_234 = arith.constant dense<0.000000e+00> : vector<8x512xf32>
    %230 = tpu.matmul %227, %229, %cst_234 {dimension_numbers = #tpu.dot_dimension_numbers<[1], [0], [0], [1], [0, 0, 1, 1], [], []>} : vector<8x256xf32>, vector<256x512xf32>, vector<8x512xf32> -> vector<8x512xf32>
    %231 = arith.addf %226, %230 : vector<8x512xf32>
    %c144 = arith.constant 144 : index
    %c0_235 = arith.constant 0 : index
    %232 = vector.load %arg23[%c144, %c0_235] : memref<160x256xf32, #tpu.memory_space<vmem>>, vector<8x256xf32>
    %c1_236 = arith.constant 1 : index
    %c3_237 = arith.constant 3 : index
    %c0_238 = arith.constant 0 : index
    %c0_239 = arith.constant 0 : index
    %233 = vector.load %arg24[%c1_236, %c3_237, %c0_238, %c0_239] : memref<2x5x256x512xf32, #tpu.memory_space<vmem>>, vector<1x1x256x512xf32>
    %234 = vector.shape_cast %233 : vector<1x1x256x512xf32> to vector<256x512xf32>
    %cst_240 = arith.constant dense<0.000000e+00> : vector<8x512xf32>
    %235 = tpu.matmul %232, %234, %cst_240 {dimension_numbers = #tpu.dot_dimension_numbers<[1], [0], [0], [1], [0, 0, 1, 1], [], []>} : vector<8x256xf32>, vector<256x512xf32>, vector<8x512xf32> -> vector<8x512xf32>
    %236 = arith.addf %231, %235 : vector<8x512xf32>
    %c152 = arith.constant 152 : index
    %c0_241 = arith.constant 0 : index
    %237 = vector.load %arg23[%c152, %c0_241] : memref<160x256xf32, #tpu.memory_space<vmem>>, vector<8x256xf32>
    %c1_242 = arith.constant 1 : index
    %c4_243 = arith.constant 4 : index
    %c0_244 = arith.constant 0 : index
    %c0_245 = arith.constant 0 : index
    %238 = vector.load %arg24[%c1_242, %c4_243, %c0_244, %c0_245] : memref<2x5x256x512xf32, #tpu.memory_space<vmem>>, vector<1x1x256x512xf32>
    %239 = vector.shape_cast %238 : vector<1x1x256x512xf32> to vector<256x512xf32>
    %cst_246 = arith.constant dense<0.000000e+00> : vector<8x512xf32>
    %240 = tpu.matmul %237, %239, %cst_246 {dimension_numbers = #tpu.dot_dimension_numbers<[1], [0], [0], [1], [0, 0, 1, 1], [], []>} : vector<8x256xf32>, vector<256x512xf32>, vector<8x512xf32> -> vector<8x512xf32>
    %241 = arith.addf %236, %240 : vector<8x512xf32>
    %cst_247 = arith.constant 0.000000e+00 : f32
    %242 = vector.broadcast %cst_247 : f32 to vector<8x512xf32>
    %243 = arith.maximumf %241, %242 : vector<8x512xf32>
    %c0_248 = arith.constant 0 : index
    %c0_249 = arith.constant 0 : index
    %244 = vector.load %arg15[%c0_248, %c0_249] : memref<512x256xf32, #tpu.memory_space<vmem>>, vector<512x256xf32>
    %cst_250 = arith.constant dense<0.000000e+00> : vector<8x256xf32>
    %245 = tpu.matmul %243, %244, %cst_250 {dimension_numbers = #tpu.dot_dimension_numbers<[1], [0], [0], [1], [0, 0, 1, 1], [], []>} : vector<8x512xf32>, vector<512x256xf32>, vector<8x256xf32> -> vector<8x256xf32>
    %c0_251 = arith.constant 0 : index
    %c0_252 = arith.constant 0 : index
    %246 = vector.load %arg16[%c0_251, %c0_252] : memref<1x256xf32, #tpu.memory_space<vmem>>, vector<1x256xf32>
    %247 = vector.broadcast %246 : vector<1x256xf32> to vector<8x256xf32>
    %248 = arith.addf %245, %247 : vector<8x256xf32>
    %cst_253 = arith.constant 0.000000e+00 : f32
    %249 = vector.broadcast %cst_253 : f32 to vector<8x256xf32>
    %250 = arith.maximumf %248, %249 : vector<8x256xf32>
    %c0_254 = arith.constant 0 : index
    %c0_255 = arith.constant 0 : index
    %251 = vector.load %arg17[%c0_254, %c0_255] : memref<256x128xf32, #tpu.memory_space<vmem>>, vector<256x128xf32>
    %cst_256 = arith.constant dense<0.000000e+00> : vector<8x128xf32>
    %252 = tpu.matmul %250, %251, %cst_256 {dimension_numbers = #tpu.dot_dimension_numbers<[1], [0], [0], [1], [0, 0, 1, 1], [], []>} : vector<8x256xf32>, vector<256x128xf32>, vector<8x128xf32> -> vector<8x128xf32>
    %c0_257 = arith.constant 0 : index
    %c0_258 = arith.constant 0 : index
    %253 = vector.load %arg18[%c0_257, %c0_258] : memref<1x128xf32, #tpu.memory_space<vmem>>, vector<1x128xf32>
    %254 = vector.broadcast %253 : vector<1x128xf32> to vector<8x128xf32>
    %255 = arith.addf %252, %254 : vector<8x128xf32>
    %256 = vector.extract_strided_slice %255 {offsets = [0, 0], sizes = [2, 128], strides = [1, 1]} : vector<8x128xf32> to vector<2x128xf32>
    %257 = vector.extract_strided_slice %255 {offsets = [2, 0], sizes = [2, 128], strides = [1, 1]} : vector<8x128xf32> to vector<2x128xf32>
    %258 = arith.subf %256, %257 : vector<2x128xf32>
    %cst_259 = arith.constant 9.99999997E-7 : f32
    %259 = vector.broadcast %cst_259 : f32 to vector<2x128xf32>
    %260 = arith.addf %258, %259 : vector<2x128xf32>
    %261 = arith.mulf %260, %260 : vector<2x128xf32>
    %cst_260 = arith.constant dense<0.000000e+00> : vector<2xf32>
    %262 = vector.multi_reduction <add>, %261, %cst_260 [1] : vector<2x128xf32> to vector<2xf32>
    %263 = vector.shape_cast %262 : vector<2xf32> to vector<2x1xf32>
    %264 = math.sqrt %263 : vector<2x1xf32>
    %c0_261 = arith.constant 0 : index
    %c0_262 = arith.constant 0 : index
    %265 = vector.load %arg19[%c0_261, %c0_262] : memref<1x1xf32, #tpu.memory_space<vmem>>, vector<1x1xf32>
    %266 = vector.broadcast %265 : vector<1x1xf32> to vector<2x1xf32>
    %267 = arith.mulf %264, %266 : vector<2x1xf32>
    %c0_263 = arith.constant 0 : index
    %c0_264 = arith.constant 0 : index
    %268 = vector.load %arg20[%c0_263, %c0_264] : memref<1x1xf32, #tpu.memory_space<vmem>>, vector<1x1xf32>
    %269 = vector.broadcast %268 : vector<1x1xf32> to vector<2x1xf32>
    %270 = arith.addf %267, %269 : vector<2x1xf32>
    %cst_265 = arith.constant 0.000000e+00 : f32
    %271 = vector.broadcast %cst_265 : f32 to vector<2x1xf32>
    %272 = arith.subf %271, %270 : vector<2x1xf32>
    %273 = math.exp %272 : vector<2x1xf32>
    %cst_266 = arith.constant 1.000000e+00 : f32
    %274 = vector.broadcast %cst_266 : f32 to vector<2x1xf32>
    %275 = arith.addf %274, %273 : vector<2x1xf32>
    %cst_267 = arith.constant 1.000000e+00 : f32
    %276 = vector.broadcast %cst_267 : f32 to vector<2x1xf32>
    %277 = arith.divf %276, %275 : vector<2x1xf32>
    %c0_268 = arith.constant 0 : index
    %c0_269 = arith.constant 0 : index
    %278 = vector.load %arg22[%c0_268, %c0_269] : memref<2x1xf32, #tpu.memory_space<vmem>>, vector<2x1xf32>
    tpu.vector_store %arg22[%c0_268, %c0_269], %277 {strides = array<i32>} : memref<2x1xf32, #tpu.memory_space<vmem>>, vector<2x1xf32>,
    return
  }
  func.func @transform_0(%arg0: i32) -> (i32, i32) {
    %c0_i32 = arith.constant 0 : i32
    %c0_i32_0 = arith.constant 0 : i32
    %c0_i32_1 = arith.constant 0 : i32
    return %c0_i32, %c0_i32_0 : i32, i32
  }
  func.func @transform_1(%arg0: i32) -> (i32, i32) {
    %c0_i32 = arith.constant 0 : i32
    %c0_i32_0 = arith.constant 0 : i32
    %c0_i32_1 = arith.constant 0 : i32
    return %c0_i32, %c0_i32_0 : i32, i32
  }
  func.func @transform_2(%arg0: i32) -> (i32, i32) {
    %c0_i32 = arith.constant 0 : i32
    %c0_i32_0 = arith.constant 0 : i32
    %c0_i32_1 = arith.constant 0 : i32
    return %c0_i32, %c0_i32_0 : i32, i32
  }
  func.func @transform_3(%arg0: i32) -> (i32, i32) {
    %c0_i32 = arith.constant 0 : i32
    %c0_i32_0 = arith.constant 0 : i32
    %c0_i32_1 = arith.constant 0 : i32
    return %c0_i32, %c0_i32_0 : i32, i32
  }
  func.func @transform_4(%arg0: i32) -> (i32, i32, i32) {
    %c0_i32 = arith.constant 0 : i32
    %c0_i32_0 = arith.constant 0 : i32
    %c0_i32_1 = arith.constant 0 : i32
    %c0_i32_2 = arith.constant 0 : i32
    return %c0_i32, %c0_i32_0, %c0_i32_1 : i32, i32, i32
  }
  func.func @transform_5(%arg0: i32) -> (i32, i32) {
    %c0_i32 = arith.constant 0 : i32
    %c0_i32_0 = arith.constant 0 : i32
    %c0_i32_1 = arith.constant 0 : i32
    return %c0_i32, %c0_i32_0 : i32, i32
  }
  func.func @transform_6(%arg0: i32) -> (i32, i32) {
    %c0_i32 = arith.constant 0 : i32
    %c0_i32_0 = arith.constant 0 : i32
    %c0_i32_1 = arith.constant 0 : i32
    return %c0_i32, %c0_i32_0 : i32, i32
  }
  func.func @transform_7(%arg0: i32) -> (i32, i32, i32) {
    %c0_i32 = arith.constant 0 : i32
    %c0_i32_0 = arith.constant 0 : i32
    %c0_i32_1 = arith.constant 0 : i32
    %c0_i32_2 = arith.constant 0 : i32
    return %c0_i32, %c0_i32_0, %c0_i32_1 : i32, i32, i32
  }
  func.func @transform_8(%arg0: i32) -> (i32, i32) {
    %c0_i32 = arith.constant 0 : i32
    %c0_i32_0 = arith.constant 0 : i32
    %c0_i32_1 = arith.constant 0 : i32
    return %c0_i32, %c0_i32_0 : i32, i32
  }
  func.func @transform_9(%arg0: i32) -> (i32, i32) {
    %c0_i32 = arith.constant 0 : i32
    %c0_i32_0 = arith.constant 0 : i32
    %c0_i32_1 = arith.constant 0 : i32
    return %c0_i32, %c0_i32_0 : i32, i32
  }
  func.func @transform_10(%arg0: i32) -> (i32, i32, i32) {
    %c0_i32 = arith.constant 0 : i32
    %c0_i32_0 = arith.constant 0 : i32
    %c0_i32_1 = arith.constant 0 : i32
    %c0_i32_2 = arith.constant 0 : i32
    return %c0_i32, %c0_i32_0, %c0_i32_1 : i32, i32, i32
  }
  func.func @transform_11(%arg0: i32) -> (i32, i32) {
    %c0_i32 = arith.constant 0 : i32
    %c0_i32_0 = arith.constant 0 : i32
    %c0_i32_1 = arith.constant 0 : i32
    return %c0_i32, %c0_i32_0 : i32, i32
  }
  func.func @transform_12(%arg0: i32) -> (i32, i32) {
    %c0_i32 = arith.constant 0 : i32
    %c0_i32_0 = arith.constant 0 : i32
    %c0_i32_1 = arith.constant 0 : i32
    return %c0_i32, %c0_i32_0 : i32, i32
  }
  func.func @transform_13(%arg0: i32) -> (i32, i32) {
    %c0_i32 = arith.constant 0 : i32
    %c0_i32_0 = arith.constant 0 : i32
    %c0_i32_1 = arith.constant 0 : i32
    return %c0_i32, %c0_i32_0 : i32, i32
  }
  func.func @transform_14(%arg0: i32) -> (i32, i32) {
    %c0_i32 = arith.constant 0 : i32
    %c0_i32_0 = arith.constant 0 : i32
    %c0_i32_1 = arith.constant 0 : i32
    return %c0_i32, %c0_i32_0 : i32, i32
  }
  func.func @transform_15(%arg0: i32) -> (i32, i32) {
    %c0_i32 = arith.constant 0 : i32
    %c0_i32_0 = arith.constant 0 : i32
    %c0_i32_1 = arith.constant 0 : i32
    return %c0_i32, %c0_i32_0 : i32, i32
  }
  func.func @transform_16(%arg0: i32) -> (i32, i32) {
    %c0_i32 = arith.constant 0 : i32
    %c0_i32_0 = arith.constant 0 : i32
    %c0_i32_1 = arith.constant 0 : i32
    return %c0_i32, %c0_i32_0 : i32, i32
  }
  func.func @transform_17(%arg0: i32) -> (i32, i32) {
    %c0_i32 = arith.constant 0 : i32
    %c0_i32_0 = arith.constant 0 : i32
    %c0_i32_1 = arith.constant 0 : i32
    return %c0_i32, %c0_i32_0 : i32, i32
  }
  func.func @transform_18(%arg0: i32) -> (i32, i32) {
    %c0_i32 = arith.constant 0 : i32
    %c0_i32_0 = arith.constant 0 : i32
    %c0_i32_1 = arith.constant 0 : i32
    return %c0_i32, %c0_i32_0 : i32, i32
  }
  func.func @transform_19(%arg0: i32) -> (i32, i32) {
    %c0_i32 = arith.constant 0 : i32
    %c0_i32_0 = arith.constant 0 : i32
    %c0_i32_1 = arith.constant 0 : i32
    return %c0_i32, %c0_i32_0 : i32, i32
  }
  func.func @transform_21(%arg0: i32) -> (i32, i32) {
    %c0_i32 = arith.constant 0 : i32
    %c0_i32_0 = arith.constant 0 : i32
    %c0_i32_1 = arith.constant 0 : i32
    return %c0_i32, %c0_i32_0 : i32, i32
  }
}

</mosaic_0001>

<llo_original>
// kernel: tpu_custom_call.1
$region0: #{tpu_custom_call.1}
  #allocation0 [shape = 'u32[]', space=smem, size = 0x4, offset = 0x4, fixed_abs, tag = 'smem constant byte address 0x4 - core index']
  #allocation1 [shape = 'u32[144,128]{1,0:T(1,128)}', space=vmem, size = 0x12000, scoped, tag = 'internal scratch']
  #allocation2 [shape = 'f32[160,256]{1,0:T(8,128)}', space=vmem, size = 0x28000, scoped, tag = 'scratch operand']
  #allocation3 [shape = 'f32[2,5,256,512]{3,2,1,0:T(8,128)}', space=vmem, size = 0x500000, scoped, tag = 'scratch operand']
  #allocation4 [shape = 's32[2]{0}', space=sflag, size = 0x8, scoped, tag = 'scratch operand']
  #allocation5 [shape = 'f32[1,1]{1,0:T(1,128)S(1)}', space=vmem, size = 0x200, scoped, tag = 'scoped memory for tpu_custom_call.1']
  #allocation6 [shape = 'f32[1,1]{1,0:T(1,128)S(1)}', space=vmem, size = 0x200, scoped, tag = 'scoped memory for tpu_custom_call.1']
  #allocation29 [shape = 's32[]', space=sflag, size = 0x4, offset = 0, fixed_abs, tag = 'sflag constant byte address 0x0 - dummy sync flag']
  #allocation30 [shape = 's32[]', space=sflag, size = 0x4, offset = 0, fixed_abs, tag = 'sflag constant byte address 0x0 - dummy sync flag']
  #allocation31 [shape = 'u32[]', space=smem, size = 0x4, offset = 0x44, fixed_abs, tag = 'smem constant byte address 0x44 - assertion arg 0']
  #allocation32 [shape = 'u32[]', space=smem, size = 0x4, offset = 0x48, fixed_abs, tag = 'smem constant byte address 0x48 - assertion arg 1']
  #allocation33 [shape = 's32[]', space=sflag, size = 0x4, offset = 0, fixed_abs, tag = 'sflag constant byte address 0x0 - dummy sync flag']
  #allocation34 [shape = 's32[]', space=sflag, size = 0x4, offset = 0, fixed_abs, tag = 'sflag constant byte address 0x0 - dummy sync flag']
  #allocation35 [shape = 's32[]', space=sflag, size = 0x4, offset = 0, fixed_abs, tag = 'sflag constant byte address 0x0 - dummy sync flag']
  #allocation36 [shape = 's32[]', space=sflag, size = 0x4, offset = 0, fixed_abs, tag = 'sflag constant byte address 0x0 - dummy sync flag']
  #allocation37 [shape = 's32[]', space=sflag, size = 0x4, offset = 0, fixed_abs, tag = 'sflag constant byte address 0x0 - dummy sync flag']
  #allocation38 [shape = 's32[]', space=sflag, size = 0x4, offset = 0, fixed_abs, tag = 'sflag constant byte address 0x0 - dummy sync flag']
  %s0 = inlined_call_operand.vmem [shape: f32[160,4], index: 0, kind: input, shape index: {}]
  %s1 = inlined_call_operand.vmem [shape: f32[160,1], index: 1, kind: input, shape index: {}]
  %s2 = inlined_call_operand.vmem [shape: f32[160,1], index: 2, kind: input, shape index: {}]
  %s3 = inlined_call_operand.vmem [shape: f32[160,1], index: 3, kind: input, shape index: {}]
  %s4 = inlined_call_operand.hbm [shape: f32[3,4,64], index: 4, kind: input, shape index: {}]
  %s5 = inlined_call_operand.hbm [shape: f32[1,64], index: 5, kind: input, shape index: {}]
  %s6 = inlined_call_operand.hbm [shape: f32[1,64], index: 6, kind: input, shape index: {}]
  %s7 = inlined_call_operand.hbm [shape: f32[3,64,128], index: 7, kind: input, shape index: {}]
  %s8 = inlined_call_operand.hbm [shape: f32[1,128], index: 8, kind: input, shape index: {}]
  %s9 = inlined_call_operand.hbm [shape: f32[1,128], index: 9, kind: input, shape index: {}]
  %s10 = inlined_call_operand.hbm [shape: f32[3,128,256], index: 10, kind: input, shape index: {}]
  %s11 = inlined_call_operand.hbm [shape: f32[1,256], index: 11, kind: input, shape index: {}]
  %s12 = inlined_call_operand.hbm [shape: f32[1,256], index: 12, kind: input, shape index: {}]
  %s13 = inlined_call_operand.hbm [shape: f32[1,512], index: 13, kind: input, shape index: {}]
  %s14 = inlined_call_operand.hbm [shape: f32[512,256], index: 14, kind: input, shape index: {}]
  %s15 = inlined_call_operand.hbm [shape: f32[1,256], index: 15, kind: input, shape index: {}]
  %s16 = inlined_call_operand.hbm [shape: f32[256,128], index: 16, kind: input, shape index: {}]
  %s17 = inlined_call_operand.hbm [shape: f32[1,128], index: 17, kind: input, shape index: {}]
  %s18 = inlined_call_operand.<no memory space> [shape: f32[1,1], index: 18, kind: input, shape index: {}]
  %s19 = inlined_call_operand.<no memory space> [shape: f32[1,1], index: 19, kind: input, shape index: {}]
  %s20 = inlined_call_operand.hbm [shape: f32[20,256,512], index: 20, kind: input, shape index: {}]
  %s21 = inlined_call_operand.vmem [shape: f32[2,1], index: 21, kind: output, shape index: {}]
  %s22 = sld [smem:[#allocation0]]
  $region162: #{tpu_custom_call.1} parent=0
    _
  %s24 = ssub.s32 1, %s22
  %s25 = scalar_select 0, %s24, %s22
  %v26 = vstv %s18
  %27 = vst [vmem:[#allocation5] sm:$0x1] %v26
  %v28 = vstv %s19
  %29 = vst [vmem:[#allocation6] sm:$0x1] %v28
  $region1: #{tpu_custom_call.1} parent=0
    #allocation7 [shape = 'u8[6144]{0}', space=vmem, size = 0x1800, scoped, tag = 'input window, operand 4, single buffered']
    #allocation8 [shape = 's32[1]{0}', space=sflag, size = 0x4, scoped, tag = 'scoped memory for tpu_custom_call.1']
    #allocation9 [shape = 'u8[512]{0}', space=vmem, size = 0x400, scoped, tag = 'input window, operand 5, single buffered']
    #allocation10 [shape = 's32[1]{0}', space=sflag, size = 0x4, scoped, tag = 'scoped memory for tpu_custom_call.1']
    #allocation11 [shape = 'u8[512]{0}', space=vmem, size = 0x400, scoped, tag = 'input window, operand 6, single buffered']
    #allocation12 [shape = 'u8[98304]{0}', space=vmem, size = 0x18000, scoped, tag = 'input window, operand 7, single buffered']
    #allocation13 [shape = 's32[1]{0}', space=sflag, size = 0x4, scoped, tag = 'scoped memory for tpu_custom_call.1']
    #allocation14 [shape = 'u8[512]{0}', space=vmem, size = 0x400, scoped, tag = 'input window, operand 8, single buffered']
    #allocation15 [shape = 'u8[512]{0}', space=vmem, size = 0x400, scoped, tag = 'input window, operand 9, single buffered']
    #allocation16 [shape = 's32[1]{0}', space=sflag, size = 0x4, scoped, tag = 'scoped memory for tpu_custom_call.1']
    #allocation17 [shape = 'u8[393216]{0}', space=vmem, size = 0x60000, scoped, tag = 'input window, operand 10, single buffered']
    #allocation18 [shape = 'u8[1024]{0}', space=vmem, size = 0x400, scoped, tag = 'input window, operand 11, single buffered']
    #allocation19 [shape = 's32[1]{0}', space=sflag, size = 0x4, scoped, tag = 'scoped memory for tpu_custom_call.1']
    #allocation20 [shape = 'u8[1024]{0}', space=vmem, size = 0x400, scoped, tag = 'input window, operand 12, single buffered']
    #allocation21 [shape = 'u8[2048]{0}', space=vmem, size = 0x800, scoped, tag = 'input window, operand 13, single buffered']
    #allocation22 [shape = 's32[1]{0}', space=sflag, size = 0x4, scoped, tag = 'scoped memory for tpu_custom_call.1']
    #allocation23 [shape = 'u8[524288]{0}', space=vmem, size = 0x80000, scoped, tag = 'input window, operand 14, single buffered']
    #allocation24 [shape = 'u8[1024]{0}', space=vmem, size = 0x400, scoped, tag = 'input window, operand 15, single buffered']
    #allocation25 [shape = 's32[1]{0}', space=sflag, size = 0x4, scoped, tag = 'scoped memory for tpu_custom_call.1']
    #allocation26 [shape = 'u8[131072]{0}', space=vmem, size = 0x20000, scoped, tag = 'input window, operand 16, single buffered']
    #allocation27 [shape = 'u8[512]{0}', space=vmem, size = 0x400, scoped, tag = 'input window, operand 17, single buffered']
    #allocation28 [shape = 's32[1]{0}', space=sflag, size = 0x4, scoped, tag = 'scoped memory for tpu_custom_call.1']
    %30 = vsyncpa [#allocation8], 0
    %31 = vsyncpa [#allocation10], 0
    %32 = vsyncpa [#allocation13], 0
    %33 = vsyncpa [#allocation16], 0
    %34 = vsyncpa [#allocation19], 0
    %35 = vsyncpa [#allocation22], 0
    %36 = vsyncpa [#allocation25], 0
    %37 = vsyncpa [#allocation28], 0
    // Predicated region
    $region2: #{tpu_custom_call.1} parent=1 // pred_check
      _
    $region3: #{tpu_custom_call.1} parent=1 // pred_check_branch
      %39 = sbr.rel (0) target = $region5
    $region4: #{tpu_custom_call.1} parent=1 // pred_region
      _
    $region5: #{tpu_custom_call.1} parent=1 // pred_fallthru
      _
    // Predicated region
    $region6: #{tpu_custom_call.1} parent=1 // pred_check
      _
    $region7: #{tpu_custom_call.1} parent=1 // pred_check_branch
      %41 = sbr.rel (0) target = $region9
    $region8: #{tpu_custom_call.1} parent=1 // pred_region
      _
    $region9: #{tpu_custom_call.1} parent=1 // pred_fallthru
      _
    // Predicated region
    $region10: #{tpu_custom_call.1} parent=1 // pred_check
      _
    $region11: #{tpu_custom_call.1} parent=1 // pred_check_branch
      %43 = sbr.rel (0) target = $region13
    $region12: #{tpu_custom_call.1} parent=1 // pred_region
      _
    $region13: #{tpu_custom_call.1} parent=1 // pred_fallthru
      _
    // Predicated region
    $region14: #{tpu_custom_call.1} parent=1 // pred_check
      _
    $region15: #{tpu_custom_call.1} parent=1 // pred_check_branch
      %45 = sbr.rel (0) target = $region17
    $region16: #{tpu_custom_call.1} parent=1 // pred_region
      _
    $region17: #{tpu_custom_call.1} parent=1 // pred_fallthru
      _
    // Predicated region
    $region18: #{tpu_custom_call.1} parent=1 // pred_check
      _
    $region19: #{tpu_custom_call.1} parent=1 // pred_check_branch
      %47 = sbr.rel (0) target = $region21
    $region20: #{tpu_custom_call.1} parent=1 // pred_region
      %s49 = ssub.s32 192, 192
      %50 = vsyncadd [#allocation8], %s49
      %s51 = sshll.u32 [#allocation7], 4
      %s52 = int_to_ptr.vmem [resolvable:$true] %s51
      %57 = dma.hbm_to_vmem [thread:$0]  %s4, 192, %s52, [#allocation8], 64, 64, 4
    $region21: #{tpu_custom_call.1} parent=1 // pred_fallthru
      _
    // Predicated region
    $region22: #{tpu_custom_call.1} parent=1 // pred_check
      _
    $region23: #{tpu_custom_call.1} parent=1 // pred_check_branch
      %59 = sbr.rel (0) target = $region25
    $region24: #{tpu_custom_call.1} parent=1 // pred_region
      %s61 = ssub.s32 16, 16
      %62 = vsyncadd [#allocation10], %s61
      %s64 = sshll.u32 [#allocation9], 4
      %s65 = int_to_ptr.vmem [resolvable:$true] %s64
      %67 = dma.hbm_to_vmem [thread:$0]  %s5, 16, %s65, [#allocation10]
    $region25: #{tpu_custom_call.1} parent=1 // pred_fallthru
      _
    // Predicated region
    $region26: #{tpu_custom_call.1} parent=1 // pred_check
      _
    $region27: #{tpu_custom_call.1} parent=1 // pred_check_branch
      %69 = sbr.rel (0) target = $region29
    $region28: #{tpu_custom_call.1} parent=1 // pred_region
      %s71 = ssub.s32 16, 16
      %72 = vsyncadd [#allocation10], %s71
      %s74 = sshll.u32 [#allocation11], 4
      %s75 = int_to_ptr.vmem [resolvable:$true] %s74
      %77 = dma.hbm_to_vmem [thread:$0]  %s6, 16, %s75, [#allocation10]
    $region29: #{tpu_custom_call.1} parent=1 // pred_fallthru
      _
    // Predicated region
    $region30: #{tpu_custom_call.1} parent=1 // pred_check
      _
    $region31: #{tpu_custom_call.1} parent=1 // pred_check_branch
      %79 = sbr.rel (0) target = $region33
    $region32: #{tpu_custom_call.1} parent=1 // pred_region
      %s81 = ssub.s32 3072, 3072
      %82 = vsyncadd [#allocation13], %s81
      %s83 = sshll.u32 [#allocation12], 4
      %s84 = int_to_ptr.vmem [resolvable:$true] %s83
      %89 = dma.hbm_to_vmem [thread:$0]  %s7, 3072, %s84, [#allocation13], 128, 128, 8
    $region33: #{tpu_custom_call.1} parent=1 // pred_fallthru
      _
    // Predicated region
    $region34: #{tpu_custom_call.1} parent=1 // pred_check
      _
    $region35: #{tpu_custom_call.1} parent=1 // pred_check_branch
      %91 = sbr.rel (0) target = $region37
    $region36: #{tpu_custom_call.1} parent=1 // pred_region
      %s93 = ssub.s32 16, 16
      %94 = vsyncadd [#allocation13], %s93
      %s96 = sshll.u32 [#allocation14], 4
      %s97 = int_to_ptr.vmem [resolvable:$true] %s96
      %99 = dma.hbm_to_vmem [thread:$0]  %s8, 16, %s97, [#allocation13]
    $region37: #{tpu_custom_call.1} parent=1 // pred_fallthru
      _
    // Predicated region
    $region38: #{tpu_custom_call.1} parent=1 // pred_check
      _
    $region39: #{tpu_custom_call.1} parent=1 // pred_check_branch
      %101 = sbr.rel (0) target = $region41
    $region40: #{tpu_custom_call.1} parent=1 // pred_region
      %s103 = ssub.s32 16, 16
      %104 = vsyncadd [#allocation16], %s103
      %s106 = sshll.u32 [#allocation15], 4
      %s107 = int_to_ptr.vmem [resolvable:$true] %s106
      %109 = dma.hbm_to_vmem [thread:$0]  %s9, 16, %s107, [#allocation16]
    $region41: #{tpu_custom_call.1} parent=1 // pred_fallthru
      _
    // Predicated region
    $region42: #{tpu_custom_call.1} parent=1 // pred_check
      _
    $region43: #{tpu_custom_call.1} parent=1 // pred_check_branch
      %111 = sbr.rel (0) target = $region45
    $region44: #{tpu_custom_call.1} parent=1 // pred_region
      %s113 = ssub.s32 12288, 12288
      %114 = vsyncadd [#allocation16], %s113
      %s115 = sshll.u32 [#allocation17], 4
      %s116 = int_to_ptr.vmem [resolvable:$true] %s115
      %121 = dma.hbm_to_vmem [thread:$0]  %s10, 12288, %s116, [#allocation16], 256, 256, 16
    $region45: #{tpu_custom_call.1} parent=1 // pred_fallthru
      _
    // Predicated region
    $region46: #{tpu_custom_call.1} parent=1 // pred_check
      _
    $region47: #{tpu_custom_call.1} parent=1 // pred_check_branch
      %123 = sbr.rel (0) target = $region49
    $region48: #{tpu_custom_call.1} parent=1 // pred_region
      %s125 = ssub.s32 32, 32
      %126 = vsyncadd [#allocation19], %s125
      %s128 = sshll.u32 [#allocation18], 4
      %s129 = int_to_ptr.vmem [resolvable:$true] %s128
      %131 = dma.hbm_to_vmem [thread:$0]  %s11, 32, %s129, [#allocation19]
    $region49: #{tpu_custom_call.1} parent=1 // pred_fallthru
      _
    // Predicated region
    $region50: #{tpu_custom_call.1} parent=1 // pred_check
      _
    $region51: #{tpu_custom_call.1} parent=1 // pred_check_branch
      %133 = sbr.rel (0) target = $region53
    $region52: #{tpu_custom_call.1} parent=1 // pred_region
      %s135 = ssub.s32 32, 32
      %136 = vsyncadd [#allocation19], %s135
      %s138 = sshll.u32 [#allocation20], 4
      %s139 = int_to_ptr.vmem [resolvable:$true] %s138
      %141 = dma.hbm_to_vmem [thread:$0]  %s12, 32, %s139, [#allocation19]
    $region53: #{tpu_custom_call.1} parent=1 // pred_fallthru
      _
    // Predicated region
    $region54: #{tpu_custom_call.1} parent=1 // pred_check
      _
    $region55: #{tpu_custom_call.1} parent=1 // pred_check_branch
      %143 = sbr.rel (0) target = $region57
    $region56: #{tpu_custom_call.1} parent=1 // pred_region
      %s145 = ssub.s32 64, 64
      %146 = vsyncadd [#allocation22], %s145
      %s148 = sshll.u32 [#allocation21], 4
      %s149 = int_to_ptr.vmem [resolvable:$true] %s148
      %151 = dma.hbm_to_vmem [thread:$0]  %s13, 64, %s149, [#allocation22]
    $region57: #{tpu_custom_call.1} parent=1 // pred_fallthru
      _
    // Predicated region
    $region58: #{tpu_custom_call.1} parent=1 // pred_check
      _
    $region59: #{tpu_custom_call.1} parent=1 // pred_check_branch
      %153 = sbr.rel (0) target = $region61
    $region60: #{tpu_custom_call.1} parent=1 // pred_region
      %s155 = ssub.s32 16384, 16384
      %156 = vsyncadd [#allocation22], %s155
      %s157 = sshll.u32 [#allocation23], 4
      %s158 = int_to_ptr.vmem [resolvable:$true] %s157
      %163 = dma.hbm_to_vmem [thread:$0]  %s14, 16384, %s158, [#allocation22], 256, 256, 16
    $region61: #{tpu_custom_call.1} parent=1 // pred_fallthru
      _
    // Predicated region
    $region62: #{tpu_custom_call.1} parent=1 // pred_check
      _
    $region63: #{tpu_custom_call.1} parent=1 // pred_check_branch
      %165 = sbr.rel (0) target = $region65
    $region64: #{tpu_custom_call.1} parent=1 // pred_region
      %s167 = ssub.s32 32, 32
      %168 = vsyncadd [#allocation25], %s167
      %s170 = sshll.u32 [#allocation24], 4
      %s171 = int_to_ptr.vmem [resolvable:$true] %s170
      %173 = dma.hbm_to_vmem [thread:$0]  %s15, 32, %s171, [#allocation25]
    $region65: #{tpu_custom_call.1} parent=1 // pred_fallthru
      _
    // Predicated region
    $region66: #{tpu_custom_call.1} parent=1 // pred_check
      _
    $region67: #{tpu_custom_call.1} parent=1 // pred_check_branch
      %175 = sbr.rel (0) target = $region69
    $region68: #{tpu_custom_call.1} parent=1 // pred_region
      %s177 = ssub.s32 4096, 4096
      %178 = vsyncadd [#allocation25], %s177
      %s179 = sshll.u32 [#allocation26], 4
      %s180 = int_to_ptr.vmem [resolvable:$true] %s179
      %185 = dma.hbm_to_vmem [thread:$0]  %s16, 4096, %s180, [#allocation25], 128, 128, 8
    $region69: #{tpu_custom_call.1} parent=1 // pred_fallthru
      _
    // Predicated region
    $region70: #{tpu_custom_call.1} parent=1 // pred_check
      _
    $region71: #{tpu_custom_call.1} parent=1 // pred_check_branch
      %187 = sbr.rel (0) target = $region73
    $region72: #{tpu_custom_call.1} parent=1 // pred_region
      %s189 = ssub.s32 16, 16
      %190 = vsyncadd [#allocation28], %s189
      %s192 = sshll.u32 [#allocation27], 4
      %s193 = int_to_ptr.vmem [resolvable:$true] %s192
      %195 = dma.hbm_to_vmem [thread:$0]  %s17, 16, %s193, [#allocation28]
    $region73: #{tpu_custom_call.1} parent=1 // pred_fallthru
      _
    // Predicated region
    $region74: #{tpu_custom_call.1} parent=1 // pred_check
      _
    $region75: #{tpu_custom_call.1} parent=1 // pred_check_branch
      %197 = sbr.rel (0) target = $region77
    $region76: #{tpu_custom_call.1} parent=1 // pred_region
      _
    $region77: #{tpu_custom_call.1} parent=1 // pred_fallthru
      _
    // Predicated region
    $region78: #{tpu_custom_call.1} parent=1 // pred_check
      _
    $region79: #{tpu_custom_call.1} parent=1 // pred_check_branch
      %199 = sbr.rel (0) target = $region81
    $region80: #{tpu_custom_call.1} parent=1 // pred_region
      _
    $region81: #{tpu_custom_call.1} parent=1 // pred_fallthru
      _
    // Predicated region
    $region82: #{tpu_custom_call.1} parent=1 // pred_check
      _
    $region83: #{tpu_custom_call.1} parent=1 // pred_check_branch
      %201 = sbr.rel (0) target = $region85
    $region84: #{tpu_custom_call.1} parent=1 // pred_region
      %202 = dma.done [#allocation8], 192
    $region85: #{tpu_custom_call.1} parent=1 // pred_fallthru
      _
    // Predicated region
    $region86: #{tpu_custom_call.1} parent=1 // pred_check
      _
    $region87: #{tpu_custom_call.1} parent=1 // pred_check_branch
      %204 = sbr.rel (0) target = $region89
    $region88: #{tpu_custom_call.1} parent=1 // pred_region
      %205 = dma.done [#allocation10], 16
    $region89: #{tpu_custom_call.1} parent=1 // pred_fallthru
      _
    // Predicated region
    $region90: #{tpu_custom_call.1} parent=1 // pred_check
      _
    $region91: #{tpu_custom_call.1} parent=1 // pred_check_branch
      %207 = sbr.rel (0) target = $region93
    $region92: #{tpu_custom_call.1} parent=1 // pred_region
      %208 = dma.done [#allocation10], 16
    $region93: #{tpu_custom_call.1} parent=1 // pred_fallthru
      _
    // Predicated region
    $region94: #{tpu_custom_call.1} parent=1 // pred_check
      _
    $region95: #{tpu_custom_call.1} parent=1 // pred_check_branch
      %210 = sbr.rel (0) target = $region97
    $region96: #{tpu_custom_call.1} parent=1 // pred_region
      %211 = dma.done [#allocation13], 3072
    $region97: #{tpu_custom_call.1} parent=1 // pred_fallthru
      _
    // Predicated region
    $region98: #{tpu_custom_call.1} parent=1 // pred_check
      _
    $region99: #{tpu_custom_call.1} parent=1 // pred_check_branch
      %213 = sbr.rel (0) target = $region101
    $region100: #{tpu_custom_call.1} parent=1 // pred_region
      %214 = dma.done [#allocation13], 16
    $region101: #{tpu_custom_call.1} parent=1 // pred_fallthru
      _
    // Predicated region
    $region102: #{tpu_custom_call.1} parent=1 // pred_check
      _
    $region103: #{tpu_custom_call.1} parent=1 // pred_check_branch
      %216 = sbr.rel (0) target = $region105
    $region104: #{tpu_custom_call.1} parent=1 // pred_region
      %217 = dma.done [#allocation16], 16
    $region105: #{tpu_custom_call.1} parent=1 // pred_fallthru
      _
    // Predicated region
    $region106: #{tpu_custom_call.1} parent=1 // pred_check
      _
    $region107: #{tpu_custom_call.1} parent=1 // pred_check_branch
      %219 = sbr.rel (0) target = $region109
    $region108: #{tpu_custom_call.1} parent=1 // pred_region
      %220 = dma.done [#allocation16], 12288
    $region109: #{tpu_custom_call.1} parent=1 // pred_fallthru
      _
    // Predicated region
    $region110: #{tpu_custom_call.1} parent=1 // pred_check
      _
    $region111: #{tpu_custom_call.1} parent=1 // pred_check_branch
      %222 = sbr.rel (0) target = $region113
    $region112: #{tpu_custom_call.1} parent=1 // pred_region
      %223 = dma.done [#allocation19], 32
    $region113: #{tpu_custom_call.1} parent=1 // pred_fallthru
      _
    // Predicated region
    $region114: #{tpu_custom_call.1} parent=1 // pred_check
      _
    $region115: #{tpu_custom_call.1} parent=1 // pred_check_branch
      %225 = sbr.rel (0) target = $region117
    $region116: #{tpu_custom_call.1} parent=1 // pred_region
      %226 = dma.done [#allocation19], 32
    $region117: #{tpu_custom_call.1} parent=1 // pred_fallthru
      _
    // Predicated region
    $region118: #{tpu_custom_call.1} parent=1 // pred_check
      _
    $region119: #{tpu_custom_call.1} parent=1 // pred_check_branch
      %228 = sbr.rel (0) target = $region121
    $region120: #{tpu_custom_call.1} parent=1 // pred_region
      %229 = dma.done [#allocation22], 64
    $region121: #{tpu_custom_call.1} parent=1 // pred_fallthru
      _
    // Predicated region
    $region122: #{tpu_custom_call.1} parent=1 // pred_check
      _
    $region123: #{tpu_custom_call.1} parent=1 // pred_check_branch
      %231 = sbr.rel (0) target = $region125
    $region124: #{tpu_custom_call.1} parent=1 // pred_region
      %232 = dma.done [#allocation22], 16384
    $region125: #{tpu_custom_call.1} parent=1 // pred_fallthru
      _
    // Predicated region
    $region126: #{tpu_custom_call.1} parent=1 // pred_check
      _
    $region127: #{tpu_custom_call.1} parent=1 // pred_check_branch
      %234 = sbr.rel (0) target = $region129
    $region128: #{tpu_custom_call.1} parent=1 // pred_region
      %235 = dma.done [#allocation25], 32
    $region129: #{tpu_custom_call.1} parent=1 // pred_fallthru
      _
    // Predicated region
    $region130: #{tpu_custom_call.1} parent=1 // pred_check
      _
    $region131: #{tpu_custom_call.1} parent=1 // pred_check_branch
      %237 = sbr.rel (0) target = $region133
    $region132: #{tpu_custom_call.1} parent=1 // pred_region
      %238 = dma.done [#allocation25], 4096
    $region133: #{tpu_custom_call.1} parent=1 // pred_fallthru
      _
    // Predicated region
    $region134: #{tpu_custom_call.1} parent=1 // pred_check
      _
    $region135: #{tpu_custom_call.1} parent=1 // pred_check_branch
      %240 = sbr.rel (0) target = $region137
    $region136: #{tpu_custom_call.1} parent=1 // pred_region
      %241 = dma.done [#allocation28], 16
    $region137: #{tpu_custom_call.1} parent=1 // pred_fallthru
      _
    // Predicated region
    $region138: #{tpu_custom_call.1} parent=1 // pred_check
      _
    $region139: #{tpu_custom_call.1} parent=1 // pred_check_branch
      %243 = sbr.rel target = $region141
    $region140: #{tpu_custom_call.1} parent=1 // pred_region
      %244 = sst [smem:[#allocation31]] [#allocation30]
      %245 = sst [smem:[#allocation32]] [#allocation29]
    $region141: #{tpu_custom_call.1} parent=1 // pred_fallthru
      _
    %247 = shalt.err (0)
    %s249 = sshll.u32 [#allocation3], 4
    %s250 = int_to_ptr.vmem [resolvable:$true] %s249
    %252 = dma.hbm_to_vmem [thread:$0]  %s20, 81920, %s250, [#allocation4]
    %s253 = scalar_lea.hbm %s20, 81920
    %s254 = scalar_lea.vmem [#allocation3], 5120
    %s255 = scalar_lea.sflag [#allocation4], 1
    // Predicated region
    $region142: #{tpu_custom_call.1} parent=1 // pred_check
      _
    $region143: #{tpu_custom_call.1} parent=1 // pred_check_branch
      %257 = sbr.rel target = $region145
    $region144: #{tpu_custom_call.1} parent=1 // pred_region
      %258 = sst [smem:[#allocation31]] [#allocation34]
      %259 = sst [smem:[#allocation32]] [#allocation33]
    $region145: #{tpu_custom_call.1} parent=1 // pred_fallthru
      _
    %261 = shalt.err (0)
    %s263 = sshll.u32 %s254, 4
    %s264 = int_to_ptr.vmem [resolvable:$true] %s263
    %266 = dma.hbm_to_vmem [thread:$0]  %s253, 81920, %s264, %s255
    %v267 = vld [vmem:[%s0] sm:$0xff]
    %v268 = vld [vmem:[%s0 + $0x8] sm:$0xff]
    %v269 = vld [vmem:[%s0 + $0x10] sm:$0xff]
    %v270 = vld [vmem:[%s0 + $0x18] sm:$0xff]
    %v271 = vld [vmem:[%s0 + $0x20] sm:$0xff]
    %v272 = vld [vmem:[%s0 + $0x28] sm:$0xff]
    %v273 = vld [vmem:[%s0 + $0x30] sm:$0xff]
    %v274 = vld [vmem:[%s0 + $0x38] sm:$0xff]
    %v275 = vld [vmem:[%s0 + $0x40] sm:$0xff]
    %v276 = vld [vmem:[%s0 + $0x48] sm:$0xff]
    %v277 = vld [vmem:[%s0 + $0x50] sm:$0xff]
    %v278 = vld [vmem:[%s0 + $0x58] sm:$0xff]
    %v279 = vld [vmem:[%s0 + $0x60] sm:$0xff]
    %v280 = vld [vmem:[%s0 + $0x68] sm:$0xff]
    %v281 = vld [vmem:[%s0 + $0x70] sm:$0xff]
    %v282 = vld [vmem:[%s0 + $0x78] sm:$0xff]
    %v283 = vld [vmem:[%s0 + $0x80] sm:$0xff]
    %v284 = vld [vmem:[%s0 + $0x88] sm:$0xff]
    %v285 = vld [vmem:[%s0 + $0x90] sm:$0xff]
    %v286 = vld [vmem:[%s0 + $0x98] sm:$0xff]
    %v287 = vld [vmem:[#allocation7] sm:$0xf]
    %s288 = scalar_lea.vmem [#allocation7], 4
    %v289 = vld [vmem:[%s288] sm:$0xf]
    %vm290 = vcmask 31744
    %v292 = vsel %vm290, %v267, 0
    %v295 = vsel %vm290, %v268, 0
    %v298 = vsel %vm290, %v269, 0
    %v301 = vsel %vm290, %v270, 0
    %v304 = vsel %vm290, %v271, 0
    %v307 = vsel %vm290, %v272, 0
    %v310 = vsel %vm290, %v273, 0
    %v313 = vsel %vm290, %v274, 0
    %v316 = vsel %vm290, %v275, 0
    %v319 = vsel %vm290, %v276, 0
    %v322 = vsel %vm290, %v277, 0
    %v325 = vsel %vm290, %v278, 0
    %v328 = vsel %vm290, %v279, 0
    %v331 = vsel %vm290, %v280, 0
    %v334 = vsel %vm290, %v281, 0
    %v337 = vsel %vm290, %v282, 0
    %v340 = vsel %vm290, %v283, 0
    %v343 = vsel %vm290, %v284, 0
    %v346 = vsel %vm290, %v285, 0
    %v349 = vsel %vm290, %v286, 0
    %vm351 = vcmask 1043456
    %v353 = vsel %vm351, %v289, 0
    %355 = vmatprep.subr.mxu0 0.0
    %356 = vmatpush1.msra.mxu0 0.0
    %357 = vmatprep.subr.mxu0 0.0
    %358 = vmatpush1.msra.mxu0 0.0
    %359 = vmatprep.subr.mxu0 0.0
    %360 = vmatpush1.msra.mxu0 0.0
    %361 = vmatprep.subr.mxu0 0.0
    %362 = vmatpush1.msra.mxu0 0.0
    %363 = vmatprep.subr.mxu0 0.0
    %364 = vmatpush1.msra.mxu0 0.0
    %365 = vmatprep.subr.mxu0 0.0
    %366 = vmatpush1.msra.mxu0 0.0
    %367 = vmatprep.subr.mxu0 0.0
    %368 = vmatpush1.msra.mxu0 0.0
    %369 = vmatprep.subr.mxu0 0.0
    %370 = vmatpush1.msra.mxu0 0.0
    %371 = vmatprep.subr.mxu0 0.0
    %372 = vmatpush1.msra.mxu0 0.0
    %373 = vmatprep.subr.mxu0 0.0
    %374 = vmatpush1.msra.mxu0 0.0
    %375 = vmatprep.subr.mxu0 0.0
    %376 = vmatpush1.msra.mxu0 0.0
    %377 = vmatprep.subr.mxu0 0.0
    %378 = vmatpush1.msra.mxu0 0.0
    %379 = vmatprep.subr.mxu0 0.0
    %380 = vmatpush1.msra.mxu0 0.0
    %381 = vmatprep.subr.mxu0 0.0
    %382 = vmatpush1.msra.mxu0 0.0
    %383 = vmatprep.subr.mxu0 0.0
    %384 = vmatpush1.msra.mxu0 0.0
    %385 = vmatprep.subr.mxu0 0.0
    %386 = vmatpush1.msra.mxu0 %v353
    %387 = vmatprep.subr.mxu0 0.0
    %388 = vmatpush2.msra.mxu0 0.0
    %389 = vmatprep.subr.mxu0 0.0
    %390 = vmatpush2.msra.mxu0 0.0
    %391 = vmatprep.subr.mxu0 0.0
    %392 = vmatpush2.msra.mxu0 0.0
    %393 = vmatprep.subr.mxu0 0.0
    %394 = vmatpush2.msra.mxu0 0.0
    %395 = vmatprep.subr.mxu0 0.0
    %396 = vmatpush2.msra.mxu0 0.0
    %397 = vmatprep.subr.mxu0 0.0
    %398 = vmatpush2.msra.mxu0 0.0
    %399 = vmatprep.subr.mxu0 0.0
    %400 = vmatpush2.msra.mxu0 0.0
    %401 = vmatprep.subr.mxu0 0.0
    %402 = vmatpush2.msra.mxu0 0.0
    %403 = vmatprep.subr.mxu0 0.0
    %404 = vmatpush2.msra.mxu0 0.0
    %405 = vmatprep.subr.mxu0 0.0
    %406 = vmatpush2.msra.mxu0 0.0
    %407 = vmatprep.subr.mxu0 0.0
    %408 = vmatpush2.msra.mxu0 0.0
    %409 = vmatprep.subr.mxu0 0.0
    %410 = vmatpush2.msra.mxu0 0.0
    %411 = vmatprep.subr.mxu0 0.0
    %412 = vmatpush2.msra.mxu0 0.0
    %413 = vmatprep.subr.mxu0 0.0
    %414 = vmatpush2.msra.mxu0 0.0
    %415 = vmatprep.subr.mxu0 0.0
    %416 = vmatpush2.msra.mxu0 0.0
    %417 = vmatprep.subr.mxu0 0.0
    %418 = vmatpush2.msra.mxu0 0.0
    %419 = vmatprep.mubr.f32.mxu0 0.0
    %420 = vmatmul.mubr.f32.gmra.mxu0 %v292
    %v421 = vpop.f32.mrf.mxu0
    %v422 = vadd.f32 0.0, %v421
    %v423 = vpop.f32.mrf.mxu0
    %424 = vmatprep.mubr.f32.mxu0 0.0
    %425 = vmatmul.mubr.f32.gmra.mxu0 %v295
    %v426 = vpop.f32.mrf.mxu0
    %v427 = vadd.f32 0.0, %v426
    %v428 = vpop.f32.mrf.mxu0
    %429 = vmatprep.mubr.f32.mxu0 0.0
    %430 = vmatmul.mubr.f32.gmra.mxu0 %v298
    %v431 = vpop.f32.mrf.mxu0
    %v432 = vadd.f32 0.0, %v431
    %v433 = vpop.f32.mrf.mxu0
    %434 = vmatprep.mubr.f32.mxu0 0.0
    %435 = vmatmul.mubr.f32.gmra.mxu0 %v301
    %v436 = vpop.f32.mrf.mxu0
    %v437 = vadd.f32 0.0, %v436
    %v438 = vpop.f32.mrf.mxu0
    %439 = vmatprep.mubr.f32.mxu0 0.0
    %440 = vmatmul.mubr.f32.gmra.mxu0 %v304
    %v441 = vpop.f32.mrf.mxu0
    %v442 = vadd.f32 0.0, %v441
    %v443 = vpop.f32.mrf.mxu0
    %444 = vmatprep.mubr.f32.mxu0 0.0
    %445 = vmatmul.mubr.f32.gmra.mxu0 %v307
    %v446 = vpop.f32.mrf.mxu0
    %v447 = vadd.f32 0.0, %v446
    %v448 = vpop.f32.mrf.mxu0
    %449 = vmatprep.mubr.f32.mxu0 0.0
    %450 = vmatmul.mubr.f32.gmra.mxu0 %v310
    %v451 = vpop.f32.mrf.mxu0
    %v452 = vadd.f32 0.0, %v451
    %v453 = vpop.f32.mrf.mxu0
    %454 = vmatprep.mubr.f32.mxu0 0.0
    %455 = vmatmul.mubr.f32.gmra.mxu0 %v313
    %v456 = vpop.f32.mrf.mxu0
    %v457 = vadd.f32 0.0, %v456
    %v458 = vpop.f32.mrf.mxu0
    %459 = vmatprep.mubr.f32.mxu0 0.0
    %460 = vmatmul.mubr.f32.gmra.mxu0 %v316
    %v461 = vpop.f32.mrf.mxu0
    %v462 = vadd.f32 0.0, %v461
    %v463 = vpop.f32.mrf.mxu0
    %464 = vmatprep.mubr.f32.mxu0 0.0
    %465 = vmatmul.mubr.f32.gmra.mxu0 %v319
    %v466 = vpop.f32.mrf.mxu0
    %v467 = vadd.f32 0.0, %v466
    %v468 = vpop.f32.mrf.mxu0
    %469 = vmatprep.mubr.f32.mxu0 0.0
    %470 = vmatmul.mubr.f32.gmra.mxu0 %v322
    %v471 = vpop.f32.mrf.mxu0
    %v472 = vadd.f32 0.0, %v471
    %v473 = vpop.f32.mrf.mxu0
    %474 = vmatprep.mubr.f32.mxu0 0.0
    %475 = vmatmul.mubr.f32.gmra.mxu0 %v325
    %v476 = vpop.f32.mrf.mxu0
    %v477 = vadd.f32 0.0, %v476
    %v478 = vpop.f32.mrf.mxu0
    %479 = vmatprep.mubr.f32.mxu0 0.0
    %480 = vmatmul.mubr.f32.gmra.mxu0 %v328
    %v481 = vpop.f32.mrf.mxu0
    %v482 = vadd.f32 0.0, %v481
    %v483 = vpop.f32.mrf.mxu0
    %484 = vmatprep.mubr.f32.mxu0 0.0
    %485 = vmatmul.mubr.f32.gmra.mxu0 %v331
    %v486 = vpop.f32.mrf.mxu0
    %v487 = vadd.f32 0.0, %v486
    %v488 = vpop.f32.mrf.mxu0
    %489 = vmatprep.mubr.f32.mxu0 0.0
    %490 = vmatmul.mubr.f32.gmra.mxu0 %v334
    %v491 = vpop.f32.mrf.mxu0
    %v492 = vadd.f32 0.0, %v491
    %v493 = vpop.f32.mrf.mxu0
    %494 = vmatprep.mubr.f32.mxu0 0.0
    %495 = vmatmul.mubr.f32.gmra.mxu0 %v337
    %v496 = vpop.f32.mrf.mxu0
    %v497 = vadd.f32 0.0, %v496
    %v498 = vpop.f32.mrf.mxu0
    %499 = vmatprep.mubr.f32.mxu0 0.0
    %500 = vmatmul.mubr.f32.gmra.mxu0 %v340
    %v501 = vpop.f32.mrf.mxu0
    %v502 = vadd.f32 0.0, %v501
    %v503 = vpop.f32.mrf.mxu0
    %504 = vmatprep.mubr.f32.mxu0 0.0
    %505 = vmatmul.mubr.f32.gmra.mxu0 %v343
    %v506 = vpop.f32.mrf.mxu0
    %v507 = vadd.f32 0.0, %v506
    %v508 = vpop.f32.mrf.mxu0
    %509 = vmatprep.mubr.f32.mxu0 0.0
    %510 = vmatmul.mubr.f32.gmra.mxu0 %v346
    %v511 = vpop.f32.mrf.mxu0
    %v512 = vadd.f32 0.0, %v511
    %v513 = vpop.f32.mrf.mxu0
    %514 = vmatprep.mubr.f32.mxu0 0.0
    %515 = vmatmul.mubr.f32.gmra.mxu0 %v349
    %v516 = vpop.f32.mrf.mxu0
    %v517 = vadd.f32 0.0, %v516
    %v518 = vpop.f32.mrf.mxu0
    %519 = vdwg.mxu0
    %v521 = vsel %vm290, 0.0, 0
    %v524 = vsel %vm351, %v287, 0
    %526 = vmatprep.subr.mxu0 0.0
    %527 = vmatpush1.msra.mxu0 0.0
    %528 = vmatprep.subr.mxu0 0.0
    %529 = vmatpush1.msra.mxu0 0.0
    %530 = vmatprep.subr.mxu0 0.0
    %531 = vmatpush1.msra.mxu0 0.0
    %532 = vmatprep.subr.mxu0 0.0
    %533 = vmatpush1.msra.mxu0 0.0
    %534 = vmatprep.subr.mxu0 0.0
    %535 = vmatpush1.msra.mxu0 0.0
    %536 = vmatprep.subr.mxu0 0.0
    %537 = vmatpush1.msra.mxu0 0.0
    %538 = vmatprep.subr.mxu0 0.0
    %539 = vmatpush1.msra.mxu0 0.0
    %540 = vmatprep.subr.mxu0 0.0
    %541 = vmatpush1.msra.mxu0 0.0
    %542 = vmatprep.subr.mxu0 0.0
    %543 = vmatpush1.msra.mxu0 0.0
    %544 = vmatprep.subr.mxu0 0.0
    %545 = vmatpush1.msra.mxu0 0.0
    %546 = vmatprep.subr.mxu0 0.0
    %547 = vmatpush1.msra.mxu0 0.0
    %548 = vmatprep.subr.mxu0 0.0
    %549 = vmatpush1.msra.mxu0 0.0
    %550 = vmatprep.subr.mxu0 0.0
    %551 = vmatpush1.msra.mxu0 0.0
    %552 = vmatprep.subr.mxu0 0.0
    %553 = vmatpush1.msra.mxu0 0.0
    %554 = vmatprep.subr.mxu0 0.0
    %555 = vmatpush1.msra.mxu0 0.0
    %556 = vmatprep.subr.mxu0 0.0
    %557 = vmatpush1.msra.mxu0 %v524
    %558 = vmatprep.subr.mxu0 0.0
    %559 = vmatpush2.msra.mxu0 0.0
    %560 = vmatprep.subr.mxu0 0.0
    %561 = vmatpush2.msra.mxu0 0.0
    %562 = vmatprep.subr.mxu0 0.0
    %563 = vmatpush2.msra.mxu0 0.0
    %564 = vmatprep.subr.mxu0 0.0
    %565 = vmatpush2.msra.mxu0 0.0
    %566 = vmatprep.subr.mxu0 0.0
    %567 = vmatpush2.msra.mxu0 0.0
    %568 = vmatprep.subr.mxu0 0.0
    %569 = vmatpush2.msra.mxu0 0.0
    %570 = vmatprep.subr.mxu0 0.0
    %571 = vmatpush2.msra.mxu0 0.0
    %572 = vmatprep.subr.mxu0 0.0
    %573 = vmatpush2.msra.mxu0 0.0
    %574 = vmatprep.subr.mxu0 0.0
    %575 = vmatpush2.msra.mxu0 0.0
    %576 = vmatprep.subr.mxu0 0.0
    %577 = vmatpush2.msra.mxu0 0.0
    %578 = vmatprep.subr.mxu0 0.0
    %579 = vmatpush2.msra.mxu0 0.0
    %580 = vmatprep.subr.mxu0 0.0
    %581 = vmatpush2.msra.mxu0 0.0
    %582 = vmatprep.subr.mxu0 0.0
    %583 = vmatpush2.msra.mxu0 0.0
    %584 = vmatprep.subr.mxu0 0.0
    %585 = vmatpush2.msra.mxu0 0.0
    %586 = vmatprep.subr.mxu0 0.0
    %587 = vmatpush2.msra.mxu0 0.0
    %588 = vmatprep.subr.mxu0 0.0
    %589 = vmatpush2.msra.mxu0 0.0
    %590 = vmatprep.mubr.f32.mxu0 0.0
    %591 = vmatmul.mubr.f32.gmra.mxu0 %v521
    %v592 = vpop.f32.mrf.mxu0
    %v593 = vadd.f32 %v422, %v592
    %v594 = vpop.f32.mrf.mxu0
    %595 = vmatprep.mubr.f32.mxu0 0.0
    %596 = vmatmul.mubr.f32.gmra.mxu0 %v292
    %v597 = vpop.f32.mrf.mxu0
    %v598 = vadd.f32 %v427, %v597
    %v599 = vpop.f32.mrf.mxu0
    %600 = vmatprep.mubr.f32.mxu0 0.0
    %601 = vmatmul.mubr.f32.gmra.mxu0 %v295
    %v602 = vpop.f32.mrf.mxu0
    %v603 = vadd.f32 %v432, %v602
    %v604 = vpop.f32.mrf.mxu0
    %605 = vmatprep.mubr.f32.mxu0 0.0
    %606 = vmatmul.mubr.f32.gmra.mxu0 %v298
    %v607 = vpop.f32.mrf.mxu0
    %v608 = vadd.f32 %v437, %v607
    %v609 = vpop.f32.mrf.mxu0
    %610 = vmatprep.mubr.f32.mxu0 0.0
    %611 = vmatmul.mubr.f32.gmra.mxu0 %v301
    %v612 = vpop.f32.mrf.mxu0
    %v613 = vadd.f32 %v442, %v612
    %v614 = vpop.f32.mrf.mxu0
    %615 = vmatprep.mubr.f32.mxu0 0.0
    %616 = vmatmul.mubr.f32.gmra.mxu0 %v304
    %v617 = vpop.f32.mrf.mxu0
    %v618 = vadd.f32 %v447, %v617
    %v619 = vpop.f32.mrf.mxu0
    %620 = vmatprep.mubr.f32.mxu0 0.0
    %621 = vmatmul.mubr.f32.gmra.mxu0 %v307
    %v622 = vpop.f32.mrf.mxu0
    %v623 = vadd.f32 %v452, %v622
    %v624 = vpop.f32.mrf.mxu0
    %625 = vmatprep.mubr.f32.mxu0 0.0
    %626 = vmatmul.mubr.f32.gmra.mxu0 %v310
    %v627 = vpop.f32.mrf.mxu0
    %v628 = vadd.f32 %v457, %v627
    %v629 = vpop.f32.mrf.mxu0
    %630 = vmatprep.mubr.f32.mxu0 0.0
    %631 = vmatmul.mubr.f32.gmra.mxu0 %v313
    %v632 = vpop.f32.mrf.mxu0
    %v633 = vadd.f32 %v462, %v632
    %v634 = vpop.f32.mrf.mxu0
    %635 = vmatprep.mubr.f32.mxu0 0.0
    %636 = vmatmul.mubr.f32.gmra.mxu0 %v316
    %v637 = vpop.f32.mrf.mxu0
    %v638 = vadd.f32 %v467, %v637
    %v639 = vpop.f32.mrf.mxu0
    %640 = vmatprep.mubr.f32.mxu0 0.0
    %641 = vmatmul.mubr.f32.gmra.mxu0 %v319
    %v642 = vpop.f32.mrf.mxu0
    %v643 = vadd.f32 %v472, %v642
    %v644 = vpop.f32.mrf.mxu0
    %645 = vmatprep.mubr.f32.mxu0 0.0
    %646 = vmatmul.mubr.f32.gmra.mxu0 %v322
    %v647 = vpop.f32.mrf.mxu0
    %v648 = vadd.f32 %v477, %v647
    %v649 = vpop.f32.mrf.mxu0
    %650 = vmatprep.mubr.f32.mxu0 0.0
    %651 = vmatmul.mubr.f32.gmra.mxu0 %v325
    %v652 = vpop.f32.mrf.mxu0
    %v653 = vadd.f32 %v482, %v652
    %v654 = vpop.f32.mrf.mxu0
    %655 = vmatprep.mubr.f32.mxu0 0.0
    %656 = vmatmul.mubr.f32.gmra.mxu0 %v328
    %v657 = vpop.f32.mrf.mxu0
    %v658 = vadd.f32 %v487, %v657
    %v659 = vpop.f32.mrf.mxu0
    %660 = vmatprep.mubr.f32.mxu0 0.0
    %661 = vmatmul.mubr.f32.gmra.mxu0 %v331
    %v662 = vpop.f32.mrf.mxu0
    %v663 = vadd.f32 %v492, %v662
    %v664 = vpop.f32.mrf.mxu0
    %665 = vmatprep.mubr.f32.mxu0 0.0
    %666 = vmatmul.mubr.f32.gmra.mxu0 %v334
    %v667 = vpop.f32.mrf.mxu0
    %v668 = vadd.f32 %v497, %v667
    %v669 = vpop.f32.mrf.mxu0
    %670 = vmatprep.mubr.f32.mxu0 0.0
    %671 = vmatmul.mubr.f32.gmra.mxu0 %v337
    %v672 = vpop.f32.mrf.mxu0
    %v673 = vadd.f32 %v502, %v672
    %v674 = vpop.f32.mrf.mxu0
    %675 = vmatprep.mubr.f32.mxu0 0.0
    %676 = vmatmul.mubr.f32.gmra.mxu0 %v340
    %v677 = vpop.f32.mrf.mxu0
    %v678 = vadd.f32 %v507, %v677
    %v679 = vpop.f32.mrf.mxu0
    %680 = vmatprep.mubr.f32.mxu0 0.0
    %681 = vmatmul.mubr.f32.gmra.mxu0 %v343
    %v682 = vpop.f32.mrf.mxu0
    %v683 = vadd.f32 %v512, %v682
    %v684 = vpop.f32.mrf.mxu0
    %685 = vmatprep.mubr.f32.mxu0 0.0
    %686 = vmatmul.mubr.f32.gmra.mxu0 %v346
    %v687 = vpop.f32.mrf.mxu0
    %v688 = vadd.f32 %v517, %v687
    %v689 = vpop.f32.mrf.mxu0
    %690 = vdwg.mxu0
    %s691 = scalar_lea.vmem [#allocation7], 8
    %v692 = vld [vmem:[%s691] sm:$0xf]
    %v694 = vsel %vm351, %v692, 0
    %696 = vmatprep.subr.mxu0 0.0
    %697 = vmatpush1.msra.mxu0 0.0
    %698 = vmatprep.subr.mxu0 0.0
    %699 = vmatpush1.msra.mxu0 0.0
    %700 = vmatprep.subr.mxu0 0.0
    %701 = vmatpush1.msra.mxu0 0.0
    %702 = vmatprep.subr.mxu0 0.0
    %703 = vmatpush1.msra.mxu0 0.0
    %704 = vmatprep.subr.mxu0 0.0
    %705 = vmatpush1.msra.mxu0 0.0
    %706 = vmatprep.subr.mxu0 0.0
    %707 = vmatpush1.msra.mxu0 0.0
    %708 = vmatprep.subr.mxu0 0.0
    %709 = vmatpush1.msra.mxu0 0.0
    %710 = vmatprep.subr.mxu0 0.0
    %711 = vmatpush1.msra.mxu0 0.0
    %712 = vmatprep.subr.mxu0 0.0
    %713 = vmatpush1.msra.mxu0 0.0
    %714 = vmatprep.subr.mxu0 0.0
    %715 = vmatpush1.msra.mxu0 0.0
    %716 = vmatprep.subr.mxu0 0.0
    %717 = vmatpush1.msra.mxu0 0.0
    %718 = vmatprep.subr.mxu0 0.0
    %719 = vmatpush1.msra.mxu0 0.0
    %720 = vmatprep.subr.mxu0 0.0
    %721 = vmatpush1.msra.mxu0 0.0
    %722 = vmatprep.subr.mxu0 0.0
    %723 = vmatpush1.msra.mxu0 0.0
    %724 = vmatprep.subr.mxu0 0.0
    %725 = vmatpush1.msra.mxu0 0.0
    %726 = vmatprep.subr.mxu0 0.0
    %727 = vmatpush1.msra.mxu0 %v694
    %728 = vmatprep.subr.mxu0 0.0
    %729 = vmatpush2.msra.mxu0 0.0
    %730 = vmatprep.subr.mxu0 0.0
    %731 = vmatpush2.msra.mxu0 0.0
    %732 = vmatprep.subr.mxu0 0.0
    %733 = vmatpush2.msra.mxu0 0.0
    %734 = vmatprep.subr.mxu0 0.0
    %735 = vmatpush2.msra.mxu0 0.0
    %736 = vmatprep.subr.mxu0 0.0
    %737 = vmatpush2.msra.mxu0 0.0
    %738 = vmatprep.subr.mxu0 0.0
    %739 = vmatpush2.msra.mxu0 0.0
    %740 = vmatprep.subr.mxu0 0.0
    %741 = vmatpush2.msra.mxu0 0.0
    %742 = vmatprep.subr.mxu0 0.0
    %743 = vmatpush2.msra.mxu0 0.0
    %744 = vmatprep.subr.mxu0 0.0
    %745 = vmatpush2.msra.mxu0 0.0
    %746 = vmatprep.subr.mxu0 0.0
    %747 = vmatpush2.msra.mxu0 0.0
    %748 = vmatprep.subr.mxu0 0.0
    %749 = vmatpush2.msra.mxu0 0.0
    %750 = vmatprep.subr.mxu0 0.0
    %751 = vmatpush2.msra.mxu0 0.0
    %752 = vmatprep.subr.mxu0 0.0
    %753 = vmatpush2.msra.mxu0 0.0
    %754 = vmatprep.subr.mxu0 0.0
    %755 = vmatpush2.msra.mxu0 0.0
    %756 = vmatprep.subr.mxu0 0.0
    %757 = vmatpush2.msra.mxu0 0.0
    %758 = vmatprep.subr.mxu0 0.0
    %759 = vmatpush2.msra.mxu0 0.0
    %760 = vmatprep.mubr.f32.mxu0 0.0
    %761 = vmatmul.mubr.f32.gmra.mxu0 %v295
    %v762 = vpop.f32.mrf.mxu0
    %v763 = vadd.f32 0.0, %v762
    %v764 = vpop.f32.mrf.mxu0
    %765 = vmatprep.mubr.f32.mxu0 0.0
    %766 = vmatmul.mubr.f32.gmra.mxu0 %v298
    %v767 = vpop.f32.mrf.mxu0
    %v768 = vadd.f32 0.0, %v767
    %v769 = vpop.f32.mrf.mxu0
    %770 = vmatprep.mubr.f32.mxu0 0.0
    %771 = vmatmul.mubr.f32.gmra.mxu0 %v301
    %v772 = vpop.f32.mrf.mxu0
    %v773 = vadd.f32 0.0, %v772
    %v774 = vpop.f32.mrf.mxu0
    %775 = vmatprep.mubr.f32.mxu0 0.0
    %776 = vmatmul.mubr.f32.gmra.mxu0 %v304
    %v777 = vpop.f32.mrf.mxu0
    %v778 = vadd.f32 0.0, %v777
    %v779 = vpop.f32.mrf.mxu0
    %780 = vmatprep.mubr.f32.mxu0 0.0
    %781 = vmatmul.mubr.f32.gmra.mxu0 %v307
    %v782 = vpop.f32.mrf.mxu0
    %v783 = vadd.f32 0.0, %v782
    %v784 = vpop.f32.mrf.mxu0
    %785 = vmatprep.mubr.f32.mxu0 0.0
    %786 = vmatmul.mubr.f32.gmra.mxu0 %v310
    %v787 = vpop.f32.mrf.mxu0
    %v788 = vadd.f32 0.0, %v787
    %v789 = vpop.f32.mrf.mxu0
    %790 = vmatprep.mubr.f32.mxu0 0.0
    %791 = vmatmul.mubr.f32.gmra.mxu0 %v313
    %v792 = vpop.f32.mrf.mxu0
    %v793 = vadd.f32 0.0, %v792
    %v794 = vpop.f32.mrf.mxu0
    %795 = vmatprep.mubr.f32.mxu0 0.0
    %796 = vmatmul.mubr.f32.gmra.mxu0 %v316
    %v797 = vpop.f32.mrf.mxu0
    %v798 = vadd.f32 0.0, %v797
    %v799 = vpop.f32.mrf.mxu0
    %800 = vmatprep.mubr.f32.mxu0 0.0
    %801 = vmatmul.mubr.f32.gmra.mxu0 %v319
    %v802 = vpop.f32.mrf.mxu0
    %v803 = vadd.f32 0.0, %v802
    %v804 = vpop.f32.mrf.mxu0
    %805 = vmatprep.mubr.f32.mxu0 0.0
    %806 = vmatmul.mubr.f32.gmra.mxu0 %v322
    %v807 = vpop.f32.mrf.mxu0
    %v808 = vadd.f32 0.0, %v807
    %v809 = vpop.f32.mrf.mxu0
    %810 = vmatprep.mubr.f32.mxu0 0.0
    %811 = vmatmul.mubr.f32.gmra.mxu0 %v325
    %v812 = vpop.f32.mrf.mxu0
    %v813 = vadd.f32 0.0, %v812
    %v814 = vpop.f32.mrf.mxu0
    %815 = vmatprep.mubr.f32.mxu0 0.0
    %816 = vmatmul.mubr.f32.gmra.mxu0 %v328
    %v817 = vpop.f32.mrf.mxu0
    %v818 = vadd.f32 0.0, %v817
    %v819 = vpop.f32.mrf.mxu0
    %820 = vmatprep.mubr.f32.mxu0 0.0
    %821 = vmatmul.mubr.f32.gmra.mxu0 %v331
    %v822 = vpop.f32.mrf.mxu0
    %v823 = vadd.f32 0.0, %v822
    %v824 = vpop.f32.mrf.mxu0
    %825 = vmatprep.mubr.f32.mxu0 0.0
    %826 = vmatmul.mubr.f32.gmra.mxu0 %v334
    %v827 = vpop.f32.mrf.mxu0
    %v828 = vadd.f32 0.0, %v827
    %v829 = vpop.f32.mrf.mxu0
    %830 = vmatprep.mubr.f32.mxu0 0.0
    %831 = vmatmul.mubr.f32.gmra.mxu0 %v337
    %v832 = vpop.f32.mrf.mxu0
    %v833 = vadd.f32 0.0, %v832
    %v834 = vpop.f32.mrf.mxu0
    %835 = vmatprep.mubr.f32.mxu0 0.0
    %836 = vmatmul.mubr.f32.gmra.mxu0 %v340
    %v837 = vpop.f32.mrf.mxu0
    %v838 = vadd.f32 0.0, %v837
    %v839 = vpop.f32.mrf.mxu0
    %840 = vmatprep.mubr.f32.mxu0 0.0
    %841 = vmatmul.mubr.f32.gmra.mxu0 %v343
    %v842 = vpop.f32.mrf.mxu0
    %v843 = vadd.f32 0.0, %v842
    %v844 = vpop.f32.mrf.mxu0
    %845 = vmatprep.mubr.f32.mxu0 0.0
    %846 = vmatmul.mubr.f32.gmra.mxu0 %v346
    %v847 = vpop.f32.mrf.mxu0
    %v848 = vadd.f32 0.0, %v847
    %v849 = vpop.f32.mrf.mxu0
    %850 = vmatprep.mubr.f32.mxu0 0.0
    %851 = vmatmul.mubr.f32.gmra.mxu0 %v349
    %v852 = vpop.f32.mrf.mxu0
    %v853 = vadd.f32 0.0, %v852
    %v854 = vpop.f32.mrf.mxu0
    %855 = vmatprep.mubr.f32.mxu0 0.0
    %856 = vmatmul.mubr.f32.gmra.mxu0 %v521
    %v857 = vpop.f32.mrf.mxu0
    %v858 = vadd.f32 0.0, %v857
    %v859 = vpop.f32.mrf.mxu0
    %860 = vdwg.mxu0
    %v861 = vadd.f32 %v593, %v763
    %v862 = vadd.f32 %v598, %v768
    %v863 = vadd.f32 %v603, %v773
    %v864 = vadd.f32 %v608, %v778
    %v865 = vadd.f32 %v613, %v783
    %v866 = vadd.f32 %v618, %v788
    %v867 = vadd.f32 %v623, %v793
    %v868 = vadd.f32 %v628, %v798
    %v869 = vadd.f32 %v633, %v803
    %v870 = vadd.f32 %v638, %v808
    %v871 = vadd.f32 %v643, %v813
    %v872 = vadd.f32 %v648, %v818
    %v873 = vadd.f32 %v653, %v823
    %v874 = vadd.f32 %v658, %v828
    %v875 = vadd.f32 %v663, %v833
    %v876 = vadd.f32 %v668, %v838
    %v877 = vadd.f32 %v673, %v843
    %v878 = vadd.f32 %v678, %v848
    %v879 = vadd.f32 %v683, %v853
    %v880 = vadd.f32 %v688, %v858
    %v881 = vld [vmem:[#allocation9] sm:$0x1]
    %v883 = vlaneseq
    %v884 = vshrl.u32 %v883, 7
    %v885 = vsub.s32 0, %v884
    %v886 = vrot.slane %v881, %v885
    %v888 = vmul.f32 %v861, %v886
    %v889 = vmul.f32 %v862, %v886
    %v890 = vmul.f32 %v863, %v886
    %v891 = vmul.f32 %v864, %v886
    %v892 = vmul.f32 %v865, %v886
    %v893 = vmul.f32 %v866, %v886
    %v894 = vmul.f32 %v867, %v886
    %v895 = vmul.f32 %v868, %v886
    %v896 = vmul.f32 %v869, %v886
    %v897 = vmul.f32 %v870, %v886
    %v898 = vmul.f32 %v871, %v886
    %v899 = vmul.f32 %v872, %v886
    %v900 = vmul.f32 %v873, %v886
    %v901 = vmul.f32 %v874, %v886
    %v902 = vmul.f32 %v875, %v886
    %v903 = vmul.f32 %v876, %v886
    %v904 = vmul.f32 %v877, %v886
    %v905 = vmul.f32 %v878, %v886
    %v906 = vmul.f32 %v879, %v886
    %v907 = vmul.f32 %v880, %v886
    %v908 = vld [vmem:[#allocation11] sm:$0x1]
    %v910 = vlaneseq
    %v911 = vshrl.u32 %v910, 7
    %v912 = vsub.s32 0, %v911
    %v913 = vrot.slane %v908, %v912
    %v915 = vadd.f32 %v888, %v913
    %v916 = vadd.f32 %v889, %v913
    %v917 = vadd.f32 %v890, %v913
    %v918 = vadd.f32 %v891, %v913
    %v919 = vadd.f32 %v892, %v913
    %v920 = vadd.f32 %v893, %v913
    %v921 = vadd.f32 %v894, %v913
    %v922 = vadd.f32 %v895, %v913
    %v923 = vadd.f32 %v896, %v913
    %v924 = vadd.f32 %v897, %v913
    %v925 = vadd.f32 %v898, %v913
    %v926 = vadd.f32 %v899, %v913
    %v927 = vadd.f32 %v900, %v913
    %v928 = vadd.f32 %v901, %v913
    %v929 = vadd.f32 %v902, %v913
    %v930 = vadd.f32 %v903, %v913
    %v931 = vadd.f32 %v904, %v913
    %v932 = vadd.f32 %v905, %v913
    %v933 = vadd.f32 %v906, %v913
    %v934 = vadd.f32 %v907, %v913
    %v935 = vmax.f32 %v915, 0.0
    %v936 = vmax.f32 %v916, 0.0
    %v937 = vmax.f32 %v917, 0.0
    %v938 = vmax.f32 %v918, 0.0
    %v939 = vmax.f32 %v919, 0.0
    %v940 = vmax.f32 %v920, 0.0
    %v941 = vmax.f32 %v921, 0.0
    %v942 = vmax.f32 %v922, 0.0
    %v943 = vmax.f32 %v923, 0.0
    %v944 = vmax.f32 %v924, 0.0
    %v945 = vmax.f32 %v925, 0.0
    %v946 = vmax.f32 %v926, 0.0
    %v947 = vmax.f32 %v927, 0.0
    %v948 = vmax.f32 %v928, 0.0
    %v949 = vmax.f32 %v929, 0.0
    %v950 = vmax.f32 %v930, 0.0
    %v951 = vmax.f32 %v931, 0.0
    %v952 = vmax.f32 %v932, 0.0
    %v953 = vmax.f32 %v933, 0.0
    %v954 = vmax.f32 %v934, 0.0
    %v955 = vld [vmem:[%s1] sm:$0xff]
    %v956 = vld [vmem:[%s1 + $0x8] sm:$0xff]
    %v957 = vld [vmem:[%s1 + $0x10] sm:$0xff]
    %v958 = vld [vmem:[%s1 + $0x18] sm:$0xff]
    %v959 = vld [vmem:[%s1 + $0x20] sm:$0xff]
    %v960 = vld [vmem:[%s1 + $0x28] sm:$0xff]
    %v961 = vld [vmem:[%s1 + $0x30] sm:$0xff]
    %v962 = vld [vmem:[%s1 + $0x38] sm:$0xff]
    %v963 = vld [vmem:[%s1 + $0x40] sm:$0xff]
    %v964 = vld [vmem:[%s1 + $0x48] sm:$0xff]
    %v965 = vld [vmem:[%s1 + $0x50] sm:$0xff]
    %v966 = vld [vmem:[%s1 + $0x58] sm:$0xff]
    %v967 = vld [vmem:[%s1 + $0x60] sm:$0xff]
    %v968 = vld [vmem:[%s1 + $0x68] sm:$0xff]
    %v969 = vld [vmem:[%s1 + $0x70] sm:$0xff]
    %v970 = vld [vmem:[%s1 + $0x78] sm:$0xff]
    %v971 = vld [vmem:[%s1 + $0x80] sm:$0xff]
    %v972 = vld [vmem:[%s1 + $0x88] sm:$0xff]
    %v973 = vld [vmem:[%s1 + $0x90] sm:$0xff]
    %v974 = vld [vmem:[%s1 + $0x98] sm:$0xff]
    %976 = vset.pattern.permute.xlu0 0
    %977 = vperm.xlu0 %976, %v955
    %v978 = vpop.permute.xlu0 %977
    %981 = vset.pattern.permute.xlu0 0
    %982 = vperm.xlu0 %981, %v956
    %v983 = vpop.permute.xlu0 %982
    %986 = vset.pattern.permute.xlu0 0
    %987 = vperm.xlu0 %986, %v957
    %v988 = vpop.permute.xlu0 %987
    %991 = vset.pattern.permute.xlu0 0
    %992 = vperm.xlu0 %991, %v958
    %v993 = vpop.permute.xlu0 %992
    %996 = vset.pattern.permute.xlu0 0
    %997 = vperm.xlu0 %996, %v959
    %v998 = vpop.permute.xlu0 %997
    %1001 = vset.pattern.permute.xlu0 0
    %1002 = vperm.xlu0 %1001, %v960
    %v1003 = vpop.permute.xlu0 %1002
    %1006 = vset.pattern.permute.xlu0 0
    %1007 = vperm.xlu0 %1006, %v961
    %v1008 = vpop.permute.xlu0 %1007
    %1011 = vset.pattern.permute.xlu0 0
    %1012 = vperm.xlu0 %1011, %v962
    %v1013 = vpop.permute.xlu0 %1012
    %1016 = vset.pattern.permute.xlu0 0
    %1017 = vperm.xlu0 %1016, %v963
    %v1018 = vpop.permute.xlu0 %1017
    %1021 = vset.pattern.permute.xlu0 0
    %1022 = vperm.xlu0 %1021, %v964
    %v1023 = vpop.permute.xlu0 %1022
    %1026 = vset.pattern.permute.xlu0 0
    %1027 = vperm.xlu0 %1026, %v965
    %v1028 = vpop.permute.xlu0 %1027
    %1031 = vset.pattern.permute.xlu0 0
    %1032 = vperm.xlu0 %1031, %v966
    %v1033 = vpop.permute.xlu0 %1032
    %1036 = vset.pattern.permute.xlu0 0
    %1037 = vperm.xlu0 %1036, %v967
    %v1038 = vpop.permute.xlu0 %1037
    %1041 = vset.pattern.permute.xlu0 0
    %1042 = vperm.xlu0 %1041, %v968
    %v1043 = vpop.permute.xlu0 %1042
    %1046 = vset.pattern.permute.xlu0 0
    %1047 = vperm.xlu0 %1046, %v969
    %v1048 = vpop.permute.xlu0 %1047
    %1051 = vset.pattern.permute.xlu0 0
    %1052 = vperm.xlu0 %1051, %v970
    %v1053 = vpop.permute.xlu0 %1052
    %1056 = vset.pattern.permute.xlu0 0
    %1057 = vperm.xlu0 %1056, %v971
    %v1058 = vpop.permute.xlu0 %1057
    %1061 = vset.pattern.permute.xlu0 0
    %1062 = vperm.xlu0 %1061, %v972
    %v1063 = vpop.permute.xlu0 %1062
    %1066 = vset.pattern.permute.xlu0 0
    %1067 = vperm.xlu0 %1066, %v973
    %v1068 = vpop.permute.xlu0 %1067
    %1071 = vset.pattern.permute.xlu0 0
    %1072 = vperm.xlu0 %1071, %v974
    %v1073 = vpop.permute.xlu0 %1072
    %v1075 = vmul.f32 %v935, %v978
    %v1076 = vmul.f32 %v936, %v983
    %v1077 = vmul.f32 %v937, %v988
    %v1078 = vmul.f32 %v938, %v993
    %v1079 = vmul.f32 %v939, %v998
    %v1080 = vmul.f32 %v940, %v1003
    %v1081 = vmul.f32 %v941, %v1008
    %v1082 = vmul.f32 %v942, %v1013
    %v1083 = vmul.f32 %v943, %v1018
    %v1084 = vmul.f32 %v944, %v1023
    %v1085 = vmul.f32 %v945, %v1028
    %v1086 = vmul.f32 %v946, %v1033
    %v1087 = vmul.f32 %v947, %v1038
    %v1088 = vmul.f32 %v948, %v1043
    %v1089 = vmul.f32 %v949, %v1048
    %v1090 = vmul.f32 %v950, %v1053
    %v1091 = vmul.f32 %v951, %v1058
    %v1092 = vmul.f32 %v952, %v1063
    %v1093 = vmul.f32 %v953, %v1068
    %v1094 = vmul.f32 %v954, %v1073
    %v1095 = vmax.f32 %v1075, 0.0
    %v1096 = vmax.f32 %v1075, %v1076
    %v1097 = vmax.f32 %v1076, %v1077
    %v1098 = vmax.f32 %v1077, %v1078
    %v1099 = vmax.f32 %v1078, %v1079
    %v1100 = vmax.f32 %v1079, %v1080
    %v1101 = vmax.f32 %v1080, %v1081
    %v1102 = vmax.f32 %v1081, %v1082
    %v1103 = vmax.f32 %v1082, %v1083
    %v1104 = vmax.f32 %v1083, %v1084
    %v1105 = vmax.f32 %v1084, %v1085
    %v1106 = vmax.f32 %v1085, %v1086
    %v1107 = vmax.f32 %v1086, %v1087
    %v1108 = vmax.f32 %v1087, %v1088
    %v1109 = vmax.f32 %v1088, %v1089
    %v1110 = vmax.f32 %v1089, %v1090
    %v1111 = vmax.f32 %v1090, %v1091
    %v1112 = vmax.f32 %v1091, %v1092
    %v1113 = vmax.f32 %v1092, %v1093
    %v1114 = vmax.f32 %v1093, %v1094
    %v1115 = vld [vmem:[#allocation12] sm:$0xff]
    %v1116 = vld [vmem:[#allocation12 + $0x8] sm:$0xff]
    %v1117 = vld [vmem:[#allocation12 + $0x10] sm:$0xff]
    %v1118 = vld [vmem:[#allocation12 + $0x18] sm:$0xff]
    %v1119 = vld [vmem:[#allocation12 + $0x20] sm:$0xff]
    %v1120 = vld [vmem:[#allocation12 + $0x28] sm:$0xff]
    %v1121 = vld [vmem:[#allocation12 + $0x30] sm:$0xff]
    %v1122 = vld [vmem:[#allocation12 + $0x38] sm:$0xff]
    %s1123 = scalar_lea.vmem [#allocation12], 64
    %v1124 = vld [vmem:[%s1123] sm:$0xff]
    %v1125 = vld [vmem:[%s1123 + $0x8] sm:$0xff]
    %v1126 = vld [vmem:[%s1123 + $0x10] sm:$0xff]
    %v1127 = vld [vmem:[%s1123 + $0x18] sm:$0xff]
    %v1128 = vld [vmem:[%s1123 + $0x20] sm:$0xff]
    %v1129 = vld [vmem:[%s1123 + $0x28] sm:$0xff]
    %v1130 = vld [vmem:[%s1123 + $0x30] sm:$0xff]
    %v1131 = vld [vmem:[%s1123 + $0x38] sm:$0xff]
    %vm1132 = vcmask 523264
    %v1134 = vsel %vm1132, %v1095, 0
    %v1137 = vsel %vm1132, %v1096, 0
    %v1140 = vsel %vm1132, %v1097, 0
    %v1143 = vsel %vm1132, %v1098, 0
    %v1146 = vsel %vm1132, %v1099, 0
    %v1149 = vsel %vm1132, %v1100, 0
    %v1152 = vsel %vm1132, %v1101, 0
    %v1155 = vsel %vm1132, %v1102, 0
    %v1158 = vsel %vm1132, %v1103, 0
    %v1161 = vsel %vm1132, %v1104, 0
    %v1164 = vsel %vm1132, %v1105, 0
    %v1167 = vsel %vm1132, %v1106, 0
    %v1170 = vsel %vm1132, %v1107, 0
    %v1173 = vsel %vm1132, %v1108, 0
    %v1176 = vsel %vm1132, %v1109, 0
    %v1179 = vsel %vm1132, %v1110, 0
    %v1182 = vsel %vm1132, %v1111, 0
    %v1185 = vsel %vm1132, %v1112, 0
    %v1188 = vsel %vm1132, %v1113, 0
    %v1191 = vsel %vm1132, %v1114, 0
    %1193 = vmatprep.subr.mxu0 0.0
    %1194 = vmatpush1.msra.mxu0 0.0
    %1195 = vmatprep.subr.mxu0 0.0
    %1196 = vmatpush1.msra.mxu0 0.0
    %1197 = vmatprep.subr.mxu0 0.0
    %1198 = vmatpush1.msra.mxu0 0.0
    %1199 = vmatprep.subr.mxu0 0.0
    %1200 = vmatpush1.msra.mxu0 0.0
    %1201 = vmatprep.subr.mxu0 0.0
    %1202 = vmatpush1.msra.mxu0 0.0
    %1203 = vmatprep.subr.mxu0 0.0
    %1204 = vmatpush1.msra.mxu0 0.0
    %1205 = vmatprep.subr.mxu0 0.0
    %1206 = vmatpush1.msra.mxu0 0.0
    %1207 = vmatprep.subr.mxu0 0.0
    %1208 = vmatpush1.msra.mxu0 0.0
    %1209 = vmatprep.subr.mxu0 0.0
    %1210 = vmatpush1.msra.mxu0 %v1131
    %1211 = vmatprep.subr.mxu0 0.0
    %1212 = vmatpush1.msra.mxu0 %v1130
    %1213 = vmatprep.subr.mxu0 0.0
    %1214 = vmatpush1.msra.mxu0 %v1129
    %1215 = vmatprep.subr.mxu0 0.0
    %1216 = vmatpush1.msra.mxu0 %v1128
    %1217 = vmatprep.subr.mxu0 0.0
    %1218 = vmatpush1.msra.mxu0 %v1127
    %1219 = vmatprep.subr.mxu0 0.0
    %1220 = vmatpush1.msra.mxu0 %v1126
    %1221 = vmatprep.subr.mxu0 0.0
    %1222 = vmatpush1.msra.mxu0 %v1125
    %1223 = vmatprep.subr.mxu0 0.0
    %1224 = vmatpush1.msra.mxu0 %v1124
    %1225 = vmatprep.subr.mxu0 0.0
    %1226 = vmatpush2.msra.mxu0 0.0
    %1227 = vmatprep.subr.mxu0 0.0
    %1228 = vmatpush2.msra.mxu0 0.0
    %1229 = vmatprep.subr.mxu0 0.0
    %1230 = vmatpush2.msra.mxu0 0.0
    %1231 = vmatprep.subr.mxu0 0.0
    %1232 = vmatpush2.msra.mxu0 0.0
    %1233 = vmatprep.subr.mxu0 0.0
    %1234 = vmatpush2.msra.mxu0 0.0
    %1235 = vmatprep.subr.mxu0 0.0
    %1236 = vmatpush2.msra.mxu0 0.0
    %1237 = vmatprep.subr.mxu0 0.0
    %1238 = vmatpush2.msra.mxu0 0.0
    %1239 = vmatprep.subr.mxu0 0.0
    %1240 = vmatpush2.msra.mxu0 0.0
    %1241 = vmatprep.subr.mxu0 0.0
    %1242 = vmatpush2.msra.mxu0 0.0
    %1243 = vmatprep.subr.mxu0 0.0
    %1244 = vmatpush2.msra.mxu0 0.0
    %1245 = vmatprep.subr.mxu0 0.0
    %1246 = vmatpush2.msra.mxu0 0.0
    %1247 = vmatprep.subr.mxu0 0.0
    %1248 = vmatpush2.msra.mxu0 0.0
    %1249 = vmatprep.subr.mxu0 0.0
    %1250 = vmatpush2.msra.mxu0 0.0
    %1251 = vmatprep.subr.mxu0 0.0
    %1252 = vmatpush2.msra.mxu0 0.0
    %1253 = vmatprep.subr.mxu0 0.0
    %1254 = vmatpush2.msra.mxu0 0.0
    %1255 = vmatprep.subr.mxu0 0.0
    %1256 = vmatpush2.msra.mxu0 0.0
    %1257 = vmatprep.mubr.f32.mxu0 0.0
    %1258 = vmatmul.mubr.f32.gmra.mxu0 %v1134
    %v1259 = vpop.f32.mrf.mxu0
    %v1260 = vadd.f32 0.0, %v1259
    %v1261 = vpop.f32.mrf.mxu0
    %1262 = vmatprep.mubr.f32.mxu0 0.0
    %1263 = vmatmul.mubr.f32.gmra.mxu0 %v1137
    %v1264 = vpop.f32.mrf.mxu0
    %v1265 = vadd.f32 0.0, %v1264
    %v1266 = vpop.f32.mrf.mxu0
    %1267 = vmatprep.mubr.f32.mxu0 0.0
    %1268 = vmatmul.mubr.f32.gmra.mxu0 %v1140
    %v1269 = vpop.f32.mrf.mxu0
    %v1270 = vadd.f32 0.0, %v1269
    %v1271 = vpop.f32.mrf.mxu0
    %1272 = vmatprep.mubr.f32.mxu0 0.0
    %1273 = vmatmul.mubr.f32.gmra.mxu0 %v1143
    %v1274 = vpop.f32.mrf.mxu0
    %v1275 = vadd.f32 0.0, %v1274
    %v1276 = vpop.f32.mrf.mxu0
    %1277 = vmatprep.mubr.f32.mxu0 0.0
    %1278 = vmatmul.mubr.f32.gmra.mxu0 %v1146
    %v1279 = vpop.f32.mrf.mxu0
    %v1280 = vadd.f32 0.0, %v1279
    %v1281 = vpop.f32.mrf.mxu0
    %1282 = vmatprep.mubr.f32.mxu0 0.0
    %1283 = vmatmul.mubr.f32.gmra.mxu0 %v1149
    %v1284 = vpop.f32.mrf.mxu0
    %v1285 = vadd.f32 0.0, %v1284
    %v1286 = vpop.f32.mrf.mxu0
    %1287 = vmatprep.mubr.f32.mxu0 0.0
    %1288 = vmatmul.mubr.f32.gmra.mxu0 %v1152
    %v1289 = vpop.f32.mrf.mxu0
    %v1290 = vadd.f32 0.0, %v1289
    %v1291 = vpop.f32.mrf.mxu0
    %1292 = vmatprep.mubr.f32.mxu0 0.0
    %1293 = vmatmul.mubr.f32.gmra.mxu0 %v1155
    %v1294 = vpop.f32.mrf.mxu0
    %v1295 = vadd.f32 0.0, %v1294
    %v1296 = vpop.f32.mrf.mxu0
    %1297 = vmatprep.mubr.f32.mxu0 0.0
    %1298 = vmatmul.mubr.f32.gmra.mxu0 %v1158
    %v1299 = vpop.f32.mrf.mxu0
    %v1300 = vadd.f32 0.0, %v1299
    %v1301 = vpop.f32.mrf.mxu0
    %1302 = vmatprep.mubr.f32.mxu0 0.0
    %1303 = vmatmul.mubr.f32.gmra.mxu0 %v1161
    %v1304 = vpop.f32.mrf.mxu0
    %v1305 = vadd.f32 0.0, %v1304
    %v1306 = vpop.f32.mrf.mxu0
    %1307 = vmatprep.mubr.f32.mxu0 0.0
    %1308 = vmatmul.mubr.f32.gmra.mxu0 %v1164
    %v1309 = vpop.f32.mrf.mxu0
    %v1310 = vadd.f32 0.0, %v1309
    %v1311 = vpop.f32.mrf.mxu0
    %1312 = vmatprep.mubr.f32.mxu0 0.0
    %1313 = vmatmul.mubr.f32.gmra.mxu0 %v1167
    %v1314 = vpop.f32.mrf.mxu0
    %v1315 = vadd.f32 0.0, %v1314
    %v1316 = vpop.f32.mrf.mxu0
    %1317 = vmatprep.mubr.f32.mxu0 0.0
    %1318 = vmatmul.mubr.f32.gmra.mxu0 %v1170
    %v1319 = vpop.f32.mrf.mxu0
    %v1320 = vadd.f32 0.0, %v1319
    %v1321 = vpop.f32.mrf.mxu0
    %1322 = vmatprep.mubr.f32.mxu0 0.0
    %1323 = vmatmul.mubr.f32.gmra.mxu0 %v1173
    %v1324 = vpop.f32.mrf.mxu0
    %v1325 = vadd.f32 0.0, %v1324
    %v1326 = vpop.f32.mrf.mxu0
    %1327 = vmatprep.mubr.f32.mxu0 0.0
    %1328 = vmatmul.mubr.f32.gmra.mxu0 %v1176
    %v1329 = vpop.f32.mrf.mxu0
    %v1330 = vadd.f32 0.0, %v1329
    %v1331 = vpop.f32.mrf.mxu0
    %1332 = vmatprep.mubr.f32.mxu0 0.0
    %1333 = vmatmul.mubr.f32.gmra.mxu0 %v1179
    %v1334 = vpop.f32.mrf.mxu0
    %v1335 = vadd.f32 0.0, %v1334
    %v1336 = vpop.f32.mrf.mxu0
    %1337 = vmatprep.mubr.f32.mxu0 0.0
    %1338 = vmatmul.mubr.f32.gmra.mxu0 %v1182
    %v1339 = vpop.f32.mrf.mxu0
    %v1340 = vadd.f32 0.0, %v1339
    %v1341 = vpop.f32.mrf.mxu0
    %1342 = vmatprep.mubr.f32.mxu0 0.0
    %1343 = vmatmul.mubr.f32.gmra.mxu0 %v1185
    %v1344 = vpop.f32.mrf.mxu0
    %v1345 = vadd.f32 0.0, %v1344
    %v1346 = vpop.f32.mrf.mxu0
    %1347 = vmatprep.mubr.f32.mxu0 0.0
    %1348 = vmatmul.mubr.f32.gmra.mxu0 %v1188
    %v1349 = vpop.f32.mrf.mxu0
    %v1350 = vadd.f32 0.0, %v1349
    %v1351 = vpop.f32.mrf.mxu0
    %1352 = vmatprep.mubr.f32.mxu0 0.0
    %1353 = vmatmul.mubr.f32.gmra.mxu0 %v1191
    %v1354 = vpop.f32.mrf.mxu0
    %v1355 = vadd.f32 0.0, %v1354
    %v1356 = vpop.f32.mrf.mxu0
    %1357 = vdwg.mxu0
    %v1358 = vsel %vm1132, 0.0, 0
    %1360 = vmatprep.subr.mxu0 0.0
    %1361 = vmatpush1.msra.mxu0 0.0
    %1362 = vmatprep.subr.mxu0 0.0
    %1363 = vmatpush1.msra.mxu0 0.0
    %1364 = vmatprep.subr.mxu0 0.0
    %1365 = vmatpush1.msra.mxu0 0.0
    %1366 = vmatprep.subr.mxu0 0.0
    %1367 = vmatpush1.msra.mxu0 0.0
    %1368 = vmatprep.subr.mxu0 0.0
    %1369 = vmatpush1.msra.mxu0 0.0
    %1370 = vmatprep.subr.mxu0 0.0
    %1371 = vmatpush1.msra.mxu0 0.0
    %1372 = vmatprep.subr.mxu0 0.0
    %1373 = vmatpush1.msra.mxu0 0.0
    %1374 = vmatprep.subr.mxu0 0.0
    %1375 = vmatpush1.msra.mxu0 0.0
    %1376 = vmatprep.subr.mxu0 0.0
    %1377 = vmatpush1.msra.mxu0 %v1122
    %1378 = vmatprep.subr.mxu0 0.0
    %1379 = vmatpush1.msra.mxu0 %v1121
    %1380 = vmatprep.subr.mxu0 0.0
    %1381 = vmatpush1.msra.mxu0 %v1120
    %1382 = vmatprep.subr.mxu0 0.0
    %1383 = vmatpush1.msra.mxu0 %v1119
    %1384 = vmatprep.subr.mxu0 0.0
    %1385 = vmatpush1.msra.mxu0 %v1118
    %1386 = vmatprep.subr.mxu0 0.0
    %1387 = vmatpush1.msra.mxu0 %v1117
    %1388 = vmatprep.subr.mxu0 0.0
    %1389 = vmatpush1.msra.mxu0 %v1116
    %1390 = vmatprep.subr.mxu0 0.0
    %1391 = vmatpush1.msra.mxu0 %v1115
    %1392 = vmatprep.subr.mxu0 0.0
    %1393 = vmatpush2.msra.mxu0 0.0
    %1394 = vmatprep.subr.mxu0 0.0
    %1395 = vmatpush2.msra.mxu0 0.0
    %1396 = vmatprep.subr.mxu0 0.0
    %1397 = vmatpush2.msra.mxu0 0.0
    %1398 = vmatprep.subr.mxu0 0.0
    %1399 = vmatpush2.msra.mxu0 0.0
    %1400 = vmatprep.subr.mxu0 0.0
    %1401 = vmatpush2.msra.mxu0 0.0
    %1402 = vmatprep.subr.mxu0 0.0
    %1403 = vmatpush2.msra.mxu0 0.0
    %1404 = vmatprep.subr.mxu0 0.0
    %1405 = vmatpush2.msra.mxu0 0.0
    %1406 = vmatprep.subr.mxu0 0.0
    %1407 = vmatpush2.msra.mxu0 0.0
    %1408 = vmatprep.subr.mxu0 0.0
    %1409 = vmatpush2.msra.mxu0 0.0
    %1410 = vmatprep.subr.mxu0 0.0
    %1411 = vmatpush2.msra.mxu0 0.0
    %1412 = vmatprep.subr.mxu0 0.0
    %1413 = vmatpush2.msra.mxu0 0.0
    %1414 = vmatprep.subr.mxu0 0.0
    %1415 = vmatpush2.msra.mxu0 0.0
    %1416 = vmatprep.subr.mxu0 0.0
    %1417 = vmatpush2.msra.mxu0 0.0
    %1418 = vmatprep.subr.mxu0 0.0
    %1419 = vmatpush2.msra.mxu0 0.0
    %1420 = vmatprep.subr.mxu0 0.0
    %1421 = vmatpush2.msra.mxu0 0.0
    %1422 = vmatprep.subr.mxu0 0.0
    %1423 = vmatpush2.msra.mxu0 0.0
    %1424 = vmatprep.mubr.f32.mxu0 0.0
    %1425 = vmatmul.mubr.f32.gmra.mxu0 %v1358
    %v1426 = vpop.f32.mrf.mxu0
    %v1427 = vadd.f32 %v1260, %v1426
    %v1428 = vpop.f32.mrf.mxu0
    %1429 = vmatprep.mubr.f32.mxu0 0.0
    %1430 = vmatmul.mubr.f32.gmra.mxu0 %v1134
    %v1431 = vpop.f32.mrf.mxu0
    %v1432 = vadd.f32 %v1265, %v1431
    %v1433 = vpop.f32.mrf.mxu0
    %1434 = vmatprep.mubr.f32.mxu0 0.0
    %1435 = vmatmul.mubr.f32.gmra.mxu0 %v1137
    %v1436 = vpop.f32.mrf.mxu0
    %v1437 = vadd.f32 %v1270, %v1436
    %v1438 = vpop.f32.mrf.mxu0
    %1439 = vmatprep.mubr.f32.mxu0 0.0
    %1440 = vmatmul.mubr.f32.gmra.mxu0 %v1140
    %v1441 = vpop.f32.mrf.mxu0
    %v1442 = vadd.f32 %v1275, %v1441
    %v1443 = vpop.f32.mrf.mxu0
    %1444 = vmatprep.mubr.f32.mxu0 0.0
    %1445 = vmatmul.mubr.f32.gmra.mxu0 %v1143
    %v1446 = vpop.f32.mrf.mxu0
    %v1447 = vadd.f32 %v1280, %v1446
    %v1448 = vpop.f32.mrf.mxu0
    %1449 = vmatprep.mubr.f32.mxu0 0.0
    %1450 = vmatmul.mubr.f32.gmra.mxu0 %v1146
    %v1451 = vpop.f32.mrf.mxu0
    %v1452 = vadd.f32 %v1285, %v1451
    %v1453 = vpop.f32.mrf.mxu0
    %1454 = vmatprep.mubr.f32.mxu0 0.0
    %1455 = vmatmul.mubr.f32.gmra.mxu0 %v1149
    %v1456 = vpop.f32.mrf.mxu0
    %v1457 = vadd.f32 %v1290, %v1456
    %v1458 = vpop.f32.mrf.mxu0
    %1459 = vmatprep.mubr.f32.mxu0 0.0
    %1460 = vmatmul.mubr.f32.gmra.mxu0 %v1152
    %v1461 = vpop.f32.mrf.mxu0
    %v1462 = vadd.f32 %v1295, %v1461
    %v1463 = vpop.f32.mrf.mxu0
    %1464 = vmatprep.mubr.f32.mxu0 0.0
    %1465 = vmatmul.mubr.f32.gmra.mxu0 %v1155
    %v1466 = vpop.f32.mrf.mxu0
    %v1467 = vadd.f32 %v1300, %v1466
    %v1468 = vpop.f32.mrf.mxu0
    %1469 = vmatprep.mubr.f32.mxu0 0.0
    %1470 = vmatmul.mubr.f32.gmra.mxu0 %v1158
    %v1471 = vpop.f32.mrf.mxu0
    %v1472 = vadd.f32 %v1305, %v1471
    %v1473 = vpop.f32.mrf.mxu0
    %1474 = vmatprep.mubr.f32.mxu0 0.0
    %1475 = vmatmul.mubr.f32.gmra.mxu0 %v1161
    %v1476 = vpop.f32.mrf.mxu0
    %v1477 = vadd.f32 %v1310, %v1476
    %v1478 = vpop.f32.mrf.mxu0
    %1479 = vmatprep.mubr.f32.mxu0 0.0
    %1480 = vmatmul.mubr.f32.gmra.mxu0 %v1164
    %v1481 = vpop.f32.mrf.mxu0
    %v1482 = vadd.f32 %v1315, %v1481
    %v1483 = vpop.f32.mrf.mxu0
    %1484 = vmatprep.mubr.f32.mxu0 0.0
    %1485 = vmatmul.mubr.f32.gmra.mxu0 %v1167
    %v1486 = vpop.f32.mrf.mxu0
    %v1487 = vadd.f32 %v1320, %v1486
    %v1488 = vpop.f32.mrf.mxu0
    %1489 = vmatprep.mubr.f32.mxu0 0.0
    %1490 = vmatmul.mubr.f32.gmra.mxu0 %v1170
    %v1491 = vpop.f32.mrf.mxu0
    %v1492 = vadd.f32 %v1325, %v1491
    %v1493 = vpop.f32.mrf.mxu0
    %1494 = vmatprep.mubr.f32.mxu0 0.0
    %1495 = vmatmul.mubr.f32.gmra.mxu0 %v1173
    %v1496 = vpop.f32.mrf.mxu0
    %v1497 = vadd.f32 %v1330, %v1496
    %v1498 = vpop.f32.mrf.mxu0
    %1499 = vmatprep.mubr.f32.mxu0 0.0
    %1500 = vmatmul.mubr.f32.gmra.mxu0 %v1176
    %v1501 = vpop.f32.mrf.mxu0
    %v1502 = vadd.f32 %v1335, %v1501
    %v1503 = vpop.f32.mrf.mxu0
    %1504 = vmatprep.mubr.f32.mxu0 0.0
    %1505 = vmatmul.mubr.f32.gmra.mxu0 %v1179
    %v1506 = vpop.f32.mrf.mxu0
    %v1507 = vadd.f32 %v1340, %v1506
    %v1508 = vpop.f32.mrf.mxu0
    %1509 = vmatprep.mubr.f32.mxu0 0.0
    %1510 = vmatmul.mubr.f32.gmra.mxu0 %v1182
    %v1511 = vpop.f32.mrf.mxu0
    %v1512 = vadd.f32 %v1345, %v1511
    %v1513 = vpop.f32.mrf.mxu0
    %1514 = vmatprep.mubr.f32.mxu0 0.0
    %1515 = vmatmul.mubr.f32.gmra.mxu0 %v1185
    %v1516 = vpop.f32.mrf.mxu0
    %v1517 = vadd.f32 %v1350, %v1516
    %v1518 = vpop.f32.mrf.mxu0
    %1519 = vmatprep.mubr.f32.mxu0 0.0
    %1520 = vmatmul.mubr.f32.gmra.mxu0 %v1188
    %v1521 = vpop.f32.mrf.mxu0
    %v1522 = vadd.f32 %v1355, %v1521
    %v1523 = vpop.f32.mrf.mxu0
    %1524 = vdwg.mxu0
    %s1525 = scalar_lea.vmem [#allocation12], 128
    %v1526 = vld [vmem:[%s1525] sm:$0xff]
    %v1527 = vld [vmem:[%s1525 + $0x8] sm:$0xff]
    %v1528 = vld [vmem:[%s1525 + $0x10] sm:$0xff]
    %v1529 = vld [vmem:[%s1525 + $0x18] sm:$0xff]
    %v1530 = vld [vmem:[%s1525 + $0x20] sm:$0xff]
    %v1531 = vld [vmem:[%s1525 + $0x28] sm:$0xff]
    %v1532 = vld [vmem:[%s1525 + $0x30] sm:$0xff]
    %v1533 = vld [vmem:[%s1525 + $0x38] sm:$0xff]
    %1534 = vmatprep.subr.mxu0 0.0
    %1535 = vmatpush1.msra.mxu0 0.0
    %1536 = vmatprep.subr.mxu0 0.0
    %1537 = vmatpush1.msra.mxu0 0.0
    %1538 = vmatprep.subr.mxu0 0.0
    %1539 = vmatpush1.msra.mxu0 0.0
    %1540 = vmatprep.subr.mxu0 0.0
    %1541 = vmatpush1.msra.mxu0 0.0
    %1542 = vmatprep.subr.mxu0 0.0
    %1543 = vmatpush1.msra.mxu0 0.0
    %1544 = vmatprep.subr.mxu0 0.0
    %1545 = vmatpush1.msra.mxu0 0.0
    %1546 = vmatprep.subr.mxu0 0.0
    %1547 = vmatpush1.msra.mxu0 0.0
    %1548 = vmatprep.subr.mxu0 0.0
    %1549 = vmatpush1.msra.mxu0 0.0
    %1550 = vmatprep.subr.mxu0 0.0
    %1551 = vmatpush1.msra.mxu0 %v1533
    %1552 = vmatprep.subr.mxu0 0.0
    %1553 = vmatpush1.msra.mxu0 %v1532
    %1554 = vmatprep.subr.mxu0 0.0
    %1555 = vmatpush1.msra.mxu0 %v1531
    %1556 = vmatprep.subr.mxu0 0.0
    %1557 = vmatpush1.msra.mxu0 %v1530
    %1558 = vmatprep.subr.mxu0 0.0
    %1559 = vmatpush1.msra.mxu0 %v1529
    %1560 = vmatprep.subr.mxu0 0.0
    %1561 = vmatpush1.msra.mxu0 %v1528
    %1562 = vmatprep.subr.mxu0 0.0
    %1563 = vmatpush1.msra.mxu0 %v1527
    %1564 = vmatprep.subr.mxu0 0.0
    %1565 = vmatpush1.msra.mxu0 %v1526
    %1566 = vmatprep.subr.mxu0 0.0
    %1567 = vmatpush2.msra.mxu0 0.0
    %1568 = vmatprep.subr.mxu0 0.0
    %1569 = vmatpush2.msra.mxu0 0.0
    %1570 = vmatprep.subr.mxu0 0.0
    %1571 = vmatpush2.msra.mxu0 0.0
    %1572 = vmatprep.subr.mxu0 0.0
    %1573 = vmatpush2.msra.mxu0 0.0
    %1574 = vmatprep.subr.mxu0 0.0
    %1575 = vmatpush2.msra.mxu0 0.0
    %1576 = vmatprep.subr.mxu0 0.0
    %1577 = vmatpush2.msra.mxu0 0.0
    %1578 = vmatprep.subr.mxu0 0.0
    %1579 = vmatpush2.msra.mxu0 0.0
    %1580 = vmatprep.subr.mxu0 0.0
    %1581 = vmatpush2.msra.mxu0 0.0
    %1582 = vmatprep.subr.mxu0 0.0
    %1583 = vmatpush2.msra.mxu0 0.0
    %1584 = vmatprep.subr.mxu0 0.0
    %1585 = vmatpush2.msra.mxu0 0.0
    %1586 = vmatprep.subr.mxu0 0.0
    %1587 = vmatpush2.msra.mxu0 0.0
    %1588 = vmatprep.subr.mxu0 0.0
    %1589 = vmatpush2.msra.mxu0 0.0
    %1590 = vmatprep.subr.mxu0 0.0
    %1591 = vmatpush2.msra.mxu0 0.0
    %1592 = vmatprep.subr.mxu0 0.0
    %1593 = vmatpush2.msra.mxu0 0.0
    %1594 = vmatprep.subr.mxu0 0.0
    %1595 = vmatpush2.msra.mxu0 0.0
    %1596 = vmatprep.subr.mxu0 0.0
    %1597 = vmatpush2.msra.mxu0 0.0
    %1598 = vmatprep.mubr.f32.mxu0 0.0
    %1599 = vmatmul.mubr.f32.gmra.mxu0 %v1137
    %v1600 = vpop.f32.mrf.mxu0
    %v1601 = vadd.f32 0.0, %v1600
    %v1602 = vpop.f32.mrf.mxu0
    %1603 = vmatprep.mubr.f32.mxu0 0.0
    %1604 = vmatmul.mubr.f32.gmra.mxu0 %v1140
    %v1605 = vpop.f32.mrf.mxu0
    %v1606 = vadd.f32 0.0, %v1605
    %v1607 = vpop.f32.mrf.mxu0
    %1608 = vmatprep.mubr.f32.mxu0 0.0
    %1609 = vmatmul.mubr.f32.gmra.mxu0 %v1143
    %v1610 = vpop.f32.mrf.mxu0
    %v1611 = vadd.f32 0.0, %v1610
    %v1612 = vpop.f32.mrf.mxu0
    %1613 = vmatprep.mubr.f32.mxu0 0.0
    %1614 = vmatmul.mubr.f32.gmra.mxu0 %v1146
    %v1615 = vpop.f32.mrf.mxu0
    %v1616 = vadd.f32 0.0, %v1615
    %v1617 = vpop.f32.mrf.mxu0
    %1618 = vmatprep.mubr.f32.mxu0 0.0
    %1619 = vmatmul.mubr.f32.gmra.mxu0 %v1149
    %v1620 = vpop.f32.mrf.mxu0
    %v1621 = vadd.f32 0.0, %v1620
    %v1622 = vpop.f32.mrf.mxu0
    %1623 = vmatprep.mubr.f32.mxu0 0.0
    %1624 = vmatmul.mubr.f32.gmra.mxu0 %v1152
    %v1625 = vpop.f32.mrf.mxu0
    %v1626 = vadd.f32 0.0, %v1625
    %v1627 = vpop.f32.mrf.mxu0
    %1628 = vmatprep.mubr.f32.mxu0 0.0
    %1629 = vmatmul.mubr.f32.gmra.mxu0 %v1155
    %v1630 = vpop.f32.mrf.mxu0
    %v1631 = vadd.f32 0.0, %v1630
    %v1632 = vpop.f32.mrf.mxu0
    %1633 = vmatprep.mubr.f32.mxu0 0.0
    %1634 = vmatmul.mubr.f32.gmra.mxu0 %v1158
    %v1635 = vpop.f32.mrf.mxu0
    %v1636 = vadd.f32 0.0, %v1635
    %v1637 = vpop.f32.mrf.mxu0
    %1638 = vmatprep.mubr.f32.mxu0 0.0
    %1639 = vmatmul.mubr.f32.gmra.mxu0 %v1161
    %v1640 = vpop.f32.mrf.mxu0
    %v1641 = vadd.f32 0.0, %v1640
    %v1642 = vpop.f32.mrf.mxu0
    %1643 = vmatprep.mubr.f32.mxu0 0.0
    %1644 = vmatmul.mubr.f32.gmra.mxu0 %v1164
    %v1645 = vpop.f32.mrf.mxu0
    %v1646 = vadd.f32 0.0, %v1645
    %v1647 = vpop.f32.mrf.mxu0
    %1648 = vmatprep.mubr.f32.mxu0 0.0
    %1649 = vmatmul.mubr.f32.gmra.mxu0 %v1167
    %v1650 = vpop.f32.mrf.mxu0
    %v1651 = vadd.f32 0.0, %v1650
    %v1652 = vpop.f32.mrf.mxu0
    %1653 = vmatprep.mubr.f32.mxu0 0.0
    %1654 = vmatmul.mubr.f32.gmra.mxu0 %v1170
    %v1655 = vpop.f32.mrf.mxu0
    %v1656 = vadd.f32 0.0, %v1655
    %v1657 = vpop.f32.mrf.mxu0
    %1658 = vmatprep.mubr.f32.mxu0 0.0
    %1659 = vmatmul.mubr.f32.gmra.mxu0 %v1173
    %v1660 = vpop.f32.mrf.mxu0
    %v1661 = vadd.f32 0.0, %v1660
    %v1662 = vpop.f32.mrf.mxu0
    %1663 = vmatprep.mubr.f32.mxu0 0.0
    %1664 = vmatmul.mubr.f32.gmra.mxu0 %v1176
    %v1665 = vpop.f32.mrf.mxu0
    %v1666 = vadd.f32 0.0, %v1665
    %v1667 = vpop.f32.mrf.mxu0
    %1668 = vmatprep.mubr.f32.mxu0 0.0
    %1669 = vmatmul.mubr.f32.gmra.mxu0 %v1179
    %v1670 = vpop.f32.mrf.mxu0
    %v1671 = vadd.f32 0.0, %v1670
    %v1672 = vpop.f32.mrf.mxu0
    %1673 = vmatprep.mubr.f32.mxu0 0.0
    %1674 = vmatmul.mubr.f32.gmra.mxu0 %v1182
    %v1675 = vpop.f32.mrf.mxu0
    %v1676 = vadd.f32 0.0, %v1675
    %v1677 = vpop.f32.mrf.mxu0
    %1678 = vmatprep.mubr.f32.mxu0 0.0
    %1679 = vmatmul.mubr.f32.gmra.mxu0 %v1185
    %v1680 = vpop.f32.mrf.mxu0
    %v1681 = vadd.f32 0.0, %v1680
    %v1682 = vpop.f32.mrf.mxu0
    %1683 = vmatprep.mubr.f32.mxu0 0.0
    %1684 = vmatmul.mubr.f32.gmra.mxu0 %v1188
    %v1685 = vpop.f32.mrf.mxu0
    %v1686 = vadd.f32 0.0, %v1685
    %v1687 = vpop.f32.mrf.mxu0
    %1688 = vmatprep.mubr.f32.mxu0 0.0
    %1689 = vmatmul.mubr.f32.gmra.mxu0 %v1191
    %v1690 = vpop.f32.mrf.mxu0
    %v1691 = vadd.f32 0.0, %v1690
    %v1692 = vpop.f32.mrf.mxu0
    %1693 = vmatprep.mubr.f32.mxu0 0.0
    %1694 = vmatmul.mubr.f32.gmra.mxu0 %v1358
    %v1695 = vpop.f32.mrf.mxu0
    %v1696 = vadd.f32 0.0, %v1695
    %v1697 = vpop.f32.mrf.mxu0
    %1698 = vdwg.mxu0
    %v1699 = vadd.f32 %v1427, %v1601
    %v1700 = vadd.f32 %v1432, %v1606
    %v1701 = vadd.f32 %v1437, %v1611
    %v1702 = vadd.f32 %v1442, %v1616
    %v1703 = vadd.f32 %v1447, %v1621
    %v1704 = vadd.f32 %v1452, %v1626
    %v1705 = vadd.f32 %v1457, %v1631
    %v1706 = vadd.f32 %v1462, %v1636
    %v1707 = vadd.f32 %v1467, %v1641
    %v1708 = vadd.f32 %v1472, %v1646
    %v1709 = vadd.f32 %v1477, %v1651
    %v1710 = vadd.f32 %v1482, %v1656
    %v1711 = vadd.f32 %v1487, %v1661
    %v1712 = vadd.f32 %v1492, %v1666
    %v1713 = vadd.f32 %v1497, %v1671
    %v1714 = vadd.f32 %v1502, %v1676
    %v1715 = vadd.f32 %v1507, %v1681
    %v1716 = vadd.f32 %v1512, %v1686
    %v1717 = vadd.f32 %v1517, %v1691
    %v1718 = vadd.f32 %v1522, %v1696
    %v1719 = vld [vmem:[#allocation14] sm:$0x1]
    %v1721 = vlaneseq
    %v1722 = vshrl.u32 %v1721, 7
    %v1723 = vsub.s32 0, %v1722
    %v1724 = vrot.slane %v1719, %v1723
    %v1726 = vmul.f32 %v1699, %v1724
    %v1727 = vmul.f32 %v1700, %v1724
    %v1728 = vmul.f32 %v1701, %v1724
    %v1729 = vmul.f32 %v1702, %v1724
    %v1730 = vmul.f32 %v1703, %v1724
    %v1731 = vmul.f32 %v1704, %v1724
    %v1732 = vmul.f32 %v1705, %v1724
    %v1733 = vmul.f32 %v1706, %v1724
    %v1734 = vmul.f32 %v1707, %v1724
    %v1735 = vmul.f32 %v1708, %v1724
    %v1736 = vmul.f32 %v1709, %v1724
    %v1737 = vmul.f32 %v1710, %v1724
    %v1738 = vmul.f32 %v1711, %v1724
    %v1739 = vmul.f32 %v1712, %v1724
    %v1740 = vmul.f32 %v1713, %v1724
    %v1741 = vmul.f32 %v1714, %v1724
    %v1742 = vmul.f32 %v1715, %v1724
    %v1743 = vmul.f32 %v1716, %v1724
    %v1744 = vmul.f32 %v1717, %v1724
    %v1745 = vmul.f32 %v1718, %v1724
    %v1746 = vld [vmem:[#allocation15] sm:$0x1]
    %v1748 = vlaneseq
    %v1749 = vshrl.u32 %v1748, 7
    %v1750 = vsub.s32 0, %v1749
    %v1751 = vrot.slane %v1746, %v1750
    %v1753 = vadd.f32 %v1726, %v1751
    %v1754 = vadd.f32 %v1727, %v1751
    %v1755 = vadd.f32 %v1728, %v1751
    %v1756 = vadd.f32 %v1729, %v1751
    %v1757 = vadd.f32 %v1730, %v1751
    %v1758 = vadd.f32 %v1731, %v1751
    %v1759 = vadd.f32 %v1732, %v1751
    %v1760 = vadd.f32 %v1733, %v1751
    %v1761 = vadd.f32 %v1734, %v1751
    %v1762 = vadd.f32 %v1735, %v1751
    %v1763 = vadd.f32 %v1736, %v1751
    %v1764 = vadd.f32 %v1737, %v1751
    %v1765 = vadd.f32 %v1738, %v1751
    %v1766 = vadd.f32 %v1739, %v1751
    %v1767 = vadd.f32 %v1740, %v1751
    %v1768 = vadd.f32 %v1741, %v1751
    %v1769 = vadd.f32 %v1742, %v1751
    %v1770 = vadd.f32 %v1743, %v1751
    %v1771 = vadd.f32 %v1744, %v1751
    %v1772 = vadd.f32 %v1745, %v1751
    %v1773 = vmax.f32 %v1753, 0.0
    %v1774 = vmax.f32 %v1754, 0.0
    %v1775 = vmax.f32 %v1755, 0.0
    %v1776 = vmax.f32 %v1756, 0.0
    %v1777 = vmax.f32 %v1757, 0.0
    %v1778 = vmax.f32 %v1758, 0.0
    %v1779 = vmax.f32 %v1759, 0.0
    %v1780 = vmax.f32 %v1760, 0.0
    %v1781 = vmax.f32 %v1761, 0.0
    %v1782 = vmax.f32 %v1762, 0.0
    %v1783 = vmax.f32 %v1763, 0.0
    %v1784 = vmax.f32 %v1764, 0.0
    %v1785 = vmax.f32 %v1765, 0.0
    %v1786 = vmax.f32 %v1766, 0.0
    %v1787 = vmax.f32 %v1767, 0.0
    %v1788 = vmax.f32 %v1768, 0.0
    %v1789 = vmax.f32 %v1769, 0.0
    %v1790 = vmax.f32 %v1770, 0.0
    %v1791 = vmax.f32 %v1771, 0.0
    %v1792 = vmax.f32 %v1772, 0.0
    %v1793 = vld [vmem:[%s2] sm:$0xff]
    %v1794 = vld [vmem:[%s2 + $0x8] sm:$0xff]
    %v1795 = vld [vmem:[%s2 + $0x10] sm:$0xff]
    %v1796 = vld [vmem:[%s2 + $0x18] sm:$0xff]
    %v1797 = vld [vmem:[%s2 + $0x20] sm:$0xff]
    %v1798 = vld [vmem:[%s2 + $0x28] sm:$0xff]
    %v1799 = vld [vmem:[%s2 + $0x30] sm:$0xff]
    %v1800 = vld [vmem:[%s2 + $0x38] sm:$0xff]
    %v1801 = vld [vmem:[%s2 + $0x40] sm:$0xff]
    %v1802 = vld [vmem:[%s2 + $0x48] sm:$0xff]
    %v1803 = vld [vmem:[%s2 + $0x50] sm:$0xff]
    %v1804 = vld [vmem:[%s2 + $0x58] sm:$0xff]
    %v1805 = vld [vmem:[%s2 + $0x60] sm:$0xff]
    %v1806 = vld [vmem:[%s2 + $0x68] sm:$0xff]
    %v1807 = vld [vmem:[%s2 + $0x70] sm:$0xff]
    %v1808 = vld [vmem:[%s2 + $0x78] sm:$0xff]
    %v1809 = vld [vmem:[%s2 + $0x80] sm:$0xff]
    %v1810 = vld [vmem:[%s2 + $0x88] sm:$0xff]
    %v1811 = vld [vmem:[%s2 + $0x90] sm:$0xff]
    %v1812 = vld [vmem:[%s2 + $0x98] sm:$0xff]
    %1814 = vset.pattern.permute.xlu0 0
    %1815 = vperm.xlu0 %1814, %v1793
    %v1816 = vpop.permute.xlu0 %1815
    %1819 = vset.pattern.permute.xlu0 0
    %1820 = vperm.xlu0 %1819, %v1794
    %v1821 = vpop.permute.xlu0 %1820
    %1824 = vset.pattern.permute.xlu0 0
    %1825 = vperm.xlu0 %1824, %v1795
    %v1826 = vpop.permute.xlu0 %1825
    %1829 = vset.pattern.permute.xlu0 0
    %1830 = vperm.xlu0 %1829, %v1796
    %v1831 = vpop.permute.xlu0 %1830
    %1834 = vset.pattern.permute.xlu0 0
    %1835 = vperm.xlu0 %1834, %v1797
    %v1836 = vpop.permute.xlu0 %1835
    %1839 = vset.pattern.permute.xlu0 0
    %1840 = vperm.xlu0 %1839, %v1798
    %v1841 = vpop.permute.xlu0 %1840
    %1844 = vset.pattern.permute.xlu0 0
    %1845 = vperm.xlu0 %1844, %v1799
    %v1846 = vpop.permute.xlu0 %1845
    %1849 = vset.pattern.permute.xlu0 0
    %1850 = vperm.xlu0 %1849, %v1800
    %v1851 = vpop.permute.xlu0 %1850
    %1854 = vset.pattern.permute.xlu0 0
    %1855 = vperm.xlu0 %1854, %v1801
    %v1856 = vpop.permute.xlu0 %1855
    %1859 = vset.pattern.permute.xlu0 0
    %1860 = vperm.xlu0 %1859, %v1802
    %v1861 = vpop.permute.xlu0 %1860
    %1864 = vset.pattern.permute.xlu0 0
    %1865 = vperm.xlu0 %1864, %v1803
    %v1866 = vpop.permute.xlu0 %1865
    %1869 = vset.pattern.permute.xlu0 0
    %1870 = vperm.xlu0 %1869, %v1804
    %v1871 = vpop.permute.xlu0 %1870
    %1874 = vset.pattern.permute.xlu0 0
    %1875 = vperm.xlu0 %1874, %v1805
    %v1876 = vpop.permute.xlu0 %1875
    %1879 = vset.pattern.permute.xlu0 0
    %1880 = vperm.xlu0 %1879, %v1806
    %v1881 = vpop.permute.xlu0 %1880
    %1884 = vset.pattern.permute.xlu0 0
    %1885 = vperm.xlu0 %1884, %v1807
    %v1886 = vpop.permute.xlu0 %1885
    %1889 = vset.pattern.permute.xlu0 0
    %1890 = vperm.xlu0 %1889, %v1808
    %v1891 = vpop.permute.xlu0 %1890
    %1894 = vset.pattern.permute.xlu0 0
    %1895 = vperm.xlu0 %1894, %v1809
    %v1896 = vpop.permute.xlu0 %1895
    %1899 = vset.pattern.permute.xlu0 0
    %1900 = vperm.xlu0 %1899, %v1810
    %v1901 = vpop.permute.xlu0 %1900
    %1904 = vset.pattern.permute.xlu0 0
    %1905 = vperm.xlu0 %1904, %v1811
    %v1906 = vpop.permute.xlu0 %1905
    %1909 = vset.pattern.permute.xlu0 0
    %1910 = vperm.xlu0 %1909, %v1812
    %v1911 = vpop.permute.xlu0 %1910
    %v1913 = vmul.f32 %v1773, %v1816
    %v1914 = vmul.f32 %v1774, %v1821
    %v1915 = vmul.f32 %v1775, %v1826
    %v1916 = vmul.f32 %v1776, %v1831
    %v1917 = vmul.f32 %v1777, %v1836
    %v1918 = vmul.f32 %v1778, %v1841
    %v1919 = vmul.f32 %v1779, %v1846
    %v1920 = vmul.f32 %v1780, %v1851
    %v1921 = vmul.f32 %v1781, %v1856
    %v1922 = vmul.f32 %v1782, %v1861
    %v1923 = vmul.f32 %v1783, %v1866
    %v1924 = vmul.f32 %v1784, %v1871
    %v1925 = vmul.f32 %v1785, %v1876
    %v1926 = vmul.f32 %v1786, %v1881
    %v1927 = vmul.f32 %v1787, %v1886
    %v1928 = vmul.f32 %v1788, %v1891
    %v1929 = vmul.f32 %v1789, %v1896
    %v1930 = vmul.f32 %v1790, %v1901
    %v1931 = vmul.f32 %v1791, %v1906
    %v1932 = vmul.f32 %v1792, %v1911
    %v1933 = vmax.f32 %v1913, 0.0
    %v1934 = vmax.f32 %v1913, %v1914
    %v1935 = vmax.f32 %v1914, %v1915
    %v1936 = vmax.f32 %v1915, %v1916
    %v1937 = vmax.f32 %v1916, %v1917
    %v1938 = vmax.f32 %v1917, %v1918
    %v1939 = vmax.f32 %v1918, %v1919
    %v1940 = vmax.f32 %v1919, %v1920
    %v1941 = vmax.f32 %v1920, %v1921
    %v1942 = vmax.f32 %v1921, %v1922
    %v1943 = vmax.f32 %v1922, %v1923
    %v1944 = vmax.f32 %v1923, %v1924
    %v1945 = vmax.f32 %v1924, %v1925
    %v1946 = vmax.f32 %v1925, %v1926
    %v1947 = vmax.f32 %v1926, %v1927
    %v1948 = vmax.f32 %v1927, %v1928
    %v1949 = vmax.f32 %v1928, %v1929
    %v1950 = vmax.f32 %v1929, %v1930
    %v1951 = vmax.f32 %v1930, %v1931
    %v1952 = vmax.f32 %v1931, %v1932
    %v1953 = vld [vmem:[#allocation17] sm:$0xff]
    %v1954 = vld [vmem:[#allocation17 + $0x8] sm:$0xff]
    %v1955 = vld [vmem:[#allocation17 + $0x10] sm:$0xff]
    %v1956 = vld [vmem:[#allocation17 + $0x18] sm:$0xff]
    %v1957 = vld [vmem:[#allocation17 + $0x20] sm:$0xff]
    %v1958 = vld [vmem:[#allocation17 + $0x28] sm:$0xff]
    %v1959 = vld [vmem:[#allocation17 + $0x30] sm:$0xff]
    %v1960 = vld [vmem:[#allocation17 + $0x38] sm:$0xff]
    %v1961 = vld [vmem:[#allocation17 + $0x40] sm:$0xff]
    %v1962 = vld [vmem:[#allocation17 + $0x48] sm:$0xff]
    %v1963 = vld [vmem:[#allocation17 + $0x50] sm:$0xff]
    %v1964 = vld [vmem:[#allocation17 + $0x58] sm:$0xff]
    %v1965 = vld [vmem:[#allocation17 + $0x60] sm:$0xff]
    %v1966 = vld [vmem:[#allocation17 + $0x68] sm:$0xff]
    %v1967 = vld [vmem:[#allocation17 + $0x70] sm:$0xff]
    %v1968 = vld [vmem:[#allocation17 + $0x78] sm:$0xff]
    %v1969 = vld [vmem:[#allocation17 + $0x80] sm:$0xff]
    %v1970 = vld [vmem:[#allocation17 + $0x88] sm:$0xff]
    %v1971 = vld [vmem:[#allocation17 + $0x90] sm:$0xff]
    %v1972 = vld [vmem:[#allocation17 + $0x98] sm:$0xff]
    %v1973 = vld [vmem:[#allocation17 + $0xa0] sm:$0xff]
    %v1974 = vld [vmem:[#allocation17 + $0xa8] sm:$0xff]
    %v1975 = vld [vmem:[#allocation17 + $0xb0] sm:$0xff]
    %v1976 = vld [vmem:[#allocation17 + $0xb8] sm:$0xff]
    %v1977 = vld [vmem:[#allocation17 + $0xc0] sm:$0xff]
    %v1978 = vld [vmem:[#allocation17 + $0xc8] sm:$0xff]
    %v1979 = vld [vmem:[#allocation17 + $0xd0] sm:$0xff]
    %v1980 = vld [vmem:[#allocation17 + $0xd8] sm:$0xff]
    %v1981 = vld [vmem:[#allocation17 + $0xe0] sm:$0xff]
    %v1982 = vld [vmem:[#allocation17 + $0xe8] sm:$0xff]
    %v1983 = vld [vmem:[#allocation17 + $0xf0] sm:$0xff]
    %v1984 = vld [vmem:[#allocation17 + $0xf8] sm:$0xff]
    %s1985 = scalar_lea.vmem [#allocation17], 256
    %v1986 = vld [vmem:[%s1985] sm:$0xff]
    %v1987 = vld [vmem:[%s1985 + $0x8] sm:$0xff]
    %v1988 = vld [vmem:[%s1985 + $0x10] sm:$0xff]
    %v1989 = vld [vmem:[%s1985 + $0x18] sm:$0xff]
    %v1990 = vld [vmem:[%s1985 + $0x20] sm:$0xff]
    %v1991 = vld [vmem:[%s1985 + $0x28] sm:$0xff]
    %v1992 = vld [vmem:[%s1985 + $0x30] sm:$0xff]
    %v1993 = vld [vmem:[%s1985 + $0x38] sm:$0xff]
    %v1994 = vld [vmem:[%s1985 + $0x40] sm:$0xff]
    %v1995 = vld [vmem:[%s1985 + $0x48] sm:$0xff]
    %v1996 = vld [vmem:[%s1985 + $0x50] sm:$0xff]
    %v1997 = vld [vmem:[%s1985 + $0x58] sm:$0xff]
    %v1998 = vld [vmem:[%s1985 + $0x60] sm:$0xff]
    %v1999 = vld [vmem:[%s1985 + $0x68] sm:$0xff]
    %v2000 = vld [vmem:[%s1985 + $0x70] sm:$0xff]
    %v2001 = vld [vmem:[%s1985 + $0x78] sm:$0xff]
    %v2002 = vld [vmem:[%s1985 + $0x80] sm:$0xff]
    %v2003 = vld [vmem:[%s1985 + $0x88] sm:$0xff]
    %v2004 = vld [vmem:[%s1985 + $0x90] sm:$0xff]
    %v2005 = vld [vmem:[%s1985 + $0x98] sm:$0xff]
    %v2006 = vld [vmem:[%s1985 + $0xa0] sm:$0xff]
    %v2007 = vld [vmem:[%s1985 + $0xa8] sm:$0xff]
    %v2008 = vld [vmem:[%s1985 + $0xb0] sm:$0xff]
    %v2009 = vld [vmem:[%s1985 + $0xb8] sm:$0xff]
    %v2010 = vld [vmem:[%s1985 + $0xc0] sm:$0xff]
    %v2011 = vld [vmem:[%s1985 + $0xc8] sm:$0xff]
    %v2012 = vld [vmem:[%s1985 + $0xd0] sm:$0xff]
    %v2013 = vld [vmem:[%s1985 + $0xd8] sm:$0xff]
    %v2014 = vld [vmem:[%s1985 + $0xe0] sm:$0xff]
    %v2015 = vld [vmem:[%s1985 + $0xe8] sm:$0xff]
    %v2016 = vld [vmem:[%s1985 + $0xf0] sm:$0xff]
    %v2017 = vld [vmem:[%s1985 + $0xf8] sm:$0xff]
    %2018 = vmatprep.subr.mxu0 %v2017
    %2019 = vmatpush1.msra.mxu0 %v2016
    %2020 = vmatprep.subr.mxu0 %v2015
    %2021 = vmatpush1.msra.mxu0 %v2014
    %2022 = vmatprep.subr.mxu0 %v2013
    %2023 = vmatpush1.msra.mxu0 %v2012
    %2024 = vmatprep.subr.mxu0 %v2011
    %2025 = vmatpush1.msra.mxu0 %v2010
    %2026 = vmatprep.subr.mxu0 %v2009
    %2027 = vmatpush1.msra.mxu0 %v2008
    %2028 = vmatprep.subr.mxu0 %v2007
    %2029 = vmatpush1.msra.mxu0 %v2006
    %2030 = vmatprep.subr.mxu0 %v2005
    %2031 = vmatpush1.msra.mxu0 %v2004
    %2032 = vmatprep.subr.mxu0 %v2003
    %2033 = vmatpush1.msra.mxu0 %v2002
    %2034 = vmatprep.subr.mxu0 %v2001
    %2035 = vmatpush1.msra.mxu0 %v2000
    %2036 = vmatprep.subr.mxu0 %v1999
    %2037 = vmatpush1.msra.mxu0 %v1998
    %2038 = vmatprep.subr.mxu0 %v1997
    %2039 = vmatpush1.msra.mxu0 %v1996
    %2040 = vmatprep.subr.mxu0 %v1995
    %2041 = vmatpush1.msra.mxu0 %v1994
    %2042 = vmatprep.subr.mxu0 %v1993
    %2043 = vmatpush1.msra.mxu0 %v1992
    %2044 = vmatprep.subr.mxu0 %v1991
    %2045 = vmatpush1.msra.mxu0 %v1990
    %2046 = vmatprep.subr.mxu0 %v1989
    %2047 = vmatpush1.msra.mxu0 %v1988
    %2048 = vmatprep.subr.mxu0 %v1987
    %2049 = vmatpush1.msra.mxu0 %v1986
    %2050 = vmatprep.subr.mxu0 0.0
    %2051 = vmatpush2.msra.mxu0 0.0
    %2052 = vmatprep.subr.mxu0 0.0
    %2053 = vmatpush2.msra.mxu0 0.0
    %2054 = vmatprep.subr.mxu0 0.0
    %2055 = vmatpush2.msra.mxu0 0.0
    %2056 = vmatprep.subr.mxu0 0.0
    %2057 = vmatpush2.msra.mxu0 0.0
    %2058 = vmatprep.subr.mxu0 0.0
    %2059 = vmatpush2.msra.mxu0 0.0
    %2060 = vmatprep.subr.mxu0 0.0
    %2061 = vmatpush2.msra.mxu0 0.0
    %2062 = vmatprep.subr.mxu0 0.0
    %2063 = vmatpush2.msra.mxu0 0.0
    %2064 = vmatprep.subr.mxu0 0.0
    %2065 = vmatpush2.msra.mxu0 0.0
    %2066 = vmatprep.subr.mxu0 0.0
    %2067 = vmatpush2.msra.mxu0 0.0
    %2068 = vmatprep.subr.mxu0 0.0
    %2069 = vmatpush2.msra.mxu0 0.0
    %2070 = vmatprep.subr.mxu0 0.0
    %2071 = vmatpush2.msra.mxu0 0.0
    %2072 = vmatprep.subr.mxu0 0.0
    %2073 = vmatpush2.msra.mxu0 0.0
    %2074 = vmatprep.subr.mxu0 0.0
    %2075 = vmatpush2.msra.mxu0 0.0
    %2076 = vmatprep.subr.mxu0 0.0
    %2077 = vmatpush2.msra.mxu0 0.0
    %2078 = vmatprep.subr.mxu0 0.0
    %2079 = vmatpush2.msra.mxu0 0.0
    %2080 = vmatprep.subr.mxu0 0.0
    %2081 = vmatpush2.msra.mxu0 0.0
    %2082 = vmatprep.mubr.f32.mxu0 0.0
    %2083 = vmatmul.mubr.f32.gmra.mxu0 %v1933
    %v2084 = vpop.f32.mrf.mxu0
    %v2085 = vadd.f32 0.0, %v2084
    %v2086 = vpop.f32.mrf.mxu0
    %v2087 = vadd.f32 0.0, %v2086
    %2088 = vmatprep.mubr.f32.mxu0 0.0
    %2089 = vmatmul.mubr.f32.gmra.mxu0 %v1934
    %v2090 = vpop.f32.mrf.mxu0
    %v2091 = vadd.f32 0.0, %v2090
    %v2092 = vpop.f32.mrf.mxu0
    %v2093 = vadd.f32 0.0, %v2092
    %2094 = vmatprep.mubr.f32.mxu0 0.0
    %2095 = vmatmul.mubr.f32.gmra.mxu0 %v1935
    %v2096 = vpop.f32.mrf.mxu0
    %v2097 = vadd.f32 0.0, %v2096
    %v2098 = vpop.f32.mrf.mxu0
    %v2099 = vadd.f32 0.0, %v2098
    %2100 = vmatprep.mubr.f32.mxu0 0.0
    %2101 = vmatmul.mubr.f32.gmra.mxu0 %v1936
    %v2102 = vpop.f32.mrf.mxu0
    %v2103 = vadd.f32 0.0, %v2102
    %v2104 = vpop.f32.mrf.mxu0
    %v2105 = vadd.f32 0.0, %v2104
    %2106 = vmatprep.mubr.f32.mxu0 0.0
    %2107 = vmatmul.mubr.f32.gmra.mxu0 %v1937
    %v2108 = vpop.f32.mrf.mxu0
    %v2109 = vadd.f32 0.0, %v2108
    %v2110 = vpop.f32.mrf.mxu0
    %v2111 = vadd.f32 0.0, %v2110
    %2112 = vmatprep.mubr.f32.mxu0 0.0
    %2113 = vmatmul.mubr.f32.gmra.mxu0 %v1938
    %v2114 = vpop.f32.mrf.mxu0
    %v2115 = vadd.f32 0.0, %v2114
    %v2116 = vpop.f32.mrf.mxu0
    %v2117 = vadd.f32 0.0, %v2116
    %2118 = vmatprep.mubr.f32.mxu0 0.0
    %2119 = vmatmul.mubr.f32.gmra.mxu0 %v1939
    %v2120 = vpop.f32.mrf.mxu0
    %v2121 = vadd.f32 0.0, %v2120
    %v2122 = vpop.f32.mrf.mxu0
    %v2123 = vadd.f32 0.0, %v2122
    %2124 = vmatprep.mubr.f32.mxu0 0.0
    %2125 = vmatmul.mubr.f32.gmra.mxu0 %v1940
    %v2126 = vpop.f32.mrf.mxu0
    %v2127 = vadd.f32 0.0, %v2126
    %v2128 = vpop.f32.mrf.mxu0
    %v2129 = vadd.f32 0.0, %v2128
    %2130 = vmatprep.mubr.f32.mxu0 0.0
    %2131 = vmatmul.mubr.f32.gmra.mxu0 %v1941
    %v2132 = vpop.f32.mrf.mxu0
    %v2133 = vadd.f32 0.0, %v2132
    %v2134 = vpop.f32.mrf.mxu0
    %v2135 = vadd.f32 0.0, %v2134
    %2136 = vmatprep.mubr.f32.mxu0 0.0
    %2137 = vmatmul.mubr.f32.gmra.mxu0 %v1942
    %v2138 = vpop.f32.mrf.mxu0
    %v2139 = vadd.f32 0.0, %v2138
    %v2140 = vpop.f32.mrf.mxu0
    %v2141 = vadd.f32 0.0, %v2140
    %2142 = vmatprep.mubr.f32.mxu0 0.0
    %2143 = vmatmul.mubr.f32.gmra.mxu0 %v1943
    %v2144 = vpop.f32.mrf.mxu0
    %v2145 = vadd.f32 0.0, %v2144
    %v2146 = vpop.f32.mrf.mxu0
    %v2147 = vadd.f32 0.0, %v2146
    %2148 = vmatprep.mubr.f32.mxu0 0.0
    %2149 = vmatmul.mubr.f32.gmra.mxu0 %v1944
    %v2150 = vpop.f32.mrf.mxu0
    %v2151 = vadd.f32 0.0, %v2150
    %v2152 = vpop.f32.mrf.mxu0
    %v2153 = vadd.f32 0.0, %v2152
    %2154 = vmatprep.mubr.f32.mxu0 0.0
    %2155 = vmatmul.mubr.f32.gmra.mxu0 %v1945
    %v2156 = vpop.f32.mrf.mxu0
    %v2157 = vadd.f32 0.0, %v2156
    %v2158 = vpop.f32.mrf.mxu0
    %v2159 = vadd.f32 0.0, %v2158
    %2160 = vmatprep.mubr.f32.mxu0 0.0
    %2161 = vmatmul.mubr.f32.gmra.mxu0 %v1946
    %v2162 = vpop.f32.mrf.mxu0
    %v2163 = vadd.f32 0.0, %v2162
    %v2164 = vpop.f32.mrf.mxu0
    %v2165 = vadd.f32 0.0, %v2164
    %2166 = vmatprep.mubr.f32.mxu0 0.0
    %2167 = vmatmul.mubr.f32.gmra.mxu0 %v1947
    %v2168 = vpop.f32.mrf.mxu0
    %v2169 = vadd.f32 0.0, %v2168
    %v2170 = vpop.f32.mrf.mxu0
    %v2171 = vadd.f32 0.0, %v2170
    %2172 = vmatprep.mubr.f32.mxu0 0.0
    %2173 = vmatmul.mubr.f32.gmra.mxu0 %v1948
    %v2174 = vpop.f32.mrf.mxu0
    %v2175 = vadd.f32 0.0, %v2174
    %v2176 = vpop.f32.mrf.mxu0
    %v2177 = vadd.f32 0.0, %v2176
    %2178 = vmatprep.mubr.f32.mxu0 0.0
    %2179 = vmatmul.mubr.f32.gmra.mxu0 %v1949
    %v2180 = vpop.f32.mrf.mxu0
    %v2181 = vadd.f32 0.0, %v2180
    %v2182 = vpop.f32.mrf.mxu0
    %v2183 = vadd.f32 0.0, %v2182
    %2184 = vmatprep.mubr.f32.mxu0 0.0
    %2185 = vmatmul.mubr.f32.gmra.mxu0 %v1950
    %v2186 = vpop.f32.mrf.mxu0
    %v2187 = vadd.f32 0.0, %v2186
    %v2188 = vpop.f32.mrf.mxu0
    %v2189 = vadd.f32 0.0, %v2188
    %2190 = vmatprep.mubr.f32.mxu0 0.0
    %2191 = vmatmul.mubr.f32.gmra.mxu0 %v1951
    %v2192 = vpop.f32.mrf.mxu0
    %v2193 = vadd.f32 0.0, %v2192
    %v2194 = vpop.f32.mrf.mxu0
    %v2195 = vadd.f32 0.0, %v2194
    %2196 = vmatprep.mubr.f32.mxu0 0.0
    %2197 = vmatmul.mubr.f32.gmra.mxu0 %v1952
    %v2198 = vpop.f32.mrf.mxu0
    %v2199 = vadd.f32 0.0, %v2198
    %v2200 = vpop.f32.mrf.mxu0
    %v2201 = vadd.f32 0.0, %v2200
    %2202 = vdwg.mxu0
    %2203 = vmatprep.subr.mxu0 %v1984
    %2204 = vmatpush1.msra.mxu0 %v1983
    %2205 = vmatprep.subr.mxu0 %v1982
    %2206 = vmatpush1.msra.mxu0 %v1981
    %2207 = vmatprep.subr.mxu0 %v1980
    %2208 = vmatpush1.msra.mxu0 %v1979
    %2209 = vmatprep.subr.mxu0 %v1978
    %2210 = vmatpush1.msra.mxu0 %v1977
    %2211 = vmatprep.subr.mxu0 %v1976
    %2212 = vmatpush1.msra.mxu0 %v1975
    %2213 = vmatprep.subr.mxu0 %v1974
    %2214 = vmatpush1.msra.mxu0 %v1973
    %2215 = vmatprep.subr.mxu0 %v1972
    %2216 = vmatpush1.msra.mxu0 %v1971
    %2217 = vmatprep.subr.mxu0 %v1970
    %2218 = vmatpush1.msra.mxu0 %v1969
    %2219 = vmatprep.subr.mxu0 %v1968
    %2220 = vmatpush1.msra.mxu0 %v1967
    %2221 = vmatprep.subr.mxu0 %v1966
    %2222 = vmatpush1.msra.mxu0 %v1965
    %2223 = vmatprep.subr.mxu0 %v1964
    %2224 = vmatpush1.msra.mxu0 %v1963
    %2225 = vmatprep.subr.mxu0 %v1962
    %2226 = vmatpush1.msra.mxu0 %v1961
    %2227 = vmatprep.subr.mxu0 %v1960
    %2228 = vmatpush1.msra.mxu0 %v1959
    %2229 = vmatprep.subr.mxu0 %v1958
    %2230 = vmatpush1.msra.mxu0 %v1957
    %2231 = vmatprep.subr.mxu0 %v1956
    %2232 = vmatpush1.msra.mxu0 %v1955
    %2233 = vmatprep.subr.mxu0 %v1954
    %2234 = vmatpush1.msra.mxu0 %v1953
    %2235 = vmatprep.subr.mxu0 0.0
    %2236 = vmatpush2.msra.mxu0 0.0
    %2237 = vmatprep.subr.mxu0 0.0
    %2238 = vmatpush2.msra.mxu0 0.0
    %2239 = vmatprep.subr.mxu0 0.0
    %2240 = vmatpush2.msra.mxu0 0.0
    %2241 = vmatprep.subr.mxu0 0.0
    %2242 = vmatpush2.msra.mxu0 0.0
    %2243 = vmatprep.subr.mxu0 0.0
    %2244 = vmatpush2.msra.mxu0 0.0
    %2245 = vmatprep.subr.mxu0 0.0
    %2246 = vmatpush2.msra.mxu0 0.0
    %2247 = vmatprep.subr.mxu0 0.0
    %2248 = vmatpush2.msra.mxu0 0.0
    %2249 = vmatprep.subr.mxu0 0.0
    %2250 = vmatpush2.msra.mxu0 0.0
    %2251 = vmatprep.subr.mxu0 0.0
    %2252 = vmatpush2.msra.mxu0 0.0
    %2253 = vmatprep.subr.mxu0 0.0
    %2254 = vmatpush2.msra.mxu0 0.0
    %2255 = vmatprep.subr.mxu0 0.0
    %2256 = vmatpush2.msra.mxu0 0.0
    %2257 = vmatprep.subr.mxu0 0.0
    %2258 = vmatpush2.msra.mxu0 0.0
    %2259 = vmatprep.subr.mxu0 0.0
    %2260 = vmatpush2.msra.mxu0 0.0
    %2261 = vmatprep.subr.mxu0 0.0
    %2262 = vmatpush2.msra.mxu0 0.0
    %2263 = vmatprep.subr.mxu0 0.0
    %2264 = vmatpush2.msra.mxu0 0.0
    %2265 = vmatprep.subr.mxu0 0.0
    %2266 = vmatpush2.msra.mxu0 0.0
    %2267 = vmatprep.mubr.f32.mxu0 0.0
    %2268 = vmatmul.mubr.f32.gmra.mxu0 0.0
    %v2269 = vpop.f32.mrf.mxu0
    %v2270 = vadd.f32 %v2085, %v2269
    %v2271 = vpop.f32.mrf.mxu0
    %v2272 = vadd.f32 %v2087, %v2271
    %2273 = vmatprep.mubr.f32.mxu0 0.0
    %2274 = vmatmul.mubr.f32.gmra.mxu0 %v1933
    %v2275 = vpop.f32.mrf.mxu0
    %v2276 = vadd.f32 %v2091, %v2275
    %v2277 = vpop.f32.mrf.mxu0
    %v2278 = vadd.f32 %v2093, %v2277
    %2279 = vmatprep.mubr.f32.mxu0 0.0
    %2280 = vmatmul.mubr.f32.gmra.mxu0 %v1934
    %v2281 = vpop.f32.mrf.mxu0
    %v2282 = vadd.f32 %v2097, %v2281
    %v2283 = vpop.f32.mrf.mxu0
    %v2284 = vadd.f32 %v2099, %v2283
    %2285 = vmatprep.mubr.f32.mxu0 0.0
    %2286 = vmatmul.mubr.f32.gmra.mxu0 %v1935
    %v2287 = vpop.f32.mrf.mxu0
    %v2288 = vadd.f32 %v2103, %v2287
    %v2289 = vpop.f32.mrf.mxu0
    %v2290 = vadd.f32 %v2105, %v2289
    %2291 = vmatprep.mubr.f32.mxu0 0.0
    %2292 = vmatmul.mubr.f32.gmra.mxu0 %v1936
    %v2293 = vpop.f32.mrf.mxu0
    %v2294 = vadd.f32 %v2109, %v2293
    %v2295 = vpop.f32.mrf.mxu0
    %v2296 = vadd.f32 %v2111, %v2295
    %2297 = vmatprep.mubr.f32.mxu0 0.0
    %2298 = vmatmul.mubr.f32.gmra.mxu0 %v1937
    %v2299 = vpop.f32.mrf.mxu0
    %v2300 = vadd.f32 %v2115, %v2299
    %v2301 = vpop.f32.mrf.mxu0
    %v2302 = vadd.f32 %v2117, %v2301
    %2303 = vmatprep.mubr.f32.mxu0 0.0
    %2304 = vmatmul.mubr.f32.gmra.mxu0 %v1938
    %v2305 = vpop.f32.mrf.mxu0
    %v2306 = vadd.f32 %v2121, %v2305
    %v2307 = vpop.f32.mrf.mxu0
    %v2308 = vadd.f32 %v2123, %v2307
    %2309 = vmatprep.mubr.f32.mxu0 0.0
    %2310 = vmatmul.mubr.f32.gmra.mxu0 %v1939
    %v2311 = vpop.f32.mrf.mxu0
    %v2312 = vadd.f32 %v2127, %v2311
    %v2313 = vpop.f32.mrf.mxu0
    %v2314 = vadd.f32 %v2129, %v2313
    %2315 = vmatprep.mubr.f32.mxu0 0.0
    %2316 = vmatmul.mubr.f32.gmra.mxu0 %v1940
    %v2317 = vpop.f32.mrf.mxu0
    %v2318 = vadd.f32 %v2133, %v2317
    %v2319 = vpop.f32.mrf.mxu0
    %v2320 = vadd.f32 %v2135, %v2319
    %2321 = vmatprep.mubr.f32.mxu0 0.0
    %2322 = vmatmul.mubr.f32.gmra.mxu0 %v1941
    %v2323 = vpop.f32.mrf.mxu0
    %v2324 = vadd.f32 %v2139, %v2323
    %v2325 = vpop.f32.mrf.mxu0
    %v2326 = vadd.f32 %v2141, %v2325
    %2327 = vmatprep.mubr.f32.mxu0 0.0
    %2328 = vmatmul.mubr.f32.gmra.mxu0 %v1942
    %v2329 = vpop.f32.mrf.mxu0
    %v2330 = vadd.f32 %v2145, %v2329
    %v2331 = vpop.f32.mrf.mxu0
    %v2332 = vadd.f32 %v2147, %v2331
    %2333 = vmatprep.mubr.f32.mxu0 0.0
    %2334 = vmatmul.mubr.f32.gmra.mxu0 %v1943
    %v2335 = vpop.f32.mrf.mxu0
    %v2336 = vadd.f32 %v2151, %v2335
    %v2337 = vpop.f32.mrf.mxu0
    %v2338 = vadd.f32 %v2153, %v2337
    %2339 = vmatprep.mubr.f32.mxu0 0.0
    %2340 = vmatmul.mubr.f32.gmra.mxu0 %v1944
    %v2341 = vpop.f32.mrf.mxu0
    %v2342 = vadd.f32 %v2157, %v2341
    %v2343 = vpop.f32.mrf.mxu0
    %v2344 = vadd.f32 %v2159, %v2343
    %2345 = vmatprep.mubr.f32.mxu0 0.0
    %2346 = vmatmul.mubr.f32.gmra.mxu0 %v1945
    %v2347 = vpop.f32.mrf.mxu0
    %v2348 = vadd.f32 %v2163, %v2347
    %v2349 = vpop.f32.mrf.mxu0
    %v2350 = vadd.f32 %v2165, %v2349
    %2351 = vmatprep.mubr.f32.mxu0 0.0
    %2352 = vmatmul.mubr.f32.gmra.mxu0 %v1946
    %v2353 = vpop.f32.mrf.mxu0
    %v2354 = vadd.f32 %v2169, %v2353
    %v2355 = vpop.f32.mrf.mxu0
    %v2356 = vadd.f32 %v2171, %v2355
    %2357 = vmatprep.mubr.f32.mxu0 0.0
    %2358 = vmatmul.mubr.f32.gmra.mxu0 %v1947
    %v2359 = vpop.f32.mrf.mxu0
    %v2360 = vadd.f32 %v2175, %v2359
    %v2361 = vpop.f32.mrf.mxu0
    %v2362 = vadd.f32 %v2177, %v2361
    %2363 = vmatprep.mubr.f32.mxu0 0.0
    %2364 = vmatmul.mubr.f32.gmra.mxu0 %v1948
    %v2365 = vpop.f32.mrf.mxu0
    %v2366 = vadd.f32 %v2181, %v2365
    %v2367 = vpop.f32.mrf.mxu0
    %v2368 = vadd.f32 %v2183, %v2367
    %2369 = vmatprep.mubr.f32.mxu0 0.0
    %2370 = vmatmul.mubr.f32.gmra.mxu0 %v1949
    %v2371 = vpop.f32.mrf.mxu0
    %v2372 = vadd.f32 %v2187, %v2371
    %v2373 = vpop.f32.mrf.mxu0
    %v2374 = vadd.f32 %v2189, %v2373
    %2375 = vmatprep.mubr.f32.mxu0 0.0
    %2376 = vmatmul.mubr.f32.gmra.mxu0 %v1950
    %v2377 = vpop.f32.mrf.mxu0
    %v2378 = vadd.f32 %v2193, %v2377
    %v2379 = vpop.f32.mrf.mxu0
    %v2380 = vadd.f32 %v2195, %v2379
    %2381 = vmatprep.mubr.f32.mxu0 0.0
    %2382 = vmatmul.mubr.f32.gmra.mxu0 %v1951
    %v2383 = vpop.f32.mrf.mxu0
    %v2384 = vadd.f32 %v2199, %v2383
    %v2385 = vpop.f32.mrf.mxu0
    %v2386 = vadd.f32 %v2201, %v2385
    %2387 = vdwg.mxu0
    %s2388 = scalar_lea.vmem [#allocation17], 512
    %v2389 = vld [vmem:[%s2388] sm:$0xff]
    %v2390 = vld [vmem:[%s2388 + $0x8] sm:$0xff]
    %v2391 = vld [vmem:[%s2388 + $0x10] sm:$0xff]
    %v2392 = vld [vmem:[%s2388 + $0x18] sm:$0xff]
    %v2393 = vld [vmem:[%s2388 + $0x20] sm:$0xff]
    %v2394 = vld [vmem:[%s2388 + $0x28] sm:$0xff]
    %v2395 = vld [vmem:[%s2388 + $0x30] sm:$0xff]
    %v2396 = vld [vmem:[%s2388 + $0x38] sm:$0xff]
    %v2397 = vld [vmem:[%s2388 + $0x40] sm:$0xff]
    %v2398 = vld [vmem:[%s2388 + $0x48] sm:$0xff]
    %v2399 = vld [vmem:[%s2388 + $0x50] sm:$0xff]
    %v2400 = vld [vmem:[%s2388 + $0x58] sm:$0xff]
    %v2401 = vld [vmem:[%s2388 + $0x60] sm:$0xff]
    %v2402 = vld [vmem:[%s2388 + $0x68] sm:$0xff]
    %v2403 = vld [vmem:[%s2388 + $0x70] sm:$0xff]
    %v2404 = vld [vmem:[%s2388 + $0x78] sm:$0xff]
    %v2405 = vld [vmem:[%s2388 + $0x80] sm:$0xff]
    %v2406 = vld [vmem:[%s2388 + $0x88] sm:$0xff]
    %v2407 = vld [vmem:[%s2388 + $0x90] sm:$0xff]
    %v2408 = vld [vmem:[%s2388 + $0x98] sm:$0xff]
    %v2409 = vld [vmem:[%s2388 + $0xa0] sm:$0xff]
    %v2410 = vld [vmem:[%s2388 + $0xa8] sm:$0xff]
    %v2411 = vld [vmem:[%s2388 + $0xb0] sm:$0xff]
    %v2412 = vld [vmem:[%s2388 + $0xb8] sm:$0xff]
    %v2413 = vld [vmem:[%s2388 + $0xc0] sm:$0xff]
    %v2414 = vld [vmem:[%s2388 + $0xc8] sm:$0xff]
    %v2415 = vld [vmem:[%s2388 + $0xd0] sm:$0xff]
    %v2416 = vld [vmem:[%s2388 + $0xd8] sm:$0xff]
    %v2417 = vld [vmem:[%s2388 + $0xe0] sm:$0xff]
    %v2418 = vld [vmem:[%s2388 + $0xe8] sm:$0xff]
    %v2419 = vld [vmem:[%s2388 + $0xf0] sm:$0xff]
    %v2420 = vld [vmem:[%s2388 + $0xf8] sm:$0xff]
    %2421 = vmatprep.subr.mxu0 %v2420
    %2422 = vmatpush1.msra.mxu0 %v2419
    %2423 = vmatprep.subr.mxu0 %v2418
    %2424 = vmatpush1.msra.mxu0 %v2417
    %2425 = vmatprep.subr.mxu0 %v2416
    %2426 = vmatpush1.msra.mxu0 %v2415
    %2427 = vmatprep.subr.mxu0 %v2414
    %2428 = vmatpush1.msra.mxu0 %v2413
    %2429 = vmatprep.subr.mxu0 %v2412
    %2430 = vmatpush1.msra.mxu0 %v2411
    %2431 = vmatprep.subr.mxu0 %v2410
    %2432 = vmatpush1.msra.mxu0 %v2409
    %2433 = vmatprep.subr.mxu0 %v2408
    %2434 = vmatpush1.msra.mxu0 %v2407
    %2435 = vmatprep.subr.mxu0 %v2406
    %2436 = vmatpush1.msra.mxu0 %v2405
    %2437 = vmatprep.subr.mxu0 %v2404
    %2438 = vmatpush1.msra.mxu0 %v2403
    %2439 = vmatprep.subr.mxu0 %v2402
    %2440 = vmatpush1.msra.mxu0 %v2401
    %2441 = vmatprep.subr.mxu0 %v2400
    %2442 = vmatpush1.msra.mxu0 %v2399
    %2443 = vmatprep.subr.mxu0 %v2398
    %2444 = vmatpush1.msra.mxu0 %v2397
    %2445 = vmatprep.subr.mxu0 %v2396
    %2446 = vmatpush1.msra.mxu0 %v2395
    %2447 = vmatprep.subr.mxu0 %v2394
    %2448 = vmatpush1.msra.mxu0 %v2393
    %2449 = vmatprep.subr.mxu0 %v2392
    %2450 = vmatpush1.msra.mxu0 %v2391
    %2451 = vmatprep.subr.mxu0 %v2390
    %2452 = vmatpush1.msra.mxu0 %v2389
    %2453 = vmatprep.subr.mxu0 0.0
    %2454 = vmatpush2.msra.mxu0 0.0
    %2455 = vmatprep.subr.mxu0 0.0
    %2456 = vmatpush2.msra.mxu0 0.0
    %2457 = vmatprep.subr.mxu0 0.0
    %2458 = vmatpush2.msra.mxu0 0.0
    %2459 = vmatprep.subr.mxu0 0.0
    %2460 = vmatpush2.msra.mxu0 0.0
    %2461 = vmatprep.subr.mxu0 0.0
    %2462 = vmatpush2.msra.mxu0 0.0
    %2463 = vmatprep.subr.mxu0 0.0
    %2464 = vmatpush2.msra.mxu0 0.0
    %2465 = vmatprep.subr.mxu0 0.0
    %2466 = vmatpush2.msra.mxu0 0.0
    %2467 = vmatprep.subr.mxu0 0.0
    %2468 = vmatpush2.msra.mxu0 0.0
    %2469 = vmatprep.subr.mxu0 0.0
    %2470 = vmatpush2.msra.mxu0 0.0
    %2471 = vmatprep.subr.mxu0 0.0
    %2472 = vmatpush2.msra.mxu0 0.0
    %2473 = vmatprep.subr.mxu0 0.0
    %2474 = vmatpush2.msra.mxu0 0.0
    %2475 = vmatprep.subr.mxu0 0.0
    %2476 = vmatpush2.msra.mxu0 0.0
    %2477 = vmatprep.subr.mxu0 0.0
    %2478 = vmatpush2.msra.mxu0 0.0
    %2479 = vmatprep.subr.mxu0 0.0
    %2480 = vmatpush2.msra.mxu0 0.0
    %2481 = vmatprep.subr.mxu0 0.0
    %2482 = vmatpush2.msra.mxu0 0.0
    %2483 = vmatprep.subr.mxu0 0.0
    %2484 = vmatpush2.msra.mxu0 0.0
    %2485 = vmatprep.mubr.f32.mxu0 0.0
    %2486 = vmatmul.mubr.f32.gmra.mxu0 %v1934
    %v2487 = vpop.f32.mrf.mxu0
    %v2488 = vadd.f32 0.0, %v2487
    %v2489 = vpop.f32.mrf.mxu0
    %v2490 = vadd.f32 0.0, %v2489
    %2491 = vmatprep.mubr.f32.mxu0 0.0
    %2492 = vmatmul.mubr.f32.gmra.mxu0 %v1935
    %v2493 = vpop.f32.mrf.mxu0
    %v2494 = vadd.f32 0.0, %v2493
    %v2495 = vpop.f32.mrf.mxu0
    %v2496 = vadd.f32 0.0, %v2495
    %2497 = vmatprep.mubr.f32.mxu0 0.0
    %2498 = vmatmul.mubr.f32.gmra.mxu0 %v1936
    %v2499 = vpop.f32.mrf.mxu0
    %v2500 = vadd.f32 0.0, %v2499
    %v2501 = vpop.f32.mrf.mxu0
    %v2502 = vadd.f32 0.0, %v2501
    %2503 = vmatprep.mubr.f32.mxu0 0.0
    %2504 = vmatmul.mubr.f32.gmra.mxu0 %v1937
    %v2505 = vpop.f32.mrf.mxu0
    %v2506 = vadd.f32 0.0, %v2505
    %v2507 = vpop.f32.mrf.mxu0
    %v2508 = vadd.f32 0.0, %v2507
    %2509 = vmatprep.mubr.f32.mxu0 0.0
    %2510 = vmatmul.mubr.f32.gmra.mxu0 %v1938
    %v2511 = vpop.f32.mrf.mxu0
    %v2512 = vadd.f32 0.0, %v2511
    %v2513 = vpop.f32.mrf.mxu0
    %v2514 = vadd.f32 0.0, %v2513
    %2515 = vmatprep.mubr.f32.mxu0 0.0
    %2516 = vmatmul.mubr.f32.gmra.mxu0 %v1939
    %v2517 = vpop.f32.mrf.mxu0
    %v2518 = vadd.f32 0.0, %v2517
    %v2519 = vpop.f32.mrf.mxu0
    %v2520 = vadd.f32 0.0, %v2519
    %2521 = vmatprep.mubr.f32.mxu0 0.0
    %2522 = vmatmul.mubr.f32.gmra.mxu0 %v1940
    %v2523 = vpop.f32.mrf.mxu0
    %v2524 = vadd.f32 0.0, %v2523
    %v2525 = vpop.f32.mrf.mxu0
    %v2526 = vadd.f32 0.0, %v2525
    %2527 = vmatprep.mubr.f32.mxu0 0.0
    %2528 = vmatmul.mubr.f32.gmra.mxu0 %v1941
    %v2529 = vpop.f32.mrf.mxu0
    %v2530 = vadd.f32 0.0, %v2529
    %v2531 = vpop.f32.mrf.mxu0
    %v2532 = vadd.f32 0.0, %v2531
    %2533 = vmatprep.mubr.f32.mxu0 0.0
    %2534 = vmatmul.mubr.f32.gmra.mxu0 %v1942
    %v2535 = vpop.f32.mrf.mxu0
    %v2536 = vadd.f32 0.0, %v2535
    %v2537 = vpop.f32.mrf.mxu0
    %v2538 = vadd.f32 0.0, %v2537
    %2539 = vmatprep.mubr.f32.mxu0 0.0
    %2540 = vmatmul.mubr.f32.gmra.mxu0 %v1943
    %v2541 = vpop.f32.mrf.mxu0
    %v2542 = vadd.f32 0.0, %v2541
    %v2543 = vpop.f32.mrf.mxu0
    %v2544 = vadd.f32 0.0, %v2543
    %2545 = vmatprep.mubr.f32.mxu0 0.0
    %2546 = vmatmul.mubr.f32.gmra.mxu0 %v1944
    %v2547 = vpop.f32.mrf.mxu0
    %v2548 = vadd.f32 0.0, %v2547
    %v2549 = vpop.f32.mrf.mxu0
    %v2550 = vadd.f32 0.0, %v2549
    %2551 = vmatprep.mubr.f32.mxu0 0.0
    %2552 = vmatmul.mubr.f32.gmra.mxu0 %v1945
    %v2553 = vpop.f32.mrf.mxu0
    %v2554 = vadd.f32 0.0, %v2553
    %v2555 = vpop.f32.mrf.mxu0
    %v2556 = vadd.f32 0.0, %v2555
    %2557 = vmatprep.mubr.f32.mxu0 0.0
    %2558 = vmatmul.mubr.f32.gmra.mxu0 %v1946
    %v2559 = vpop.f32.mrf.mxu0
    %v2560 = vadd.f32 0.0, %v2559
    %v2561 = vpop.f32.mrf.mxu0
    %v2562 = vadd.f32 0.0, %v2561
    %2563 = vmatprep.mubr.f32.mxu0 0.0
    %2564 = vmatmul.mubr.f32.gmra.mxu0 %v1947
    %v2565 = vpop.f32.mrf.mxu0
    %v2566 = vadd.f32 0.0, %v2565
    %v2567 = vpop.f32.mrf.mxu0
    %v2568 = vadd.f32 0.0, %v2567
    %2569 = vmatprep.mubr.f32.mxu0 0.0
    %2570 = vmatmul.mubr.f32.gmra.mxu0 %v1948
    %v2571 = vpop.f32.mrf.mxu0
    %v2572 = vadd.f32 0.0, %v2571
    %v2573 = vpop.f32.mrf.mxu0
    %v2574 = vadd.f32 0.0, %v2573
    %2575 = vmatprep.mubr.f32.mxu0 0.0
    %2576 = vmatmul.mubr.f32.gmra.mxu0 %v1949
    %v2577 = vpop.f32.mrf.mxu0
    %v2578 = vadd.f32 0.0, %v2577
    %v2579 = vpop.f32.mrf.mxu0
    %v2580 = vadd.f32 0.0, %v2579
    %2581 = vmatprep.mubr.f32.mxu0 0.0
    %2582 = vmatmul.mubr.f32.gmra.mxu0 %v1950
    %v2583 = vpop.f32.mrf.mxu0
    %v2584 = vadd.f32 0.0, %v2583
    %v2585 = vpop.f32.mrf.mxu0
    %v2586 = vadd.f32 0.0, %v2585
    %2587 = vmatprep.mubr.f32.mxu0 0.0
    %2588 = vmatmul.mubr.f32.gmra.mxu0 %v1951
    %v2589 = vpop.f32.mrf.mxu0
    %v2590 = vadd.f32 0.0, %v2589
    %v2591 = vpop.f32.mrf.mxu0
    %v2592 = vadd.f32 0.0, %v2591
    %2593 = vmatprep.mubr.f32.mxu0 0.0
    %2594 = vmatmul.mubr.f32.gmra.mxu0 %v1952
    %v2595 = vpop.f32.mrf.mxu0
    %v2596 = vadd.f32 0.0, %v2595
    %v2597 = vpop.f32.mrf.mxu0
    %v2598 = vadd.f32 0.0, %v2597
    %2599 = vmatprep.mubr.f32.mxu0 0.0
    %2600 = vmatmul.mubr.f32.gmra.mxu0 0.0
    %v2601 = vpop.f32.mrf.mxu0
    %v2602 = vadd.f32 0.0, %v2601
    %v2603 = vpop.f32.mrf.mxu0
    %v2604 = vadd.f32 0.0, %v2603
    %2605 = vdwg.mxu0
    %v2606 = vadd.f32 %v2270, %v2488
    %v2607 = vadd.f32 %v2272, %v2490
    %v2608 = vadd.f32 %v2276, %v2494
    %v2609 = vadd.f32 %v2278, %v2496
    %v2610 = vadd.f32 %v2282, %v2500
    %v2611 = vadd.f32 %v2284, %v2502
    %v2612 = vadd.f32 %v2288, %v2506
    %v2613 = vadd.f32 %v2290, %v2508
    %v2614 = vadd.f32 %v2294, %v2512
    %v2615 = vadd.f32 %v2296, %v2514
    %v2616 = vadd.f32 %v2300, %v2518
    %v2617 = vadd.f32 %v2302, %v2520
    %v2618 = vadd.f32 %v2306, %v2524
    %v2619 = vadd.f32 %v2308, %v2526
    %v2620 = vadd.f32 %v2312, %v2530
    %v2621 = vadd.f32 %v2314, %v2532
    %v2622 = vadd.f32 %v2318, %v2536
    %v2623 = vadd.f32 %v2320, %v2538
    %v2624 = vadd.f32 %v2324, %v2542
    %v2625 = vadd.f32 %v2326, %v2544
    %v2626 = vadd.f32 %v2330, %v2548
    %v2627 = vadd.f32 %v2332, %v2550
    %v2628 = vadd.f32 %v2336, %v2554
    %v2629 = vadd.f32 %v2338, %v2556
    %v2630 = vadd.f32 %v2342, %v2560
    %v2631 = vadd.f32 %v2344, %v2562
    %v2632 = vadd.f32 %v2348, %v2566
    %v2633 = vadd.f32 %v2350, %v2568
    %v2634 = vadd.f32 %v2354, %v2572
    %v2635 = vadd.f32 %v2356, %v2574
    %v2636 = vadd.f32 %v2360, %v2578
    %v2637 = vadd.f32 %v2362, %v2580
    %v2638 = vadd.f32 %v2366, %v2584
    %v2639 = vadd.f32 %v2368, %v2586
    %v2640 = vadd.f32 %v2372, %v2590
    %v2641 = vadd.f32 %v2374, %v2592
    %v2642 = vadd.f32 %v2378, %v2596
    %v2643 = vadd.f32 %v2380, %v2598
    %v2644 = vadd.f32 %v2384, %v2602
    %v2645 = vadd.f32 %v2386, %v2604
    %v2646 = vld [vmem:[#allocation18] sm:$0x3]
    %v2648 = vlaneseq
    %v2649 = vshrl.u32 %v2648, 7
    %v2650 = vsub.s32 0, %v2649
    %v2651 = vrot.slane %v2646, %v2650
    %v2652 = vlaneseq
    %v2653 = vshrl.u32 %v2652, 7
    %v2654 = vsub.s32 1, %v2653
    %v2655 = vrot.slane %v2646, %v2654
    %v2658 = vmul.f32 %v2606, %v2651
    %v2659 = vmul.f32 %v2607, %v2655
    %v2660 = vmul.f32 %v2608, %v2651
    %v2661 = vmul.f32 %v2609, %v2655
    %v2662 = vmul.f32 %v2610, %v2651
    %v2663 = vmul.f32 %v2611, %v2655
    %v2664 = vmul.f32 %v2612, %v2651
    %v2665 = vmul.f32 %v2613, %v2655
    %v2666 = vmul.f32 %v2614, %v2651
    %v2667 = vmul.f32 %v2615, %v2655
    %v2668 = vmul.f32 %v2616, %v2651
    %v2669 = vmul.f32 %v2617, %v2655
    %v2670 = vmul.f32 %v2618, %v2651
    %v2671 = vmul.f32 %v2619, %v2655
    %v2672 = vmul.f32 %v2620, %v2651
    %v2673 = vmul.f32 %v2621, %v2655
    %v2674 = vmul.f32 %v2622, %v2651
    %v2675 = vmul.f32 %v2623, %v2655
    %v2676 = vmul.f32 %v2624, %v2651
    %v2677 = vmul.f32 %v2625, %v2655
    %v2678 = vmul.f32 %v2626, %v2651
    %v2679 = vmul.f32 %v2627, %v2655
    %v2680 = vmul.f32 %v2628, %v2651
    %v2681 = vmul.f32 %v2629, %v2655
    %v2682 = vmul.f32 %v2630, %v2651
    %v2683 = vmul.f32 %v2631, %v2655
    %v2684 = vmul.f32 %v2632, %v2651
    %v2685 = vmul.f32 %v2633, %v2655
    %v2686 = vmul.f32 %v2634, %v2651
    %v2687 = vmul.f32 %v2635, %v2655
    %v2688 = vmul.f32 %v2636, %v2651
    %v2689 = vmul.f32 %v2637, %v2655
    %v2690 = vmul.f32 %v2638, %v2651
    %v2691 = vmul.f32 %v2639, %v2655
    %v2692 = vmul.f32 %v2640, %v2651
    %v2693 = vmul.f32 %v2641, %v2655
    %v2694 = vmul.f32 %v2642, %v2651
    %v2695 = vmul.f32 %v2643, %v2655
    %v2696 = vmul.f32 %v2644, %v2651
    %v2697 = vmul.f32 %v2645, %v2655
    %v2698 = vld [vmem:[#allocation20] sm:$0x3]
    %v2700 = vlaneseq
    %v2701 = vshrl.u32 %v2700, 7
    %v2702 = vsub.s32 0, %v2701
    %v2703 = vrot.slane %v2698, %v2702
    %v2704 = vlaneseq
    %v2705 = vshrl.u32 %v2704, 7
    %v2706 = vsub.s32 1, %v2705
    %v2707 = vrot.slane %v2698, %v2706
    %v2710 = vadd.f32 %v2658, %v2703
    %v2711 = vadd.f32 %v2659, %v2707
    %v2712 = vadd.f32 %v2660, %v2703
    %v2713 = vadd.f32 %v2661, %v2707
    %v2714 = vadd.f32 %v2662, %v2703
    %v2715 = vadd.f32 %v2663, %v2707
    %v2716 = vadd.f32 %v2664, %v2703
    %v2717 = vadd.f32 %v2665, %v2707
    %v2718 = vadd.f32 %v2666, %v2703
    %v2719 = vadd.f32 %v2667, %v2707
    %v2720 = vadd.f32 %v2668, %v2703
    %v2721 = vadd.f32 %v2669, %v2707
    %v2722 = vadd.f32 %v2670, %v2703
    %v2723 = vadd.f32 %v2671, %v2707
    %v2724 = vadd.f32 %v2672, %v2703
    %v2725 = vadd.f32 %v2673, %v2707
    %v2726 = vadd.f32 %v2674, %v2703
    %v2727 = vadd.f32 %v2675, %v2707
    %v2728 = vadd.f32 %v2676, %v2703
    %v2729 = vadd.f32 %v2677, %v2707
    %v2730 = vadd.f32 %v2678, %v2703
    %v2731 = vadd.f32 %v2679, %v2707
    %v2732 = vadd.f32 %v2680, %v2703
    %v2733 = vadd.f32 %v2681, %v2707
    %v2734 = vadd.f32 %v2682, %v2703
    %v2735 = vadd.f32 %v2683, %v2707
    %v2736 = vadd.f32 %v2684, %v2703
    %v2737 = vadd.f32 %v2685, %v2707
    %v2738 = vadd.f32 %v2686, %v2703
    %v2739 = vadd.f32 %v2687, %v2707
    %v2740 = vadd.f32 %v2688, %v2703
    %v2741 = vadd.f32 %v2689, %v2707
    %v2742 = vadd.f32 %v2690, %v2703
    %v2743 = vadd.f32 %v2691, %v2707
    %v2744 = vadd.f32 %v2692, %v2703
    %v2745 = vadd.f32 %v2693, %v2707
    %v2746 = vadd.f32 %v2694, %v2703
    %v2747 = vadd.f32 %v2695, %v2707
    %v2748 = vadd.f32 %v2696, %v2703
    %v2749 = vadd.f32 %v2697, %v2707
    %v2750 = vmax.f32 %v2710, 0.0
    %v2751 = vmax.f32 %v2711, 0.0
    %v2752 = vmax.f32 %v2712, 0.0
    %v2753 = vmax.f32 %v2713, 0.0
    %v2754 = vmax.f32 %v2714, 0.0
    %v2755 = vmax.f32 %v2715, 0.0
    %v2756 = vmax.f32 %v2716, 0.0
    %v2757 = vmax.f32 %v2717, 0.0
    %v2758 = vmax.f32 %v2718, 0.0
    %v2759 = vmax.f32 %v2719, 0.0
    %v2760 = vmax.f32 %v2720, 0.0
    %v2761 = vmax.f32 %v2721, 0.0
    %v2762 = vmax.f32 %v2722, 0.0
    %v2763 = vmax.f32 %v2723, 0.0
    %v2764 = vmax.f32 %v2724, 0.0
    %v2765 = vmax.f32 %v2725, 0.0
    %v2766 = vmax.f32 %v2726, 0.0
    %v2767 = vmax.f32 %v2727, 0.0
    %v2768 = vmax.f32 %v2728, 0.0
    %v2769 = vmax.f32 %v2729, 0.0
    %v2770 = vmax.f32 %v2730, 0.0
    %v2771 = vmax.f32 %v2731, 0.0
    %v2772 = vmax.f32 %v2732, 0.0
    %v2773 = vmax.f32 %v2733, 0.0
    %v2774 = vmax.f32 %v2734, 0.0
    %v2775 = vmax.f32 %v2735, 0.0
    %v2776 = vmax.f32 %v2736, 0.0
    %v2777 = vmax.f32 %v2737, 0.0
    %v2778 = vmax.f32 %v2738, 0.0
    %v2779 = vmax.f32 %v2739, 0.0
    %v2780 = vmax.f32 %v2740, 0.0
    %v2781 = vmax.f32 %v2741, 0.0
    %v2782 = vmax.f32 %v2742, 0.0
    %v2783 = vmax.f32 %v2743, 0.0
    %v2784 = vmax.f32 %v2744, 0.0
    %v2785 = vmax.f32 %v2745, 0.0
    %v2786 = vmax.f32 %v2746, 0.0
    %v2787 = vmax.f32 %v2747, 0.0
    %v2788 = vmax.f32 %v2748, 0.0
    %v2789 = vmax.f32 %v2749, 0.0
    %v2790 = vld [vmem:[%s3] sm:$0xff]
    %v2791 = vld [vmem:[%s3 + $0x8] sm:$0xff]
    %v2792 = vld [vmem:[%s3 + $0x10] sm:$0xff]
    %v2793 = vld [vmem:[%s3 + $0x18] sm:$0xff]
    %v2794 = vld [vmem:[%s3 + $0x20] sm:$0xff]
    %v2795 = vld [vmem:[%s3 + $0x28] sm:$0xff]
    %v2796 = vld [vmem:[%s3 + $0x30] sm:$0xff]
    %v2797 = vld [vmem:[%s3 + $0x38] sm:$0xff]
    %v2798 = vld [vmem:[%s3 + $0x40] sm:$0xff]
    %v2799 = vld [vmem:[%s3 + $0x48] sm:$0xff]
    %v2800 = vld [vmem:[%s3 + $0x50] sm:$0xff]
    %v2801 = vld [vmem:[%s3 + $0x58] sm:$0xff]
    %v2802 = vld [vmem:[%s3 + $0x60] sm:$0xff]
    %v2803 = vld [vmem:[%s3 + $0x68] sm:$0xff]
    %v2804 = vld [vmem:[%s3 + $0x70] sm:$0xff]
    %v2805 = vld [vmem:[%s3 + $0x78] sm:$0xff]
    %v2806 = vld [vmem:[%s3 + $0x80] sm:$0xff]
    %v2807 = vld [vmem:[%s3 + $0x88] sm:$0xff]
    %v2808 = vld [vmem:[%s3 + $0x90] sm:$0xff]
    %v2809 = vld [vmem:[%s3 + $0x98] sm:$0xff]
    %2811 = vset.pattern.permute.xlu0 0
    %2812 = vperm.xlu0 %2811, %v2790
    %v2813 = vpop.permute.xlu0 %2812
    %2816 = vset.pattern.permute.xlu0 0
    %2817 = vperm.xlu0 %2816, %v2791
    %v2818 = vpop.permute.xlu0 %2817
    %2821 = vset.pattern.permute.xlu0 0
    %2822 = vperm.xlu0 %2821, %v2792
    %v2823 = vpop.permute.xlu0 %2822
    %2826 = vset.pattern.permute.xlu0 0
    %2827 = vperm.xlu0 %2826, %v2793
    %v2828 = vpop.permute.xlu0 %2827
    %2831 = vset.pattern.permute.xlu0 0
    %2832 = vperm.xlu0 %2831, %v2794
    %v2833 = vpop.permute.xlu0 %2832
    %2836 = vset.pattern.permute.xlu0 0
    %2837 = vperm.xlu0 %2836, %v2795
    %v2838 = vpop.permute.xlu0 %2837
    %2841 = vset.pattern.permute.xlu0 0
    %2842 = vperm.xlu0 %2841, %v2796
    %v2843 = vpop.permute.xlu0 %2842
    %2846 = vset.pattern.permute.xlu0 0
    %2847 = vperm.xlu0 %2846, %v2797
    %v2848 = vpop.permute.xlu0 %2847
    %2851 = vset.pattern.permute.xlu0 0
    %2852 = vperm.xlu0 %2851, %v2798
    %v2853 = vpop.permute.xlu0 %2852
    %2856 = vset.pattern.permute.xlu0 0
    %2857 = vperm.xlu0 %2856, %v2799
    %v2858 = vpop.permute.xlu0 %2857
    %2861 = vset.pattern.permute.xlu0 0
    %2862 = vperm.xlu0 %2861, %v2800
    %v2863 = vpop.permute.xlu0 %2862
    %2866 = vset.pattern.permute.xlu0 0
    %2867 = vperm.xlu0 %2866, %v2801
    %v2868 = vpop.permute.xlu0 %2867
    %2871 = vset.pattern.permute.xlu0 0
    %2872 = vperm.xlu0 %2871, %v2802
    %v2873 = vpop.permute.xlu0 %2872
    %2876 = vset.pattern.permute.xlu0 0
    %2877 = vperm.xlu0 %2876, %v2803
    %v2878 = vpop.permute.xlu0 %2877
    %2881 = vset.pattern.permute.xlu0 0
    %2882 = vperm.xlu0 %2881, %v2804
    %v2883 = vpop.permute.xlu0 %2882
    %2886 = vset.pattern.permute.xlu0 0
    %2887 = vperm.xlu0 %2886, %v2805
    %v2888 = vpop.permute.xlu0 %2887
    %2891 = vset.pattern.permute.xlu0 0
    %2892 = vperm.xlu0 %2891, %v2806
    %v2893 = vpop.permute.xlu0 %2892
    %2896 = vset.pattern.permute.xlu0 0
    %2897 = vperm.xlu0 %2896, %v2807
    %v2898 = vpop.permute.xlu0 %2897
    %2901 = vset.pattern.permute.xlu0 0
    %2902 = vperm.xlu0 %2901, %v2808
    %v2903 = vpop.permute.xlu0 %2902
    %2906 = vset.pattern.permute.xlu0 0
    %2907 = vperm.xlu0 %2906, %v2809
    %v2908 = vpop.permute.xlu0 %2907
    %v2910 = vmul.f32 %v2750, %v2813
    %v2911 = vmul.f32 %v2751, %v2813
    %v2912 = vmul.f32 %v2752, %v2818
    %v2913 = vmul.f32 %v2753, %v2818
    %v2914 = vmul.f32 %v2754, %v2823
    %v2915 = vmul.f32 %v2755, %v2823
    %v2916 = vmul.f32 %v2756, %v2828
    %v2917 = vmul.f32 %v2757, %v2828
    %v2918 = vmul.f32 %v2758, %v2833
    %v2919 = vmul.f32 %v2759, %v2833
    %v2920 = vmul.f32 %v2760, %v2838
    %v2921 = vmul.f32 %v2761, %v2838
    %v2922 = vmul.f32 %v2762, %v2843
    %v2923 = vmul.f32 %v2763, %v2843
    %v2924 = vmul.f32 %v2764, %v2848
    %v2925 = vmul.f32 %v2765, %v2848
    %v2926 = vmul.f32 %v2766, %v2853
    %v2927 = vmul.f32 %v2767, %v2853
    %v2928 = vmul.f32 %v2768, %v2858
    %v2929 = vmul.f32 %v2769, %v2858
    %v2930 = vmul.f32 %v2770, %v2863
    %v2931 = vmul.f32 %v2771, %v2863
    %v2932 = vmul.f32 %v2772, %v2868
    %v2933 = vmul.f32 %v2773, %v2868
    %v2934 = vmul.f32 %v2774, %v2873
    %v2935 = vmul.f32 %v2775, %v2873
    %v2936 = vmul.f32 %v2776, %v2878
    %v2937 = vmul.f32 %v2777, %v2878
    %v2938 = vmul.f32 %v2778, %v2883
    %v2939 = vmul.f32 %v2779, %v2883
    %v2940 = vmul.f32 %v2780, %v2888
    %v2941 = vmul.f32 %v2781, %v2888
    %v2942 = vmul.f32 %v2782, %v2893
    %v2943 = vmul.f32 %v2783, %v2893
    %v2944 = vmul.f32 %v2784, %v2898
    %v2945 = vmul.f32 %v2785, %v2898
    %v2946 = vmul.f32 %v2786, %v2903
    %v2947 = vmul.f32 %v2787, %v2903
    %v2948 = vmul.f32 %v2788, %v2908
    %v2949 = vmul.f32 %v2789, %v2908
    %v2950 = vmax.f32 %v2910, 0.0
    %v2951 = vmax.f32 %v2911, 0.0
    %v2952 = vmax.f32 %v2910, %v2912
    %v2953 = vmax.f32 %v2911, %v2913
    %v2954 = vmax.f32 %v2912, %v2914
    %v2955 = vmax.f32 %v2913, %v2915
    %v2956 = vmax.f32 %v2914, %v2916
    %v2957 = vmax.f32 %v2915, %v2917
    %v2958 = vmax.f32 %v2916, %v2918
    %v2959 = vmax.f32 %v2917, %v2919
    %v2960 = vmax.f32 %v2918, %v2920
    %v2961 = vmax.f32 %v2919, %v2921
    %v2962 = vmax.f32 %v2920, %v2922
    %v2963 = vmax.f32 %v2921, %v2923
    %v2964 = vmax.f32 %v2922, %v2924
    %v2965 = vmax.f32 %v2923, %v2925
    %v2966 = vmax.f32 %v2924, %v2926
    %v2967 = vmax.f32 %v2925, %v2927
    %v2968 = vmax.f32 %v2926, %v2928
    %v2969 = vmax.f32 %v2927, %v2929
    %v2970 = vmax.f32 %v2928, %v2930
    %v2971 = vmax.f32 %v2929, %v2931
    %v2972 = vmax.f32 %v2930, %v2932
    %v2973 = vmax.f32 %v2931, %v2933
    %v2974 = vmax.f32 %v2932, %v2934
    %v2975 = vmax.f32 %v2933, %v2935
    %v2976 = vmax.f32 %v2934, %v2936
    %v2977 = vmax.f32 %v2935, %v2937
    %v2978 = vmax.f32 %v2936, %v2938
    %v2979 = vmax.f32 %v2937, %v2939
    %v2980 = vmax.f32 %v2938, %v2940
    %v2981 = vmax.f32 %v2939, %v2941
    %v2982 = vmax.f32 %v2940, %v2942
    %v2983 = vmax.f32 %v2941, %v2943
    %v2984 = vmax.f32 %v2942, %v2944
    %v2985 = vmax.f32 %v2943, %v2945
    %v2986 = vmax.f32 %v2944, %v2946
    %v2987 = vmax.f32 %v2945, %v2947
    %v2988 = vmax.f32 %v2946, %v2948
    %v2989 = vmax.f32 %v2947, %v2949
    %2990 = vst [vmem:[#allocation2] sm:$0xff] %v2950
    %2991 = vst [vmem:[#allocation2 + $0x8] sm:$0xff] %v2951
    %2992 = vst [vmem:[#allocation2 + $0x10] sm:$0xff] %v2952
    %2993 = vst [vmem:[#allocation2 + $0x18] sm:$0xff] %v2953
    %2994 = vst [vmem:[#allocation2 + $0x20] sm:$0xff] %v2954
    %2995 = vst [vmem:[#allocation2 + $0x28] sm:$0xff] %v2955
    %2996 = vst [vmem:[#allocation2 + $0x30] sm:$0xff] %v2956
    %2997 = vst [vmem:[#allocation2 + $0x38] sm:$0xff] %v2957
    %2998 = vst [vmem:[#allocation2 + $0x40] sm:$0xff] %v2958
    %2999 = vst [vmem:[#allocation2 + $0x48] sm:$0xff] %v2959
    %3000 = vst [vmem:[#allocation2 + $0x50] sm:$0xff] %v2960
    %3001 = vst [vmem:[#allocation2 + $0x58] sm:$0xff] %v2961
    %3002 = vst [vmem:[#allocation2 + $0x60] sm:$0xff] %v2962
    %3003 = vst [vmem:[#allocation2 + $0x68] sm:$0xff] %v2963
    %3004 = vst [vmem:[#allocation2 + $0x70] sm:$0xff] %v2964
    %3005 = vst [vmem:[#allocation2 + $0x78] sm:$0xff] %v2965
    %3006 = vst [vmem:[#allocation2 + $0x80] sm:$0xff] %v2966
    %3007 = vst [vmem:[#allocation2 + $0x88] sm:$0xff] %v2967
    %3008 = vst [vmem:[#allocation2 + $0x90] sm:$0xff] %v2968
    %3009 = vst [vmem:[#allocation2 + $0x98] sm:$0xff] %v2969
    %3010 = vst [vmem:[#allocation2 + $0xa0] sm:$0xff] %v2970
    %3011 = vst [vmem:[#allocation2 + $0xa8] sm:$0xff] %v2971
    %3012 = vst [vmem:[#allocation2 + $0xb0] sm:$0xff] %v2972
    %3013 = vst [vmem:[#allocation2 + $0xb8] sm:$0xff] %v2973
    %3014 = vst [vmem:[#allocation2 + $0xc0] sm:$0xff] %v2974
    %3015 = vst [vmem:[#allocation2 + $0xc8] sm:$0xff] %v2975
    %3016 = vst [vmem:[#allocation2 + $0xd0] sm:$0xff] %v2976
    %3017 = vst [vmem:[#allocation2 + $0xd8] sm:$0xff] %v2977
    %3018 = vst [vmem:[#allocation2 + $0xe0] sm:$0xff] %v2978
    %3019 = vst [vmem:[#allocation2 + $0xe8] sm:$0xff] %v2979
    %3020 = vst [vmem:[#allocation2 + $0xf0] sm:$0xff] %v2980
    %3021 = vst [vmem:[#allocation2 + $0xf8] sm:$0xff] %v2981
    %3022 = vst [vmem:[#allocation2 + $0x100] sm:$0xff] %v2982
    %3023 = vst [vmem:[#allocation2 + $0x108] sm:$0xff] %v2983
    %3024 = vst [vmem:[#allocation2 + $0x110] sm:$0xff] %v2984
    %3025 = vst [vmem:[#allocation2 + $0x118] sm:$0xff] %v2985
    %3026 = vst [vmem:[#allocation2 + $0x120] sm:$0xff] %v2986
    %3027 = vst [vmem:[#allocation2 + $0x128] sm:$0xff] %v2987
    %3028 = vst [vmem:[#allocation2 + $0x130] sm:$0xff] %v2988
    %3029 = vst [vmem:[#allocation2 + $0x138] sm:$0xff] %v2989
    %v3030 = vld [vmem:[#allocation21] sm:$0xf]
    %v3032 = vlaneseq
    %v3033 = vshrl.u32 %v3032, 7
    %v3034 = vsub.s32 0, %v3033
    %v3035 = vrot.slane %v3030, %v3034
    %v3036 = vlaneseq
    %v3037 = vshrl.u32 %v3036, 7
    %v3038 = vsub.s32 1, %v3037
    %v3039 = vrot.slane %v3030, %v3038
    %v3040 = vlaneseq
    %v3041 = vshrl.u32 %v3040, 7
    %v3042 = vsub.s32 2, %v3041
    %v3043 = vrot.slane %v3030, %v3042
    %v3044 = vlaneseq
    %v3045 = vshrl.u32 %v3044, 7
    %v3046 = vsub.s32 3, %v3045
    %v3047 = vrot.slane %v3030, %v3046
    %v3052 = vadd.f32 %v3035, 0.0
    %v3053 = vadd.f32 %v3039, 0.0
    %v3054 = vadd.f32 %v3043, 0.0
    %v3055 = vadd.f32 %v3047, 0.0
    %s3056 = smul.u32 8, 5
    %s3057 = smul.u32 %s3056, 32
    %s3058 = smul.u32 %s3057, 4
    %s3059 = sshll.u32 %s3058, 4
    %3060 = dma.done [#allocation4], %s3059
    %v3061 = vld [vmem:[#allocation2] sm:$0xff]
    %v3062 = vld [vmem:[#allocation2 + $0x8] sm:$0xff]
    %v3063 = vld [vmem:[#allocation3] sm:$0xff]
    %v3064 = vld [vmem:[#allocation3 + $0x8] sm:$0xff]
    %v3065 = vld [vmem:[#allocation3 + $0x10] sm:$0xff]
    %v3066 = vld [vmem:[#allocation3 + $0x18] sm:$0xff]
    %v3067 = vld [vmem:[#allocation3 + $0x20] sm:$0xff]
    %v3068 = vld [vmem:[#allocation3 + $0x28] sm:$0xff]
    %v3069 = vld [vmem:[#allocation3 + $0x30] sm:$0xff]
    %v3070 = vld [vmem:[#allocation3 + $0x38] sm:$0xff]
    %v3071 = vld [vmem:[#allocation3 + $0x40] sm:$0xff]
    %v3072 = vld [vmem:[#allocation3 + $0x48] sm:$0xff]
    %v3073 = vld [vmem:[#allocation3 + $0x50] sm:$0xff]
    %v3074 = vld [vmem:[#allocation3 + $0x58] sm:$0xff]
    %v3075 = vld [vmem:[#allocation3 + $0x60] sm:$0xff]
    %v3076 = vld [vmem:[#allocation3 + $0x68] sm:$0xff]
    %v3077 = vld [vmem:[#allocation3 + $0x70] sm:$0xff]
    %v3078 = vld [vmem:[#allocation3 + $0x78] sm:$0xff]
    %v3079 = vld [vmem:[#allocation3 + $0x80] sm:$0xff]
    %v3080 = vld [vmem:[#allocation3 + $0x88] sm:$0xff]
    %v3081 = vld [vmem:[#allocation3 + $0x90] sm:$0xff]
    %v3082 = vld [vmem:[#allocation3 + $0x98] sm:$0xff]
    %v3083 = vld [vmem:[#allocation3 + $0xa0] sm:$0xff]
    %v3084 = vld [vmem:[#allocation3 + $0xa8] sm:$0xff]
    %v3085 = vld [vmem:[#allocation3 + $0xb0] sm:$0xff]
    %v3086 = vld [vmem:[#allocation3 + $0xb8] sm:$0xff]
    %v3087 = vld [vmem:[#allocation3 + $0xc0] sm:$0xff]
    %v3088 = vld [vmem:[#allocation3 + $0xc8] sm:$0xff]
    %v3089 = vld [vmem:[#allocation3 + $0xd0] sm:$0xff]
    %v3090 = vld [vmem:[#allocation3 + $0xd8] sm:$0xff]
    %v3091 = vld [vmem:[#allocation3 + $0xe0] sm:$0xff]
    %v3092 = vld [vmem:[#allocation3 + $0xe8] sm:$0xff]
    %v3093 = vld [vmem:[#allocation3 + $0xf0] sm:$0xff]
    %v3094 = vld [vmem:[#allocation3 + $0xf8] sm:$0xff]
    %v3095 = vld [vmem:[#allocation3 + $0x100] sm:$0xff]
    %v3096 = vld [vmem:[#allocation3 + $0x108] sm:$0xff]
    %v3097 = vld [vmem:[#allocation3 + $0x110] sm:$0xff]
    %v3098 = vld [vmem:[#allocation3 + $0x118] sm:$0xff]
    %v3099 = vld [vmem:[#allocation3 + $0x120] sm:$0xff]
    %v3100 = vld [vmem:[#allocation3 + $0x128] sm:$0xff]
    %v3101 = vld [vmem:[#allocation3 + $0x130] sm:$0xff]
    %v3102 = vld [vmem:[#allocation3 + $0x138] sm:$0xff]
    %v3103 = vld [vmem:[#allocation3 + $0x140] sm:$0xff]
    %v3104 = vld [vmem:[#allocation3 + $0x148] sm:$0xff]
    %v3105 = vld [vmem:[#allocation3 + $0x150] sm:$0xff]
    %v3106 = vld [vmem:[#allocation3 + $0x158] sm:$0xff]
    %v3107 = vld [vmem:[#allocation3 + $0x160] sm:$0xff]
    %v3108 = vld [vmem:[#allocation3 + $0x168] sm:$0xff]
    %v3109 = vld [vmem:[#allocation3 + $0x170] sm:$0xff]
    %v3110 = vld [vmem:[#allocation3 + $0x178] sm:$0xff]
    %v3111 = vld [vmem:[#allocation3 + $0x180] sm:$0xff]
    %v3112 = vld [vmem:[#allocation3 + $0x188] sm:$0xff]
    %v3113 = vld [vmem:[#allocation3 + $0x190] sm:$0xff]
    %v3114 = vld [vmem:[#allocation3 + $0x198] sm:$0xff]
    %v3115 = vld [vmem:[#allocation3 + $0x1a0] sm:$0xff]
    %v3116 = vld [vmem:[#allocation3 + $0x1a8] sm:$0xff]
    %v3117 = vld [vmem:[#allocation3 + $0x1b0] sm:$0xff]
    %v3118 = vld [vmem:[#allocation3 + $0x1b8] sm:$0xff]
    %v3119 = vld [vmem:[#allocation3 + $0x1c0] sm:$0xff]
    %v3120 = vld [vmem:[#allocation3 + $0x1c8] sm:$0xff]
    %v3121 = vld [vmem:[#allocation3 + $0x1d0] sm:$0xff]
    %v3122 = vld [vmem:[#allocation3 + $0x1d8] sm:$0xff]
    %v3123 = vld [vmem:[#allocation3 + $0x1e0] sm:$0xff]
    %v3124 = vld [vmem:[#allocation3 + $0x1e8] sm:$0xff]
    %v3125 = vld [vmem:[#allocation3 + $0x1f0] sm:$0xff]
    %v3126 = vld [vmem:[#allocation3 + $0x1f8] sm:$0xff]
    %v3127 = vld [vmem:[#allocation3 + $0x200] sm:$0xff]
    %v3128 = vld [vmem:[#allocation3 + $0x208] sm:$0xff]
    %v3129 = vld [vmem:[#allocation3 + $0x210] sm:$0xff]
    %v3130 = vld [vmem:[#allocation3 + $0x218] sm:$0xff]
    %v3131 = vld [vmem:[#allocation3 + $0x220] sm:$0xff]
    %v3132 = vld [vmem:[#allocation3 + $0x228] sm:$0xff]
    %v3133 = vld [vmem:[#allocation3 + $0x230] sm:$0xff]
    %v3134 = vld [vmem:[#allocation3 + $0x238] sm:$0xff]
    %v3135 = vld [vmem:[#allocation3 + $0x240] sm:$0xff]
    %v3136 = vld [vmem:[#allocation3 + $0x248] sm:$0xff]
    %v3137 = vld [vmem:[#allocation3 + $0x250] sm:$0xff]
    %v3138 = vld [vmem:[#allocation3 + $0x258] sm:$0xff]
    %v3139 = vld [vmem:[#allocation3 + $0x260] sm:$0xff]
    %v3140 = vld [vmem:[#allocation3 + $0x268] sm:$0xff]
    %v3141 = vld [vmem:[#allocation3 + $0x270] sm:$0xff]
    %v3142 = vld [vmem:[#allocation3 + $0x278] sm:$0xff]
    %v3143 = vld [vmem:[#allocation3 + $0x280] sm:$0xff]
    %v3144 = vld [vmem:[#allocation3 + $0x288] sm:$0xff]
    %v3145 = vld [vmem:[#allocation3 + $0x290] sm:$0xff]
    %v3146 = vld [vmem:[#allocation3 + $0x298] sm:$0xff]
    %v3147 = vld [vmem:[#allocation3 + $0x2a0] sm:$0xff]
    %v3148 = vld [vmem:[#allocation3 + $0x2a8] sm:$0xff]
    %v3149 = vld [vmem:[#allocation3 + $0x2b0] sm:$0xff]
    %v3150 = vld [vmem:[#allocation3 + $0x2b8] sm:$0xff]
    %v3151 = vld [vmem:[#allocation3 + $0x2c0] sm:$0xff]
    %v3152 = vld [vmem:[#allocation3 + $0x2c8] sm:$0xff]
    %v3153 = vld [vmem:[#allocation3 + $0x2d0] sm:$0xff]
    %v3154 = vld [vmem:[#allocation3 + $0x2d8] sm:$0xff]
    %v3155 = vld [vmem:[#allocation3 + $0x2e0] sm:$0xff]
    %v3156 = vld [vmem:[#allocation3 + $0x2e8] sm:$0xff]
    %v3157 = vld [vmem:[#allocation3 + $0x2f0] sm:$0xff]
    %v3158 = vld [vmem:[#allocation3 + $0x2f8] sm:$0xff]
    %v3159 = vld [vmem:[#allocation3 + $0x300] sm:$0xff]
    %v3160 = vld [vmem:[#allocation3 + $0x308] sm:$0xff]
    %v3161 = vld [vmem:[#allocation3 + $0x310] sm:$0xff]
    %v3162 = vld [vmem:[#allocation3 + $0x318] sm:$0xff]
    %v3163 = vld [vmem:[#allocation3 + $0x320] sm:$0xff]
    %v3164 = vld [vmem:[#allocation3 + $0x328] sm:$0xff]
    %v3165 = vld [vmem:[#allocation3 + $0x330] sm:$0xff]
    %v3166 = vld [vmem:[#allocation3 + $0x338] sm:$0xff]
    %v3167 = vld [vmem:[#allocation3 + $0x340] sm:$0xff]
    %v3168 = vld [vmem:[#allocation3 + $0x348] sm:$0xff]
    %v3169 = vld [vmem:[#allocation3 + $0x350] sm:$0xff]
    %v3170 = vld [vmem:[#allocation3 + $0x358] sm:$0xff]
    %v3171 = vld [vmem:[#allocation3 + $0x360] sm:$0xff]
    %v3172 = vld [vmem:[#allocation3 + $0x368] sm:$0xff]
    %v3173 = vld [vmem:[#allocation3 + $0x370] sm:$0xff]
    %v3174 = vld [vmem:[#allocation3 + $0x378] sm:$0xff]
    %v3175 = vld [vmem:[#allocation3 + $0x380] sm:$0xff]
    %v3176 = vld [vmem:[#allocation3 + $0x388] sm:$0xff]
    %v3177 = vld [vmem:[#allocation3 + $0x390] sm:$0xff]
    %v3178 = vld [vmem:[#allocation3 + $0x398] sm:$0xff]
    %v3179 = vld [vmem:[#allocation3 + $0x3a0] sm:$0xff]
    %v3180 = vld [vmem:[#allocation3 + $0x3a8] sm:$0xff]
    %v3181 = vld [vmem:[#allocation3 + $0x3b0] sm:$0xff]
    %v3182 = vld [vmem:[#allocation3 + $0x3b8] sm:$0xff]
    %v3183 = vld [vmem:[#allocation3 + $0x3c0] sm:$0xff]
    %v3184 = vld [vmem:[#allocation3 + $0x3c8] sm:$0xff]
    %v3185 = vld [vmem:[#allocation3 + $0x3d0] sm:$0xff]
    %v3186 = vld [vmem:[#allocation3 + $0x3d8] sm:$0xff]
    %v3187 = vld [vmem:[#allocation3 + $0x3e0] sm:$0xff]
    %v3188 = vld [vmem:[#allocation3 + $0x3e8] sm:$0xff]
    %v3189 = vld [vmem:[#allocation3 + $0x3f0] sm:$0xff]
    %v3190 = vld [vmem:[#allocation3 + $0x3f8] sm:$0xff]
    %3191 = vmatprep.subr.mxu0 %v3124
    %3192 = vmatpush1.msra.mxu0 %v3123
    %3193 = vmatprep.subr.mxu0 %v3120
    %3194 = vmatpush1.msra.mxu0 %v3119
    %3195 = vmatprep.subr.mxu0 %v3116
    %3196 = vmatpush1.msra.mxu0 %v3115
    %3197 = vmatprep.subr.mxu0 %v3112
    %3198 = vmatpush1.msra.mxu0 %v3111
    %3199 = vmatprep.subr.mxu0 %v3108
    %3200 = vmatpush1.msra.mxu0 %v3107
    %3201 = vmatprep.subr.mxu0 %v3104
    %3202 = vmatpush1.msra.mxu0 %v3103
    %3203 = vmatprep.subr.mxu0 %v3100
    %3204 = vmatpush1.msra.mxu0 %v3099
    %3205 = vmatprep.subr.mxu0 %v3096
    %3206 = vmatpush1.msra.mxu0 %v3095
    %3207 = vmatprep.subr.mxu0 %v3092
    %3208 = vmatpush1.msra.mxu0 %v3091
    %3209 = vmatprep.subr.mxu0 %v3088
    %3210 = vmatpush1.msra.mxu0 %v3087
    %3211 = vmatprep.subr.mxu0 %v3084
    %3212 = vmatpush1.msra.mxu0 %v3083
    %3213 = vmatprep.subr.mxu0 %v3080
    %3214 = vmatpush1.msra.mxu0 %v3079
    %3215 = vmatprep.subr.mxu0 %v3076
    %3216 = vmatpush1.msra.mxu0 %v3075
    %3217 = vmatprep.subr.mxu0 %v3072
    %3218 = vmatpush1.msra.mxu0 %v3071
    %3219 = vmatprep.subr.mxu0 %v3068
    %3220 = vmatpush1.msra.mxu0 %v3067
    %3221 = vmatprep.subr.mxu0 %v3064
    %3222 = vmatpush1.msra.mxu0 %v3063
    %3223 = vmatprep.subr.mxu0 %v3188
    %3224 = vmatpush2.msra.mxu0 %v3187
    %3225 = vmatprep.subr.mxu0 %v3184
    %3226 = vmatpush2.msra.mxu0 %v3183
    %3227 = vmatprep.subr.mxu0 %v3180
    %3228 = vmatpush2.msra.mxu0 %v3179
    %3229 = vmatprep.subr.mxu0 %v3176
    %3230 = vmatpush2.msra.mxu0 %v3175
    %3231 = vmatprep.subr.mxu0 %v3172
    %3232 = vmatpush2.msra.mxu0 %v3171
    %3233 = vmatprep.subr.mxu0 %v3168
    %3234 = vmatpush2.msra.mxu0 %v3167
    %3235 = vmatprep.subr.mxu0 %v3164
    %3236 = vmatpush2.msra.mxu0 %v3163
    %3237 = vmatprep.subr.mxu0 %v3160
    %3238 = vmatpush2.msra.mxu0 %v3159
    %3239 = vmatprep.subr.mxu0 %v3156
    %3240 = vmatpush2.msra.mxu0 %v3155
    %3241 = vmatprep.subr.mxu0 %v3152
    %3242 = vmatpush2.msra.mxu0 %v3151
    %3243 = vmatprep.subr.mxu0 %v3148
    %3244 = vmatpush2.msra.mxu0 %v3147
    %3245 = vmatprep.subr.mxu0 %v3144
    %3246 = vmatpush2.msra.mxu0 %v3143
    %3247 = vmatprep.subr.mxu0 %v3140
    %3248 = vmatpush2.msra.mxu0 %v3139
    %3249 = vmatprep.subr.mxu0 %v3136
    %3250 = vmatpush2.msra.mxu0 %v3135
    %3251 = vmatprep.subr.mxu0 %v3132
    %3252 = vmatpush2.msra.mxu0 %v3131
    %3253 = vmatprep.subr.mxu0 %v3128
    %3254 = vmatpush2.msra.mxu0 %v3127
    %3255 = vmatprep.mubr.f32.mxu0 %v3062
    %3256 = vmatmul.mubr.f32.gmra.mxu0 %v3061
    %v3257 = vpop.f32.mrf.mxu0
    %v3258 = vadd.f32 0.0, %v3257
    %v3259 = vpop.f32.mrf.mxu0
    %v3260 = vadd.f32 0.0, %v3259
    %3261 = vdwg.mxu0
    %3262 = vmatprep.subr.mxu0 %v3126
    %3263 = vmatpush1.msra.mxu0 %v3125
    %3264 = vmatprep.subr.mxu0 %v3122
    %3265 = vmatpush1.msra.mxu0 %v3121
    %3266 = vmatprep.subr.mxu0 %v3118
    %3267 = vmatpush1.msra.mxu0 %v3117
    %3268 = vmatprep.subr.mxu0 %v3114
    %3269 = vmatpush1.msra.mxu0 %v3113
    %3270 = vmatprep.subr.mxu0 %v3110
    %3271 = vmatpush1.msra.mxu0 %v3109
    %3272 = vmatprep.subr.mxu0 %v3106
    %3273 = vmatpush1.msra.mxu0 %v3105
    %3274 = vmatprep.subr.mxu0 %v3102
    %3275 = vmatpush1.msra.mxu0 %v3101
    %3276 = vmatprep.subr.mxu0 %v3098
    %3277 = vmatpush1.msra.mxu0 %v3097
    %3278 = vmatprep.subr.mxu0 %v3094
    %3279 = vmatpush1.msra.mxu0 %v3093
    %3280 = vmatprep.subr.mxu0 %v3090
    %3281 = vmatpush1.msra.mxu0 %v3089
    %3282 = vmatprep.subr.mxu0 %v3086
    %3283 = vmatpush1.msra.mxu0 %v3085
    %3284 = vmatprep.subr.mxu0 %v3082
    %3285 = vmatpush1.msra.mxu0 %v3081
    %3286 = vmatprep.subr.mxu0 %v3078
    %3287 = vmatpush1.msra.mxu0 %v3077
    %3288 = vmatprep.subr.mxu0 %v3074
    %3289 = vmatpush1.msra.mxu0 %v3073
    %3290 = vmatprep.subr.mxu0 %v3070
    %3291 = vmatpush1.msra.mxu0 %v3069
    %3292 = vmatprep.subr.mxu0 %v3066
    %3293 = vmatpush1.msra.mxu0 %v3065
    %3294 = vmatprep.subr.mxu0 %v3190
    %3295 = vmatpush2.msra.mxu0 %v3189
    %3296 = vmatprep.subr.mxu0 %v3186
    %3297 = vmatpush2.msra.mxu0 %v3185
    %3298 = vmatprep.subr.mxu0 %v3182
    %3299 = vmatpush2.msra.mxu0 %v3181
    %3300 = vmatprep.subr.mxu0 %v3178
    %3301 = vmatpush2.msra.mxu0 %v3177
    %3302 = vmatprep.subr.mxu0 %v3174
    %3303 = vmatpush2.msra.mxu0 %v3173
    %3304 = vmatprep.subr.mxu0 %v3170
    %3305 = vmatpush2.msra.mxu0 %v3169
    %3306 = vmatprep.subr.mxu0 %v3166
    %3307 = vmatpush2.msra.mxu0 %v3165
    %3308 = vmatprep.subr.mxu0 %v3162
    %3309 = vmatpush2.msra.mxu0 %v3161
    %3310 = vmatprep.subr.mxu0 %v3158
    %3311 = vmatpush2.msra.mxu0 %v3157
    %3312 = vmatprep.subr.mxu0 %v3154
    %3313 = vmatpush2.msra.mxu0 %v3153
    %3314 = vmatprep.subr.mxu0 %v3150
    %3315 = vmatpush2.msra.mxu0 %v3149
    %3316 = vmatprep.subr.mxu0 %v3146
    %3317 = vmatpush2.msra.mxu0 %v3145
    %3318 = vmatprep.subr.mxu0 %v3142
    %3319 = vmatpush2.msra.mxu0 %v3141
    %3320 = vmatprep.subr.mxu0 %v3138
    %3321 = vmatpush2.msra.mxu0 %v3137
    %3322 = vmatprep.subr.mxu0 %v3134
    %3323 = vmatpush2.msra.mxu0 %v3133
    %3324 = vmatprep.subr.mxu0 %v3130
    %3325 = vmatpush2.msra.mxu0 %v3129
    %3326 = vmatprep.mubr.f32.mxu0 %v3062
    %3327 = vmatmul.mubr.f32.gmra.mxu0 %v3061
    %v3328 = vpop.f32.mrf.mxu0
    %v3329 = vadd.f32 0.0, %v3328
    %v3330 = vpop.f32.mrf.mxu0
    %v3331 = vadd.f32 0.0, %v3330
    %3332 = vdwg.mxu0
    %v3333 = vadd.f32 %v3052, %v3258
    %v3334 = vadd.f32 %v3053, %v3260
    %v3335 = vadd.f32 %v3054, %v3329
    %v3336 = vadd.f32 %v3055, %v3331
    %v3337 = vld [vmem:[#allocation2 + $0x10] sm:$0xff]
    %v3338 = vld [vmem:[#allocation2 + $0x18] sm:$0xff]
    %s3339 = scalar_lea.vmem [#allocation3], 1024
    %v3340 = vld [vmem:[%s3339] sm:$0xff]
    %v3341 = vld [vmem:[%s3339 + $0x8] sm:$0xff]
    %v3342 = vld [vmem:[%s3339 + $0x10] sm:$0xff]
    %v3343 = vld [vmem:[%s3339 + $0x18] sm:$0xff]
    %v3344 = vld [vmem:[%s3339 + $0x20] sm:$0xff]
    %v3345 = vld [vmem:[%s3339 + $0x28] sm:$0xff]
    %v3346 = vld [vmem:[%s3339 + $0x30] sm:$0xff]
    %v3347 = vld [vmem:[%s3339 + $0x38] sm:$0xff]
    %v3348 = vld [vmem:[%s3339 + $0x40] sm:$0xff]
    %v3349 = vld [vmem:[%s3339 + $0x48] sm:$0xff]
    %v3350 = vld [vmem:[%s3339 + $0x50] sm:$0xff]
    %v3351 = vld [vmem:[%s3339 + $0x58] sm:$0xff]
    %v3352 = vld [vmem:[%s3339 + $0x60] sm:$0xff]
    %v3353 = vld [vmem:[%s3339 + $0x68] sm:$0xff]
    %v3354 = vld [vmem:[%s3339 + $0x70] sm:$0xff]
    %v3355 = vld [vmem:[%s3339 + $0x78] sm:$0xff]
    %v3356 = vld [vmem:[%s3339 + $0x80] sm:$0xff]
    %v3357 = vld [vmem:[%s3339 + $0x88] sm:$0xff]
    %v3358 = vld [vmem:[%s3339 + $0x90] sm:$0xff]
    %v3359 = vld [vmem:[%s3339 + $0x98] sm:$0xff]
    %v3360 = vld [vmem:[%s3339 + $0xa0] sm:$0xff]
    %v3361 = vld [vmem:[%s3339 + $0xa8] sm:$0xff]
    %v3362 = vld [vmem:[%s3339 + $0xb0] sm:$0xff]
    %v3363 = vld [vmem:[%s3339 + $0xb8] sm:$0xff]
    %v3364 = vld [vmem:[%s3339 + $0xc0] sm:$0xff]
    %v3365 = vld [vmem:[%s3339 + $0xc8] sm:$0xff]
    %v3366 = vld [vmem:[%s3339 + $0xd0] sm:$0xff]
    %v3367 = vld [vmem:[%s3339 + $0xd8] sm:$0xff]
    %v3368 = vld [vmem:[%s3339 + $0xe0] sm:$0xff]
    %v3369 = vld [vmem:[%s3339 + $0xe8] sm:$0xff]
    %v3370 = vld [vmem:[%s3339 + $0xf0] sm:$0xff]
    %v3371 = vld [vmem:[%s3339 + $0xf8] sm:$0xff]
    %v3372 = vld [vmem:[%s3339 + $0x100] sm:$0xff]
    %v3373 = vld [vmem:[%s3339 + $0x108] sm:$0xff]
    %v3374 = vld [vmem:[%s3339 + $0x110] sm:$0xff]
    %v3375 = vld [vmem:[%s3339 + $0x118] sm:$0xff]
    %v3376 = vld [vmem:[%s3339 + $0x120] sm:$0xff]
    %v3377 = vld [vmem:[%s3339 + $0x128] sm:$0xff]
    %v3378 = vld [vmem:[%s3339 + $0x130] sm:$0xff]
    %v3379 = vld [vmem:[%s3339 + $0x138] sm:$0xff]
    %v3380 = vld [vmem:[%s3339 + $0x140] sm:$0xff]
    %v3381 = vld [vmem:[%s3339 + $0x148] sm:$0xff]
    %v3382 = vld [vmem:[%s3339 + $0x150] sm:$0xff]
    %v3383 = vld [vmem:[%s3339 + $0x158] sm:$0xff]
    %v3384 = vld [vmem:[%s3339 + $0x160] sm:$0xff]
    %v3385 = vld [vmem:[%s3339 + $0x168] sm:$0xff]
    %v3386 = vld [vmem:[%s3339 + $0x170] sm:$0xff]
    %v3387 = vld [vmem:[%s3339 + $0x178] sm:$0xff]
    %v3388 = vld [vmem:[%s3339 + $0x180] sm:$0xff]
    %v3389 = vld [vmem:[%s3339 + $0x188] sm:$0xff]
    %v3390 = vld [vmem:[%s3339 + $0x190] sm:$0xff]
    %v3391 = vld [vmem:[%s3339 + $0x198] sm:$0xff]
    %v3392 = vld [vmem:[%s3339 + $0x1a0] sm:$0xff]
    %v3393 = vld [vmem:[%s3339 + $0x1a8] sm:$0xff]
    %v3394 = vld [vmem:[%s3339 + $0x1b0] sm:$0xff]
    %v3395 = vld [vmem:[%s3339 + $0x1b8] sm:$0xff]
    %v3396 = vld [vmem:[%s3339 + $0x1c0] sm:$0xff]
    %v3397 = vld [vmem:[%s3339 + $0x1c8] sm:$0xff]
    %v3398 = vld [vmem:[%s3339 + $0x1d0] sm:$0xff]
    %v3399 = vld [vmem:[%s3339 + $0x1d8] sm:$0xff]
    %v3400 = vld [vmem:[%s3339 + $0x1e0] sm:$0xff]
    %v3401 = vld [vmem:[%s3339 + $0x1e8] sm:$0xff]
    %v3402 = vld [vmem:[%s3339 + $0x1f0] sm:$0xff]
    %v3403 = vld [vmem:[%s3339 + $0x1f8] sm:$0xff]
    %v3404 = vld [vmem:[%s3339 + $0x200] sm:$0xff]
    %v3405 = vld [vmem:[%s3339 + $0x208] sm:$0xff]
    %v3406 = vld [vmem:[%s3339 + $0x210] sm:$0xff]
    %v3407 = vld [vmem:[%s3339 + $0x218] sm:$0xff]
    %v3408 = vld [vmem:[%s3339 + $0x220] sm:$0xff]
    %v3409 = vld [vmem:[%s3339 + $0x228] sm:$0xff]
    %v3410 = vld [vmem:[%s3339 + $0x230] sm:$0xff]
    %v3411 = vld [vmem:[%s3339 + $0x238] sm:$0xff]
    %v3412 = vld [vmem:[%s3339 + $0x240] sm:$0xff]
    %v3413 = vld [vmem:[%s3339 + $0x248] sm:$0xff]
    %v3414 = vld [vmem:[%s3339 + $0x250] sm:$0xff]
    %v3415 = vld [vmem:[%s3339 + $0x258] sm:$0xff]
    %v3416 = vld [vmem:[%s3339 + $0x260] sm:$0xff]
    %v3417 = vld [vmem:[%s3339 + $0x268] sm:$0xff]
    %v3418 = vld [vmem:[%s3339 + $0x270] sm:$0xff]
    %v3419 = vld [vmem:[%s3339 + $0x278] sm:$0xff]
    %v3420 = vld [vmem:[%s3339 + $0x280] sm:$0xff]
    %v3421 = vld [vmem:[%s3339 + $0x288] sm:$0xff]
    %v3422 = vld [vmem:[%s3339 + $0x290] sm:$0xff]
    %v3423 = vld [vmem:[%s3339 + $0x298] sm:$0xff]
    %v3424 = vld [vmem:[%s3339 + $0x2a0] sm:$0xff]
    %v3425 = vld [vmem:[%s3339 + $0x2a8] sm:$0xff]
    %v3426 = vld [vmem:[%s3339 + $0x2b0] sm:$0xff]
    %v3427 = vld [vmem:[%s3339 + $0x2b8] sm:$0xff]
    %v3428 = vld [vmem:[%s3339 + $0x2c0] sm:$0xff]
    %v3429 = vld [vmem:[%s3339 + $0x2c8] sm:$0xff]
    %v3430 = vld [vmem:[%s3339 + $0x2d0] sm:$0xff]
    %v3431 = vld [vmem:[%s3339 + $0x2d8] sm:$0xff]
    %v3432 = vld [vmem:[%s3339 + $0x2e0] sm:$0xff]
    %v3433 = vld [vmem:[%s3339 + $0x2e8] sm:$0xff]
    %v3434 = vld [vmem:[%s3339 + $0x2f0] sm:$0xff]
    %v3435 = vld [vmem:[%s3339 + $0x2f8] sm:$0xff]
    %v3436 = vld [vmem:[%s3339 + $0x300] sm:$0xff]
    %v3437 = vld [vmem:[%s3339 + $0x308] sm:$0xff]
    %v3438 = vld [vmem:[%s3339 + $0x310] sm:$0xff]
    %v3439 = vld [vmem:[%s3339 + $0x318] sm:$0xff]
    %v3440 = vld [vmem:[%s3339 + $0x320] sm:$0xff]
    %v3441 = vld [vmem:[%s3339 + $0x328] sm:$0xff]
    %v3442 = vld [vmem:[%s3339 + $0x330] sm:$0xff]
    %v3443 = vld [vmem:[%s3339 + $0x338] sm:$0xff]
    %v3444 = vld [vmem:[%s3339 + $0x340] sm:$0xff]
    %v3445 = vld [vmem:[%s3339 + $0x348] sm:$0xff]
    %v3446 = vld [vmem:[%s3339 + $0x350] sm:$0xff]
    %v3447 = vld [vmem:[%s3339 + $0x358] sm:$0xff]
    %v3448 = vld [vmem:[%s3339 + $0x360] sm:$0xff]
    %v3449 = vld [vmem:[%s3339 + $0x368] sm:$0xff]
    %v3450 = vld [vmem:[%s3339 + $0x370] sm:$0xff]
    %v3451 = vld [vmem:[%s3339 + $0x378] sm:$0xff]
    %v3452 = vld [vmem:[%s3339 + $0x380] sm:$0xff]
    %v3453 = vld [vmem:[%s3339 + $0x388] sm:$0xff]
    %v3454 = vld [vmem:[%s3339 + $0x390] sm:$0xff]
    %v3455 = vld [vmem:[%s3339 + $0x398] sm:$0xff]
    %v3456 = vld [vmem:[%s3339 + $0x3a0] sm:$0xff]
    %v3457 = vld [vmem:[%s3339 + $0x3a8] sm:$0xff]
    %v3458 = vld [vmem:[%s3339 + $0x3b0] sm:$0xff]
    %v3459 = vld [vmem:[%s3339 + $0x3b8] sm:$0xff]
    %v3460 = vld [vmem:[%s3339 + $0x3c0] sm:$0xff]
    %v3461 = vld [vmem:[%s3339 + $0x3c8] sm:$0xff]
    %v3462 = vld [vmem:[%s3339 + $0x3d0] sm:$0xff]
    %v3463 = vld [vmem:[%s3339 + $0x3d8] sm:$0xff]
    %v3464 = vld [vmem:[%s3339 + $0x3e0] sm:$0xff]
    %v3465 = vld [vmem:[%s3339 + $0x3e8] sm:$0xff]
    %v3466 = vld [vmem:[%s3339 + $0x3f0] sm:$0xff]
    %v3467 = vld [vmem:[%s3339 + $0x3f8] sm:$0xff]
    %3468 = vmatprep.subr.mxu0 %v3401
    %3469 = vmatpush1.msra.mxu0 %v3400
    %3470 = vmatprep.subr.mxu0 %v3397
    %3471 = vmatpush1.msra.mxu0 %v3396
    %3472 = vmatprep.subr.mxu0 %v3393
    %3473 = vmatpush1.msra.mxu0 %v3392
    %3474 = vmatprep.subr.mxu0 %v3389
    %3475 = vmatpush1.msra.mxu0 %v3388
    %3476 = vmatprep.subr.mxu0 %v3385
    %3477 = vmatpush1.msra.mxu0 %v3384
    %3478 = vmatprep.subr.mxu0 %v3381
    %3479 = vmatpush1.msra.mxu0 %v3380
    %3480 = vmatprep.subr.mxu0 %v3377
    %3481 = vmatpush1.msra.mxu0 %v3376
    %3482 = vmatprep.subr.mxu0 %v3373
    %3483 = vmatpush1.msra.mxu0 %v3372
    %3484 = vmatprep.subr.mxu0 %v3369
    %3485 = vmatpush1.msra.mxu0 %v3368
    %3486 = vmatprep.subr.mxu0 %v3365
    %3487 = vmatpush1.msra.mxu0 %v3364
    %3488 = vmatprep.subr.mxu0 %v3361
    %3489 = vmatpush1.msra.mxu0 %v3360
    %3490 = vmatprep.subr.mxu0 %v3357
    %3491 = vmatpush1.msra.mxu0 %v3356
    %3492 = vmatprep.subr.mxu0 %v3353
    %3493 = vmatpush1.msra.mxu0 %v3352
    %3494 = vmatprep.subr.mxu0 %v3349
    %3495 = vmatpush1.msra.mxu0 %v3348
    %3496 = vmatprep.subr.mxu0 %v3345
    %3497 = vmatpush1.msra.mxu0 %v3344
    %3498 = vmatprep.subr.mxu0 %v3341
    %3499 = vmatpush1.msra.mxu0 %v3340
    %3500 = vmatprep.subr.mxu0 %v3465
    %3501 = vmatpush2.msra.mxu0 %v3464
    %3502 = vmatprep.subr.mxu0 %v3461
    %3503 = vmatpush2.msra.mxu0 %v3460
    %3504 = vmatprep.subr.mxu0 %v3457
    %3505 = vmatpush2.msra.mxu0 %v3456
    %3506 = vmatprep.subr.mxu0 %v3453
    %3507 = vmatpush2.msra.mxu0 %v3452
    %3508 = vmatprep.subr.mxu0 %v3449
    %3509 = vmatpush2.msra.mxu0 %v3448
    %3510 = vmatprep.subr.mxu0 %v3445
    %3511 = vmatpush2.msra.mxu0 %v3444
    %3512 = vmatprep.subr.mxu0 %v3441
    %3513 = vmatpush2.msra.mxu0 %v3440
    %3514 = vmatprep.subr.mxu0 %v3437
    %3515 = vmatpush2.msra.mxu0 %v3436
    %3516 = vmatprep.subr.mxu0 %v3433
    %3517 = vmatpush2.msra.mxu0 %v3432
    %3518 = vmatprep.subr.mxu0 %v3429
    %3519 = vmatpush2.msra.mxu0 %v3428
    %3520 = vmatprep.subr.mxu0 %v3425
    %3521 = vmatpush2.msra.mxu0 %v3424
    %3522 = vmatprep.subr.mxu0 %v3421
    %3523 = vmatpush2.msra.mxu0 %v3420
    %3524 = vmatprep.subr.mxu0 %v3417
    %3525 = vmatpush2.msra.mxu0 %v3416
    %3526 = vmatprep.subr.mxu0 %v3413
    %3527 = vmatpush2.msra.mxu0 %v3412
    %3528 = vmatprep.subr.mxu0 %v3409
    %3529 = vmatpush2.msra.mxu0 %v3408
    %3530 = vmatprep.subr.mxu0 %v3405
    %3531 = vmatpush2.msra.mxu0 %v3404
    %3532 = vmatprep.mubr.f32.mxu0 %v3338
    %3533 = vmatmul.mubr.f32.gmra.mxu0 %v3337
    %v3534 = vpop.f32.mrf.mxu0
    %v3535 = vadd.f32 0.0, %v3534
    %v3536 = vpop.f32.mrf.mxu0
    %v3537 = vadd.f32 0.0, %v3536
    %3538 = vdwg.mxu0
    %3539 = vmatprep.subr.mxu0 %v3403
    %3540 = vmatpush1.msra.mxu0 %v3402
    %3541 = vmatprep.subr.mxu0 %v3399
    %3542 = vmatpush1.msra.mxu0 %v3398
    %3543 = vmatprep.subr.mxu0 %v3395
    %3544 = vmatpush1.msra.mxu0 %v3394
    %3545 = vmatprep.subr.mxu0 %v3391
    %3546 = vmatpush1.msra.mxu0 %v3390
    %3547 = vmatprep.subr.mxu0 %v3387
    %3548 = vmatpush1.msra.mxu0 %v3386
    %3549 = vmatprep.subr.mxu0 %v3383
    %3550 = vmatpush1.msra.mxu0 %v3382
    %3551 = vmatprep.subr.mxu0 %v3379
    %3552 = vmatpush1.msra.mxu0 %v3378
    %3553 = vmatprep.subr.mxu0 %v3375
    %3554 = vmatpush1.msra.mxu0 %v3374
    %3555 = vmatprep.subr.mxu0 %v3371
    %3556 = vmatpush1.msra.mxu0 %v3370
    %3557 = vmatprep.subr.mxu0 %v3367
    %3558 = vmatpush1.msra.mxu0 %v3366
    %3559 = vmatprep.subr.mxu0 %v3363
    %3560 = vmatpush1.msra.mxu0 %v3362
    %3561 = vmatprep.subr.mxu0 %v3359
    %3562 = vmatpush1.msra.mxu0 %v3358
    %3563 = vmatprep.subr.mxu0 %v3355
    %3564 = vmatpush1.msra.mxu0 %v3354
    %3565 = vmatprep.subr.mxu0 %v3351
    %3566 = vmatpush1.msra.mxu0 %v3350
    %3567 = vmatprep.subr.mxu0 %v3347
    %3568 = vmatpush1.msra.mxu0 %v3346
    %3569 = vmatprep.subr.mxu0 %v3343
    %3570 = vmatpush1.msra.mxu0 %v3342
    %3571 = vmatprep.subr.mxu0 %v3467
    %3572 = vmatpush2.msra.mxu0 %v3466
    %3573 = vmatprep.subr.mxu0 %v3463
    %3574 = vmatpush2.msra.mxu0 %v3462
    %3575 = vmatprep.subr.mxu0 %v3459
    %3576 = vmatpush2.msra.mxu0 %v3458
    %3577 = vmatprep.subr.mxu0 %v3455
    %3578 = vmatpush2.msra.mxu0 %v3454
    %3579 = vmatprep.subr.mxu0 %v3451
    %3580 = vmatpush2.msra.mxu0 %v3450
    %3581 = vmatprep.subr.mxu0 %v3447
    %3582 = vmatpush2.msra.mxu0 %v3446
    %3583 = vmatprep.subr.mxu0 %v3443
    %3584 = vmatpush2.msra.mxu0 %v3442
    %3585 = vmatprep.subr.mxu0 %v3439
    %3586 = vmatpush2.msra.mxu0 %v3438
    %3587 = vmatprep.subr.mxu0 %v3435
    %3588 = vmatpush2.msra.mxu0 %v3434
    %3589 = vmatprep.subr.mxu0 %v3431
    %3590 = vmatpush2.msra.mxu0 %v3430
    %3591 = vmatprep.subr.mxu0 %v3427
    %3592 = vmatpush2.msra.mxu0 %v3426
    %3593 = vmatprep.subr.mxu0 %v3423
    %3594 = vmatpush2.msra.mxu0 %v3422
    %3595 = vmatprep.subr.mxu0 %v3419
    %3596 = vmatpush2.msra.mxu0 %v3418
    %3597 = vmatprep.subr.mxu0 %v3415
    %3598 = vmatpush2.msra.mxu0 %v3414
    %3599 = vmatprep.subr.mxu0 %v3411
    %3600 = vmatpush2.msra.mxu0 %v3410
    %3601 = vmatprep.subr.mxu0 %v3407
    %3602 = vmatpush2.msra.mxu0 %v3406
    %3603 = vmatprep.mubr.f32.mxu0 %v3338
    %3604 = vmatmul.mubr.f32.gmra.mxu0 %v3337
    %v3605 = vpop.f32.mrf.mxu0
    %v3606 = vadd.f32 0.0, %v3605
    %v3607 = vpop.f32.mrf.mxu0
    %v3608 = vadd.f32 0.0, %v3607
    %3609 = vdwg.mxu0
    %v3610 = vadd.f32 %v3333, %v3535
    %v3611 = vadd.f32 %v3334, %v3537
    %v3612 = vadd.f32 %v3335, %v3606
    %v3613 = vadd.f32 %v3336, %v3608
    %v3614 = vld [vmem:[#allocation2 + $0x20] sm:$0xff]
    %v3615 = vld [vmem:[#allocation2 + $0x28] sm:$0xff]
    %s3616 = scalar_lea.vmem [#allocation3], 2048
    %v3617 = vld [vmem:[%s3616] sm:$0xff]
    %v3618 = vld [vmem:[%s3616 + $0x8] sm:$0xff]
    %v3619 = vld [vmem:[%s3616 + $0x10] sm:$0xff]
    %v3620 = vld [vmem:[%s3616 + $0x18] sm:$0xff]
    %v3621 = vld [vmem:[%s3616 + $0x20] sm:$0xff]
    %v3622 = vld [vmem:[%s3616 + $0x28] sm:$0xff]
    %v3623 = vld [vmem:[%s3616 + $0x30] sm:$0xff]
    %v3624 = vld [vmem:[%s3616 + $0x38] sm:$0xff]
    %v3625 = vld [vmem:[%s3616 + $0x40] sm:$0xff]
    %v3626 = vld [vmem:[%s3616 + $0x48] sm:$0xff]
    %v3627 = vld [vmem:[%s3616 + $0x50] sm:$0xff]
    %v3628 = vld [vmem:[%s3616 + $0x58] sm:$0xff]
    %v3629 = vld [vmem:[%s3616 + $0x60] sm:$0xff]
    %v3630 = vld [vmem:[%s3616 + $0x68] sm:$0xff]
    %v3631 = vld [vmem:[%s3616 + $0x70] sm:$0xff]
    %v3632 = vld [vmem:[%s3616 + $0x78] sm:$0xff]
    %v3633 = vld [vmem:[%s3616 + $0x80] sm:$0xff]
    %v3634 = vld [vmem:[%s3616 + $0x88] sm:$0xff]
    %v3635 = vld [vmem:[%s3616 + $0x90] sm:$0xff]
    %v3636 = vld [vmem:[%s3616 + $0x98] sm:$0xff]
    %v3637 = vld [vmem:[%s3616 + $0xa0] sm:$0xff]
    %v3638 = vld [vmem:[%s3616 + $0xa8] sm:$0xff]
    %v3639 = vld [vmem:[%s3616 + $0xb0] sm:$0xff]
    %v3640 = vld [vmem:[%s3616 + $0xb8] sm:$0xff]
    %v3641 = vld [vmem:[%s3616 + $0xc0] sm:$0xff]
    %v3642 = vld [vmem:[%s3616 + $0xc8] sm:$0xff]
    %v3643 = vld [vmem:[%s3616 + $0xd0] sm:$0xff]
    %v3644 = vld [vmem:[%s3616 + $0xd8] sm:$0xff]
    %v3645 = vld [vmem:[%s3616 + $0xe0] sm:$0xff]
    %v3646 = vld [vmem:[%s3616 + $0xe8] sm:$0xff]
    %v3647 = vld [vmem:[%s3616 + $0xf0] sm:$0xff]
    %v3648 = vld [vmem:[%s3616 + $0xf8] sm:$0xff]
    %v3649 = vld [vmem:[%s3616 + $0x100] sm:$0xff]
    %v3650 = vld [vmem:[%s3616 + $0x108] sm:$0xff]
    %v3651 = vld [vmem:[%s3616 + $0x110] sm:$0xff]
    %v3652 = vld [vmem:[%s3616 + $0x118] sm:$0xff]
    %v3653 = vld [vmem:[%s3616 + $0x120] sm:$0xff]
    %v3654 = vld [vmem:[%s3616 + $0x128] sm:$0xff]
    %v3655 = vld [vmem:[%s3616 + $0x130] sm:$0xff]
    %v3656 = vld [vmem:[%s3616 + $0x138] sm:$0xff]
    %v3657 = vld [vmem:[%s3616 + $0x140] sm:$0xff]
    %v3658 = vld [vmem:[%s3616 + $0x148] sm:$0xff]
    %v3659 = vld [vmem:[%s3616 + $0x150] sm:$0xff]
    %v3660 = vld [vmem:[%s3616 + $0x158] sm:$0xff]
    %v3661 = vld [vmem:[%s3616 + $0x160] sm:$0xff]
    %v3662 = vld [vmem:[%s3616 + $0x168] sm:$0xff]
    %v3663 = vld [vmem:[%s3616 + $0x170] sm:$0xff]
    %v3664 = vld [vmem:[%s3616 + $0x178] sm:$0xff]
    %v3665 = vld [vmem:[%s3616 + $0x180] sm:$0xff]
    %v3666 = vld [vmem:[%s3616 + $0x188] sm:$0xff]
    %v3667 = vld [vmem:[%s3616 + $0x190] sm:$0xff]
    %v3668 = vld [vmem:[%s3616 + $0x198] sm:$0xff]
    %v3669 = vld [vmem:[%s3616 + $0x1a0] sm:$0xff]
    %v3670 = vld [vmem:[%s3616 + $0x1a8] sm:$0xff]
    %v3671 = vld [vmem:[%s3616 + $0x1b0] sm:$0xff]
    %v3672 = vld [vmem:[%s3616 + $0x1b8] sm:$0xff]
    %v3673 = vld [vmem:[%s3616 + $0x1c0] sm:$0xff]
    %v3674 = vld [vmem:[%s3616 + $0x1c8] sm:$0xff]
    %v3675 = vld [vmem:[%s3616 + $0x1d0] sm:$0xff]
    %v3676 = vld [vmem:[%s3616 + $0x1d8] sm:$0xff]
    %v3677 = vld [vmem:[%s3616 + $0x1e0] sm:$0xff]
    %v3678 = vld [vmem:[%s3616 + $0x1e8] sm:$0xff]
    %v3679 = vld [vmem:[%s3616 + $0x1f0] sm:$0xff]
    %v3680 = vld [vmem:[%s3616 + $0x1f8] sm:$0xff]
    %v3681 = vld [vmem:[%s3616 + $0x200] sm:$0xff]
    %v3682 = vld [vmem:[%s3616 + $0x208] sm:$0xff]
    %v3683 = vld [vmem:[%s3616 + $0x210] sm:$0xff]
    %v3684 = vld [vmem:[%s3616 + $0x218] sm:$0xff]
    %v3685 = vld [vmem:[%s3616 + $0x220] sm:$0xff]
    %v3686 = vld [vmem:[%s3616 + $0x228] sm:$0xff]
    %v3687 = vld [vmem:[%s3616 + $0x230] sm:$0xff]
    %v3688 = vld [vmem:[%s3616 + $0x238] sm:$0xff]
    %v3689 = vld [vmem:[%s3616 + $0x240] sm:$0xff]
    %v3690 = vld [vmem:[%s3616 + $0x248] sm:$0xff]
    %v3691 = vld [vmem:[%s3616 + $0x250] sm:$0xff]
    %v3692 = vld [vmem:[%s3616 + $0x258] sm:$0xff]
    %v3693 = vld [vmem:[%s3616 + $0x260] sm:$0xff]
    %v3694 = vld [vmem:[%s3616 + $0x268] sm:$0xff]
    %v3695 = vld [vmem:[%s3616 + $0x270] sm:$0xff]
    %v3696 = vld [vmem:[%s3616 + $0x278] sm:$0xff]
    %v3697 = vld [vmem:[%s3616 + $0x280] sm:$0xff]
    %v3698 = vld [vmem:[%s3616 + $0x288] sm:$0xff]
    %v3699 = vld [vmem:[%s3616 + $0x290] sm:$0xff]
    %v3700 = vld [vmem:[%s3616 + $0x298] sm:$0xff]
    %v3701 = vld [vmem:[%s3616 + $0x2a0] sm:$0xff]
    %v3702 = vld [vmem:[%s3616 + $0x2a8] sm:$0xff]
    %v3703 = vld [vmem:[%s3616 + $0x2b0] sm:$0xff]
    %v3704 = vld [vmem:[%s3616 + $0x2b8] sm:$0xff]
    %v3705 = vld [vmem:[%s3616 + $0x2c0] sm:$0xff]
    %v3706 = vld [vmem:[%s3616 + $0x2c8] sm:$0xff]
    %v3707 = vld [vmem:[%s3616 + $0x2d0] sm:$0xff]
    %v3708 = vld [vmem:[%s3616 + $0x2d8] sm:$0xff]
    %v3709 = vld [vmem:[%s3616 + $0x2e0] sm:$0xff]
    %v3710 = vld [vmem:[%s3616 + $0x2e8] sm:$0xff]
    %v3711 = vld [vmem:[%s3616 + $0x2f0] sm:$0xff]
    %v3712 = vld [vmem:[%s3616 + $0x2f8] sm:$0xff]
    %v3713 = vld [vmem:[%s3616 + $0x300] sm:$0xff]
    %v3714 = vld [vmem:[%s3616 + $0x308] sm:$0xff]
    %v3715 = vld [vmem:[%s3616 + $0x310] sm:$0xff]
    %v3716 = vld [vmem:[%s3616 + $0x318] sm:$0xff]
    %v3717 = vld [vmem:[%s3616 + $0x320] sm:$0xff]
    %v3718 = vld [vmem:[%s3616 + $0x328] sm:$0xff]
    %v3719 = vld [vmem:[%s3616 + $0x330] sm:$0xff]
    %v3720 = vld [vmem:[%s3616 + $0x338] sm:$0xff]
    %v3721 = vld [vmem:[%s3616 + $0x340] sm:$0xff]
    %v3722 = vld [vmem:[%s3616 + $0x348] sm:$0xff]
    %v3723 = vld [vmem:[%s3616 + $0x350] sm:$0xff]
    %v3724 = vld [vmem:[%s3616 + $0x358] sm:$0xff]
    %v3725 = vld [vmem:[%s3616 + $0x360] sm:$0xff]
    %v3726 = vld [vmem:[%s3616 + $0x368] sm:$0xff]
    %v3727 = vld [vmem:[%s3616 + $0x370] sm:$0xff]
    %v3728 = vld [vmem:[%s3616 + $0x378] sm:$0xff]
    %v3729 = vld [vmem:[%s3616 + $0x380] sm:$0xff]
    %v3730 = vld [vmem:[%s3616 + $0x388] sm:$0xff]
    %v3731 = vld [vmem:[%s3616 + $0x390] sm:$0xff]
    %v3732 = vld [vmem:[%s3616 + $0x398] sm:$0xff]
    %v3733 = vld [vmem:[%s3616 + $0x3a0] sm:$0xff]
    %v3734 = vld [vmem:[%s3616 + $0x3a8] sm:$0xff]
    %v3735 = vld [vmem:[%s3616 + $0x3b0] sm:$0xff]
    %v3736 = vld [vmem:[%s3616 + $0x3b8] sm:$0xff]
    %v3737 = vld [vmem:[%s3616 + $0x3c0] sm:$0xff]
    %v3738 = vld [vmem:[%s3616 + $0x3c8] sm:$0xff]
    %v3739 = vld [vmem:[%s3616 + $0x3d0] sm:$0xff]
    %v3740 = vld [vmem:[%s3616 + $0x3d8] sm:$0xff]
    %v3741 = vld [vmem:[%s3616 + $0x3e0] sm:$0xff]
    %v3742 = vld [vmem:[%s3616 + $0x3e8] sm:$0xff]
    %v3743 = vld [vmem:[%s3616 + $0x3f0] sm:$0xff]
    %v3744 = vld [vmem:[%s3616 + $0x3f8] sm:$0xff]
    %3745 = vmatprep.subr.mxu0 %v3678
    %3746 = vmatpush1.msra.mxu0 %v3677
    %3747 = vmatprep.subr.mxu0 %v3674
    %3748 = vmatpush1.msra.mxu0 %v3673
    %3749 = vmatprep.subr.mxu0 %v3670
    %3750 = vmatpush1.msra.mxu0 %v3669
    %3751 = vmatprep.subr.mxu0 %v3666
    %3752 = vmatpush1.msra.mxu0 %v3665
    %3753 = vmatprep.subr.mxu0 %v3662
    %3754 = vmatpush1.msra.mxu0 %v3661
    %3755 = vmatprep.subr.mxu0 %v3658
    %3756 = vmatpush1.msra.mxu0 %v3657
    %3757 = vmatprep.subr.mxu0 %v3654
    %3758 = vmatpush1.msra.mxu0 %v3653
    %3759 = vmatprep.subr.mxu0 %v3650
    %3760 = vmatpush1.msra.mxu0 %v3649
    %3761 = vmatprep.subr.mxu0 %v3646
    %3762 = vmatpush1.msra.mxu0 %v3645
    %3763 = vmatprep.subr.mxu0 %v3642
    %3764 = vmatpush1.msra.mxu0 %v3641
    %3765 = vmatprep.subr.mxu0 %v3638
    %3766 = vmatpush1.msra.mxu0 %v3637
    %3767 = vmatprep.subr.mxu0 %v3634
    %3768 = vmatpush1.msra.mxu0 %v3633
    %3769 = vmatprep.subr.mxu0 %v3630
    %3770 = vmatpush1.msra.mxu0 %v3629
    %3771 = vmatprep.subr.mxu0 %v3626
    %3772 = vmatpush1.msra.mxu0 %v3625
    %3773 = vmatprep.subr.mxu0 %v3622
    %3774 = vmatpush1.msra.mxu0 %v3621
    %3775 = vmatprep.subr.mxu0 %v3618
    %3776 = vmatpush1.msra.mxu0 %v3617
    %3777 = vmatprep.subr.mxu0 %v3742
    %3778 = vmatpush2.msra.mxu0 %v3741
    %3779 = vmatprep.subr.mxu0 %v3738
    %3780 = vmatpush2.msra.mxu0 %v3737
    %3781 = vmatprep.subr.mxu0 %v3734
    %3782 = vmatpush2.msra.mxu0 %v3733
    %3783 = vmatprep.subr.mxu0 %v3730
    %3784 = vmatpush2.msra.mxu0 %v3729
    %3785 = vmatprep.subr.mxu0 %v3726
    %3786 = vmatpush2.msra.mxu0 %v3725
    %3787 = vmatprep.subr.mxu0 %v3722
    %3788 = vmatpush2.msra.mxu0 %v3721
    %3789 = vmatprep.subr.mxu0 %v3718
    %3790 = vmatpush2.msra.mxu0 %v3717
    %3791 = vmatprep.subr.mxu0 %v3714
    %3792 = vmatpush2.msra.mxu0 %v3713
    %3793 = vmatprep.subr.mxu0 %v3710
    %3794 = vmatpush2.msra.mxu0 %v3709
    %3795 = vmatprep.subr.mxu0 %v3706
    %3796 = vmatpush2.msra.mxu0 %v3705
    %3797 = vmatprep.subr.mxu0 %v3702
    %3798 = vmatpush2.msra.mxu0 %v3701
    %3799 = vmatprep.subr.mxu0 %v3698
    %3800 = vmatpush2.msra.mxu0 %v3697
    %3801 = vmatprep.subr.mxu0 %v3694
    %3802 = vmatpush2.msra.mxu0 %v3693
    %3803 = vmatprep.subr.mxu0 %v3690
    %3804 = vmatpush2.msra.mxu0 %v3689
    %3805 = vmatprep.subr.mxu0 %v3686
    %3806 = vmatpush2.msra.mxu0 %v3685
    %3807 = vmatprep.subr.mxu0 %v3682
    %3808 = vmatpush2.msra.mxu0 %v3681
    %3809 = vmatprep.mubr.f32.mxu0 %v3615
    %3810 = vmatmul.mubr.f32.gmra.mxu0 %v3614
    %v3811 = vpop.f32.mrf.mxu0
    %v3812 = vadd.f32 0.0, %v3811
    %v3813 = vpop.f32.mrf.mxu0
    %v3814 = vadd.f32 0.0, %v3813
    %3815 = vdwg.mxu0
    %3816 = vmatprep.subr.mxu0 %v3680
    %3817 = vmatpush1.msra.mxu0 %v3679
    %3818 = vmatprep.subr.mxu0 %v3676
    %3819 = vmatpush1.msra.mxu0 %v3675
    %3820 = vmatprep.subr.mxu0 %v3672
    %3821 = vmatpush1.msra.mxu0 %v3671
    %3822 = vmatprep.subr.mxu0 %v3668
    %3823 = vmatpush1.msra.mxu0 %v3667
    %3824 = vmatprep.subr.mxu0 %v3664
    %3825 = vmatpush1.msra.mxu0 %v3663
    %3826 = vmatprep.subr.mxu0 %v3660
    %3827 = vmatpush1.msra.mxu0 %v3659
    %3828 = vmatprep.subr.mxu0 %v3656
    %3829 = vmatpush1.msra.mxu0 %v3655
    %3830 = vmatprep.subr.mxu0 %v3652
    %3831 = vmatpush1.msra.mxu0 %v3651
    %3832 = vmatprep.subr.mxu0 %v3648
    %3833 = vmatpush1.msra.mxu0 %v3647
    %3834 = vmatprep.subr.mxu0 %v3644
    %3835 = vmatpush1.msra.mxu0 %v3643
    %3836 = vmatprep.subr.mxu0 %v3640
    %3837 = vmatpush1.msra.mxu0 %v3639
    %3838 = vmatprep.subr.mxu0 %v3636
    %3839 = vmatpush1.msra.mxu0 %v3635
    %3840 = vmatprep.subr.mxu0 %v3632
    %3841 = vmatpush1.msra.mxu0 %v3631
    %3842 = vmatprep.subr.mxu0 %v3628
    %3843 = vmatpush1.msra.mxu0 %v3627
    %3844 = vmatprep.subr.mxu0 %v3624
    %3845 = vmatpush1.msra.mxu0 %v3623
    %3846 = vmatprep.subr.mxu0 %v3620
    %3847 = vmatpush1.msra.mxu0 %v3619
    %3848 = vmatprep.subr.mxu0 %v3744
    %3849 = vmatpush2.msra.mxu0 %v3743
    %3850 = vmatprep.subr.mxu0 %v3740
    %3851 = vmatpush2.msra.mxu0 %v3739
    %3852 = vmatprep.subr.mxu0 %v3736
    %3853 = vmatpush2.msra.mxu0 %v3735
    %3854 = vmatprep.subr.mxu0 %v3732
    %3855 = vmatpush2.msra.mxu0 %v3731
    %3856 = vmatprep.subr.mxu0 %v3728
    %3857 = vmatpush2.msra.mxu0 %v3727
    %3858 = vmatprep.subr.mxu0 %v3724
    %3859 = vmatpush2.msra.mxu0 %v3723
    %3860 = vmatprep.subr.mxu0 %v3720
    %3861 = vmatpush2.msra.mxu0 %v3719
    %3862 = vmatprep.subr.mxu0 %v3716
    %3863 = vmatpush2.msra.mxu0 %v3715
    %3864 = vmatprep.subr.mxu0 %v3712
    %3865 = vmatpush2.msra.mxu0 %v3711
    %3866 = vmatprep.subr.mxu0 %v3708
    %3867 = vmatpush2.msra.mxu0 %v3707
    %3868 = vmatprep.subr.mxu0 %v3704
    %3869 = vmatpush2.msra.mxu0 %v3703
    %3870 = vmatprep.subr.mxu0 %v3700
    %3871 = vmatpush2.msra.mxu0 %v3699
    %3872 = vmatprep.subr.mxu0 %v3696
    %3873 = vmatpush2.msra.mxu0 %v3695
    %3874 = vmatprep.subr.mxu0 %v3692
    %3875 = vmatpush2.msra.mxu0 %v3691
    %3876 = vmatprep.subr.mxu0 %v3688
    %3877 = vmatpush2.msra.mxu0 %v3687
    %3878 = vmatprep.subr.mxu0 %v3684
    %3879 = vmatpush2.msra.mxu0 %v3683
    %3880 = vmatprep.mubr.f32.mxu0 %v3615
    %3881 = vmatmul.mubr.f32.gmra.mxu0 %v3614
    %v3882 = vpop.f32.mrf.mxu0
    %v3883 = vadd.f32 0.0, %v3882
    %v3884 = vpop.f32.mrf.mxu0
    %v3885 = vadd.f32 0.0, %v3884
    %3886 = vdwg.mxu0
    %v3887 = vadd.f32 %v3610, %v3812
    %v3888 = vadd.f32 %v3611, %v3814
    %v3889 = vadd.f32 %v3612, %v3883
    %v3890 = vadd.f32 %v3613, %v3885
    %v3891 = vld [vmem:[#allocation2 + $0x30] sm:$0xff]
    %v3892 = vld [vmem:[#allocation2 + $0x38] sm:$0xff]
    %s3893 = scalar_lea.vmem [#allocation3], 3072
    %v3894 = vld [vmem:[%s3893] sm:$0xff]
    %v3895 = vld [vmem:[%s3893 + $0x8] sm:$0xff]
    %v3896 = vld [vmem:[%s3893 + $0x10] sm:$0xff]
    %v3897 = vld [vmem:[%s3893 + $0x18] sm:$0xff]
    %v3898 = vld [vmem:[%s3893 + $0x20] sm:$0xff]
    %v3899 = vld [vmem:[%s3893 + $0x28] sm:$0xff]
    %v3900 = vld [vmem:[%s3893 + $0x30] sm:$0xff]
    %v3901 = vld [vmem:[%s3893 + $0x38] sm:$0xff]
    %v3902 = vld [vmem:[%s3893 + $0x40] sm:$0xff]
    %v3903 = vld [vmem:[%s3893 + $0x48] sm:$0xff]
    %v3904 = vld [vmem:[%s3893 + $0x50] sm:$0xff]
    %v3905 = vld [vmem:[%s3893 + $0x58] sm:$0xff]
    %v3906 = vld [vmem:[%s3893 + $0x60] sm:$0xff]
    %v3907 = vld [vmem:[%s3893 + $0x68] sm:$0xff]
    %v3908 = vld [vmem:[%s3893 + $0x70] sm:$0xff]
    %v3909 = vld [vmem:[%s3893 + $0x78] sm:$0xff]
    %v3910 = vld [vmem:[%s3893 + $0x80] sm:$0xff]
    %v3911 = vld [vmem:[%s3893 + $0x88] sm:$0xff]
    %v3912 = vld [vmem:[%s3893 + $0x90] sm:$0xff]
    %v3913 = vld [vmem:[%s3893 + $0x98] sm:$0xff]
    %v3914 = vld [vmem:[%s3893 + $0xa0] sm:$0xff]
    %v3915 = vld [vmem:[%s3893 + $0xa8] sm:$0xff]
    %v3916 = vld [vmem:[%s3893 + $0xb0] sm:$0xff]
    %v3917 = vld [vmem:[%s3893 + $0xb8] sm:$0xff]
    %v3918 = vld [vmem:[%s3893 + $0xc0] sm:$0xff]
    %v3919 = vld [vmem:[%s3893 + $0xc8] sm:$0xff]
    %v3920 = vld [vmem:[%s3893 + $0xd0] sm:$0xff]
    %v3921 = vld [vmem:[%s3893 + $0xd8] sm:$0xff]
    %v3922 = vld [vmem:[%s3893 + $0xe0] sm:$0xff]
    %v3923 = vld [vmem:[%s3893 + $0xe8] sm:$0xff]
    %v3924 = vld [vmem:[%s3893 + $0xf0] sm:$0xff]
    %v3925 = vld [vmem:[%s3893 + $0xf8] sm:$0xff]
    %v3926 = vld [vmem:[%s3893 + $0x100] sm:$0xff]
    %v3927 = vld [vmem:[%s3893 + $0x108] sm:$0xff]
    %v3928 = vld [vmem:[%s3893 + $0x110] sm:$0xff]
    %v3929 = vld [vmem:[%s3893 + $0x118] sm:$0xff]
    %v3930 = vld [vmem:[%s3893 + $0x120] sm:$0xff]
    %v3931 = vld [vmem:[%s3893 + $0x128] sm:$0xff]
    %v3932 = vld [vmem:[%s3893 + $0x130] sm:$0xff]
    %v3933 = vld [vmem:[%s3893 + $0x138] sm:$0xff]
    %v3934 = vld [vmem:[%s3893 + $0x140] sm:$0xff]
    %v3935 = vld [vmem:[%s3893 + $0x148] sm:$0xff]
    %v3936 = vld [vmem:[%s3893 + $0x150] sm:$0xff]
    %v3937 = vld [vmem:[%s3893 + $0x158] sm:$0xff]
    %v3938 = vld [vmem:[%s3893 + $0x160] sm:$0xff]
    %v3939 = vld [vmem:[%s3893 + $0x168] sm:$0xff]
    %v3940 = vld [vmem:[%s3893 + $0x170] sm:$0xff]
    %v3941 = vld [vmem:[%s3893 + $0x178] sm:$0xff]
    %v3942 = vld [vmem:[%s3893 + $0x180] sm:$0xff]
    %v3943 = vld [vmem:[%s3893 + $0x188] sm:$0xff]
    %v3944 = vld [vmem:[%s3893 + $0x190] sm:$0xff]
    %v3945 = vld [vmem:[%s3893 + $0x198] sm:$0xff]
    %v3946 = vld [vmem:[%s3893 + $0x1a0] sm:$0xff]
    %v3947 = vld [vmem:[%s3893 + $0x1a8] sm:$0xff]
    %v3948 = vld [vmem:[%s3893 + $0x1b0] sm:$0xff]
    %v3949 = vld [vmem:[%s3893 + $0x1b8] sm:$0xff]
    %v3950 = vld [vmem:[%s3893 + $0x1c0] sm:$0xff]
    %v3951 = vld [vmem:[%s3893 + $0x1c8] sm:$0xff]
    %v3952 = vld [vmem:[%s3893 + $0x1d0] sm:$0xff]
    %v3953 = vld [vmem:[%s3893 + $0x1d8] sm:$0xff]
    %v3954 = vld [vmem:[%s3893 + $0x1e0] sm:$0xff]
    %v3955 = vld [vmem:[%s3893 + $0x1e8] sm:$0xff]
    %v3956 = vld [vmem:[%s3893 + $0x1f0] sm:$0xff]
    %v3957 = vld [vmem:[%s3893 + $0x1f8] sm:$0xff]
    %v3958 = vld [vmem:[%s3893 + $0x200] sm:$0xff]
    %v3959 = vld [vmem:[%s3893 + $0x208] sm:$0xff]
    %v3960 = vld [vmem:[%s3893 + $0x210] sm:$0xff]
    %v3961 = vld [vmem:[%s3893 + $0x218] sm:$0xff]
    %v3962 = vld [vmem:[%s3893 + $0x220] sm:$0xff]
    %v3963 = vld [vmem:[%s3893 + $0x228] sm:$0xff]
    %v3964 = vld [vmem:[%s3893 + $0x230] sm:$0xff]
    %v3965 = vld [vmem:[%s3893 + $0x238] sm:$0xff]
    %v3966 = vld [vmem:[%s3893 + $0x240] sm:$0xff]
    %v3967 = vld [vmem:[%s3893 + $0x248] sm:$0xff]
    %v3968 = vld [vmem:[%s3893 + $0x250] sm:$0xff]
    %v3969 = vld [vmem:[%s3893 + $0x258] sm:$0xff]
    %v3970 = vld [vmem:[%s3893 + $0x260] sm:$0xff]
    %v3971 = vld [vmem:[%s3893 + $0x268] sm:$0xff]
    %v3972 = vld [vmem:[%s3893 + $0x270] sm:$0xff]
    %v3973 = vld [vmem:[%s3893 + $0x278] sm:$0xff]
    %v3974 = vld [vmem:[%s3893 + $0x280] sm:$0xff]
    %v3975 = vld [vmem:[%s3893 + $0x288] sm:$0xff]
    %v3976 = vld [vmem:[%s3893 + $0x290] sm:$0xff]
    %v3977 = vld [vmem:[%s3893 + $0x298] sm:$0xff]
    %v3978 = vld [vmem:[%s3893 + $0x2a0] sm:$0xff]
    %v3979 = vld [vmem:[%s3893 + $0x2a8] sm:$0xff]
    %v3980 = vld [vmem:[%s3893 + $0x2b0] sm:$0xff]
    %v3981 = vld [vmem:[%s3893 + $0x2b8] sm:$0xff]
    %v3982 = vld [vmem:[%s3893 + $0x2c0] sm:$0xff]
    %v3983 = vld [vmem:[%s3893 + $0x2c8] sm:$0xff]
    %v3984 = vld [vmem:[%s3893 + $0x2d0] sm:$0xff]
    %v3985 = vld [vmem:[%s3893 + $0x2d8] sm:$0xff]
    %v3986 = vld [vmem:[%s3893 + $0x2e0] sm:$0xff]
    %v3987 = vld [vmem:[%s3893 + $0x2e8] sm:$0xff]
    %v3988 = vld [vmem:[%s3893 + $0x2f0] sm:$0xff]
    %v3989 = vld [vmem:[%s3893 + $0x2f8] sm:$0xff]
    %v3990 = vld [vmem:[%s3893 + $0x300] sm:$0xff]
    %v3991 = vld [vmem:[%s3893 + $0x308] sm:$0xff]
    %v3992 = vld [vmem:[%s3893 + $0x310] sm:$0xff]
    %v3993 = vld [vmem:[%s3893 + $0x318] sm:$0xff]
    %v3994 = vld [vmem:[%s3893 + $0x320] sm:$0xff]
    %v3995 = vld [vmem:[%s3893 + $0x328] sm:$0xff]
    %v3996 = vld [vmem:[%s3893 + $0x330] sm:$0xff]
    %v3997 = vld [vmem:[%s3893 + $0x338] sm:$0xff]
    %v3998 = vld [vmem:[%s3893 + $0x340] sm:$0xff]
    %v3999 = vld [vmem:[%s3893 + $0x348] sm:$0xff]
    %v4000 = vld [vmem:[%s3893 + $0x350] sm:$0xff]
    %v4001 = vld [vmem:[%s3893 + $0x358] sm:$0xff]
    %v4002 = vld [vmem:[%s3893 + $0x360] sm:$0xff]
    %v4003 = vld [vmem:[%s3893 + $0x368] sm:$0xff]
    %v4004 = vld [vmem:[%s3893 + $0x370] sm:$0xff]
    %v4005 = vld [vmem:[%s3893 + $0x378] sm:$0xff]
    %v4006 = vld [vmem:[%s3893 + $0x380] sm:$0xff]
    %v4007 = vld [vmem:[%s3893 + $0x388] sm:$0xff]
    %v4008 = vld [vmem:[%s3893 + $0x390] sm:$0xff]
    %v4009 = vld [vmem:[%s3893 + $0x398] sm:$0xff]
    %v4010 = vld [vmem:[%s3893 + $0x3a0] sm:$0xff]
    %v4011 = vld [vmem:[%s3893 + $0x3a8] sm:$0xff]
    %v4012 = vld [vmem:[%s3893 + $0x3b0] sm:$0xff]
    %v4013 = vld [vmem:[%s3893 + $0x3b8] sm:$0xff]
    %v4014 = vld [vmem:[%s3893 + $0x3c0] sm:$0xff]
    %v4015 = vld [vmem:[%s3893 + $0x3c8] sm:$0xff]
    %v4016 = vld [vmem:[%s3893 + $0x3d0] sm:$0xff]
    %v4017 = vld [vmem:[%s3893 + $0x3d8] sm:$0xff]
    %v4018 = vld [vmem:[%s3893 + $0x3e0] sm:$0xff]
    %v4019 = vld [vmem:[%s3893 + $0x3e8] sm:$0xff]
    %v4020 = vld [vmem:[%s3893 + $0x3f0] sm:$0xff]
    %v4021 = vld [vmem:[%s3893 + $0x3f8] sm:$0xff]
    %4022 = vmatprep.subr.mxu0 %v3955
    %4023 = vmatpush1.msra.mxu0 %v3954
    %4024 = vmatprep.subr.mxu0 %v3951
    %4025 = vmatpush1.msra.mxu0 %v3950
    %4026 = vmatprep.subr.mxu0 %v3947
    %4027 = vmatpush1.msra.mxu0 %v3946
    %4028 = vmatprep.subr.mxu0 %v3943
    %4029 = vmatpush1.msra.mxu0 %v3942
    %4030 = vmatprep.subr.mxu0 %v3939
    %4031 = vmatpush1.msra.mxu0 %v3938
    %4032 = vmatprep.subr.mxu0 %v3935
    %4033 = vmatpush1.msra.mxu0 %v3934
    %4034 = vmatprep.subr.mxu0 %v3931
    %4035 = vmatpush1.msra.mxu0 %v3930
    %4036 = vmatprep.subr.mxu0 %v3927
    %4037 = vmatpush1.msra.mxu0 %v3926
    %4038 = vmatprep.subr.mxu0 %v3923
    %4039 = vmatpush1.msra.mxu0 %v3922
    %4040 = vmatprep.subr.mxu0 %v3919
    %4041 = vmatpush1.msra.mxu0 %v3918
    %4042 = vmatprep.subr.mxu0 %v3915
    %4043 = vmatpush1.msra.mxu0 %v3914
    %4044 = vmatprep.subr.mxu0 %v3911
    %4045 = vmatpush1.msra.mxu0 %v3910
    %4046 = vmatprep.subr.mxu0 %v3907
    %4047 = vmatpush1.msra.mxu0 %v3906
    %4048 = vmatprep.subr.mxu0 %v3903
    %4049 = vmatpush1.msra.mxu0 %v3902
    %4050 = vmatprep.subr.mxu0 %v3899
    %4051 = vmatpush1.msra.mxu0 %v3898
    %4052 = vmatprep.subr.mxu0 %v3895
    %4053 = vmatpush1.msra.mxu0 %v3894
    %4054 = vmatprep.subr.mxu0 %v4019
    %4055 = vmatpush2.msra.mxu0 %v4018
    %4056 = vmatprep.subr.mxu0 %v4015
    %4057 = vmatpush2.msra.mxu0 %v4014
    %4058 = vmatprep.subr.mxu0 %v4011
    %4059 = vmatpush2.msra.mxu0 %v4010
    %4060 = vmatprep.subr.mxu0 %v4007
    %4061 = vmatpush2.msra.mxu0 %v4006
    %4062 = vmatprep.subr.mxu0 %v4003
    %4063 = vmatpush2.msra.mxu0 %v4002
    %4064 = vmatprep.subr.mxu0 %v3999
    %4065 = vmatpush2.msra.mxu0 %v3998
    %4066 = vmatprep.subr.mxu0 %v3995
    %4067 = vmatpush2.msra.mxu0 %v3994
    %4068 = vmatprep.subr.mxu0 %v3991
    %4069 = vmatpush2.msra.mxu0 %v3990
    %4070 = vmatprep.subr.mxu0 %v3987
    %4071 = vmatpush2.msra.mxu0 %v3986
    %4072 = vmatprep.subr.mxu0 %v3983
    %4073 = vmatpush2.msra.mxu0 %v3982
    %4074 = vmatprep.subr.mxu0 %v3979
    %4075 = vmatpush2.msra.mxu0 %v3978
    %4076 = vmatprep.subr.mxu0 %v3975
    %4077 = vmatpush2.msra.mxu0 %v3974
    %4078 = vmatprep.subr.mxu0 %v3971
    %4079 = vmatpush2.msra.mxu0 %v3970
    %4080 = vmatprep.subr.mxu0 %v3967
    %4081 = vmatpush2.msra.mxu0 %v3966
    %4082 = vmatprep.subr.mxu0 %v3963
    %4083 = vmatpush2.msra.mxu0 %v3962
    %4084 = vmatprep.subr.mxu0 %v3959
    %4085 = vmatpush2.msra.mxu0 %v3958
    %4086 = vmatprep.mubr.f32.mxu0 %v3892
    %4087 = vmatmul.mubr.f32.gmra.mxu0 %v3891
    %v4088 = vpop.f32.mrf.mxu0
    %v4089 = vadd.f32 0.0, %v4088
    %v4090 = vpop.f32.mrf.mxu0
    %v4091 = vadd.f32 0.0, %v4090
    %4092 = vdwg.mxu0
    %4093 = vmatprep.subr.mxu0 %v3957
    %4094 = vmatpush1.msra.mxu0 %v3956
    %4095 = vmatprep.subr.mxu0 %v3953
    %4096 = vmatpush1.msra.mxu0 %v3952
    %4097 = vmatprep.subr.mxu0 %v3949
    %4098 = vmatpush1.msra.mxu0 %v3948
    %4099 = vmatprep.subr.mxu0 %v3945
    %4100 = vmatpush1.msra.mxu0 %v3944
    %4101 = vmatprep.subr.mxu0 %v3941
    %4102 = vmatpush1.msra.mxu0 %v3940
    %4103 = vmatprep.subr.mxu0 %v3937
    %4104 = vmatpush1.msra.mxu0 %v3936
    %4105 = vmatprep.subr.mxu0 %v3933
    %4106 = vmatpush1.msra.mxu0 %v3932
    %4107 = vmatprep.subr.mxu0 %v3929
    %4108 = vmatpush1.msra.mxu0 %v3928
    %4109 = vmatprep.subr.mxu0 %v3925
    %4110 = vmatpush1.msra.mxu0 %v3924
    %4111 = vmatprep.subr.mxu0 %v3921
    %4112 = vmatpush1.msra.mxu0 %v3920
    %4113 = vmatprep.subr.mxu0 %v3917
    %4114 = vmatpush1.msra.mxu0 %v3916
    %4115 = vmatprep.subr.mxu0 %v3913
    %4116 = vmatpush1.msra.mxu0 %v3912
    %4117 = vmatprep.subr.mxu0 %v3909
    %4118 = vmatpush1.msra.mxu0 %v3908
    %4119 = vmatprep.subr.mxu0 %v3905
    %4120 = vmatpush1.msra.mxu0 %v3904
    %4121 = vmatprep.subr.mxu0 %v3901
    %4122 = vmatpush1.msra.mxu0 %v3900
    %4123 = vmatprep.subr.mxu0 %v3897
    %4124 = vmatpush1.msra.mxu0 %v3896
    %4125 = vmatprep.subr.mxu0 %v4021
    %4126 = vmatpush2.msra.mxu0 %v4020
    %4127 = vmatprep.subr.mxu0 %v4017
    %4128 = vmatpush2.msra.mxu0 %v4016
    %4129 = vmatprep.subr.mxu0 %v4013
    %4130 = vmatpush2.msra.mxu0 %v4012
    %4131 = vmatprep.subr.mxu0 %v4009
    %4132 = vmatpush2.msra.mxu0 %v4008
    %4133 = vmatprep.subr.mxu0 %v4005
    %4134 = vmatpush2.msra.mxu0 %v4004
    %4135 = vmatprep.subr.mxu0 %v4001
    %4136 = vmatpush2.msra.mxu0 %v4000
    %4137 = vmatprep.subr.mxu0 %v3997
    %4138 = vmatpush2.msra.mxu0 %v3996
    %4139 = vmatprep.subr.mxu0 %v3993
    %4140 = vmatpush2.msra.mxu0 %v3992
    %4141 = vmatprep.subr.mxu0 %v3989
    %4142 = vmatpush2.msra.mxu0 %v3988
    %4143 = vmatprep.subr.mxu0 %v3985
    %4144 = vmatpush2.msra.mxu0 %v3984
    %4145 = vmatprep.subr.mxu0 %v3981
    %4146 = vmatpush2.msra.mxu0 %v3980
    %4147 = vmatprep.subr.mxu0 %v3977
    %4148 = vmatpush2.msra.mxu0 %v3976
    %4149 = vmatprep.subr.mxu0 %v3973
    %4150 = vmatpush2.msra.mxu0 %v3972
    %4151 = vmatprep.subr.mxu0 %v3969
    %4152 = vmatpush2.msra.mxu0 %v3968
    %4153 = vmatprep.subr.mxu0 %v3965
    %4154 = vmatpush2.msra.mxu0 %v3964
    %4155 = vmatprep.subr.mxu0 %v3961
    %4156 = vmatpush2.msra.mxu0 %v3960
    %4157 = vmatprep.mubr.f32.mxu0 %v3892
    %4158 = vmatmul.mubr.f32.gmra.mxu0 %v3891
    %v4159 = vpop.f32.mrf.mxu0
    %v4160 = vadd.f32 0.0, %v4159
    %v4161 = vpop.f32.mrf.mxu0
    %v4162 = vadd.f32 0.0, %v4161
    %4163 = vdwg.mxu0
    %v4164 = vadd.f32 %v3887, %v4089
    %v4165 = vadd.f32 %v3888, %v4091
    %v4166 = vadd.f32 %v3889, %v4160
    %v4167 = vadd.f32 %v3890, %v4162
    %v4168 = vld [vmem:[#allocation2 + $0x40] sm:$0xff]
    %v4169 = vld [vmem:[#allocation2 + $0x48] sm:$0xff]
    %s4170 = scalar_lea.vmem [#allocation3], 4096
    %v4171 = vld [vmem:[%s4170] sm:$0xff]
    %v4172 = vld [vmem:[%s4170 + $0x8] sm:$0xff]
    %v4173 = vld [vmem:[%s4170 + $0x10] sm:$0xff]
    %v4174 = vld [vmem:[%s4170 + $0x18] sm:$0xff]
    %v4175 = vld [vmem:[%s4170 + $0x20] sm:$0xff]
    %v4176 = vld [vmem:[%s4170 + $0x28] sm:$0xff]
    %v4177 = vld [vmem:[%s4170 + $0x30] sm:$0xff]
    %v4178 = vld [vmem:[%s4170 + $0x38] sm:$0xff]
    %v4179 = vld [vmem:[%s4170 + $0x40] sm:$0xff]
    %v4180 = vld [vmem:[%s4170 + $0x48] sm:$0xff]
    %v4181 = vld [vmem:[%s4170 + $0x50] sm:$0xff]
    %v4182 = vld [vmem:[%s4170 + $0x58] sm:$0xff]
    %v4183 = vld [vmem:[%s4170 + $0x60] sm:$0xff]
    %v4184 = vld [vmem:[%s4170 + $0x68] sm:$0xff]
    %v4185 = vld [vmem:[%s4170 + $0x70] sm:$0xff]
    %v4186 = vld [vmem:[%s4170 + $0x78] sm:$0xff]
    %v4187 = vld [vmem:[%s4170 + $0x80] sm:$0xff]
    %v4188 = vld [vmem:[%s4170 + $0x88] sm:$0xff]
    %v4189 = vld [vmem:[%s4170 + $0x90] sm:$0xff]
    %v4190 = vld [vmem:[%s4170 + $0x98] sm:$0xff]
    %v4191 = vld [vmem:[%s4170 + $0xa0] sm:$0xff]
    %v4192 = vld [vmem:[%s4170 + $0xa8] sm:$0xff]
    %v4193 = vld [vmem:[%s4170 + $0xb0] sm:$0xff]
    %v4194 = vld [vmem:[%s4170 + $0xb8] sm:$0xff]
    %v4195 = vld [vmem:[%s4170 + $0xc0] sm:$0xff]
    %v4196 = vld [vmem:[%s4170 + $0xc8] sm:$0xff]
    %v4197 = vld [vmem:[%s4170 + $0xd0] sm:$0xff]
    %v4198 = vld [vmem:[%s4170 + $0xd8] sm:$0xff]
    %v4199 = vld [vmem:[%s4170 + $0xe0] sm:$0xff]
    %v4200 = vld [vmem:[%s4170 + $0xe8] sm:$0xff]
    %v4201 = vld [vmem:[%s4170 + $0xf0] sm:$0xff]
    %v4202 = vld [vmem:[%s4170 + $0xf8] sm:$0xff]
    %v4203 = vld [vmem:[%s4170 + $0x100] sm:$0xff]
    %v4204 = vld [vmem:[%s4170 + $0x108] sm:$0xff]
    %v4205 = vld [vmem:[%s4170 + $0x110] sm:$0xff]
    %v4206 = vld [vmem:[%s4170 + $0x118] sm:$0xff]
    %v4207 = vld [vmem:[%s4170 + $0x120] sm:$0xff]
    %v4208 = vld [vmem:[%s4170 + $0x128] sm:$0xff]
    %v4209 = vld [vmem:[%s4170 + $0x130] sm:$0xff]
    %v4210 = vld [vmem:[%s4170 + $0x138] sm:$0xff]
    %v4211 = vld [vmem:[%s4170 + $0x140] sm:$0xff]
    %v4212 = vld [vmem:[%s4170 + $0x148] sm:$0xff]
    %v4213 = vld [vmem:[%s4170 + $0x150] sm:$0xff]
    %v4214 = vld [vmem:[%s4170 + $0x158] sm:$0xff]
    %v4215 = vld [vmem:[%s4170 + $0x160] sm:$0xff]
    %v4216 = vld [vmem:[%s4170 + $0x168] sm:$0xff]
    %v4217 = vld [vmem:[%s4170 + $0x170] sm:$0xff]
    %v4218 = vld [vmem:[%s4170 + $0x178] sm:$0xff]
    %v4219 = vld [vmem:[%s4170 + $0x180] sm:$0xff]
    %v4220 = vld [vmem:[%s4170 + $0x188] sm:$0xff]
    %v4221 = vld [vmem:[%s4170 + $0x190] sm:$0xff]
    %v4222 = vld [vmem:[%s4170 + $0x198] sm:$0xff]
    %v4223 = vld [vmem:[%s4170 + $0x1a0] sm:$0xff]
    %v4224 = vld [vmem:[%s4170 + $0x1a8] sm:$0xff]
    %v4225 = vld [vmem:[%s4170 + $0x1b0] sm:$0xff]
    %v4226 = vld [vmem:[%s4170 + $0x1b8] sm:$0xff]
    %v4227 = vld [vmem:[%s4170 + $0x1c0] sm:$0xff]
    %v4228 = vld [vmem:[%s4170 + $0x1c8] sm:$0xff]
    %v4229 = vld [vmem:[%s4170 + $0x1d0] sm:$0xff]
    %v4230 = vld [vmem:[%s4170 + $0x1d8] sm:$0xff]
    %v4231 = vld [vmem:[%s4170 + $0x1e0] sm:$0xff]
    %v4232 = vld [vmem:[%s4170 + $0x1e8] sm:$0xff]
    %v4233 = vld [vmem:[%s4170 + $0x1f0] sm:$0xff]
    %v4234 = vld [vmem:[%s4170 + $0x1f8] sm:$0xff]
    %v4235 = vld [vmem:[%s4170 + $0x200] sm:$0xff]
    %v4236 = vld [vmem:[%s4170 + $0x208] sm:$0xff]
    %v4237 = vld [vmem:[%s4170 + $0x210] sm:$0xff]
    %v4238 = vld [vmem:[%s4170 + $0x218] sm:$0xff]
    %v4239 = vld [vmem:[%s4170 + $0x220] sm:$0xff]
    %v4240 = vld [vmem:[%s4170 + $0x228] sm:$0xff]
    %v4241 = vld [vmem:[%s4170 + $0x230] sm:$0xff]
    %v4242 = vld [vmem:[%s4170 + $0x238] sm:$0xff]
    %v4243 = vld [vmem:[%s4170 + $0x240] sm:$0xff]
    %v4244 = vld [vmem:[%s4170 + $0x248] sm:$0xff]
    %v4245 = vld [vmem:[%s4170 + $0x250] sm:$0xff]
    %v4246 = vld [vmem:[%s4170 + $0x258] sm:$0xff]
    %v4247 = vld [vmem:[%s4170 + $0x260] sm:$0xff]
    %v4248 = vld [vmem:[%s4170 + $0x268] sm:$0xff]
    %v4249 = vld [vmem:[%s4170 + $0x270] sm:$0xff]
    %v4250 = vld [vmem:[%s4170 + $0x278] sm:$0xff]
    %v4251 = vld [vmem:[%s4170 + $0x280] sm:$0xff]
    %v4252 = vld [vmem:[%s4170 + $0x288] sm:$0xff]
    %v4253 = vld [vmem:[%s4170 + $0x290] sm:$0xff]
    %v4254 = vld [vmem:[%s4170 + $0x298] sm:$0xff]
    %v4255 = vld [vmem:[%s4170 + $0x2a0] sm:$0xff]
    %v4256 = vld [vmem:[%s4170 + $0x2a8] sm:$0xff]
    %v4257 = vld [vmem:[%s4170 + $0x2b0] sm:$0xff]
    %v4258 = vld [vmem:[%s4170 + $0x2b8] sm:$0xff]
    %v4259 = vld [vmem:[%s4170 + $0x2c0] sm:$0xff]
    %v4260 = vld [vmem:[%s4170 + $0x2c8] sm:$0xff]
    %v4261 = vld [vmem:[%s4170 + $0x2d0] sm:$0xff]
    %v4262 = vld [vmem:[%s4170 + $0x2d8] sm:$0xff]
    %v4263 = vld [vmem:[%s4170 + $0x2e0] sm:$0xff]
    %v4264 = vld [vmem:[%s4170 + $0x2e8] sm:$0xff]
    %v4265 = vld [vmem:[%s4170 + $0x2f0] sm:$0xff]
    %v4266 = vld [vmem:[%s4170 + $0x2f8] sm:$0xff]
    %v4267 = vld [vmem:[%s4170 + $0x300] sm:$0xff]
    %v4268 = vld [vmem:[%s4170 + $0x308] sm:$0xff]
    %v4269 = vld [vmem:[%s4170 + $0x310] sm:$0xff]
    %v4270 = vld [vmem:[%s4170 + $0x318] sm:$0xff]
    %v4271 = vld [vmem:[%s4170 + $0x320] sm:$0xff]
    %v4272 = vld [vmem:[%s4170 + $0x328] sm:$0xff]
    %v4273 = vld [vmem:[%s4170 + $0x330] sm:$0xff]
    %v4274 = vld [vmem:[%s4170 + $0x338] sm:$0xff]
    %v4275 = vld [vmem:[%s4170 + $0x340] sm:$0xff]
    %v4276 = vld [vmem:[%s4170 + $0x348] sm:$0xff]
    %v4277 = vld [vmem:[%s4170 + $0x350] sm:$0xff]
    %v4278 = vld [vmem:[%s4170 + $0x358] sm:$0xff]
    %v4279 = vld [vmem:[%s4170 + $0x360] sm:$0xff]
    %v4280 = vld [vmem:[%s4170 + $0x368] sm:$0xff]
    %v4281 = vld [vmem:[%s4170 + $0x370] sm:$0xff]
    %v4282 = vld [vmem:[%s4170 + $0x378] sm:$0xff]
    %v4283 = vld [vmem:[%s4170 + $0x380] sm:$0xff]
    %v4284 = vld [vmem:[%s4170 + $0x388] sm:$0xff]
    %v4285 = vld [vmem:[%s4170 + $0x390] sm:$0xff]
    %v4286 = vld [vmem:[%s4170 + $0x398] sm:$0xff]
    %v4287 = vld [vmem:[%s4170 + $0x3a0] sm:$0xff]
    %v4288 = vld [vmem:[%s4170 + $0x3a8] sm:$0xff]
    %v4289 = vld [vmem:[%s4170 + $0x3b0] sm:$0xff]
    %v4290 = vld [vmem:[%s4170 + $0x3b8] sm:$0xff]
    %v4291 = vld [vmem:[%s4170 + $0x3c0] sm:$0xff]
    %v4292 = vld [vmem:[%s4170 + $0x3c8] sm:$0xff]
    %v4293 = vld [vmem:[%s4170 + $0x3d0] sm:$0xff]
    %v4294 = vld [vmem:[%s4170 + $0x3d8] sm:$0xff]
    %v4295 = vld [vmem:[%s4170 + $0x3e0] sm:$0xff]
    %v4296 = vld [vmem:[%s4170 + $0x3e8] sm:$0xff]
    %v4297 = vld [vmem:[%s4170 + $0x3f0] sm:$0xff]
    %v4298 = vld [vmem:[%s4170 + $0x3f8] sm:$0xff]
    %4299 = vmatprep.subr.mxu0 %v4232
    %4300 = vmatpush1.msra.mxu0 %v4231
    %4301 = vmatprep.subr.mxu0 %v4228
    %4302 = vmatpush1.msra.mxu0 %v4227
    %4303 = vmatprep.subr.mxu0 %v4224
    %4304 = vmatpush1.msra.mxu0 %v4223
    %4305 = vmatprep.subr.mxu0 %v4220
    %4306 = vmatpush1.msra.mxu0 %v4219
    %4307 = vmatprep.subr.mxu0 %v4216
    %4308 = vmatpush1.msra.mxu0 %v4215
    %4309 = vmatprep.subr.mxu0 %v4212
    %4310 = vmatpush1.msra.mxu0 %v4211
    %4311 = vmatprep.subr.mxu0 %v4208
    %4312 = vmatpush1.msra.mxu0 %v4207
    %4313 = vmatprep.subr.mxu0 %v4204
    %4314 = vmatpush1.msra.mxu0 %v4203
    %4315 = vmatprep.subr.mxu0 %v4200
    %4316 = vmatpush1.msra.mxu0 %v4199
    %4317 = vmatprep.subr.mxu0 %v4196
    %4318 = vmatpush1.msra.mxu0 %v4195
    %4319 = vmatprep.subr.mxu0 %v4192
    %4320 = vmatpush1.msra.mxu0 %v4191
    %4321 = vmatprep.subr.mxu0 %v4188
    %4322 = vmatpush1.msra.mxu0 %v4187
    %4323 = vmatprep.subr.mxu0 %v4184
    %4324 = vmatpush1.msra.mxu0 %v4183
    %4325 = vmatprep.subr.mxu0 %v4180
    %4326 = vmatpush1.msra.mxu0 %v4179
    %4327 = vmatprep.subr.mxu0 %v4176
    %4328 = vmatpush1.msra.mxu0 %v4175
    %4329 = vmatprep.subr.mxu0 %v4172
    %4330 = vmatpush1.msra.mxu0 %v4171
    %4331 = vmatprep.subr.mxu0 %v4296
    %4332 = vmatpush2.msra.mxu0 %v4295
    %4333 = vmatprep.subr.mxu0 %v4292
    %4334 = vmatpush2.msra.mxu0 %v4291
    %4335 = vmatprep.subr.mxu0 %v4288
    %4336 = vmatpush2.msra.mxu0 %v4287
    %4337 = vmatprep.subr.mxu0 %v4284
    %4338 = vmatpush2.msra.mxu0 %v4283
    %4339 = vmatprep.subr.mxu0 %v4280
    %4340 = vmatpush2.msra.mxu0 %v4279
    %4341 = vmatprep.subr.mxu0 %v4276
    %4342 = vmatpush2.msra.mxu0 %v4275
    %4343 = vmatprep.subr.mxu0 %v4272
    %4344 = vmatpush2.msra.mxu0 %v4271
    %4345 = vmatprep.subr.mxu0 %v4268
    %4346 = vmatpush2.msra.mxu0 %v4267
    %4347 = vmatprep.subr.mxu0 %v4264
    %4348 = vmatpush2.msra.mxu0 %v4263
    %4349 = vmatprep.subr.mxu0 %v4260
    %4350 = vmatpush2.msra.mxu0 %v4259
    %4351 = vmatprep.subr.mxu0 %v4256
    %4352 = vmatpush2.msra.mxu0 %v4255
    %4353 = vmatprep.subr.mxu0 %v4252
    %4354 = vmatpush2.msra.mxu0 %v4251
    %4355 = vmatprep.subr.mxu0 %v4248
    %4356 = vmatpush2.msra.mxu0 %v4247
    %4357 = vmatprep.subr.mxu0 %v4244
    %4358 = vmatpush2.msra.mxu0 %v4243
    %4359 = vmatprep.subr.mxu0 %v4240
    %4360 = vmatpush2.msra.mxu0 %v4239
    %4361 = vmatprep.subr.mxu0 %v4236
    %4362 = vmatpush2.msra.mxu0 %v4235
    %4363 = vmatprep.mubr.f32.mxu0 %v4169
    %4364 = vmatmul.mubr.f32.gmra.mxu0 %v4168
    %v4365 = vpop.f32.mrf.mxu0
    %v4366 = vadd.f32 0.0, %v4365
    %v4367 = vpop.f32.mrf.mxu0
    %v4368 = vadd.f32 0.0, %v4367
    %4369 = vdwg.mxu0
    %4370 = vmatprep.subr.mxu0 %v4234
    %4371 = vmatpush1.msra.mxu0 %v4233
    %4372 = vmatprep.subr.mxu0 %v4230
    %4373 = vmatpush1.msra.mxu0 %v4229
    %4374 = vmatprep.subr.mxu0 %v4226
    %4375 = vmatpush1.msra.mxu0 %v4225
    %4376 = vmatprep.subr.mxu0 %v4222
    %4377 = vmatpush1.msra.mxu0 %v4221
    %4378 = vmatprep.subr.mxu0 %v4218
    %4379 = vmatpush1.msra.mxu0 %v4217
    %4380 = vmatprep.subr.mxu0 %v4214
    %4381 = vmatpush1.msra.mxu0 %v4213
    %4382 = vmatprep.subr.mxu0 %v4210
    %4383 = vmatpush1.msra.mxu0 %v4209
    %4384 = vmatprep.subr.mxu0 %v4206
    %4385 = vmatpush1.msra.mxu0 %v4205
    %4386 = vmatprep.subr.mxu0 %v4202
    %4387 = vmatpush1.msra.mxu0 %v4201
    %4388 = vmatprep.subr.mxu0 %v4198
    %4389 = vmatpush1.msra.mxu0 %v4197
    %4390 = vmatprep.subr.mxu0 %v4194
    %4391 = vmatpush1.msra.mxu0 %v4193
    %4392 = vmatprep.subr.mxu0 %v4190
    %4393 = vmatpush1.msra.mxu0 %v4189
    %4394 = vmatprep.subr.mxu0 %v4186
    %4395 = vmatpush1.msra.mxu0 %v4185
    %4396 = vmatprep.subr.mxu0 %v4182
    %4397 = vmatpush1.msra.mxu0 %v4181
    %4398 = vmatprep.subr.mxu0 %v4178
    %4399 = vmatpush1.msra.mxu0 %v4177
    %4400 = vmatprep.subr.mxu0 %v4174
    %4401 = vmatpush1.msra.mxu0 %v4173
    %4402 = vmatprep.subr.mxu0 %v4298
    %4403 = vmatpush2.msra.mxu0 %v4297
    %4404 = vmatprep.subr.mxu0 %v4294
    %4405 = vmatpush2.msra.mxu0 %v4293
    %4406 = vmatprep.subr.mxu0 %v4290
    %4407 = vmatpush2.msra.mxu0 %v4289
    %4408 = vmatprep.subr.mxu0 %v4286
    %4409 = vmatpush2.msra.mxu0 %v4285
    %4410 = vmatprep.subr.mxu0 %v4282
    %4411 = vmatpush2.msra.mxu0 %v4281
    %4412 = vmatprep.subr.mxu0 %v4278
    %4413 = vmatpush2.msra.mxu0 %v4277
    %4414 = vmatprep.subr.mxu0 %v4274
    %4415 = vmatpush2.msra.mxu0 %v4273
    %4416 = vmatprep.subr.mxu0 %v4270
    %4417 = vmatpush2.msra.mxu0 %v4269
    %4418 = vmatprep.subr.mxu0 %v4266
    %4419 = vmatpush2.msra.mxu0 %v4265
    %4420 = vmatprep.subr.mxu0 %v4262
    %4421 = vmatpush2.msra.mxu0 %v4261
    %4422 = vmatprep.subr.mxu0 %v4258
    %4423 = vmatpush2.msra.mxu0 %v4257
    %4424 = vmatprep.subr.mxu0 %v4254
    %4425 = vmatpush2.msra.mxu0 %v4253
    %4426 = vmatprep.subr.mxu0 %v4250
    %4427 = vmatpush2.msra.mxu0 %v4249
    %4428 = vmatprep.subr.mxu0 %v4246
    %4429 = vmatpush2.msra.mxu0 %v4245
    %4430 = vmatprep.subr.mxu0 %v4242
    %4431 = vmatpush2.msra.mxu0 %v4241
    %4432 = vmatprep.subr.mxu0 %v4238
    %4433 = vmatpush2.msra.mxu0 %v4237
    %4434 = vmatprep.mubr.f32.mxu0 %v4169
    %4435 = vmatmul.mubr.f32.gmra.mxu0 %v4168
    %v4436 = vpop.f32.mrf.mxu0
    %v4437 = vadd.f32 0.0, %v4436
    %v4438 = vpop.f32.mrf.mxu0
    %v4439 = vadd.f32 0.0, %v4438
    %4440 = vdwg.mxu0
    %v4441 = vadd.f32 %v4164, %v4366
    %v4442 = vadd.f32 %v4165, %v4368
    %v4443 = vadd.f32 %v4166, %v4437
    %v4444 = vadd.f32 %v4167, %v4439
    %s4445 = scalar_lea.hbm %s20, 163840
    // Predicated region
    $region146: #{tpu_custom_call.1} parent=1 // pred_check
      _
    $region147: #{tpu_custom_call.1} parent=1 // pred_check_branch
      %4447 = sbr.rel target = $region149
    $region148: #{tpu_custom_call.1} parent=1 // pred_region
      %4448 = sst [smem:[#allocation31]] [#allocation36]
      %4449 = sst [smem:[#allocation32]] [#allocation35]
    $region149: #{tpu_custom_call.1} parent=1 // pred_fallthru
      _
    %4451 = shalt.err (0)
    %s4453 = sshll.u32 [#allocation3], 4
    %s4454 = int_to_ptr.vmem [resolvable:$true] %s4453
    %4456 = dma.hbm_to_vmem [thread:$0]  %s4445, 81920, %s4454, [#allocation4]
    %s4457 = sshll.u32 %s3058, 4
    %4458 = dma.done %s255, %s4457
    %v4459 = vld [vmem:[#allocation2 + $0x50] sm:$0xff]
    %v4460 = vld [vmem:[#allocation2 + $0x58] sm:$0xff]
    %v4461 = vld [vmem:[%s254] sm:$0xff]
    %v4462 = vld [vmem:[%s254 + $0x8] sm:$0xff]
    %v4463 = vld [vmem:[%s254 + $0x10] sm:$0xff]
    %v4464 = vld [vmem:[%s254 + $0x18] sm:$0xff]
    %v4465 = vld [vmem:[%s254 + $0x20] sm:$0xff]
    %v4466 = vld [vmem:[%s254 + $0x28] sm:$0xff]
    %v4467 = vld [vmem:[%s254 + $0x30] sm:$0xff]
    %v4468 = vld [vmem:[%s254 + $0x38] sm:$0xff]
    %v4469 = vld [vmem:[%s254 + $0x40] sm:$0xff]
    %v4470 = vld [vmem:[%s254 + $0x48] sm:$0xff]
    %v4471 = vld [vmem:[%s254 + $0x50] sm:$0xff]
    %v4472 = vld [vmem:[%s254 + $0x58] sm:$0xff]
    %v4473 = vld [vmem:[%s254 + $0x60] sm:$0xff]
    %v4474 = vld [vmem:[%s254 + $0x68] sm:$0xff]
    %v4475 = vld [vmem:[%s254 + $0x70] sm:$0xff]
    %v4476 = vld [vmem:[%s254 + $0x78] sm:$0xff]
    %v4477 = vld [vmem:[%s254 + $0x80] sm:$0xff]
    %v4478 = vld [vmem:[%s254 + $0x88] sm:$0xff]
    %v4479 = vld [vmem:[%s254 + $0x90] sm:$0xff]
    %v4480 = vld [vmem:[%s254 + $0x98] sm:$0xff]
    %v4481 = vld [vmem:[%s254 + $0xa0] sm:$0xff]
    %v4482 = vld [vmem:[%s254 + $0xa8] sm:$0xff]
    %v4483 = vld [vmem:[%s254 + $0xb0] sm:$0xff]
    %v4484 = vld [vmem:[%s254 + $0xb8] sm:$0xff]
    %v4485 = vld [vmem:[%s254 + $0xc0] sm:$0xff]
    %v4486 = vld [vmem:[%s254 + $0xc8] sm:$0xff]
    %v4487 = vld [vmem:[%s254 + $0xd0] sm:$0xff]
    %v4488 = vld [vmem:[%s254 + $0xd8] sm:$0xff]
    %v4489 = vld [vmem:[%s254 + $0xe0] sm:$0xff]
    %v4490 = vld [vmem:[%s254 + $0xe8] sm:$0xff]
    %v4491 = vld [vmem:[%s254 + $0xf0] sm:$0xff]
    %v4492 = vld [vmem:[%s254 + $0xf8] sm:$0xff]
    %v4493 = vld [vmem:[%s254 + $0x100] sm:$0xff]
    %v4494 = vld [vmem:[%s254 + $0x108] sm:$0xff]
    %v4495 = vld [vmem:[%s254 + $0x110] sm:$0xff]
    %v4496 = vld [vmem:[%s254 + $0x118] sm:$0xff]
    %v4497 = vld [vmem:[%s254 + $0x120] sm:$0xff]
    %v4498 = vld [vmem:[%s254 + $0x128] sm:$0xff]
    %v4499 = vld [vmem:[%s254 + $0x130] sm:$0xff]
    %v4500 = vld [vmem:[%s254 + $0x138] sm:$0xff]
    %v4501 = vld [vmem:[%s254 + $0x140] sm:$0xff]
    %v4502 = vld [vmem:[%s254 + $0x148] sm:$0xff]
    %v4503 = vld [vmem:[%s254 + $0x150] sm:$0xff]
    %v4504 = vld [vmem:[%s254 + $0x158] sm:$0xff]
    %v4505 = vld [vmem:[%s254 + $0x160] sm:$0xff]
    %v4506 = vld [vmem:[%s254 + $0x168] sm:$0xff]
    %v4507 = vld [vmem:[%s254 + $0x170] sm:$0xff]
    %v4508 = vld [vmem:[%s254 + $0x178] sm:$0xff]
    %v4509 = vld [vmem:[%s254 + $0x180] sm:$0xff]
    %v4510 = vld [vmem:[%s254 + $0x188] sm:$0xff]
    %v4511 = vld [vmem:[%s254 + $0x190] sm:$0xff]
    %v4512 = vld [vmem:[%s254 + $0x198] sm:$0xff]
    %v4513 = vld [vmem:[%s254 + $0x1a0] sm:$0xff]
    %v4514 = vld [vmem:[%s254 + $0x1a8] sm:$0xff]
    %v4515 = vld [vmem:[%s254 + $0x1b0] sm:$0xff]
    %v4516 = vld [vmem:[%s254 + $0x1b8] sm:$0xff]
    %v4517 = vld [vmem:[%s254 + $0x1c0] sm:$0xff]
    %v4518 = vld [vmem:[%s254 + $0x1c8] sm:$0xff]
    %v4519 = vld [vmem:[%s254 + $0x1d0] sm:$0xff]
    %v4520 = vld [vmem:[%s254 + $0x1d8] sm:$0xff]
    %v4521 = vld [vmem:[%s254 + $0x1e0] sm:$0xff]
    %v4522 = vld [vmem:[%s254 + $0x1e8] sm:$0xff]
    %v4523 = vld [vmem:[%s254 + $0x1f0] sm:$0xff]
    %v4524 = vld [vmem:[%s254 + $0x1f8] sm:$0xff]
    %v4525 = vld [vmem:[%s254 + $0x200] sm:$0xff]
    %v4526 = vld [vmem:[%s254 + $0x208] sm:$0xff]
    %v4527 = vld [vmem:[%s254 + $0x210] sm:$0xff]
    %v4528 = vld [vmem:[%s254 + $0x218] sm:$0xff]
    %v4529 = vld [vmem:[%s254 + $0x220] sm:$0xff]
    %v4530 = vld [vmem:[%s254 + $0x228] sm:$0xff]
    %v4531 = vld [vmem:[%s254 + $0x230] sm:$0xff]
    %v4532 = vld [vmem:[%s254 + $0x238] sm:$0xff]
    %v4533 = vld [vmem:[%s254 + $0x240] sm:$0xff]
    %v4534 = vld [vmem:[%s254 + $0x248] sm:$0xff]
    %v4535 = vld [vmem:[%s254 + $0x250] sm:$0xff]
    %v4536 = vld [vmem:[%s254 + $0x258] sm:$0xff]
    %v4537 = vld [vmem:[%s254 + $0x260] sm:$0xff]
    %v4538 = vld [vmem:[%s254 + $0x268] sm:$0xff]
    %v4539 = vld [vmem:[%s254 + $0x270] sm:$0xff]
    %v4540 = vld [vmem:[%s254 + $0x278] sm:$0xff]
    %v4541 = vld [vmem:[%s254 + $0x280] sm:$0xff]
    %v4542 = vld [vmem:[%s254 + $0x288] sm:$0xff]
    %v4543 = vld [vmem:[%s254 + $0x290] sm:$0xff]
    %v4544 = vld [vmem:[%s254 + $0x298] sm:$0xff]
    %v4545 = vld [vmem:[%s254 + $0x2a0] sm:$0xff]
    %v4546 = vld [vmem:[%s254 + $0x2a8] sm:$0xff]
    %v4547 = vld [vmem:[%s254 + $0x2b0] sm:$0xff]
    %v4548 = vld [vmem:[%s254 + $0x2b8] sm:$0xff]
    %v4549 = vld [vmem:[%s254 + $0x2c0] sm:$0xff]
    %v4550 = vld [vmem:[%s254 + $0x2c8] sm:$0xff]
    %v4551 = vld [vmem:[%s254 + $0x2d0] sm:$0xff]
    %v4552 = vld [vmem:[%s254 + $0x2d8] sm:$0xff]
    %v4553 = vld [vmem:[%s254 + $0x2e0] sm:$0xff]
    %v4554 = vld [vmem:[%s254 + $0x2e8] sm:$0xff]
    %v4555 = vld [vmem:[%s254 + $0x2f0] sm:$0xff]
    %v4556 = vld [vmem:[%s254 + $0x2f8] sm:$0xff]
    %v4557 = vld [vmem:[%s254 + $0x300] sm:$0xff]
    %v4558 = vld [vmem:[%s254 + $0x308] sm:$0xff]
    %v4559 = vld [vmem:[%s254 + $0x310] sm:$0xff]
    %v4560 = vld [vmem:[%s254 + $0x318] sm:$0xff]
    %v4561 = vld [vmem:[%s254 + $0x320] sm:$0xff]
    %v4562 = vld [vmem:[%s254 + $0x328] sm:$0xff]
    %v4563 = vld [vmem:[%s254 + $0x330] sm:$0xff]
    %v4564 = vld [vmem:[%s254 + $0x338] sm:$0xff]
    %v4565 = vld [vmem:[%s254 + $0x340] sm:$0xff]
    %v4566 = vld [vmem:[%s254 + $0x348] sm:$0xff]
    %v4567 = vld [vmem:[%s254 + $0x350] sm:$0xff]
    %v4568 = vld [vmem:[%s254 + $0x358] sm:$0xff]
    %v4569 = vld [vmem:[%s254 + $0x360] sm:$0xff]
    %v4570 = vld [vmem:[%s254 + $0x368] sm:$0xff]
    %v4571 = vld [vmem:[%s254 + $0x370] sm:$0xff]
    %v4572 = vld [vmem:[%s254 + $0x378] sm:$0xff]
    %v4573 = vld [vmem:[%s254 + $0x380] sm:$0xff]
    %v4574 = vld [vmem:[%s254 + $0x388] sm:$0xff]
    %v4575 = vld [vmem:[%s254 + $0x390] sm:$0xff]
    %v4576 = vld [vmem:[%s254 + $0x398] sm:$0xff]
    %v4577 = vld [vmem:[%s254 + $0x3a0] sm:$0xff]
    %v4578 = vld [vmem:[%s254 + $0x3a8] sm:$0xff]
    %v4579 = vld [vmem:[%s254 + $0x3b0] sm:$0xff]
    %v4580 = vld [vmem:[%s254 + $0x3b8] sm:$0xff]
    %v4581 = vld [vmem:[%s254 + $0x3c0] sm:$0xff]
    %v4582 = vld [vmem:[%s254 + $0x3c8] sm:$0xff]
    %v4583 = vld [vmem:[%s254 + $0x3d0] sm:$0xff]
    %v4584 = vld [vmem:[%s254 + $0x3d8] sm:$0xff]
    %v4585 = vld [vmem:[%s254 + $0x3e0] sm:$0xff]
    %v4586 = vld [vmem:[%s254 + $0x3e8] sm:$0xff]
    %v4587 = vld [vmem:[%s254 + $0x3f0] sm:$0xff]
    %v4588 = vld [vmem:[%s254 + $0x3f8] sm:$0xff]
    %4589 = vmatprep.subr.mxu0 %v4522
    %4590 = vmatpush1.msra.mxu0 %v4521
    %4591 = vmatprep.subr.mxu0 %v4518
    %4592 = vmatpush1.msra.mxu0 %v4517
    %4593 = vmatprep.subr.mxu0 %v4514
    %4594 = vmatpush1.msra.mxu0 %v4513
    %4595 = vmatprep.subr.mxu0 %v4510
    %4596 = vmatpush1.msra.mxu0 %v4509
    %4597 = vmatprep.subr.mxu0 %v4506
    %4598 = vmatpush1.msra.mxu0 %v4505
    %4599 = vmatprep.subr.mxu0 %v4502
    %4600 = vmatpush1.msra.mxu0 %v4501
    %4601 = vmatprep.subr.mxu0 %v4498
    %4602 = vmatpush1.msra.mxu0 %v4497
    %4603 = vmatprep.subr.mxu0 %v4494
    %4604 = vmatpush1.msra.mxu0 %v4493
    %4605 = vmatprep.subr.mxu0 %v4490
    %4606 = vmatpush1.msra.mxu0 %v4489
    %4607 = vmatprep.subr.mxu0 %v4486
    %4608 = vmatpush1.msra.mxu0 %v4485
    %4609 = vmatprep.subr.mxu0 %v4482
    %4610 = vmatpush1.msra.mxu0 %v4481
    %4611 = vmatprep.subr.mxu0 %v4478
    %4612 = vmatpush1.msra.mxu0 %v4477
    %4613 = vmatprep.subr.mxu0 %v4474
    %4614 = vmatpush1.msra.mxu0 %v4473
    %4615 = vmatprep.subr.mxu0 %v4470
    %4616 = vmatpush1.msra.mxu0 %v4469
    %4617 = vmatprep.subr.mxu0 %v4466
    %4618 = vmatpush1.msra.mxu0 %v4465
    %4619 = vmatprep.subr.mxu0 %v4462
    %4620 = vmatpush1.msra.mxu0 %v4461
    %4621 = vmatprep.subr.mxu0 %v4586
    %4622 = vmatpush2.msra.mxu0 %v4585
    %4623 = vmatprep.subr.mxu0 %v4582
    %4624 = vmatpush2.msra.mxu0 %v4581
    %4625 = vmatprep.subr.mxu0 %v4578
    %4626 = vmatpush2.msra.mxu0 %v4577
    %4627 = vmatprep.subr.mxu0 %v4574
    %4628 = vmatpush2.msra.mxu0 %v4573
    %4629 = vmatprep.subr.mxu0 %v4570
    %4630 = vmatpush2.msra.mxu0 %v4569
    %4631 = vmatprep.subr.mxu0 %v4566
    %4632 = vmatpush2.msra.mxu0 %v4565
    %4633 = vmatprep.subr.mxu0 %v4562
    %4634 = vmatpush2.msra.mxu0 %v4561
    %4635 = vmatprep.subr.mxu0 %v4558
    %4636 = vmatpush2.msra.mxu0 %v4557
    %4637 = vmatprep.subr.mxu0 %v4554
    %4638 = vmatpush2.msra.mxu0 %v4553
    %4639 = vmatprep.subr.mxu0 %v4550
    %4640 = vmatpush2.msra.mxu0 %v4549
    %4641 = vmatprep.subr.mxu0 %v4546
    %4642 = vmatpush2.msra.mxu0 %v4545
    %4643 = vmatprep.subr.mxu0 %v4542
    %4644 = vmatpush2.msra.mxu0 %v4541
    %4645 = vmatprep.subr.mxu0 %v4538
    %4646 = vmatpush2.msra.mxu0 %v4537
    %4647 = vmatprep.subr.mxu0 %v4534
    %4648 = vmatpush2.msra.mxu0 %v4533
    %4649 = vmatprep.subr.mxu0 %v4530
    %4650 = vmatpush2.msra.mxu0 %v4529
    %4651 = vmatprep.subr.mxu0 %v4526
    %4652 = vmatpush2.msra.mxu0 %v4525
    %4653 = vmatprep.mubr.f32.mxu0 %v4460
    %4654 = vmatmul.mubr.f32.gmra.mxu0 %v4459
    %v4655 = vpop.f32.mrf.mxu0
    %v4656 = vadd.f32 0.0, %v4655
    %v4657 = vpop.f32.mrf.mxu0
    %v4658 = vadd.f32 0.0, %v4657
    %4659 = vdwg.mxu0
    %4660 = vmatprep.subr.mxu0 %v4524
    %4661 = vmatpush1.msra.mxu0 %v4523
    %4662 = vmatprep.subr.mxu0 %v4520
    %4663 = vmatpush1.msra.mxu0 %v4519
    %4664 = vmatprep.subr.mxu0 %v4516
    %4665 = vmatpush1.msra.mxu0 %v4515
    %4666 = vmatprep.subr.mxu0 %v4512
    %4667 = vmatpush1.msra.mxu0 %v4511
    %4668 = vmatprep.subr.mxu0 %v4508
    %4669 = vmatpush1.msra.mxu0 %v4507
    %4670 = vmatprep.subr.mxu0 %v4504
    %4671 = vmatpush1.msra.mxu0 %v4503
    %4672 = vmatprep.subr.mxu0 %v4500
    %4673 = vmatpush1.msra.mxu0 %v4499
    %4674 = vmatprep.subr.mxu0 %v4496
    %4675 = vmatpush1.msra.mxu0 %v4495
    %4676 = vmatprep.subr.mxu0 %v4492
    %4677 = vmatpush1.msra.mxu0 %v4491
    %4678 = vmatprep.subr.mxu0 %v4488
    %4679 = vmatpush1.msra.mxu0 %v4487
    %4680 = vmatprep.subr.mxu0 %v4484
    %4681 = vmatpush1.msra.mxu0 %v4483
    %4682 = vmatprep.subr.mxu0 %v4480
    %4683 = vmatpush1.msra.mxu0 %v4479
    %4684 = vmatprep.subr.mxu0 %v4476
    %4685 = vmatpush1.msra.mxu0 %v4475
    %4686 = vmatprep.subr.mxu0 %v4472
    %4687 = vmatpush1.msra.mxu0 %v4471
    %4688 = vmatprep.subr.mxu0 %v4468
    %4689 = vmatpush1.msra.mxu0 %v4467
    %4690 = vmatprep.subr.mxu0 %v4464
    %4691 = vmatpush1.msra.mxu0 %v4463
    %4692 = vmatprep.subr.mxu0 %v4588
    %4693 = vmatpush2.msra.mxu0 %v4587
    %4694 = vmatprep.subr.mxu0 %v4584
    %4695 = vmatpush2.msra.mxu0 %v4583
    %4696 = vmatprep.subr.mxu0 %v4580
    %4697 = vmatpush2.msra.mxu0 %v4579
    %4698 = vmatprep.subr.mxu0 %v4576
    %4699 = vmatpush2.msra.mxu0 %v4575
    %4700 = vmatprep.subr.mxu0 %v4572
    %4701 = vmatpush2.msra.mxu0 %v4571
    %4702 = vmatprep.subr.mxu0 %v4568
    %4703 = vmatpush2.msra.mxu0 %v4567
    %4704 = vmatprep.subr.mxu0 %v4564
    %4705 = vmatpush2.msra.mxu0 %v4563
    %4706 = vmatprep.subr.mxu0 %v4560
    %4707 = vmatpush2.msra.mxu0 %v4559
    %4708 = vmatprep.subr.mxu0 %v4556
    %4709 = vmatpush2.msra.mxu0 %v4555
    %4710 = vmatprep.subr.mxu0 %v4552
    %4711 = vmatpush2.msra.mxu0 %v4551
    %4712 = vmatprep.subr.mxu0 %v4548
    %4713 = vmatpush2.msra.mxu0 %v4547
    %4714 = vmatprep.subr.mxu0 %v4544
    %4715 = vmatpush2.msra.mxu0 %v4543
    %4716 = vmatprep.subr.mxu0 %v4540
    %4717 = vmatpush2.msra.mxu0 %v4539
    %4718 = vmatprep.subr.mxu0 %v4536
    %4719 = vmatpush2.msra.mxu0 %v4535
    %4720 = vmatprep.subr.mxu0 %v4532
    %4721 = vmatpush2.msra.mxu0 %v4531
    %4722 = vmatprep.subr.mxu0 %v4528
    %4723 = vmatpush2.msra.mxu0 %v4527
    %4724 = vmatprep.mubr.f32.mxu0 %v4460
    %4725 = vmatmul.mubr.f32.gmra.mxu0 %v4459
    %v4726 = vpop.f32.mrf.mxu0
    %v4727 = vadd.f32 0.0, %v4726
    %v4728 = vpop.f32.mrf.mxu0
    %v4729 = vadd.f32 0.0, %v4728
    %4730 = vdwg.mxu0
    %v4731 = vadd.f32 %v4441, %v4656
    %v4732 = vadd.f32 %v4442, %v4658
    %v4733 = vadd.f32 %v4443, %v4727
    %v4734 = vadd.f32 %v4444, %v4729
    %v4735 = vld [vmem:[#allocation2 + $0x60] sm:$0xff]
    %v4736 = vld [vmem:[#allocation2 + $0x68] sm:$0xff]
    %s4737 = scalar_lea.vmem [#allocation3], 6144
    %v4738 = vld [vmem:[%s4737] sm:$0xff]
    %v4739 = vld [vmem:[%s4737 + $0x8] sm:$0xff]
    %v4740 = vld [vmem:[%s4737 + $0x10] sm:$0xff]
    %v4741 = vld [vmem:[%s4737 + $0x18] sm:$0xff]
    %v4742 = vld [vmem:[%s4737 + $0x20] sm:$0xff]
    %v4743 = vld [vmem:[%s4737 + $0x28] sm:$0xff]
    %v4744 = vld [vmem:[%s4737 + $0x30] sm:$0xff]
    %v4745 = vld [vmem:[%s4737 + $0x38] sm:$0xff]
    %v4746 = vld [vmem:[%s4737 + $0x40] sm:$0xff]
    %v4747 = vld [vmem:[%s4737 + $0x48] sm:$0xff]
    %v4748 = vld [vmem:[%s4737 + $0x50] sm:$0xff]
    %v4749 = vld [vmem:[%s4737 + $0x58] sm:$0xff]
    %v4750 = vld [vmem:[%s4737 + $0x60] sm:$0xff]
    %v4751 = vld [vmem:[%s4737 + $0x68] sm:$0xff]
    %v4752 = vld [vmem:[%s4737 + $0x70] sm:$0xff]
    %v4753 = vld [vmem:[%s4737 + $0x78] sm:$0xff]
    %v4754 = vld [vmem:[%s4737 + $0x80] sm:$0xff]
    %v4755 = vld [vmem:[%s4737 + $0x88] sm:$0xff]
    %v4756 = vld [vmem:[%s4737 + $0x90] sm:$0xff]
    %v4757 = vld [vmem:[%s4737 + $0x98] sm:$0xff]
    %v4758 = vld [vmem:[%s4737 + $0xa0] sm:$0xff]
    %v4759 = vld [vmem:[%s4737 + $0xa8] sm:$0xff]
    %v4760 = vld [vmem:[%s4737 + $0xb0] sm:$0xff]
    %v4761 = vld [vmem:[%s4737 + $0xb8] sm:$0xff]
    %v4762 = vld [vmem:[%s4737 + $0xc0] sm:$0xff]
    %v4763 = vld [vmem:[%s4737 + $0xc8] sm:$0xff]
    %v4764 = vld [vmem:[%s4737 + $0xd0] sm:$0xff]
    %v4765 = vld [vmem:[%s4737 + $0xd8] sm:$0xff]
    %v4766 = vld [vmem:[%s4737 + $0xe0] sm:$0xff]
    %v4767 = vld [vmem:[%s4737 + $0xe8] sm:$0xff]
    %v4768 = vld [vmem:[%s4737 + $0xf0] sm:$0xff]
    %v4769 = vld [vmem:[%s4737 + $0xf8] sm:$0xff]
    %v4770 = vld [vmem:[%s4737 + $0x100] sm:$0xff]
    %v4771 = vld [vmem:[%s4737 + $0x108] sm:$0xff]
    %v4772 = vld [vmem:[%s4737 + $0x110] sm:$0xff]
    %v4773 = vld [vmem:[%s4737 + $0x118] sm:$0xff]
    %v4774 = vld [vmem:[%s4737 + $0x120] sm:$0xff]
    %v4775 = vld [vmem:[%s4737 + $0x128] sm:$0xff]
    %v4776 = vld [vmem:[%s4737 + $0x130] sm:$0xff]
    %v4777 = vld [vmem:[%s4737 + $0x138] sm:$0xff]
    %v4778 = vld [vmem:[%s4737 + $0x140] sm:$0xff]
    %v4779 = vld [vmem:[%s4737 + $0x148] sm:$0xff]
    %v4780 = vld [vmem:[%s4737 + $0x150] sm:$0xff]
    %v4781 = vld [vmem:[%s4737 + $0x158] sm:$0xff]
    %v4782 = vld [vmem:[%s4737 + $0x160] sm:$0xff]
    %v4783 = vld [vmem:[%s4737 + $0x168] sm:$0xff]
    %v4784 = vld [vmem:[%s4737 + $0x170] sm:$0xff]
    %v4785 = vld [vmem:[%s4737 + $0x178] sm:$0xff]
    %v4786 = vld [vmem:[%s4737 + $0x180] sm:$0xff]
    %v4787 = vld [vmem:[%s4737 + $0x188] sm:$0xff]
    %v4788 = vld [vmem:[%s4737 + $0x190] sm:$0xff]
    %v4789 = vld [vmem:[%s4737 + $0x198] sm:$0xff]
    %v4790 = vld [vmem:[%s4737 + $0x1a0] sm:$0xff]
    %v4791 = vld [vmem:[%s4737 + $0x1a8] sm:$0xff]
    %v4792 = vld [vmem:[%s4737 + $0x1b0] sm:$0xff]
    %v4793 = vld [vmem:[%s4737 + $0x1b8] sm:$0xff]
    %v4794 = vld [vmem:[%s4737 + $0x1c0] sm:$0xff]
    %v4795 = vld [vmem:[%s4737 + $0x1c8] sm:$0xff]
    %v4796 = vld [vmem:[%s4737 + $0x1d0] sm:$0xff]
    %v4797 = vld [vmem:[%s4737 + $0x1d8] sm:$0xff]
    %v4798 = vld [vmem:[%s4737 + $0x1e0] sm:$0xff]
    %v4799 = vld [vmem:[%s4737 + $0x1e8] sm:$0xff]
    %v4800 = vld [vmem:[%s4737 + $0x1f0] sm:$0xff]
    %v4801 = vld [vmem:[%s4737 + $0x1f8] sm:$0xff]
    %v4802 = vld [vmem:[%s4737 + $0x200] sm:$0xff]
    %v4803 = vld [vmem:[%s4737 + $0x208] sm:$0xff]
    %v4804 = vld [vmem:[%s4737 + $0x210] sm:$0xff]
    %v4805 = vld [vmem:[%s4737 + $0x218] sm:$0xff]
    %v4806 = vld [vmem:[%s4737 + $0x220] sm:$0xff]
    %v4807 = vld [vmem:[%s4737 + $0x228] sm:$0xff]
    %v4808 = vld [vmem:[%s4737 + $0x230] sm:$0xff]
    %v4809 = vld [vmem:[%s4737 + $0x238] sm:$0xff]
    %v4810 = vld [vmem:[%s4737 + $0x240] sm:$0xff]
    %v4811 = vld [vmem:[%s4737 + $0x248] sm:$0xff]
    %v4812 = vld [vmem:[%s4737 + $0x250] sm:$0xff]
    %v4813 = vld [vmem:[%s4737 + $0x258] sm:$0xff]
    %v4814 = vld [vmem:[%s4737 + $0x260] sm:$0xff]
    %v4815 = vld [vmem:[%s4737 + $0x268] sm:$0xff]
    %v4816 = vld [vmem:[%s4737 + $0x270] sm:$0xff]
    %v4817 = vld [vmem:[%s4737 + $0x278] sm:$0xff]
    %v4818 = vld [vmem:[%s4737 + $0x280] sm:$0xff]
    %v4819 = vld [vmem:[%s4737 + $0x288] sm:$0xff]
    %v4820 = vld [vmem:[%s4737 + $0x290] sm:$0xff]
    %v4821 = vld [vmem:[%s4737 + $0x298] sm:$0xff]
    %v4822 = vld [vmem:[%s4737 + $0x2a0] sm:$0xff]
    %v4823 = vld [vmem:[%s4737 + $0x2a8] sm:$0xff]
    %v4824 = vld [vmem:[%s4737 + $0x2b0] sm:$0xff]
    %v4825 = vld [vmem:[%s4737 + $0x2b8] sm:$0xff]
    %v4826 = vld [vmem:[%s4737 + $0x2c0] sm:$0xff]
    %v4827 = vld [vmem:[%s4737 + $0x2c8] sm:$0xff]
    %v4828 = vld [vmem:[%s4737 + $0x2d0] sm:$0xff]
    %v4829 = vld [vmem:[%s4737 + $0x2d8] sm:$0xff]
    %v4830 = vld [vmem:[%s4737 + $0x2e0] sm:$0xff]
    %v4831 = vld [vmem:[%s4737 + $0x2e8] sm:$0xff]
    %v4832 = vld [vmem:[%s4737 + $0x2f0] sm:$0xff]
    %v4833 = vld [vmem:[%s4737 + $0x2f8] sm:$0xff]
    %v4834 = vld [vmem:[%s4737 + $0x300] sm:$0xff]
    %v4835 = vld [vmem:[%s4737 + $0x308] sm:$0xff]
    %v4836 = vld [vmem:[%s4737 + $0x310] sm:$0xff]
    %v4837 = vld [vmem:[%s4737 + $0x318] sm:$0xff]
    %v4838 = vld [vmem:[%s4737 + $0x320] sm:$0xff]
    %v4839 = vld [vmem:[%s4737 + $0x328] sm:$0xff]
    %v4840 = vld [vmem:[%s4737 + $0x330] sm:$0xff]
    %v4841 = vld [vmem:[%s4737 + $0x338] sm:$0xff]
    %v4842 = vld [vmem:[%s4737 + $0x340] sm:$0xff]
    %v4843 = vld [vmem:[%s4737 + $0x348] sm:$0xff]
    %v4844 = vld [vmem:[%s4737 + $0x350] sm:$0xff]
    %v4845 = vld [vmem:[%s4737 + $0x358] sm:$0xff]
    %v4846 = vld [vmem:[%s4737 + $0x360] sm:$0xff]
    %v4847 = vld [vmem:[%s4737 + $0x368] sm:$0xff]
    %v4848 = vld [vmem:[%s4737 + $0x370] sm:$0xff]
    %v4849 = vld [vmem:[%s4737 + $0x378] sm:$0xff]
    %v4850 = vld [vmem:[%s4737 + $0x380] sm:$0xff]
    %v4851 = vld [vmem:[%s4737 + $0x388] sm:$0xff]
    %v4852 = vld [vmem:[%s4737 + $0x390] sm:$0xff]
    %v4853 = vld [vmem:[%s4737 + $0x398] sm:$0xff]
    %v4854 = vld [vmem:[%s4737 + $0x3a0] sm:$0xff]
    %v4855 = vld [vmem:[%s4737 + $0x3a8] sm:$0xff]
    %v4856 = vld [vmem:[%s4737 + $0x3b0] sm:$0xff]
    %v4857 = vld [vmem:[%s4737 + $0x3b8] sm:$0xff]
    %v4858 = vld [vmem:[%s4737 + $0x3c0] sm:$0xff]
    %v4859 = vld [vmem:[%s4737 + $0x3c8] sm:$0xff]
    %v4860 = vld [vmem:[%s4737 + $0x3d0] sm:$0xff]
    %v4861 = vld [vmem:[%s4737 + $0x3d8] sm:$0xff]
    %v4862 = vld [vmem:[%s4737 + $0x3e0] sm:$0xff]
    %v4863 = vld [vmem:[%s4737 + $0x3e8] sm:$0xff]
    %v4864 = vld [vmem:[%s4737 + $0x3f0] sm:$0xff]
    %v4865 = vld [vmem:[%s4737 + $0x3f8] sm:$0xff]
    %4866 = vmatprep.subr.mxu0 %v4799
    %4867 = vmatpush1.msra.mxu0 %v4798
    %4868 = vmatprep.subr.mxu0 %v4795
    %4869 = vmatpush1.msra.mxu0 %v4794
    %4870 = vmatprep.subr.mxu0 %v4791
    %4871 = vmatpush1.msra.mxu0 %v4790
    %4872 = vmatprep.subr.mxu0 %v4787
    %4873 = vmatpush1.msra.mxu0 %v4786
    %4874 = vmatprep.subr.mxu0 %v4783
    %4875 = vmatpush1.msra.mxu0 %v4782
    %4876 = vmatprep.subr.mxu0 %v4779
    %4877 = vmatpush1.msra.mxu0 %v4778
    %4878 = vmatprep.subr.mxu0 %v4775
    %4879 = vmatpush1.msra.mxu0 %v4774
    %4880 = vmatprep.subr.mxu0 %v4771
    %4881 = vmatpush1.msra.mxu0 %v4770
    %4882 = vmatprep.subr.mxu0 %v4767
    %4883 = vmatpush1.msra.mxu0 %v4766
    %4884 = vmatprep.subr.mxu0 %v4763
    %4885 = vmatpush1.msra.mxu0 %v4762
    %4886 = vmatprep.subr.mxu0 %v4759
    %4887 = vmatpush1.msra.mxu0 %v4758
    %4888 = vmatprep.subr.mxu0 %v4755
    %4889 = vmatpush1.msra.mxu0 %v4754
    %4890 = vmatprep.subr.mxu0 %v4751
    %4891 = vmatpush1.msra.mxu0 %v4750
    %4892 = vmatprep.subr.mxu0 %v4747
    %4893 = vmatpush1.msra.mxu0 %v4746
    %4894 = vmatprep.subr.mxu0 %v4743
    %4895 = vmatpush1.msra.mxu0 %v4742
    %4896 = vmatprep.subr.mxu0 %v4739
    %4897 = vmatpush1.msra.mxu0 %v4738
    %4898 = vmatprep.subr.mxu0 %v4863
    %4899 = vmatpush2.msra.mxu0 %v4862
    %4900 = vmatprep.subr.mxu0 %v4859
    %4901 = vmatpush2.msra.mxu0 %v4858
    %4902 = vmatprep.subr.mxu0 %v4855
    %4903 = vmatpush2.msra.mxu0 %v4854
    %4904 = vmatprep.subr.mxu0 %v4851
    %4905 = vmatpush2.msra.mxu0 %v4850
    %4906 = vmatprep.subr.mxu0 %v4847
    %4907 = vmatpush2.msra.mxu0 %v4846
    %4908 = vmatprep.subr.mxu0 %v4843
    %4909 = vmatpush2.msra.mxu0 %v4842
    %4910 = vmatprep.subr.mxu0 %v4839
    %4911 = vmatpush2.msra.mxu0 %v4838
    %4912 = vmatprep.subr.mxu0 %v4835
    %4913 = vmatpush2.msra.mxu0 %v4834
    %4914 = vmatprep.subr.mxu0 %v4831
    %4915 = vmatpush2.msra.mxu0 %v4830
    %4916 = vmatprep.subr.mxu0 %v4827
    %4917 = vmatpush2.msra.mxu0 %v4826
    %4918 = vmatprep.subr.mxu0 %v4823
    %4919 = vmatpush2.msra.mxu0 %v4822
    %4920 = vmatprep.subr.mxu0 %v4819
    %4921 = vmatpush2.msra.mxu0 %v4818
    %4922 = vmatprep.subr.mxu0 %v4815
    %4923 = vmatpush2.msra.mxu0 %v4814
    %4924 = vmatprep.subr.mxu0 %v4811
    %4925 = vmatpush2.msra.mxu0 %v4810
    %4926 = vmatprep.subr.mxu0 %v4807
    %4927 = vmatpush2.msra.mxu0 %v4806
    %4928 = vmatprep.subr.mxu0 %v4803
    %4929 = vmatpush2.msra.mxu0 %v4802
    %4930 = vmatprep.mubr.f32.mxu0 %v4736
    %4931 = vmatmul.mubr.f32.gmra.mxu0 %v4735
    %v4932 = vpop.f32.mrf.mxu0
    %v4933 = vadd.f32 0.0, %v4932
    %v4934 = vpop.f32.mrf.mxu0
    %v4935 = vadd.f32 0.0, %v4934
    %4936 = vdwg.mxu0
    %4937 = vmatprep.subr.mxu0 %v4801
    %4938 = vmatpush1.msra.mxu0 %v4800
    %4939 = vmatprep.subr.mxu0 %v4797
    %4940 = vmatpush1.msra.mxu0 %v4796
    %4941 = vmatprep.subr.mxu0 %v4793
    %4942 = vmatpush1.msra.mxu0 %v4792
    %4943 = vmatprep.subr.mxu0 %v4789
    %4944 = vmatpush1.msra.mxu0 %v4788
    %4945 = vmatprep.subr.mxu0 %v4785
    %4946 = vmatpush1.msra.mxu0 %v4784
    %4947 = vmatprep.subr.mxu0 %v4781
    %4948 = vmatpush1.msra.mxu0 %v4780
    %4949 = vmatprep.subr.mxu0 %v4777
    %4950 = vmatpush1.msra.mxu0 %v4776
    %4951 = vmatprep.subr.mxu0 %v4773
    %4952 = vmatpush1.msra.mxu0 %v4772
    %4953 = vmatprep.subr.mxu0 %v4769
    %4954 = vmatpush1.msra.mxu0 %v4768
    %4955 = vmatprep.subr.mxu0 %v4765
    %4956 = vmatpush1.msra.mxu0 %v4764
    %4957 = vmatprep.subr.mxu0 %v4761
    %4958 = vmatpush1.msra.mxu0 %v4760
    %4959 = vmatprep.subr.mxu0 %v4757
    %4960 = vmatpush1.msra.mxu0 %v4756
    %4961 = vmatprep.subr.mxu0 %v4753
    %4962 = vmatpush1.msra.mxu0 %v4752
    %4963 = vmatprep.subr.mxu0 %v4749
    %4964 = vmatpush1.msra.mxu0 %v4748
    %4965 = vmatprep.subr.mxu0 %v4745
    %4966 = vmatpush1.msra.mxu0 %v4744
    %4967 = vmatprep.subr.mxu0 %v4741
    %4968 = vmatpush1.msra.mxu0 %v4740
    %4969 = vmatprep.subr.mxu0 %v4865
    %4970 = vmatpush2.msra.mxu0 %v4864
    %4971 = vmatprep.subr.mxu0 %v4861
    %4972 = vmatpush2.msra.mxu0 %v4860
    %4973 = vmatprep.subr.mxu0 %v4857
    %4974 = vmatpush2.msra.mxu0 %v4856
    %4975 = vmatprep.subr.mxu0 %v4853
    %4976 = vmatpush2.msra.mxu0 %v4852
    %4977 = vmatprep.subr.mxu0 %v4849
    %4978 = vmatpush2.msra.mxu0 %v4848
    %4979 = vmatprep.subr.mxu0 %v4845
    %4980 = vmatpush2.msra.mxu0 %v4844
    %4981 = vmatprep.subr.mxu0 %v4841
    %4982 = vmatpush2.msra.mxu0 %v4840
    %4983 = vmatprep.subr.mxu0 %v4837
    %4984 = vmatpush2.msra.mxu0 %v4836
    %4985 = vmatprep.subr.mxu0 %v4833
    %4986 = vmatpush2.msra.mxu0 %v4832
    %4987 = vmatprep.subr.mxu0 %v4829
    %4988 = vmatpush2.msra.mxu0 %v4828
    %4989 = vmatprep.subr.mxu0 %v4825
    %4990 = vmatpush2.msra.mxu0 %v4824
    %4991 = vmatprep.subr.mxu0 %v4821
    %4992 = vmatpush2.msra.mxu0 %v4820
    %4993 = vmatprep.subr.mxu0 %v4817
    %4994 = vmatpush2.msra.mxu0 %v4816
    %4995 = vmatprep.subr.mxu0 %v4813
    %4996 = vmatpush2.msra.mxu0 %v4812
    %4997 = vmatprep.subr.mxu0 %v4809
    %4998 = vmatpush2.msra.mxu0 %v4808
    %4999 = vmatprep.subr.mxu0 %v4805
    %5000 = vmatpush2.msra.mxu0 %v4804
    %5001 = vmatprep.mubr.f32.mxu0 %v4736
    %5002 = vmatmul.mubr.f32.gmra.mxu0 %v4735
    %v5003 = vpop.f32.mrf.mxu0
    %v5004 = vadd.f32 0.0, %v5003
    %v5005 = vpop.f32.mrf.mxu0
    %v5006 = vadd.f32 0.0, %v5005
    %5007 = vdwg.mxu0
    %v5008 = vadd.f32 %v4731, %v4933
    %v5009 = vadd.f32 %v4732, %v4935
    %v5010 = vadd.f32 %v4733, %v5004
    %v5011 = vadd.f32 %v4734, %v5006
    %v5012 = vld [vmem:[#allocation2 + $0x70] sm:$0xff]
    %v5013 = vld [vmem:[#allocation2 + $0x78] sm:$0xff]
    %s5014 = scalar_lea.vmem [#allocation3], 7168
    %v5015 = vld [vmem:[%s5014] sm:$0xff]
    %v5016 = vld [vmem:[%s5014 + $0x8] sm:$0xff]
    %v5017 = vld [vmem:[%s5014 + $0x10] sm:$0xff]
    %v5018 = vld [vmem:[%s5014 + $0x18] sm:$0xff]
    %v5019 = vld [vmem:[%s5014 + $0x20] sm:$0xff]
    %v5020 = vld [vmem:[%s5014 + $0x28] sm:$0xff]
    %v5021 = vld [vmem:[%s5014 + $0x30] sm:$0xff]
    %v5022 = vld [vmem:[%s5014 + $0x38] sm:$0xff]
    %v5023 = vld [vmem:[%s5014 + $0x40] sm:$0xff]
    %v5024 = vld [vmem:[%s5014 + $0x48] sm:$0xff]
    %v5025 = vld [vmem:[%s5014 + $0x50] sm:$0xff]
    %v5026 = vld [vmem:[%s5014 + $0x58] sm:$0xff]
    %v5027 = vld [vmem:[%s5014 + $0x60] sm:$0xff]
    %v5028 = vld [vmem:[%s5014 + $0x68] sm:$0xff]
    %v5029 = vld [vmem:[%s5014 + $0x70] sm:$0xff]
    %v5030 = vld [vmem:[%s5014 + $0x78] sm:$0xff]
    %v5031 = vld [vmem:[%s5014 + $0x80] sm:$0xff]
    %v5032 = vld [vmem:[%s5014 + $0x88] sm:$0xff]
    %v5033 = vld [vmem:[%s5014 + $0x90] sm:$0xff]
    %v5034 = vld [vmem:[%s5014 + $0x98] sm:$0xff]
    %v5035 = vld [vmem:[%s5014 + $0xa0] sm:$0xff]
    %v5036 = vld [vmem:[%s5014 + $0xa8] sm:$0xff]
    %v5037 = vld [vmem:[%s5014 + $0xb0] sm:$0xff]
    %v5038 = vld [vmem:[%s5014 + $0xb8] sm:$0xff]
    %v5039 = vld [vmem:[%s5014 + $0xc0] sm:$0xff]
    %v5040 = vld [vmem:[%s5014 + $0xc8] sm:$0xff]
    %v5041 = vld [vmem:[%s5014 + $0xd0] sm:$0xff]
    %v5042 = vld [vmem:[%s5014 + $0xd8] sm:$0xff]
    %v5043 = vld [vmem:[%s5014 + $0xe0] sm:$0xff]
    %v5044 = vld [vmem:[%s5014 + $0xe8] sm:$0xff]
    %v5045 = vld [vmem:[%s5014 + $0xf0] sm:$0xff]
    %v5046 = vld [vmem:[%s5014 + $0xf8] sm:$0xff]
    %v5047 = vld [vmem:[%s5014 + $0x100] sm:$0xff]
    %v5048 = vld [vmem:[%s5014 + $0x108] sm:$0xff]
    %v5049 = vld [vmem:[%s5014 + $0x110] sm:$0xff]
    %v5050 = vld [vmem:[%s5014 + $0x118] sm:$0xff]
    %v5051 = vld [vmem:[%s5014 + $0x120] sm:$0xff]
    %v5052 = vld [vmem:[%s5014 + $0x128] sm:$0xff]
    %v5053 = vld [vmem:[%s5014 + $0x130] sm:$0xff]
    %v5054 = vld [vmem:[%s5014 + $0x138] sm:$0xff]
    %v5055 = vld [vmem:[%s5014 + $0x140] sm:$0xff]
    %v5056 = vld [vmem:[%s5014 + $0x148] sm:$0xff]
    %v5057 = vld [vmem:[%s5014 + $0x150] sm:$0xff]
    %v5058 = vld [vmem:[%s5014 + $0x158] sm:$0xff]
    %v5059 = vld [vmem:[%s5014 + $0x160] sm:$0xff]
    %v5060 = vld [vmem:[%s5014 + $0x168] sm:$0xff]
    %v5061 = vld [vmem:[%s5014 + $0x170] sm:$0xff]
    %v5062 = vld [vmem:[%s5014 + $0x178] sm:$0xff]
    %v5063 = vld [vmem:[%s5014 + $0x180] sm:$0xff]
    %v5064 = vld [vmem:[%s5014 + $0x188] sm:$0xff]
    %v5065 = vld [vmem:[%s5014 + $0x190] sm:$0xff]
    %v5066 = vld [vmem:[%s5014 + $0x198] sm:$0xff]
    %v5067 = vld [vmem:[%s5014 + $0x1a0] sm:$0xff]
    %v5068 = vld [vmem:[%s5014 + $0x1a8] sm:$0xff]
    %v5069 = vld [vmem:[%s5014 + $0x1b0] sm:$0xff]
    %v5070 = vld [vmem:[%s5014 + $0x1b8] sm:$0xff]
    %v5071 = vld [vmem:[%s5014 + $0x1c0] sm:$0xff]
    %v5072 = vld [vmem:[%s5014 + $0x1c8] sm:$0xff]
    %v5073 = vld [vmem:[%s5014 + $0x1d0] sm:$0xff]
    %v5074 = vld [vmem:[%s5014 + $0x1d8] sm:$0xff]
    %v5075 = vld [vmem:[%s5014 + $0x1e0] sm:$0xff]
    %v5076 = vld [vmem:[%s5014 + $0x1e8] sm:$0xff]
    %v5077 = vld [vmem:[%s5014 + $0x1f0] sm:$0xff]
    %v5078 = vld [vmem:[%s5014 + $0x1f8] sm:$0xff]
    %v5079 = vld [vmem:[%s5014 + $0x200] sm:$0xff]
    %v5080 = vld [vmem:[%s5014 + $0x208] sm:$0xff]
    %v5081 = vld [vmem:[%s5014 + $0x210] sm:$0xff]
    %v5082 = vld [vmem:[%s5014 + $0x218] sm:$0xff]
    %v5083 = vld [vmem:[%s5014 + $0x220] sm:$0xff]
    %v5084 = vld [vmem:[%s5014 + $0x228] sm:$0xff]
    %v5085 = vld [vmem:[%s5014 + $0x230] sm:$0xff]
    %v5086 = vld [vmem:[%s5014 + $0x238] sm:$0xff]
    %v5087 = vld [vmem:[%s5014 + $0x240] sm:$0xff]
    %v5088 = vld [vmem:[%s5014 + $0x248] sm:$0xff]
    %v5089 = vld [vmem:[%s5014 + $0x250] sm:$0xff]
    %v5090 = vld [vmem:[%s5014 + $0x258] sm:$0xff]
    %v5091 = vld [vmem:[%s5014 + $0x260] sm:$0xff]
    %v5092 = vld [vmem:[%s5014 + $0x268] sm:$0xff]
    %v5093 = vld [vmem:[%s5014 + $0x270] sm:$0xff]
    %v5094 = vld [vmem:[%s5014 + $0x278] sm:$0xff]
    %v5095 = vld [vmem:[%s5014 + $0x280] sm:$0xff]
    %v5096 = vld [vmem:[%s5014 + $0x288] sm:$0xff]
    %v5097 = vld [vmem:[%s5014 + $0x290] sm:$0xff]
    %v5098 = vld [vmem:[%s5014 + $0x298] sm:$0xff]
    %v5099 = vld [vmem:[%s5014 + $0x2a0] sm:$0xff]
    %v5100 = vld [vmem:[%s5014 + $0x2a8] sm:$0xff]
    %v5101 = vld [vmem:[%s5014 + $0x2b0] sm:$0xff]
    %v5102 = vld [vmem:[%s5014 + $0x2b8] sm:$0xff]
    %v5103 = vld [vmem:[%s5014 + $0x2c0] sm:$0xff]
    %v5104 = vld [vmem:[%s5014 + $0x2c8] sm:$0xff]
    %v5105 = vld [vmem:[%s5014 + $0x2d0] sm:$0xff]
    %v5106 = vld [vmem:[%s5014 + $0x2d8] sm:$0xff]
    %v5107 = vld [vmem:[%s5014 + $0x2e0] sm:$0xff]
    %v5108 = vld [vmem:[%s5014 + $0x2e8] sm:$0xff]
    %v5109 = vld [vmem:[%s5014 + $0x2f0] sm:$0xff]
    %v5110 = vld [vmem:[%s5014 + $0x2f8] sm:$0xff]
    %v5111 = vld [vmem:[%s5014 + $0x300] sm:$0xff]
    %v5112 = vld [vmem:[%s5014 + $0x308] sm:$0xff]
    %v5113 = vld [vmem:[%s5014 + $0x310] sm:$0xff]
    %v5114 = vld [vmem:[%s5014 + $0x318] sm:$0xff]
    %v5115 = vld [vmem:[%s5014 + $0x320] sm:$0xff]
    %v5116 = vld [vmem:[%s5014 + $0x328] sm:$0xff]
    %v5117 = vld [vmem:[%s5014 + $0x330] sm:$0xff]
    %v5118 = vld [vmem:[%s5014 + $0x338] sm:$0xff]
    %v5119 = vld [vmem:[%s5014 + $0x340] sm:$0xff]
    %v5120 = vld [vmem:[%s5014 + $0x348] sm:$0xff]
    %v5121 = vld [vmem:[%s5014 + $0x350] sm:$0xff]
    %v5122 = vld [vmem:[%s5014 + $0x358] sm:$0xff]
    %v5123 = vld [vmem:[%s5014 + $0x360] sm:$0xff]
    %v5124 = vld [vmem:[%s5014 + $0x368] sm:$0xff]
    %v5125 = vld [vmem:[%s5014 + $0x370] sm:$0xff]
    %v5126 = vld [vmem:[%s5014 + $0x378] sm:$0xff]
    %v5127 = vld [vmem:[%s5014 + $0x380] sm:$0xff]
    %v5128 = vld [vmem:[%s5014 + $0x388] sm:$0xff]
    %v5129 = vld [vmem:[%s5014 + $0x390] sm:$0xff]
    %v5130 = vld [vmem:[%s5014 + $0x398] sm:$0xff]
    %v5131 = vld [vmem:[%s5014 + $0x3a0] sm:$0xff]
    %v5132 = vld [vmem:[%s5014 + $0x3a8] sm:$0xff]
    %v5133 = vld [vmem:[%s5014 + $0x3b0] sm:$0xff]
    %v5134 = vld [vmem:[%s5014 + $0x3b8] sm:$0xff]
    %v5135 = vld [vmem:[%s5014 + $0x3c0] sm:$0xff]
    %v5136 = vld [vmem:[%s5014 + $0x3c8] sm:$0xff]
    %v5137 = vld [vmem:[%s5014 + $0x3d0] sm:$0xff]
    %v5138 = vld [vmem:[%s5014 + $0x3d8] sm:$0xff]
    %v5139 = vld [vmem:[%s5014 + $0x3e0] sm:$0xff]
    %v5140 = vld [vmem:[%s5014 + $0x3e8] sm:$0xff]
    %v5141 = vld [vmem:[%s5014 + $0x3f0] sm:$0xff]
    %v5142 = vld [vmem:[%s5014 + $0x3f8] sm:$0xff]
    %5143 = vmatprep.subr.mxu0 %v5076
    %5144 = vmatpush1.msra.mxu0 %v5075
    %5145 = vmatprep.subr.mxu0 %v5072
    %5146 = vmatpush1.msra.mxu0 %v5071
    %5147 = vmatprep.subr.mxu0 %v5068
    %5148 = vmatpush1.msra.mxu0 %v5067
    %5149 = vmatprep.subr.mxu0 %v5064
    %5150 = vmatpush1.msra.mxu0 %v5063
    %5151 = vmatprep.subr.mxu0 %v5060
    %5152 = vmatpush1.msra.mxu0 %v5059
    %5153 = vmatprep.subr.mxu0 %v5056
    %5154 = vmatpush1.msra.mxu0 %v5055
    %5155 = vmatprep.subr.mxu0 %v5052
    %5156 = vmatpush1.msra.mxu0 %v5051
    %5157 = vmatprep.subr.mxu0 %v5048
    %5158 = vmatpush1.msra.mxu0 %v5047
    %5159 = vmatprep.subr.mxu0 %v5044
    %5160 = vmatpush1.msra.mxu0 %v5043
    %5161 = vmatprep.subr.mxu0 %v5040
    %5162 = vmatpush1.msra.mxu0 %v5039
    %5163 = vmatprep.subr.mxu0 %v5036
    %5164 = vmatpush1.msra.mxu0 %v5035
    %5165 = vmatprep.subr.mxu0 %v5032
    %5166 = vmatpush1.msra.mxu0 %v5031
    %5167 = vmatprep.subr.mxu0 %v5028
    %5168 = vmatpush1.msra.mxu0 %v5027
    %5169 = vmatprep.subr.mxu0 %v5024
    %5170 = vmatpush1.msra.mxu0 %v5023
    %5171 = vmatprep.subr.mxu0 %v5020
    %5172 = vmatpush1.msra.mxu0 %v5019
    %5173 = vmatprep.subr.mxu0 %v5016
    %5174 = vmatpush1.msra.mxu0 %v5015
    %5175 = vmatprep.subr.mxu0 %v5140
    %5176 = vmatpush2.msra.mxu0 %v5139
    %5177 = vmatprep.subr.mxu0 %v5136
    %5178 = vmatpush2.msra.mxu0 %v5135
    %5179 = vmatprep.subr.mxu0 %v5132
    %5180 = vmatpush2.msra.mxu0 %v5131
    %5181 = vmatprep.subr.mxu0 %v5128
    %5182 = vmatpush2.msra.mxu0 %v5127
    %5183 = vmatprep.subr.mxu0 %v5124
    %5184 = vmatpush2.msra.mxu0 %v5123
    %5185 = vmatprep.subr.mxu0 %v5120
    %5186 = vmatpush2.msra.mxu0 %v5119
    %5187 = vmatprep.subr.mxu0 %v5116
    %5188 = vmatpush2.msra.mxu0 %v5115
    %5189 = vmatprep.subr.mxu0 %v5112
    %5190 = vmatpush2.msra.mxu0 %v5111
    %5191 = vmatprep.subr.mxu0 %v5108
    %5192 = vmatpush2.msra.mxu0 %v5107
    %5193 = vmatprep.subr.mxu0 %v5104
    %5194 = vmatpush2.msra.mxu0 %v5103
    %5195 = vmatprep.subr.mxu0 %v5100
    %5196 = vmatpush2.msra.mxu0 %v5099
    %5197 = vmatprep.subr.mxu0 %v5096
    %5198 = vmatpush2.msra.mxu0 %v5095
    %5199 = vmatprep.subr.mxu0 %v5092
    %5200 = vmatpush2.msra.mxu0 %v5091
    %5201 = vmatprep.subr.mxu0 %v5088
    %5202 = vmatpush2.msra.mxu0 %v5087
    %5203 = vmatprep.subr.mxu0 %v5084
    %5204 = vmatpush2.msra.mxu0 %v5083
    %5205 = vmatprep.subr.mxu0 %v5080
    %5206 = vmatpush2.msra.mxu0 %v5079
    %5207 = vmatprep.mubr.f32.mxu0 %v5013
    %5208 = vmatmul.mubr.f32.gmra.mxu0 %v5012
    %v5209 = vpop.f32.mrf.mxu0
    %v5210 = vadd.f32 0.0, %v5209
    %v5211 = vpop.f32.mrf.mxu0
    %v5212 = vadd.f32 0.0, %v5211
    %5213 = vdwg.mxu0
    %5214 = vmatprep.subr.mxu0 %v5078
    %5215 = vmatpush1.msra.mxu0 %v5077
    %5216 = vmatprep.subr.mxu0 %v5074
    %5217 = vmatpush1.msra.mxu0 %v5073
    %5218 = vmatprep.subr.mxu0 %v5070
    %5219 = vmatpush1.msra.mxu0 %v5069
    %5220 = vmatprep.subr.mxu0 %v5066
    %5221 = vmatpush1.msra.mxu0 %v5065
    %5222 = vmatprep.subr.mxu0 %v5062
    %5223 = vmatpush1.msra.mxu0 %v5061
    %5224 = vmatprep.subr.mxu0 %v5058
    %5225 = vmatpush1.msra.mxu0 %v5057
    %5226 = vmatprep.subr.mxu0 %v5054
    %5227 = vmatpush1.msra.mxu0 %v5053
    %5228 = vmatprep.subr.mxu0 %v5050
    %5229 = vmatpush1.msra.mxu0 %v5049
    %5230 = vmatprep.subr.mxu0 %v5046
    %5231 = vmatpush1.msra.mxu0 %v5045
    %5232 = vmatprep.subr.mxu0 %v5042
    %5233 = vmatpush1.msra.mxu0 %v5041
    %5234 = vmatprep.subr.mxu0 %v5038
    %5235 = vmatpush1.msra.mxu0 %v5037
    %5236 = vmatprep.subr.mxu0 %v5034
    %5237 = vmatpush1.msra.mxu0 %v5033
    %5238 = vmatprep.subr.mxu0 %v5030
    %5239 = vmatpush1.msra.mxu0 %v5029
    %5240 = vmatprep.subr.mxu0 %v5026
    %5241 = vmatpush1.msra.mxu0 %v5025
    %5242 = vmatprep.subr.mxu0 %v5022
    %5243 = vmatpush1.msra.mxu0 %v5021
    %5244 = vmatprep.subr.mxu0 %v5018
    %5245 = vmatpush1.msra.mxu0 %v5017
    %5246 = vmatprep.subr.mxu0 %v5142
    %5247 = vmatpush2.msra.mxu0 %v5141
    %5248 = vmatprep.subr.mxu0 %v5138
    %5249 = vmatpush2.msra.mxu0 %v5137
    %5250 = vmatprep.subr.mxu0 %v5134
    %5251 = vmatpush2.msra.mxu0 %v5133
    %5252 = vmatprep.subr.mxu0 %v5130
    %5253 = vmatpush2.msra.mxu0 %v5129
    %5254 = vmatprep.subr.mxu0 %v5126
    %5255 = vmatpush2.msra.mxu0 %v5125
    %5256 = vmatprep.subr.mxu0 %v5122
    %5257 = vmatpush2.msra.mxu0 %v5121
    %5258 = vmatprep.subr.mxu0 %v5118
    %5259 = vmatpush2.msra.mxu0 %v5117
    %5260 = vmatprep.subr.mxu0 %v5114
    %5261 = vmatpush2.msra.mxu0 %v5113
    %5262 = vmatprep.subr.mxu0 %v5110
    %5263 = vmatpush2.msra.mxu0 %v5109
    %5264 = vmatprep.subr.mxu0 %v5106
    %5265 = vmatpush2.msra.mxu0 %v5105
    %5266 = vmatprep.subr.mxu0 %v5102
    %5267 = vmatpush2.msra.mxu0 %v5101
    %5268 = vmatprep.subr.mxu0 %v5098
    %5269 = vmatpush2.msra.mxu0 %v5097
    %5270 = vmatprep.subr.mxu0 %v5094
    %5271 = vmatpush2.msra.mxu0 %v5093
    %5272 = vmatprep.subr.mxu0 %v5090
    %5273 = vmatpush2.msra.mxu0 %v5089
    %5274 = vmatprep.subr.mxu0 %v5086
    %5275 = vmatpush2.msra.mxu0 %v5085
    %5276 = vmatprep.subr.mxu0 %v5082
    %5277 = vmatpush2.msra.mxu0 %v5081
    %5278 = vmatprep.mubr.f32.mxu0 %v5013
    %5279 = vmatmul.mubr.f32.gmra.mxu0 %v5012
    %v5280 = vpop.f32.mrf.mxu0
    %v5281 = vadd.f32 0.0, %v5280
    %v5282 = vpop.f32.mrf.mxu0
    %v5283 = vadd.f32 0.0, %v5282
    %5284 = vdwg.mxu0
    %v5285 = vadd.f32 %v5008, %v5210
    %v5286 = vadd.f32 %v5009, %v5212
    %v5287 = vadd.f32 %v5010, %v5281
    %v5288 = vadd.f32 %v5011, %v5283
    %v5289 = vld [vmem:[#allocation2 + $0x80] sm:$0xff]
    %v5290 = vld [vmem:[#allocation2 + $0x88] sm:$0xff]
    %s5291 = scalar_lea.vmem [#allocation3], 8192
    %v5292 = vld [vmem:[%s5291] sm:$0xff]
    %v5293 = vld [vmem:[%s5291 + $0x8] sm:$0xff]
    %v5294 = vld [vmem:[%s5291 + $0x10] sm:$0xff]
    %v5295 = vld [vmem:[%s5291 + $0x18] sm:$0xff]
    %v5296 = vld [vmem:[%s5291 + $0x20] sm:$0xff]
    %v5297 = vld [vmem:[%s5291 + $0x28] sm:$0xff]
    %v5298 = vld [vmem:[%s5291 + $0x30] sm:$0xff]
    %v5299 = vld [vmem:[%s5291 + $0x38] sm:$0xff]
    %v5300 = vld [vmem:[%s5291 + $0x40] sm:$0xff]
    %v5301 = vld [vmem:[%s5291 + $0x48] sm:$0xff]
    %v5302 = vld [vmem:[%s5291 + $0x50] sm:$0xff]
    %v5303 = vld [vmem:[%s5291 + $0x58] sm:$0xff]
    %v5304 = vld [vmem:[%s5291 + $0x60] sm:$0xff]
    %v5305 = vld [vmem:[%s5291 + $0x68] sm:$0xff]
    %v5306 = vld [vmem:[%s5291 + $0x70] sm:$0xff]
    %v5307 = vld [vmem:[%s5291 + $0x78] sm:$0xff]
    %v5308 = vld [vmem:[%s5291 + $0x80] sm:$0xff]
    %v5309 = vld [vmem:[%s5291 + $0x88] sm:$0xff]
    %v5310 = vld [vmem:[%s5291 + $0x90] sm:$0xff]
    %v5311 = vld [vmem:[%s5291 + $0x98] sm:$0xff]
    %v5312 = vld [vmem:[%s5291 + $0xa0] sm:$0xff]
    %v5313 = vld [vmem:[%s5291 + $0xa8] sm:$0xff]
    %v5314 = vld [vmem:[%s5291 + $0xb0] sm:$0xff]
    %v5315 = vld [vmem:[%s5291 + $0xb8] sm:$0xff]
    %v5316 = vld [vmem:[%s5291 + $0xc0] sm:$0xff]
    %v5317 = vld [vmem:[%s5291 + $0xc8] sm:$0xff]
    %v5318 = vld [vmem:[%s5291 + $0xd0] sm:$0xff]
    %v5319 = vld [vmem:[%s5291 + $0xd8] sm:$0xff]
    %v5320 = vld [vmem:[%s5291 + $0xe0] sm:$0xff]
    %v5321 = vld [vmem:[%s5291 + $0xe8] sm:$0xff]
    %v5322 = vld [vmem:[%s5291 + $0xf0] sm:$0xff]
    %v5323 = vld [vmem:[%s5291 + $0xf8] sm:$0xff]
    %v5324 = vld [vmem:[%s5291 + $0x100] sm:$0xff]
    %v5325 = vld [vmem:[%s5291 + $0x108] sm:$0xff]
    %v5326 = vld [vmem:[%s5291 + $0x110] sm:$0xff]
    %v5327 = vld [vmem:[%s5291 + $0x118] sm:$0xff]
    %v5328 = vld [vmem:[%s5291 + $0x120] sm:$0xff]
    %v5329 = vld [vmem:[%s5291 + $0x128] sm:$0xff]
    %v5330 = vld [vmem:[%s5291 + $0x130] sm:$0xff]
    %v5331 = vld [vmem:[%s5291 + $0x138] sm:$0xff]
    %v5332 = vld [vmem:[%s5291 + $0x140] sm:$0xff]
    %v5333 = vld [vmem:[%s5291 + $0x148] sm:$0xff]
    %v5334 = vld [vmem:[%s5291 + $0x150] sm:$0xff]
    %v5335 = vld [vmem:[%s5291 + $0x158] sm:$0xff]
    %v5336 = vld [vmem:[%s5291 + $0x160] sm:$0xff]
    %v5337 = vld [vmem:[%s5291 + $0x168] sm:$0xff]
    %v5338 = vld [vmem:[%s5291 + $0x170] sm:$0xff]
    %v5339 = vld [vmem:[%s5291 + $0x178] sm:$0xff]
    %v5340 = vld [vmem:[%s5291 + $0x180] sm:$0xff]
    %v5341 = vld [vmem:[%s5291 + $0x188] sm:$0xff]
    %v5342 = vld [vmem:[%s5291 + $0x190] sm:$0xff]
    %v5343 = vld [vmem:[%s5291 + $0x198] sm:$0xff]
    %v5344 = vld [vmem:[%s5291 + $0x1a0] sm:$0xff]
    %v5345 = vld [vmem:[%s5291 + $0x1a8] sm:$0xff]
    %v5346 = vld [vmem:[%s5291 + $0x1b0] sm:$0xff]
    %v5347 = vld [vmem:[%s5291 + $0x1b8] sm:$0xff]
    %v5348 = vld [vmem:[%s5291 + $0x1c0] sm:$0xff]
    %v5349 = vld [vmem:[%s5291 + $0x1c8] sm:$0xff]
    %v5350 = vld [vmem:[%s5291 + $0x1d0] sm:$0xff]
    %v5351 = vld [vmem:[%s5291 + $0x1d8] sm:$0xff]
    %v5352 = vld [vmem:[%s5291 + $0x1e0] sm:$0xff]
    %v5353 = vld [vmem:[%s5291 + $0x1e8] sm:$0xff]
    %v5354 = vld [vmem:[%s5291 + $0x1f0] sm:$0xff]
    %v5355 = vld [vmem:[%s5291 + $0x1f8] sm:$0xff]
    %v5356 = vld [vmem:[%s5291 + $0x200] sm:$0xff]
    %v5357 = vld [vmem:[%s5291 + $0x208] sm:$0xff]
    %v5358 = vld [vmem:[%s5291 + $0x210] sm:$0xff]
    %v5359 = vld [vmem:[%s5291 + $0x218] sm:$0xff]
    %v5360 = vld [vmem:[%s5291 + $0x220] sm:$0xff]
    %v5361 = vld [vmem:[%s5291 + $0x228] sm:$0xff]
    %v5362 = vld [vmem:[%s5291 + $0x230] sm:$0xff]
    %v5363 = vld [vmem:[%s5291 + $0x238] sm:$0xff]
    %v5364 = vld [vmem:[%s5291 + $0x240] sm:$0xff]
    %v5365 = vld [vmem:[%s5291 + $0x248] sm:$0xff]
    %v5366 = vld [vmem:[%s5291 + $0x250] sm:$0xff]
    %v5367 = vld [vmem:[%s5291 + $0x258] sm:$0xff]
    %v5368 = vld [vmem:[%s5291 + $0x260] sm:$0xff]
    %v5369 = vld [vmem:[%s5291 + $0x268] sm:$0xff]
    %v5370 = vld [vmem:[%s5291 + $0x270] sm:$0xff]
    %v5371 = vld [vmem:[%s5291 + $0x278] sm:$0xff]
    %v5372 = vld [vmem:[%s5291 + $0x280] sm:$0xff]
    %v5373 = vld [vmem:[%s5291 + $0x288] sm:$0xff]
    %v5374 = vld [vmem:[%s5291 + $0x290] sm:$0xff]
    %v5375 = vld [vmem:[%s5291 + $0x298] sm:$0xff]
    %v5376 = vld [vmem:[%s5291 + $0x2a0] sm:$0xff]
    %v5377 = vld [vmem:[%s5291 + $0x2a8] sm:$0xff]
    %v5378 = vld [vmem:[%s5291 + $0x2b0] sm:$0xff]
    %v5379 = vld [vmem:[%s5291 + $0x2b8] sm:$0xff]
    %v5380 = vld [vmem:[%s5291 + $0x2c0] sm:$0xff]
    %v5381 = vld [vmem:[%s5291 + $0x2c8] sm:$0xff]
    %v5382 = vld [vmem:[%s5291 + $0x2d0] sm:$0xff]
    %v5383 = vld [vmem:[%s5291 + $0x2d8] sm:$0xff]
    %v5384 = vld [vmem:[%s5291 + $0x2e0] sm:$0xff]
    %v5385 = vld [vmem:[%s5291 + $0x2e8] sm:$0xff]
    %v5386 = vld [vmem:[%s5291 + $0x2f0] sm:$0xff]
    %v5387 = vld [vmem:[%s5291 + $0x2f8] sm:$0xff]
    %v5388 = vld [vmem:[%s5291 + $0x300] sm:$0xff]
    %v5389 = vld [vmem:[%s5291 + $0x308] sm:$0xff]
    %v5390 = vld [vmem:[%s5291 + $0x310] sm:$0xff]
    %v5391 = vld [vmem:[%s5291 + $0x318] sm:$0xff]
    %v5392 = vld [vmem:[%s5291 + $0x320] sm:$0xff]
    %v5393 = vld [vmem:[%s5291 + $0x328] sm:$0xff]
    %v5394 = vld [vmem:[%s5291 + $0x330] sm:$0xff]
    %v5395 = vld [vmem:[%s5291 + $0x338] sm:$0xff]
    %v5396 = vld [vmem:[%s5291 + $0x340] sm:$0xff]
    %v5397 = vld [vmem:[%s5291 + $0x348] sm:$0xff]
    %v5398 = vld [vmem:[%s5291 + $0x350] sm:$0xff]
    %v5399 = vld [vmem:[%s5291 + $0x358] sm:$0xff]
    %v5400 = vld [vmem:[%s5291 + $0x360] sm:$0xff]
    %v5401 = vld [vmem:[%s5291 + $0x368] sm:$0xff]
    %v5402 = vld [vmem:[%s5291 + $0x370] sm:$0xff]
    %v5403 = vld [vmem:[%s5291 + $0x378] sm:$0xff]
    %v5404 = vld [vmem:[%s5291 + $0x380] sm:$0xff]
    %v5405 = vld [vmem:[%s5291 + $0x388] sm:$0xff]
    %v5406 = vld [vmem:[%s5291 + $0x390] sm:$0xff]
    %v5407 = vld [vmem:[%s5291 + $0x398] sm:$0xff]
    %v5408 = vld [vmem:[%s5291 + $0x3a0] sm:$0xff]
    %v5409 = vld [vmem:[%s5291 + $0x3a8] sm:$0xff]
    %v5410 = vld [vmem:[%s5291 + $0x3b0] sm:$0xff]
    %v5411 = vld [vmem:[%s5291 + $0x3b8] sm:$0xff]
    %v5412 = vld [vmem:[%s5291 + $0x3c0] sm:$0xff]
    %v5413 = vld [vmem:[%s5291 + $0x3c8] sm:$0xff]
    %v5414 = vld [vmem:[%s5291 + $0x3d0] sm:$0xff]
    %v5415 = vld [vmem:[%s5291 + $0x3d8] sm:$0xff]
    %v5416 = vld [vmem:[%s5291 + $0x3e0] sm:$0xff]
    %v5417 = vld [vmem:[%s5291 + $0x3e8] sm:$0xff]
    %v5418 = vld [vmem:[%s5291 + $0x3f0] sm:$0xff]
    %v5419 = vld [vmem:[%s5291 + $0x3f8] sm:$0xff]
    %5420 = vmatprep.subr.mxu0 %v5353
    %5421 = vmatpush1.msra.mxu0 %v5352
    %5422 = vmatprep.subr.mxu0 %v5349
    %5423 = vmatpush1.msra.mxu0 %v5348
    %5424 = vmatprep.subr.mxu0 %v5345
    %5425 = vmatpush1.msra.mxu0 %v5344
    %5426 = vmatprep.subr.mxu0 %v5341
    %5427 = vmatpush1.msra.mxu0 %v5340
    %5428 = vmatprep.subr.mxu0 %v5337
    %5429 = vmatpush1.msra.mxu0 %v5336
    %5430 = vmatprep.subr.mxu0 %v5333
    %5431 = vmatpush1.msra.mxu0 %v5332
    %5432 = vmatprep.subr.mxu0 %v5329
    %5433 = vmatpush1.msra.mxu0 %v5328
    %5434 = vmatprep.subr.mxu0 %v5325
    %5435 = vmatpush1.msra.mxu0 %v5324
    %5436 = vmatprep.subr.mxu0 %v5321
    %5437 = vmatpush1.msra.mxu0 %v5320
    %5438 = vmatprep.subr.mxu0 %v5317
    %5439 = vmatpush1.msra.mxu0 %v5316
    %5440 = vmatprep.subr.mxu0 %v5313
    %5441 = vmatpush1.msra.mxu0 %v5312
    %5442 = vmatprep.subr.mxu0 %v5309
    %5443 = vmatpush1.msra.mxu0 %v5308
    %5444 = vmatprep.subr.mxu0 %v5305
    %5445 = vmatpush1.msra.mxu0 %v5304
    %5446 = vmatprep.subr.mxu0 %v5301
    %5447 = vmatpush1.msra.mxu0 %v5300
    %5448 = vmatprep.subr.mxu0 %v5297
    %5449 = vmatpush1.msra.mxu0 %v5296
    %5450 = vmatprep.subr.mxu0 %v5293
    %5451 = vmatpush1.msra.mxu0 %v5292
    %5452 = vmatprep.subr.mxu0 %v5417
    %5453 = vmatpush2.msra.mxu0 %v5416
    %5454 = vmatprep.subr.mxu0 %v5413
    %5455 = vmatpush2.msra.mxu0 %v5412
    %5456 = vmatprep.subr.mxu0 %v5409
    %5457 = vmatpush2.msra.mxu0 %v5408
    %5458 = vmatprep.subr.mxu0 %v5405
    %5459 = vmatpush2.msra.mxu0 %v5404
    %5460 = vmatprep.subr.mxu0 %v5401
    %5461 = vmatpush2.msra.mxu0 %v5400
    %5462 = vmatprep.subr.mxu0 %v5397
    %5463 = vmatpush2.msra.mxu0 %v5396
    %5464 = vmatprep.subr.mxu0 %v5393
    %5465 = vmatpush2.msra.mxu0 %v5392
    %5466 = vmatprep.subr.mxu0 %v5389
    %5467 = vmatpush2.msra.mxu0 %v5388
    %5468 = vmatprep.subr.mxu0 %v5385
    %5469 = vmatpush2.msra.mxu0 %v5384
    %5470 = vmatprep.subr.mxu0 %v5381
    %5471 = vmatpush2.msra.mxu0 %v5380
    %5472 = vmatprep.subr.mxu0 %v5377
    %5473 = vmatpush2.msra.mxu0 %v5376
    %5474 = vmatprep.subr.mxu0 %v5373
    %5475 = vmatpush2.msra.mxu0 %v5372
    %5476 = vmatprep.subr.mxu0 %v5369
    %5477 = vmatpush2.msra.mxu0 %v5368
    %5478 = vmatprep.subr.mxu0 %v5365
    %5479 = vmatpush2.msra.mxu0 %v5364
    %5480 = vmatprep.subr.mxu0 %v5361
    %5481 = vmatpush2.msra.mxu0 %v5360
    %5482 = vmatprep.subr.mxu0 %v5357
    %5483 = vmatpush2.msra.mxu0 %v5356
    %5484 = vmatprep.mubr.f32.mxu0 %v5290
    %5485 = vmatmul.mubr.f32.gmra.mxu0 %v5289
    %v5486 = vpop.f32.mrf.mxu0
    %v5487 = vadd.f32 0.0, %v5486
    %v5488 = vpop.f32.mrf.mxu0
    %v5489 = vadd.f32 0.0, %v5488
    %5490 = vdwg.mxu0
    %5491 = vmatprep.subr.mxu0 %v5355
    %5492 = vmatpush1.msra.mxu0 %v5354
    %5493 = vmatprep.subr.mxu0 %v5351
    %5494 = vmatpush1.msra.mxu0 %v5350
    %5495 = vmatprep.subr.mxu0 %v5347
    %5496 = vmatpush1.msra.mxu0 %v5346
    %5497 = vmatprep.subr.mxu0 %v5343
    %5498 = vmatpush1.msra.mxu0 %v5342
    %5499 = vmatprep.subr.mxu0 %v5339
    %5500 = vmatpush1.msra.mxu0 %v5338
    %5501 = vmatprep.subr.mxu0 %v5335
    %5502 = vmatpush1.msra.mxu0 %v5334
    %5503 = vmatprep.subr.mxu0 %v5331
    %5504 = vmatpush1.msra.mxu0 %v5330
    %5505 = vmatprep.subr.mxu0 %v5327
    %5506 = vmatpush1.msra.mxu0 %v5326
    %5507 = vmatprep.subr.mxu0 %v5323
    %5508 = vmatpush1.msra.mxu0 %v5322
    %5509 = vmatprep.subr.mxu0 %v5319
    %5510 = vmatpush1.msra.mxu0 %v5318
    %5511 = vmatprep.subr.mxu0 %v5315
    %5512 = vmatpush1.msra.mxu0 %v5314
    %5513 = vmatprep.subr.mxu0 %v5311
    %5514 = vmatpush1.msra.mxu0 %v5310
    %5515 = vmatprep.subr.mxu0 %v5307
    %5516 = vmatpush1.msra.mxu0 %v5306
    %5517 = vmatprep.subr.mxu0 %v5303
    %5518 = vmatpush1.msra.mxu0 %v5302
    %5519 = vmatprep.subr.mxu0 %v5299
    %5520 = vmatpush1.msra.mxu0 %v5298
    %5521 = vmatprep.subr.mxu0 %v5295
    %5522 = vmatpush1.msra.mxu0 %v5294
    %5523 = vmatprep.subr.mxu0 %v5419
    %5524 = vmatpush2.msra.mxu0 %v5418
    %5525 = vmatprep.subr.mxu0 %v5415
    %5526 = vmatpush2.msra.mxu0 %v5414
    %5527 = vmatprep.subr.mxu0 %v5411
    %5528 = vmatpush2.msra.mxu0 %v5410
    %5529 = vmatprep.subr.mxu0 %v5407
    %5530 = vmatpush2.msra.mxu0 %v5406
    %5531 = vmatprep.subr.mxu0 %v5403
    %5532 = vmatpush2.msra.mxu0 %v5402
    %5533 = vmatprep.subr.mxu0 %v5399
    %5534 = vmatpush2.msra.mxu0 %v5398
    %5535 = vmatprep.subr.mxu0 %v5395
    %5536 = vmatpush2.msra.mxu0 %v5394
    %5537 = vmatprep.subr.mxu0 %v5391
    %5538 = vmatpush2.msra.mxu0 %v5390
    %5539 = vmatprep.subr.mxu0 %v5387
    %5540 = vmatpush2.msra.mxu0 %v5386
    %5541 = vmatprep.subr.mxu0 %v5383
    %5542 = vmatpush2.msra.mxu0 %v5382
    %5543 = vmatprep.subr.mxu0 %v5379
    %5544 = vmatpush2.msra.mxu0 %v5378
    %5545 = vmatprep.subr.mxu0 %v5375
    %5546 = vmatpush2.msra.mxu0 %v5374
    %5547 = vmatprep.subr.mxu0 %v5371
    %5548 = vmatpush2.msra.mxu0 %v5370
    %5549 = vmatprep.subr.mxu0 %v5367
    %5550 = vmatpush2.msra.mxu0 %v5366
    %5551 = vmatprep.subr.mxu0 %v5363
    %5552 = vmatpush2.msra.mxu0 %v5362
    %5553 = vmatprep.subr.mxu0 %v5359
    %5554 = vmatpush2.msra.mxu0 %v5358
    %5555 = vmatprep.mubr.f32.mxu0 %v5290
    %5556 = vmatmul.mubr.f32.gmra.mxu0 %v5289
    %v5557 = vpop.f32.mrf.mxu0
    %v5558 = vadd.f32 0.0, %v5557
    %v5559 = vpop.f32.mrf.mxu0
    %v5560 = vadd.f32 0.0, %v5559
    %5561 = vdwg.mxu0
    %v5562 = vadd.f32 %v5285, %v5487
    %v5563 = vadd.f32 %v5286, %v5489
    %v5564 = vadd.f32 %v5287, %v5558
    %v5565 = vadd.f32 %v5288, %v5560
    %v5566 = vld [vmem:[#allocation2 + $0x90] sm:$0xff]
    %v5567 = vld [vmem:[#allocation2 + $0x98] sm:$0xff]
    %s5568 = scalar_lea.vmem [#allocation3], 9216
    %v5569 = vld [vmem:[%s5568] sm:$0xff]
    %v5570 = vld [vmem:[%s5568 + $0x8] sm:$0xff]
    %v5571 = vld [vmem:[%s5568 + $0x10] sm:$0xff]
    %v5572 = vld [vmem:[%s5568 + $0x18] sm:$0xff]
    %v5573 = vld [vmem:[%s5568 + $0x20] sm:$0xff]
    %v5574 = vld [vmem:[%s5568 + $0x28] sm:$0xff]
    %v5575 = vld [vmem:[%s5568 + $0x30] sm:$0xff]
    %v5576 = vld [vmem:[%s5568 + $0x38] sm:$0xff]
    %v5577 = vld [vmem:[%s5568 + $0x40] sm:$0xff]
    %v5578 = vld [vmem:[%s5568 + $0x48] sm:$0xff]
    %v5579 = vld [vmem:[%s5568 + $0x50] sm:$0xff]
    %v5580 = vld [vmem:[%s5568 + $0x58] sm:$0xff]
    %v5581 = vld [vmem:[%s5568 + $0x60] sm:$0xff]
    %v5582 = vld [vmem:[%s5568 + $0x68] sm:$0xff]
    %v5583 = vld [vmem:[%s5568 + $0x70] sm:$0xff]
    %v5584 = vld [vmem:[%s5568 + $0x78] sm:$0xff]
    %v5585 = vld [vmem:[%s5568 + $0x80] sm:$0xff]
    %v5586 = vld [vmem:[%s5568 + $0x88] sm:$0xff]
    %v5587 = vld [vmem:[%s5568 + $0x90] sm:$0xff]
    %v5588 = vld [vmem:[%s5568 + $0x98] sm:$0xff]
    %v5589 = vld [vmem:[%s5568 + $0xa0] sm:$0xff]
    %v5590 = vld [vmem:[%s5568 + $0xa8] sm:$0xff]
    %v5591 = vld [vmem:[%s5568 + $0xb0] sm:$0xff]
    %v5592 = vld [vmem:[%s5568 + $0xb8] sm:$0xff]
    %v5593 = vld [vmem:[%s5568 + $0xc0] sm:$0xff]
    %v5594 = vld [vmem:[%s5568 + $0xc8] sm:$0xff]
    %v5595 = vld [vmem:[%s5568 + $0xd0] sm:$0xff]
    %v5596 = vld [vmem:[%s5568 + $0xd8] sm:$0xff]
    %v5597 = vld [vmem:[%s5568 + $0xe0] sm:$0xff]
    %v5598 = vld [vmem:[%s5568 + $0xe8] sm:$0xff]
    %v5599 = vld [vmem:[%s5568 + $0xf0] sm:$0xff]
    %v5600 = vld [vmem:[%s5568 + $0xf8] sm:$0xff]
    %v5601 = vld [vmem:[%s5568 + $0x100] sm:$0xff]
    %v5602 = vld [vmem:[%s5568 + $0x108] sm:$0xff]
    %v5603 = vld [vmem:[%s5568 + $0x110] sm:$0xff]
    %v5604 = vld [vmem:[%s5568 + $0x118] sm:$0xff]
    %v5605 = vld [vmem:[%s5568 + $0x120] sm:$0xff]
    %v5606 = vld [vmem:[%s5568 + $0x128] sm:$0xff]
    %v5607 = vld [vmem:[%s5568 + $0x130] sm:$0xff]
    %v5608 = vld [vmem:[%s5568 + $0x138] sm:$0xff]
    %v5609 = vld [vmem:[%s5568 + $0x140] sm:$0xff]
    %v5610 = vld [vmem:[%s5568 + $0x148] sm:$0xff]
    %v5611 = vld [vmem:[%s5568 + $0x150] sm:$0xff]
    %v5612 = vld [vmem:[%s5568 + $0x158] sm:$0xff]
    %v5613 = vld [vmem:[%s5568 + $0x160] sm:$0xff]
    %v5614 = vld [vmem:[%s5568 + $0x168] sm:$0xff]
    %v5615 = vld [vmem:[%s5568 + $0x170] sm:$0xff]
    %v5616 = vld [vmem:[%s5568 + $0x178] sm:$0xff]
    %v5617 = vld [vmem:[%s5568 + $0x180] sm:$0xff]
    %v5618 = vld [vmem:[%s5568 + $0x188] sm:$0xff]
    %v5619 = vld [vmem:[%s5568 + $0x190] sm:$0xff]
    %v5620 = vld [vmem:[%s5568 + $0x198] sm:$0xff]
    %v5621 = vld [vmem:[%s5568 + $0x1a0] sm:$0xff]
    %v5622 = vld [vmem:[%s5568 + $0x1a8] sm:$0xff]
    %v5623 = vld [vmem:[%s5568 + $0x1b0] sm:$0xff]
    %v5624 = vld [vmem:[%s5568 + $0x1b8] sm:$0xff]
    %v5625 = vld [vmem:[%s5568 + $0x1c0] sm:$0xff]
    %v5626 = vld [vmem:[%s5568 + $0x1c8] sm:$0xff]
    %v5627 = vld [vmem:[%s5568 + $0x1d0] sm:$0xff]
    %v5628 = vld [vmem:[%s5568 + $0x1d8] sm:$0xff]
    %v5629 = vld [vmem:[%s5568 + $0x1e0] sm:$0xff]
    %v5630 = vld [vmem:[%s5568 + $0x1e8] sm:$0xff]
    %v5631 = vld [vmem:[%s5568 + $0x1f0] sm:$0xff]
    %v5632 = vld [vmem:[%s5568 + $0x1f8] sm:$0xff]
    %v5633 = vld [vmem:[%s5568 + $0x200] sm:$0xff]
    %v5634 = vld [vmem:[%s5568 + $0x208] sm:$0xff]
    %v5635 = vld [vmem:[%s5568 + $0x210] sm:$0xff]
    %v5636 = vld [vmem:[%s5568 + $0x218] sm:$0xff]
    %v5637 = vld [vmem:[%s5568 + $0x220] sm:$0xff]
    %v5638 = vld [vmem:[%s5568 + $0x228] sm:$0xff]
    %v5639 = vld [vmem:[%s5568 + $0x230] sm:$0xff]
    %v5640 = vld [vmem:[%s5568 + $0x238] sm:$0xff]
    %v5641 = vld [vmem:[%s5568 + $0x240] sm:$0xff]
    %v5642 = vld [vmem:[%s5568 + $0x248] sm:$0xff]
    %v5643 = vld [vmem:[%s5568 + $0x250] sm:$0xff]
    %v5644 = vld [vmem:[%s5568 + $0x258] sm:$0xff]
    %v5645 = vld [vmem:[%s5568 + $0x260] sm:$0xff]
    %v5646 = vld [vmem:[%s5568 + $0x268] sm:$0xff]
    %v5647 = vld [vmem:[%s5568 + $0x270] sm:$0xff]
    %v5648 = vld [vmem:[%s5568 + $0x278] sm:$0xff]
    %v5649 = vld [vmem:[%s5568 + $0x280] sm:$0xff]
    %v5650 = vld [vmem:[%s5568 + $0x288] sm:$0xff]
    %v5651 = vld [vmem:[%s5568 + $0x290] sm:$0xff]
    %v5652 = vld [vmem:[%s5568 + $0x298] sm:$0xff]
    %v5653 = vld [vmem:[%s5568 + $0x2a0] sm:$0xff]
    %v5654 = vld [vmem:[%s5568 + $0x2a8] sm:$0xff]
    %v5655 = vld [vmem:[%s5568 + $0x2b0] sm:$0xff]
    %v5656 = vld [vmem:[%s5568 + $0x2b8] sm:$0xff]
    %v5657 = vld [vmem:[%s5568 + $0x2c0] sm:$0xff]
    %v5658 = vld [vmem:[%s5568 + $0x2c8] sm:$0xff]
    %v5659 = vld [vmem:[%s5568 + $0x2d0] sm:$0xff]
    %v5660 = vld [vmem:[%s5568 + $0x2d8] sm:$0xff]
    %v5661 = vld [vmem:[%s5568 + $0x2e0] sm:$0xff]
    %v5662 = vld [vmem:[%s5568 + $0x2e8] sm:$0xff]
    %v5663 = vld [vmem:[%s5568 + $0x2f0] sm:$0xff]
    %v5664 = vld [vmem:[%s5568 + $0x2f8] sm:$0xff]
    %v5665 = vld [vmem:[%s5568 + $0x300] sm:$0xff]
    %v5666 = vld [vmem:[%s5568 + $0x308] sm:$0xff]
    %v5667 = vld [vmem:[%s5568 + $0x310] sm:$0xff]
    %v5668 = vld [vmem:[%s5568 + $0x318] sm:$0xff]
    %v5669 = vld [vmem:[%s5568 + $0x320] sm:$0xff]
    %v5670 = vld [vmem:[%s5568 + $0x328] sm:$0xff]
    %v5671 = vld [vmem:[%s5568 + $0x330] sm:$0xff]
    %v5672 = vld [vmem:[%s5568 + $0x338] sm:$0xff]
    %v5673 = vld [vmem:[%s5568 + $0x340] sm:$0xff]
    %v5674 = vld [vmem:[%s5568 + $0x348] sm:$0xff]
    %v5675 = vld [vmem:[%s5568 + $0x350] sm:$0xff]
    %v5676 = vld [vmem:[%s5568 + $0x358] sm:$0xff]
    %v5677 = vld [vmem:[%s5568 + $0x360] sm:$0xff]
    %v5678 = vld [vmem:[%s5568 + $0x368] sm:$0xff]
    %v5679 = vld [vmem:[%s5568 + $0x370] sm:$0xff]
    %v5680 = vld [vmem:[%s5568 + $0x378] sm:$0xff]
    %v5681 = vld [vmem:[%s5568 + $0x380] sm:$0xff]
    %v5682 = vld [vmem:[%s5568 + $0x388] sm:$0xff]
    %v5683 = vld [vmem:[%s5568 + $0x390] sm:$0xff]
    %v5684 = vld [vmem:[%s5568 + $0x398] sm:$0xff]
    %v5685 = vld [vmem:[%s5568 + $0x3a0] sm:$0xff]
    %v5686 = vld [vmem:[%s5568 + $0x3a8] sm:$0xff]
    %v5687 = vld [vmem:[%s5568 + $0x3b0] sm:$0xff]
    %v5688 = vld [vmem:[%s5568 + $0x3b8] sm:$0xff]
    %v5689 = vld [vmem:[%s5568 + $0x3c0] sm:$0xff]
    %v5690 = vld [vmem:[%s5568 + $0x3c8] sm:$0xff]
    %v5691 = vld [vmem:[%s5568 + $0x3d0] sm:$0xff]
    %v5692 = vld [vmem:[%s5568 + $0x3d8] sm:$0xff]
    %v5693 = vld [vmem:[%s5568 + $0x3e0] sm:$0xff]
    %v5694 = vld [vmem:[%s5568 + $0x3e8] sm:$0xff]
    %v5695 = vld [vmem:[%s5568 + $0x3f0] sm:$0xff]
    %v5696 = vld [vmem:[%s5568 + $0x3f8] sm:$0xff]
    %5697 = vmatprep.subr.mxu0 %v5630
    %5698 = vmatpush1.msra.mxu0 %v5629
    %5699 = vmatprep.subr.mxu0 %v5626
    %5700 = vmatpush1.msra.mxu0 %v5625
    %5701 = vmatprep.subr.mxu0 %v5622
    %5702 = vmatpush1.msra.mxu0 %v5621
    %5703 = vmatprep.subr.mxu0 %v5618
    %5704 = vmatpush1.msra.mxu0 %v5617
    %5705 = vmatprep.subr.mxu0 %v5614
    %5706 = vmatpush1.msra.mxu0 %v5613
    %5707 = vmatprep.subr.mxu0 %v5610
    %5708 = vmatpush1.msra.mxu0 %v5609
    %5709 = vmatprep.subr.mxu0 %v5606
    %5710 = vmatpush1.msra.mxu0 %v5605
    %5711 = vmatprep.subr.mxu0 %v5602
    %5712 = vmatpush1.msra.mxu0 %v5601
    %5713 = vmatprep.subr.mxu0 %v5598
    %5714 = vmatpush1.msra.mxu0 %v5597
    %5715 = vmatprep.subr.mxu0 %v5594
    %5716 = vmatpush1.msra.mxu0 %v5593
    %5717 = vmatprep.subr.mxu0 %v5590
    %5718 = vmatpush1.msra.mxu0 %v5589
    %5719 = vmatprep.subr.mxu0 %v5586
    %5720 = vmatpush1.msra.mxu0 %v5585
    %5721 = vmatprep.subr.mxu0 %v5582
    %5722 = vmatpush1.msra.mxu0 %v5581
    %5723 = vmatprep.subr.mxu0 %v5578
    %5724 = vmatpush1.msra.mxu0 %v5577
    %5725 = vmatprep.subr.mxu0 %v5574
    %5726 = vmatpush1.msra.mxu0 %v5573
    %5727 = vmatprep.subr.mxu0 %v5570
    %5728 = vmatpush1.msra.mxu0 %v5569
    %5729 = vmatprep.subr.mxu0 %v5694
    %5730 = vmatpush2.msra.mxu0 %v5693
    %5731 = vmatprep.subr.mxu0 %v5690
    %5732 = vmatpush2.msra.mxu0 %v5689
    %5733 = vmatprep.subr.mxu0 %v5686
    %5734 = vmatpush2.msra.mxu0 %v5685
    %5735 = vmatprep.subr.mxu0 %v5682
    %5736 = vmatpush2.msra.mxu0 %v5681
    %5737 = vmatprep.subr.mxu0 %v5678
    %5738 = vmatpush2.msra.mxu0 %v5677
    %5739 = vmatprep.subr.mxu0 %v5674
    %5740 = vmatpush2.msra.mxu0 %v5673
    %5741 = vmatprep.subr.mxu0 %v5670
    %5742 = vmatpush2.msra.mxu0 %v5669
    %5743 = vmatprep.subr.mxu0 %v5666
    %5744 = vmatpush2.msra.mxu0 %v5665
    %5745 = vmatprep.subr.mxu0 %v5662
    %5746 = vmatpush2.msra.mxu0 %v5661
    %5747 = vmatprep.subr.mxu0 %v5658
    %5748 = vmatpush2.msra.mxu0 %v5657
    %5749 = vmatprep.subr.mxu0 %v5654
    %5750 = vmatpush2.msra.mxu0 %v5653
    %5751 = vmatprep.subr.mxu0 %v5650
    %5752 = vmatpush2.msra.mxu0 %v5649
    %5753 = vmatprep.subr.mxu0 %v5646
    %5754 = vmatpush2.msra.mxu0 %v5645
    %5755 = vmatprep.subr.mxu0 %v5642
    %5756 = vmatpush2.msra.mxu0 %v5641
    %5757 = vmatprep.subr.mxu0 %v5638
    %5758 = vmatpush2.msra.mxu0 %v5637
    %5759 = vmatprep.subr.mxu0 %v5634
    %5760 = vmatpush2.msra.mxu0 %v5633
    %5761 = vmatprep.mubr.f32.mxu0 %v5567
    %5762 = vmatmul.mubr.f32.gmra.mxu0 %v5566
    %v5763 = vpop.f32.mrf.mxu0
    %v5764 = vadd.f32 0.0, %v5763
    %v5765 = vpop.f32.mrf.mxu0
    %v5766 = vadd.f32 0.0, %v5765
    %5767 = vdwg.mxu0
    %5768 = vmatprep.subr.mxu0 %v5632
    %5769 = vmatpush1.msra.mxu0 %v5631
    %5770 = vmatprep.subr.mxu0 %v5628
    %5771 = vmatpush1.msra.mxu0 %v5627
    %5772 = vmatprep.subr.mxu0 %v5624
    %5773 = vmatpush1.msra.mxu0 %v5623
    %5774 = vmatprep.subr.mxu0 %v5620
    %5775 = vmatpush1.msra.mxu0 %v5619
    %5776 = vmatprep.subr.mxu0 %v5616
    %5777 = vmatpush1.msra.mxu0 %v5615
    %5778 = vmatprep.subr.mxu0 %v5612
    %5779 = vmatpush1.msra.mxu0 %v5611
    %5780 = vmatprep.subr.mxu0 %v5608
    %5781 = vmatpush1.msra.mxu0 %v5607
    %5782 = vmatprep.subr.mxu0 %v5604
    %5783 = vmatpush1.msra.mxu0 %v5603
    %5784 = vmatprep.subr.mxu0 %v5600
    %5785 = vmatpush1.msra.mxu0 %v5599
    %5786 = vmatprep.subr.mxu0 %v5596
    %5787 = vmatpush1.msra.mxu0 %v5595
    %5788 = vmatprep.subr.mxu0 %v5592
    %5789 = vmatpush1.msra.mxu0 %v5591
    %5790 = vmatprep.subr.mxu0 %v5588
    %5791 = vmatpush1.msra.mxu0 %v5587
    %5792 = vmatprep.subr.mxu0 %v5584
    %5793 = vmatpush1.msra.mxu0 %v5583
    %5794 = vmatprep.subr.mxu0 %v5580
    %5795 = vmatpush1.msra.mxu0 %v5579
    %5796 = vmatprep.subr.mxu0 %v5576
    %5797 = vmatpush1.msra.mxu0 %v5575
    %5798 = vmatprep.subr.mxu0 %v5572
    %5799 = vmatpush1.msra.mxu0 %v5571
    %5800 = vmatprep.subr.mxu0 %v5696
    %5801 = vmatpush2.msra.mxu0 %v5695
    %5802 = vmatprep.subr.mxu0 %v5692
    %5803 = vmatpush2.msra.mxu0 %v5691
    %5804 = vmatprep.subr.mxu0 %v5688
    %5805 = vmatpush2.msra.mxu0 %v5687
    %5806 = vmatprep.subr.mxu0 %v5684
    %5807 = vmatpush2.msra.mxu0 %v5683
    %5808 = vmatprep.subr.mxu0 %v5680
    %5809 = vmatpush2.msra.mxu0 %v5679
    %5810 = vmatprep.subr.mxu0 %v5676
    %5811 = vmatpush2.msra.mxu0 %v5675
    %5812 = vmatprep.subr.mxu0 %v5672
    %5813 = vmatpush2.msra.mxu0 %v5671
    %5814 = vmatprep.subr.mxu0 %v5668
    %5815 = vmatpush2.msra.mxu0 %v5667
    %5816 = vmatprep.subr.mxu0 %v5664
    %5817 = vmatpush2.msra.mxu0 %v5663
    %5818 = vmatprep.subr.mxu0 %v5660
    %5819 = vmatpush2.msra.mxu0 %v5659
    %5820 = vmatprep.subr.mxu0 %v5656
    %5821 = vmatpush2.msra.mxu0 %v5655
    %5822 = vmatprep.subr.mxu0 %v5652
    %5823 = vmatpush2.msra.mxu0 %v5651
    %5824 = vmatprep.subr.mxu0 %v5648
    %5825 = vmatpush2.msra.mxu0 %v5647
    %5826 = vmatprep.subr.mxu0 %v5644
    %5827 = vmatpush2.msra.mxu0 %v5643
    %5828 = vmatprep.subr.mxu0 %v5640
    %5829 = vmatpush2.msra.mxu0 %v5639
    %5830 = vmatprep.subr.mxu0 %v5636
    %5831 = vmatpush2.msra.mxu0 %v5635
    %5832 = vmatprep.mubr.f32.mxu0 %v5567
    %5833 = vmatmul.mubr.f32.gmra.mxu0 %v5566
    %v5834 = vpop.f32.mrf.mxu0
    %v5835 = vadd.f32 0.0, %v5834
    %v5836 = vpop.f32.mrf.mxu0
    %v5837 = vadd.f32 0.0, %v5836
    %5838 = vdwg.mxu0
    %v5839 = vadd.f32 %v5562, %v5764
    %v5840 = vadd.f32 %v5563, %v5766
    %v5841 = vadd.f32 %v5564, %v5835
    %v5842 = vadd.f32 %v5565, %v5837
    %s5843 = scalar_lea.hbm %s20, 245760
    // Predicated region
    $region150: #{tpu_custom_call.1} parent=1 // pred_check
      _
    $region151: #{tpu_custom_call.1} parent=1 // pred_check_branch
      %5845 = sbr.rel target = $region153
    $region152: #{tpu_custom_call.1} parent=1 // pred_region
      %5846 = sst [smem:[#allocation31]] [#allocation38]
      %5847 = sst [smem:[#allocation32]] [#allocation37]
    $region153: #{tpu_custom_call.1} parent=1 // pred_fallthru
      _
    %5849 = shalt.err (0)
    %s5851 = sshll.u32 %s254, 4
    %s5852 = int_to_ptr.vmem [resolvable:$true] %s5851
    %5854 = dma.hbm_to_vmem [thread:$0]  %s5843, 81920, %s5852, %s255
    %s5855 = sshll.u32 %s3058, 4
    %5856 = dma.done [#allocation4], %s5855
    %v5857 = vld [vmem:[#allocation2 + $0xa0] sm:$0xff]
    %v5858 = vld [vmem:[#allocation2 + $0xa8] sm:$0xff]
    %v5859 = vld [vmem:[#allocation3] sm:$0xff]
    %v5860 = vld [vmem:[#allocation3 + $0x8] sm:$0xff]
    %v5861 = vld [vmem:[#allocation3 + $0x10] sm:$0xff]
    %v5862 = vld [vmem:[#allocation3 + $0x18] sm:$0xff]
    %v5863 = vld [vmem:[#allocation3 + $0x20] sm:$0xff]
    %v5864 = vld [vmem:[#allocation3 + $0x28] sm:$0xff]
    %v5865 = vld [vmem:[#allocation3 + $0x30] sm:$0xff]
    %v5866 = vld [vmem:[#allocation3 + $0x38] sm:$0xff]
    %v5867 = vld [vmem:[#allocation3 + $0x40] sm:$0xff]
    %v5868 = vld [vmem:[#allocation3 + $0x48] sm:$0xff]
    %v5869 = vld [vmem:[#allocation3 + $0x50] sm:$0xff]
    %v5870 = vld [vmem:[#allocation3 + $0x58] sm:$0xff]
    %v5871 = vld [vmem:[#allocation3 + $0x60] sm:$0xff]
    %v5872 = vld [vmem:[#allocation3 + $0x68] sm:$0xff]
    %v5873 = vld [vmem:[#allocation3 + $0x70] sm:$0xff]
    %v5874 = vld [vmem:[#allocation3 + $0x78] sm:$0xff]
    %v5875 = vld [vmem:[#allocation3 + $0x80] sm:$0xff]
    %v5876 = vld [vmem:[#allocation3 + $0x88] sm:$0xff]
    %v5877 = vld [vmem:[#allocation3 + $0x90] sm:$0xff]
    %v5878 = vld [vmem:[#allocation3 + $0x98] sm:$0xff]
    %v5879 = vld [vmem:[#allocation3 + $0xa0] sm:$0xff]
    %v5880 = vld [vmem:[#allocation3 + $0xa8] sm:$0xff]
    %v5881 = vld [vmem:[#allocation3 + $0xb0] sm:$0xff]
    %v5882 = vld [vmem:[#allocation3 + $0xb8] sm:$0xff]
    %v5883 = vld [vmem:[#allocation3 + $0xc0] sm:$0xff]
    %v5884 = vld [vmem:[#allocation3 + $0xc8] sm:$0xff]
    %v5885 = vld [vmem:[#allocation3 + $0xd0] sm:$0xff]
    %v5886 = vld [vmem:[#allocation3 + $0xd8] sm:$0xff]
    %v5887 = vld [vmem:[#allocation3 + $0xe0] sm:$0xff]
    %v5888 = vld [vmem:[#allocation3 + $0xe8] sm:$0xff]
    %v5889 = vld [vmem:[#allocation3 + $0xf0] sm:$0xff]
    %v5890 = vld [vmem:[#allocation3 + $0xf8] sm:$0xff]
    %v5891 = vld [vmem:[#allocation3 + $0x100] sm:$0xff]
    %v5892 = vld [vmem:[#allocation3 + $0x108] sm:$0xff]
    %v5893 = vld [vmem:[#allocation3 + $0x110] sm:$0xff]
    %v5894 = vld [vmem:[#allocation3 + $0x118] sm:$0xff]
    %v5895 = vld [vmem:[#allocation3 + $0x120] sm:$0xff]
    %v5896 = vld [vmem:[#allocation3 + $0x128] sm:$0xff]
    %v5897 = vld [vmem:[#allocation3 + $0x130] sm:$0xff]
    %v5898 = vld [vmem:[#allocation3 + $0x138] sm:$0xff]
    %v5899 = vld [vmem:[#allocation3 + $0x140] sm:$0xff]
    %v5900 = vld [vmem:[#allocation3 + $0x148] sm:$0xff]
    %v5901 = vld [vmem:[#allocation3 + $0x150] sm:$0xff]
    %v5902 = vld [vmem:[#allocation3 + $0x158] sm:$0xff]
    %v5903 = vld [vmem:[#allocation3 + $0x160] sm:$0xff]
    %v5904 = vld [vmem:[#allocation3 + $0x168] sm:$0xff]
    %v5905 = vld [vmem:[#allocation3 + $0x170] sm:$0xff]
    %v5906 = vld [vmem:[#allocation3 + $0x178] sm:$0xff]
    %v5907 = vld [vmem:[#allocation3 + $0x180] sm:$0xff]
    %v5908 = vld [vmem:[#allocation3 + $0x188] sm:$0xff]
    %v5909 = vld [vmem:[#allocation3 + $0x190] sm:$0xff]
    %v5910 = vld [vmem:[#allocation3 + $0x198] sm:$0xff]
    %v5911 = vld [vmem:[#allocation3 + $0x1a0] sm:$0xff]
    %v5912 = vld [vmem:[#allocation3 + $0x1a8] sm:$0xff]
    %v5913 = vld [vmem:[#allocation3 + $0x1b0] sm:$0xff]
    %v5914 = vld [vmem:[#allocation3 + $0x1b8] sm:$0xff]
    %v5915 = vld [vmem:[#allocation3 + $0x1c0] sm:$0xff]
    %v5916 = vld [vmem:[#allocation3 + $0x1c8] sm:$0xff]
    %v5917 = vld [vmem:[#allocation3 + $0x1d0] sm:$0xff]
    %v5918 = vld [vmem:[#allocation3 + $0x1d8] sm:$0xff]
    %v5919 = vld [vmem:[#allocation3 + $0x1e0] sm:$0xff]
    %v5920 = vld [vmem:[#allocation3 + $0x1e8] sm:$0xff]
    %v5921 = vld [vmem:[#allocation3 + $0x1f0] sm:$0xff]
    %v5922 = vld [vmem:[#allocation3 + $0x1f8] sm:$0xff]
    %v5923 = vld [vmem:[#allocation3 + $0x200] sm:$0xff]
    %v5924 = vld [vmem:[#allocation3 + $0x208] sm:$0xff]
    %v5925 = vld [vmem:[#allocation3 + $0x210] sm:$0xff]
    %v5926 = vld [vmem:[#allocation3 + $0x218] sm:$0xff]
    %v5927 = vld [vmem:[#allocation3 + $0x220] sm:$0xff]
    %v5928 = vld [vmem:[#allocation3 + $0x228] sm:$0xff]
    %v5929 = vld [vmem:[#allocation3 + $0x230] sm:$0xff]
    %v5930 = vld [vmem:[#allocation3 + $0x238] sm:$0xff]
    %v5931 = vld [vmem:[#allocation3 + $0x240] sm:$0xff]
    %v5932 = vld [vmem:[#allocation3 + $0x248] sm:$0xff]
    %v5933 = vld [vmem:[#allocation3 + $0x250] sm:$0xff]
    %v5934 = vld [vmem:[#allocation3 + $0x258] sm:$0xff]
    %v5935 = vld [vmem:[#allocation3 + $0x260] sm:$0xff]
    %v5936 = vld [vmem:[#allocation3 + $0x268] sm:$0xff]
    %v5937 = vld [vmem:[#allocation3 + $0x270] sm:$0xff]
    %v5938 = vld [vmem:[#allocation3 + $0x278] sm:$0xff]
    %v5939 = vld [vmem:[#allocation3 + $0x280] sm:$0xff]
    %v5940 = vld [vmem:[#allocation3 + $0x288] sm:$0xff]
    %v5941 = vld [vmem:[#allocation3 + $0x290] sm:$0xff]
    %v5942 = vld [vmem:[#allocation3 + $0x298] sm:$0xff]
    %v5943 = vld [vmem:[#allocation3 + $0x2a0] sm:$0xff]
    %v5944 = vld [vmem:[#allocation3 + $0x2a8] sm:$0xff]
    %v5945 = vld [vmem:[#allocation3 + $0x2b0] sm:$0xff]
    %v5946 = vld [vmem:[#allocation3 + $0x2b8] sm:$0xff]
    %v5947 = vld [vmem:[#allocation3 + $0x2c0] sm:$0xff]
    %v5948 = vld [vmem:[#allocation3 + $0x2c8] sm:$0xff]
    %v5949 = vld [vmem:[#allocation3 + $0x2d0] sm:$0xff]
    %v5950 = vld [vmem:[#allocation3 + $0x2d8] sm:$0xff]
    %v5951 = vld [vmem:[#allocation3 + $0x2e0] sm:$0xff]
    %v5952 = vld [vmem:[#allocation3 + $0x2e8] sm:$0xff]
    %v5953 = vld [vmem:[#allocation3 + $0x2f0] sm:$0xff]
    %v5954 = vld [vmem:[#allocation3 + $0x2f8] sm:$0xff]
    %v5955 = vld [vmem:[#allocation3 + $0x300] sm:$0xff]
    %v5956 = vld [vmem:[#allocation3 + $0x308] sm:$0xff]
    %v5957 = vld [vmem:[#allocation3 + $0x310] sm:$0xff]
    %v5958 = vld [vmem:[#allocation3 + $0x318] sm:$0xff]
    %v5959 = vld [vmem:[#allocation3 + $0x320] sm:$0xff]
    %v5960 = vld [vmem:[#allocation3 + $0x328] sm:$0xff]
    %v5961 = vld [vmem:[#allocation3 + $0x330] sm:$0xff]
    %v5962 = vld [vmem:[#allocation3 + $0x338] sm:$0xff]
    %v5963 = vld [vmem:[#allocation3 + $0x340] sm:$0xff]
    %v5964 = vld [vmem:[#allocation3 + $0x348] sm:$0xff]
    %v5965 = vld [vmem:[#allocation3 + $0x350] sm:$0xff]
    %v5966 = vld [vmem:[#allocation3 + $0x358] sm:$0xff]
    %v5967 = vld [vmem:[#allocation3 + $0x360] sm:$0xff]
    %v5968 = vld [vmem:[#allocation3 + $0x368] sm:$0xff]
    %v5969 = vld [vmem:[#allocation3 + $0x370] sm:$0xff]
    %v5970 = vld [vmem:[#allocation3 + $0x378] sm:$0xff]
    %v5971 = vld [vmem:[#allocation3 + $0x380] sm:$0xff]
    %v5972 = vld [vmem:[#allocation3 + $0x388] sm:$0xff]
    %v5973 = vld [vmem:[#allocation3 + $0x390] sm:$0xff]
    %v5974 = vld [vmem:[#allocation3 + $0x398] sm:$0xff]
    %v5975 = vld [vmem:[#allocation3 + $0x3a0] sm:$0xff]
    %v5976 = vld [vmem:[#allocation3 + $0x3a8] sm:$0xff]
    %v5977 = vld [vmem:[#allocation3 + $0x3b0] sm:$0xff]
    %v5978 = vld [vmem:[#allocation3 + $0x3b8] sm:$0xff]
    %v5979 = vld [vmem:[#allocation3 + $0x3c0] sm:$0xff]
    %v5980 = vld [vmem:[#allocation3 + $0x3c8] sm:$0xff]
    %v5981 = vld [vmem:[#allocation3 + $0x3d0] sm:$0xff]
    %v5982 = vld [vmem:[#allocation3 + $0x3d8] sm:$0xff]
    %v5983 = vld [vmem:[#allocation3 + $0x3e0] sm:$0xff]
    %v5984 = vld [vmem:[#allocation3 + $0x3e8] sm:$0xff]
    %v5985 = vld [vmem:[#allocation3 + $0x3f0] sm:$0xff]
    %v5986 = vld [vmem:[#allocation3 + $0x3f8] sm:$0xff]
    %5987 = vmatprep.subr.mxu0 %v5920
    %5988 = vmatpush1.msra.mxu0 %v5919
    %5989 = vmatprep.subr.mxu0 %v5916
    %5990 = vmatpush1.msra.mxu0 %v5915
    %5991 = vmatprep.subr.mxu0 %v5912
    %5992 = vmatpush1.msra.mxu0 %v5911
    %5993 = vmatprep.subr.mxu0 %v5908
    %5994 = vmatpush1.msra.mxu0 %v5907
    %5995 = vmatprep.subr.mxu0 %v5904
    %5996 = vmatpush1.msra.mxu0 %v5903
    %5997 = vmatprep.subr.mxu0 %v5900
    %5998 = vmatpush1.msra.mxu0 %v5899
    %5999 = vmatprep.subr.mxu0 %v5896
    %6000 = vmatpush1.msra.mxu0 %v5895
    %6001 = vmatprep.subr.mxu0 %v5892
    %6002 = vmatpush1.msra.mxu0 %v5891
    %6003 = vmatprep.subr.mxu0 %v5888
    %6004 = vmatpush1.msra.mxu0 %v5887
    %6005 = vmatprep.subr.mxu0 %v5884
    %6006 = vmatpush1.msra.mxu0 %v5883
    %6007 = vmatprep.subr.mxu0 %v5880
    %6008 = vmatpush1.msra.mxu0 %v5879
    %6009 = vmatprep.subr.mxu0 %v5876
    %6010 = vmatpush1.msra.mxu0 %v5875
    %6011 = vmatprep.subr.mxu0 %v5872
    %6012 = vmatpush1.msra.mxu0 %v5871
    %6013 = vmatprep.subr.mxu0 %v5868
    %6014 = vmatpush1.msra.mxu0 %v5867
    %6015 = vmatprep.subr.mxu0 %v5864
    %6016 = vmatpush1.msra.mxu0 %v5863
    %6017 = vmatprep.subr.mxu0 %v5860
    %6018 = vmatpush1.msra.mxu0 %v5859
    %6019 = vmatprep.subr.mxu0 %v5984
    %6020 = vmatpush2.msra.mxu0 %v5983
    %6021 = vmatprep.subr.mxu0 %v5980
    %6022 = vmatpush2.msra.mxu0 %v5979
    %6023 = vmatprep.subr.mxu0 %v5976
    %6024 = vmatpush2.msra.mxu0 %v5975
    %6025 = vmatprep.subr.mxu0 %v5972
    %6026 = vmatpush2.msra.mxu0 %v5971
    %6027 = vmatprep.subr.mxu0 %v5968
    %6028 = vmatpush2.msra.mxu0 %v5967
    %6029 = vmatprep.subr.mxu0 %v5964
    %6030 = vmatpush2.msra.mxu0 %v5963
    %6031 = vmatprep.subr.mxu0 %v5960
    %6032 = vmatpush2.msra.mxu0 %v5959
    %6033 = vmatprep.subr.mxu0 %v5956
    %6034 = vmatpush2.msra.mxu0 %v5955
    %6035 = vmatprep.subr.mxu0 %v5952
    %6036 = vmatpush2.msra.mxu0 %v5951
    %6037 = vmatprep.subr.mxu0 %v5948
    %6038 = vmatpush2.msra.mxu0 %v5947
    %6039 = vmatprep.subr.mxu0 %v5944
    %6040 = vmatpush2.msra.mxu0 %v5943
    %6041 = vmatprep.subr.mxu0 %v5940
    %6042 = vmatpush2.msra.mxu0 %v5939
    %6043 = vmatprep.subr.mxu0 %v5936
    %6044 = vmatpush2.msra.mxu0 %v5935
    %6045 = vmatprep.subr.mxu0 %v5932
    %6046 = vmatpush2.msra.mxu0 %v5931
    %6047 = vmatprep.subr.mxu0 %v5928
    %6048 = vmatpush2.msra.mxu0 %v5927
    %6049 = vmatprep.subr.mxu0 %v5924
    %6050 = vmatpush2.msra.mxu0 %v5923
    %6051 = vmatprep.mubr.f32.mxu0 %v5858
    %6052 = vmatmul.mubr.f32.gmra.mxu0 %v5857
    %v6053 = vpop.f32.mrf.mxu0
    %v6054 = vadd.f32 0.0, %v6053
    %v6055 = vpop.f32.mrf.mxu0
    %v6056 = vadd.f32 0.0, %v6055
    %6057 = vdwg.mxu0
    %6058 = vmatprep.subr.mxu0 %v5922
    %6059 = vmatpush1.msra.mxu0 %v5921
    %6060 = vmatprep.subr.mxu0 %v5918
    %6061 = vmatpush1.msra.mxu0 %v5917
    %6062 = vmatprep.subr.mxu0 %v5914
    %6063 = vmatpush1.msra.mxu0 %v5913
    %6064 = vmatprep.subr.mxu0 %v5910
    %6065 = vmatpush1.msra.mxu0 %v5909
    %6066 = vmatprep.subr.mxu0 %v5906
    %6067 = vmatpush1.msra.mxu0 %v5905
    %6068 = vmatprep.subr.mxu0 %v5902
    %6069 = vmatpush1.msra.mxu0 %v5901
    %6070 = vmatprep.subr.mxu0 %v5898
    %6071 = vmatpush1.msra.mxu0 %v5897
    %6072 = vmatprep.subr.mxu0 %v5894
    %6073 = vmatpush1.msra.mxu0 %v5893
    %6074 = vmatprep.subr.mxu0 %v5890
    %6075 = vmatpush1.msra.mxu0 %v5889
    %6076 = vmatprep.subr.mxu0 %v5886
    %6077 = vmatpush1.msra.mxu0 %v5885
    %6078 = vmatprep.subr.mxu0 %v5882
    %6079 = vmatpush1.msra.mxu0 %v5881
    %6080 = vmatprep.subr.mxu0 %v5878
    %6081 = vmatpush1.msra.mxu0 %v5877
    %6082 = vmatprep.subr.mxu0 %v5874
    %6083 = vmatpush1.msra.mxu0 %v5873
    %6084 = vmatprep.subr.mxu0 %v5870
    %6085 = vmatpush1.msra.mxu0 %v5869
    %6086 = vmatprep.subr.mxu0 %v5866
    %6087 = vmatpush1.msra.mxu0 %v5865
    %6088 = vmatprep.subr.mxu0 %v5862
    %6089 = vmatpush1.msra.mxu0 %v5861
    %6090 = vmatprep.subr.mxu0 %v5986
    %6091 = vmatpush2.msra.mxu0 %v5985
    %6092 = vmatprep.subr.mxu0 %v5982
    %6093 = vmatpush2.msra.mxu0 %v5981
    %6094 = vmatprep.subr.mxu0 %v5978
    %6095 = vmatpush2.msra.mxu0 %v5977
    %6096 = vmatprep.subr.mxu0 %v5974
    %6097 = vmatpush2.msra.mxu0 %v5973
    %6098 = vmatprep.subr.mxu0 %v5970
    %6099 = vmatpush2.msra.mxu0 %v5969
    %6100 = vmatprep.subr.mxu0 %v5966
    %6101 = vmatpush2.msra.mxu0 %v5965
    %6102 = vmatprep.subr.mxu0 %v5962
    %6103 = vmatpush2.msra.mxu0 %v5961
    %6104 = vmatprep.subr.mxu0 %v5958
    %6105 = vmatpush2.msra.mxu0 %v5957
    %6106 = vmatprep.subr.mxu0 %v5954
    %6107 = vmatpush2.msra.mxu0 %v5953
    %6108 = vmatprep.subr.mxu0 %v5950
    %6109 = vmatpush2.msra.mxu0 %v5949
    %6110 = vmatprep.subr.mxu0 %v5946
    %6111 = vmatpush2.msra.mxu0 %v5945
    %6112 = vmatprep.subr.mxu0 %v5942
    %6113 = vmatpush2.msra.mxu0 %v5941
    %6114 = vmatprep.subr.mxu0 %v5938
    %6115 = vmatpush2.msra.mxu0 %v5937
    %6116 = vmatprep.subr.mxu0 %v5934
    %6117 = vmatpush2.msra.mxu0 %v5933
    %6118 = vmatprep.subr.mxu0 %v5930
    %6119 = vmatpush2.msra.mxu0 %v5929
    %6120 = vmatprep.subr.mxu0 %v5926
    %6121 = vmatpush2.msra.mxu0 %v5925
    %6122 = vmatprep.mubr.f32.mxu0 %v5858
    %6123 = vmatmul.mubr.f32.gmra.mxu0 %v5857
    %v6124 = vpop.f32.mrf.mxu0
    %v6125 = vadd.f32 0.0, %v6124
    %v6126 = vpop.f32.mrf.mxu0
    %v6127 = vadd.f32 0.0, %v6126
    %6128 = vdwg.mxu0
    %v6129 = vadd.f32 %v5839, %v6054
    %v6130 = vadd.f32 %v5840, %v6056
    %v6131 = vadd.f32 %v5841, %v6125
    %v6132 = vadd.f32 %v5842, %v6127
    %v6133 = vld [vmem:[#allocation2 + $0xb0] sm:$0xff]
    %v6134 = vld [vmem:[#allocation2 + $0xb8] sm:$0xff]
    %v6135 = vld [vmem:[%s3339] sm:$0xff]
    %v6136 = vld [vmem:[%s3339 + $0x8] sm:$0xff]
    %v6137 = vld [vmem:[%s3339 + $0x10] sm:$0xff]
    %v6138 = vld [vmem:[%s3339 + $0x18] sm:$0xff]
    %v6139 = vld [vmem:[%s3339 + $0x20] sm:$0xff]
    %v6140 = vld [vmem:[%s3339 + $0x28] sm:$0xff]
    %v6141 = vld [vmem:[%s3339 + $0x30] sm:$0xff]
    %v6142 = vld [vmem:[%s3339 + $0x38] sm:$0xff]
    %v6143 = vld [vmem:[%s3339 + $0x40] sm:$0xff]
    %v6144 = vld [vmem:[%s3339 + $0x48] sm:$0xff]
    %v6145 = vld [vmem:[%s3339 + $0x50] sm:$0xff]
    %v6146 = vld [vmem:[%s3339 + $0x58] sm:$0xff]
    %v6147 = vld [vmem:[%s3339 + $0x60] sm:$0xff]
    %v6148 = vld [vmem:[%s3339 + $0x68] sm:$0xff]
    %v6149 = vld [vmem:[%s3339 + $0x70] sm:$0xff]
    %v6150 = vld [vmem:[%s3339 + $0x78] sm:$0xff]
    %v6151 = vld [vmem:[%s3339 + $0x80] sm:$0xff]
    %v6152 = vld [vmem:[%s3339 + $0x88] sm:$0xff]
    %v6153 = vld [vmem:[%s3339 + $0x90] sm:$0xff]
    %v6154 = vld [vmem:[%s3339 + $0x98] sm:$0xff]
    %v6155 = vld [vmem:[%s3339 + $0xa0] sm:$0xff]
    %v6156 = vld [vmem:[%s3339 + $0xa8] sm:$0xff]
    %v6157 = vld [vmem:[%s3339 + $0xb0] sm:$0xff]
    %v6158 = vld [vmem:[%s3339 + $0xb8] sm:$0xff]
    %v6159 = vld [vmem:[%s3339 + $0xc0] sm:$0xff]
    %v6160 = vld [vmem:[%s3339 + $0xc8] sm:$0xff]
    %v6161 = vld [vmem:[%s3339 + $0xd0] sm:$0xff]
    %v6162 = vld [vmem:[%s3339 + $0xd8] sm:$0xff]
    %v6163 = vld [vmem:[%s3339 + $0xe0] sm:$0xff]
    %v6164 = vld [vmem:[%s3339 + $0xe8] sm:$0xff]
    %v6165 = vld [vmem:[%s3339 + $0xf0] sm:$0xff]
    %v6166 = vld [vmem:[%s3339 + $0xf8] sm:$0xff]
    %v6167 = vld [vmem:[%s3339 + $0x100] sm:$0xff]
    %v6168 = vld [vmem:[%s3339 + $0x108] sm:$0xff]
    %v6169 = vld [vmem:[%s3339 + $0x110] sm:$0xff]
    %v6170 = vld [vmem:[%s3339 + $0x118] sm:$0xff]
    %v6171 = vld [vmem:[%s3339 + $0x120] sm:$0xff]
    %v6172 = vld [vmem:[%s3339 + $0x128] sm:$0xff]
    %v6173 = vld [vmem:[%s3339 + $0x130] sm:$0xff]
    %v6174 = vld [vmem:[%s3339 + $0x138] sm:$0xff]
    %v6175 = vld [vmem:[%s3339 + $0x140] sm:$0xff]
    %v6176 = vld [vmem:[%s3339 + $0x148] sm:$0xff]
    %v6177 = vld [vmem:[%s3339 + $0x150] sm:$0xff]
    %v6178 = vld [vmem:[%s3339 + $0x158] sm:$0xff]
    %v6179 = vld [vmem:[%s3339 + $0x160] sm:$0xff]
    %v6180 = vld [vmem:[%s3339 + $0x168] sm:$0xff]
    %v6181 = vld [vmem:[%s3339 + $0x170] sm:$0xff]
    %v6182 = vld [vmem:[%s3339 + $0x178] sm:$0xff]
    %v6183 = vld [vmem:[%s3339 + $0x180] sm:$0xff]
    %v6184 = vld [vmem:[%s3339 + $0x188] sm:$0xff]
    %v6185 = vld [vmem:[%s3339 + $0x190] sm:$0xff]
    %v6186 = vld [vmem:[%s3339 + $0x198] sm:$0xff]
    %v6187 = vld [vmem:[%s3339 + $0x1a0] sm:$0xff]
    %v6188 = vld [vmem:[%s3339 + $0x1a8] sm:$0xff]
    %v6189 = vld [vmem:[%s3339 + $0x1b0] sm:$0xff]
    %v6190 = vld [vmem:[%s3339 + $0x1b8] sm:$0xff]
    %v6191 = vld [vmem:[%s3339 + $0x1c0] sm:$0xff]
    %v6192 = vld [vmem:[%s3339 + $0x1c8] sm:$0xff]
    %v6193 = vld [vmem:[%s3339 + $0x1d0] sm:$0xff]
    %v6194 = vld [vmem:[%s3339 + $0x1d8] sm:$0xff]
    %v6195 = vld [vmem:[%s3339 + $0x1e0] sm:$0xff]
    %v6196 = vld [vmem:[%s3339 + $0x1e8] sm:$0xff]
    %v6197 = vld [vmem:[%s3339 + $0x1f0] sm:$0xff]
    %v6198 = vld [vmem:[%s3339 + $0x1f8] sm:$0xff]
    %v6199 = vld [vmem:[%s3339 + $0x200] sm:$0xff]
    %v6200 = vld [vmem:[%s3339 + $0x208] sm:$0xff]
    %v6201 = vld [vmem:[%s3339 + $0x210] sm:$0xff]
    %v6202 = vld [vmem:[%s3339 + $0x218] sm:$0xff]
    %v6203 = vld [vmem:[%s3339 + $0x220] sm:$0xff]
    %v6204 = vld [vmem:[%s3339 + $0x228] sm:$0xff]
    %v6205 = vld [vmem:[%s3339 + $0x230] sm:$0xff]
    %v6206 = vld [vmem:[%s3339 + $0x238] sm:$0xff]
    %v6207 = vld [vmem:[%s3339 + $0x240] sm:$0xff]
    %v6208 = vld [vmem:[%s3339 + $0x248] sm:$0xff]
    %v6209 = vld [vmem:[%s3339 + $0x250] sm:$0xff]
    %v6210 = vld [vmem:[%s3339 + $0x258] sm:$0xff]
    %v6211 = vld [vmem:[%s3339 + $0x260] sm:$0xff]
    %v6212 = vld [vmem:[%s3339 + $0x268] sm:$0xff]
    %v6213 = vld [vmem:[%s3339 + $0x270] sm:$0xff]
    %v6214 = vld [vmem:[%s3339 + $0x278] sm:$0xff]
    %v6215 = vld [vmem:[%s3339 + $0x280] sm:$0xff]
    %v6216 = vld [vmem:[%s3339 + $0x288] sm:$0xff]
    %v6217 = vld [vmem:[%s3339 + $0x290] sm:$0xff]
    %v6218 = vld [vmem:[%s3339 + $0x298] sm:$0xff]
    %v6219 = vld [vmem:[%s3339 + $0x2a0] sm:$0xff]
    %v6220 = vld [vmem:[%s3339 + $0x2a8] sm:$0xff]
    %v6221 = vld [vmem:[%s3339 + $0x2b0] sm:$0xff]
    %v6222 = vld [vmem:[%s3339 + $0x2b8] sm:$0xff]
    %v6223 = vld [vmem:[%s3339 + $0x2c0] sm:$0xff]
    %v6224 = vld [vmem:[%s3339 + $0x2c8] sm:$0xff]
    %v6225 = vld [vmem:[%s3339 + $0x2d0] sm:$0xff]
    %v6226 = vld [vmem:[%s3339 + $0x2d8] sm:$0xff]
    %v6227 = vld [vmem:[%s3339 + $0x2e0] sm:$0xff]
    %v6228 = vld [vmem:[%s3339 + $0x2e8] sm:$0xff]
    %v6229 = vld [vmem:[%s3339 + $0x2f0] sm:$0xff]
    %v6230 = vld [vmem:[%s3339 + $0x2f8] sm:$0xff]
    %v6231 = vld [vmem:[%s3339 + $0x300] sm:$0xff]
    %v6232 = vld [vmem:[%s3339 + $0x308] sm:$0xff]
    %v6233 = vld [vmem:[%s3339 + $0x310] sm:$0xff]
    %v6234 = vld [vmem:[%s3339 + $0x318] sm:$0xff]
    %v6235 = vld [vmem:[%s3339 + $0x320] sm:$0xff]
    %v6236 = vld [vmem:[%s3339 + $0x328] sm:$0xff]
    %v6237 = vld [vmem:[%s3339 + $0x330] sm:$0xff]
    %v6238 = vld [vmem:[%s3339 + $0x338] sm:$0xff]
    %v6239 = vld [vmem:[%s3339 + $0x340] sm:$0xff]
    %v6240 = vld [vmem:[%s3339 + $0x348] sm:$0xff]
    %v6241 = vld [vmem:[%s3339 + $0x350] sm:$0xff]
    %v6242 = vld [vmem:[%s3339 + $0x358] sm:$0xff]
    %v6243 = vld [vmem:[%s3339 + $0x360] sm:$0xff]
    %v6244 = vld [vmem:[%s3339 + $0x368] sm:$0xff]
    %v6245 = vld [vmem:[%s3339 + $0x370] sm:$0xff]
    %v6246 = vld [vmem:[%s3339 + $0x378] sm:$0xff]
    %v6247 = vld [vmem:[%s3339 + $0x380] sm:$0xff]
    %v6248 = vld [vmem:[%s3339 + $0x388] sm:$0xff]
    %v6249 = vld [vmem:[%s3339 + $0x390] sm:$0xff]
    %v6250 = vld [vmem:[%s3339 + $0x398] sm:$0xff]
    %v6251 = vld [vmem:[%s3339 + $0x3a0] sm:$0xff]
    %v6252 = vld [vmem:[%s3339 + $0x3a8] sm:$0xff]
    %v6253 = vld [vmem:[%s3339 + $0x3b0] sm:$0xff]
    %v6254 = vld [vmem:[%s3339 + $0x3b8] sm:$0xff]
    %v6255 = vld [vmem:[%s3339 + $0x3c0] sm:$0xff]
    %v6256 = vld [vmem:[%s3339 + $0x3c8] sm:$0xff]
    %v6257 = vld [vmem:[%s3339 + $0x3d0] sm:$0xff]
    %v6258 = vld [vmem:[%s3339 + $0x3d8] sm:$0xff]
    %v6259 = vld [vmem:[%s3339 + $0x3e0] sm:$0xff]
    %v6260 = vld [vmem:[%s3339 + $0x3e8] sm:$0xff]
    %v6261 = vld [vmem:[%s3339 + $0x3f0] sm:$0xff]
    %v6262 = vld [vmem:[%s3339 + $0x3f8] sm:$0xff]
    %6263 = vmatprep.subr.mxu0 %v6196
    %6264 = vmatpush1.msra.mxu0 %v6195
    %6265 = vmatprep.subr.mxu0 %v6192
    %6266 = vmatpush1.msra.mxu0 %v6191
    %6267 = vmatprep.subr.mxu0 %v6188
    %6268 = vmatpush1.msra.mxu0 %v6187
    %6269 = vmatprep.subr.mxu0 %v6184
    %6270 = vmatpush1.msra.mxu0 %v6183
    %6271 = vmatprep.subr.mxu0 %v6180
    %6272 = vmatpush1.msra.mxu0 %v6179
    %6273 = vmatprep.subr.mxu0 %v6176
    %6274 = vmatpush1.msra.mxu0 %v6175
    %6275 = vmatprep.subr.mxu0 %v6172
    %6276 = vmatpush1.msra.mxu0 %v6171
    %6277 = vmatprep.subr.mxu0 %v6168
    %6278 = vmatpush1.msra.mxu0 %v6167
    %6279 = vmatprep.subr.mxu0 %v6164
    %6280 = vmatpush1.msra.mxu0 %v6163
    %6281 = vmatprep.subr.mxu0 %v6160
    %6282 = vmatpush1.msra.mxu0 %v6159
    %6283 = vmatprep.subr.mxu0 %v6156
    %6284 = vmatpush1.msra.mxu0 %v6155
    %6285 = vmatprep.subr.mxu0 %v6152
    %6286 = vmatpush1.msra.mxu0 %v6151
    %6287 = vmatprep.subr.mxu0 %v6148
    %6288 = vmatpush1.msra.mxu0 %v6147
    %6289 = vmatprep.subr.mxu0 %v6144
    %6290 = vmatpush1.msra.mxu0 %v6143
    %6291 = vmatprep.subr.mxu0 %v6140
    %6292 = vmatpush1.msra.mxu0 %v6139
    %6293 = vmatprep.subr.mxu0 %v6136
    %6294 = vmatpush1.msra.mxu0 %v6135
    %6295 = vmatprep.subr.mxu0 %v6260
    %6296 = vmatpush2.msra.mxu0 %v6259
    %6297 = vmatprep.subr.mxu0 %v6256
    %6298 = vmatpush2.msra.mxu0 %v6255
    %6299 = vmatprep.subr.mxu0 %v6252
    %6300 = vmatpush2.msra.mxu0 %v6251
    %6301 = vmatprep.subr.mxu0 %v6248
    %6302 = vmatpush2.msra.mxu0 %v6247
    %6303 = vmatprep.subr.mxu0 %v6244
    %6304 = vmatpush2.msra.mxu0 %v6243
    %6305 = vmatprep.subr.mxu0 %v6240
    %6306 = vmatpush2.msra.mxu0 %v6239
    %6307 = vmatprep.subr.mxu0 %v6236
    %6308 = vmatpush2.msra.mxu0 %v6235
    %6309 = vmatprep.subr.mxu0 %v6232
    %6310 = vmatpush2.msra.mxu0 %v6231
    %6311 = vmatprep.subr.mxu0 %v6228
    %6312 = vmatpush2.msra.mxu0 %v6227
    %6313 = vmatprep.subr.mxu0 %v6224
    %6314 = vmatpush2.msra.mxu0 %v6223
    %6315 = vmatprep.subr.mxu0 %v6220
    %6316 = vmatpush2.msra.mxu0 %v6219
    %6317 = vmatprep.subr.mxu0 %v6216
    %6318 = vmatpush2.msra.mxu0 %v6215
    %6319 = vmatprep.subr.mxu0 %v6212
    %6320 = vmatpush2.msra.mxu0 %v6211
    %6321 = vmatprep.subr.mxu0 %v6208
    %6322 = vmatpush2.msra.mxu0 %v6207
    %6323 = vmatprep.subr.mxu0 %v6204
    %6324 = vmatpush2.msra.mxu0 %v6203
    %6325 = vmatprep.subr.mxu0 %v6200
    %6326 = vmatpush2.msra.mxu0 %v6199
    %6327 = vmatprep.mubr.f32.mxu0 %v6134
    %6328 = vmatmul.mubr.f32.gmra.mxu0 %v6133
    %v6329 = vpop.f32.mrf.mxu0
    %v6330 = vadd.f32 0.0, %v6329
    %v6331 = vpop.f32.mrf.mxu0
    %v6332 = vadd.f32 0.0, %v6331
    %6333 = vdwg.mxu0
    %6334 = vmatprep.subr.mxu0 %v6198
    %6335 = vmatpush1.msra.mxu0 %v6197
    %6336 = vmatprep.subr.mxu0 %v6194
    %6337 = vmatpush1.msra.mxu0 %v6193
    %6338 = vmatprep.subr.mxu0 %v6190
    %6339 = vmatpush1.msra.mxu0 %v6189
    %6340 = vmatprep.subr.mxu0 %v6186
    %6341 = vmatpush1.msra.mxu0 %v6185
    %6342 = vmatprep.subr.mxu0 %v6182
    %6343 = vmatpush1.msra.mxu0 %v6181
    %6344 = vmatprep.subr.mxu0 %v6178
    %6345 = vmatpush1.msra.mxu0 %v6177
    %6346 = vmatprep.subr.mxu0 %v6174
    %6347 = vmatpush1.msra.mxu0 %v6173
    %6348 = vmatprep.subr.mxu0 %v6170
    %6349 = vmatpush1.msra.mxu0 %v6169
    %6350 = vmatprep.subr.mxu0 %v6166
    %6351 = vmatpush1.msra.mxu0 %v6165
    %6352 = vmatprep.subr.mxu0 %v6162
    %6353 = vmatpush1.msra.mxu0 %v6161
    %6354 = vmatprep.subr.mxu0 %v6158
    %6355 = vmatpush1.msra.mxu0 %v6157
    %6356 = vmatprep.subr.mxu0 %v6154
    %6357 = vmatpush1.msra.mxu0 %v6153
    %6358 = vmatprep.subr.mxu0 %v6150
    %6359 = vmatpush1.msra.mxu0 %v6149
    %6360 = vmatprep.subr.mxu0 %v6146
    %6361 = vmatpush1.msra.mxu0 %v6145
    %6362 = vmatprep.subr.mxu0 %v6142
    %6363 = vmatpush1.msra.mxu0 %v6141
    %6364 = vmatprep.subr.mxu0 %v6138
    %6365 = vmatpush1.msra.mxu0 %v6137
    %6366 = vmatprep.subr.mxu0 %v6262
    %6367 = vmatpush2.msra.mxu0 %v6261
    %6368 = vmatprep.subr.mxu0 %v6258
    %6369 = vmatpush2.msra.mxu0 %v6257
    %6370 = vmatprep.subr.mxu0 %v6254
    %6371 = vmatpush2.msra.mxu0 %v6253
    %6372 = vmatprep.subr.mxu0 %v6250
    %6373 = vmatpush2.msra.mxu0 %v6249
    %6374 = vmatprep.subr.mxu0 %v6246
    %6375 = vmatpush2.msra.mxu0 %v6245
    %6376 = vmatprep.subr.mxu0 %v6242
    %6377 = vmatpush2.msra.mxu0 %v6241
    %6378 = vmatprep.subr.mxu0 %v6238
    %6379 = vmatpush2.msra.mxu0 %v6237
    %6380 = vmatprep.subr.mxu0 %v6234
    %6381 = vmatpush2.msra.mxu0 %v6233
    %6382 = vmatprep.subr.mxu0 %v6230
    %6383 = vmatpush2.msra.mxu0 %v6229
    %6384 = vmatprep.subr.mxu0 %v6226
    %6385 = vmatpush2.msra.mxu0 %v6225
    %6386 = vmatprep.subr.mxu0 %v6222
    %6387 = vmatpush2.msra.mxu0 %v6221
    %6388 = vmatprep.subr.mxu0 %v6218
    %6389 = vmatpush2.msra.mxu0 %v6217
    %6390 = vmatprep.subr.mxu0 %v6214
    %6391 = vmatpush2.msra.mxu0 %v6213
    %6392 = vmatprep.subr.mxu0 %v6210
    %6393 = vmatpush2.msra.mxu0 %v6209
    %6394 = vmatprep.subr.mxu0 %v6206
    %6395 = vmatpush2.msra.mxu0 %v6205
    %6396 = vmatprep.subr.mxu0 %v6202
    %6397 = vmatpush2.msra.mxu0 %v6201
    %6398 = vmatprep.mubr.f32.mxu0 %v6134
    %6399 = vmatmul.mubr.f32.gmra.mxu0 %v6133
    %v6400 = vpop.f32.mrf.mxu0
    %v6401 = vadd.f32 0.0, %v6400
    %v6402 = vpop.f32.mrf.mxu0
    %v6403 = vadd.f32 0.0, %v6402
    %6404 = vdwg.mxu0
    %v6405 = vadd.f32 %v6129, %v6330
    %v6406 = vadd.f32 %v6130, %v6332
    %v6407 = vadd.f32 %v6131, %v6401
    %v6408 = vadd.f32 %v6132, %v6403
    %v6409 = vld [vmem:[#allocation2 + $0xc0] sm:$0xff]
    %v6410 = vld [vmem:[#allocation2 + $0xc8] sm:$0xff]
    %v6411 = vld [vmem:[%s3616] sm:$0xff]
    %v6412 = vld [vmem:[%s3616 + $0x8] sm:$0xff]
    %v6413 = vld [vmem:[%s3616 + $0x10] sm:$0xff]
    %v6414 = vld [vmem:[%s3616 + $0x18] sm:$0xff]
    %v6415 = vld [vmem:[%s3616 + $0x20] sm:$0xff]
    %v6416 = vld [vmem:[%s3616 + $0x28] sm:$0xff]
    %v6417 = vld [vmem:[%s3616 + $0x30] sm:$0xff]
    %v6418 = vld [vmem:[%s3616 + $0x38] sm:$0xff]
    %v6419 = vld [vmem:[%s3616 + $0x40] sm:$0xff]
    %v6420 = vld [vmem:[%s3616 + $0x48] sm:$0xff]
    %v6421 = vld [vmem:[%s3616 + $0x50] sm:$0xff]
    %v6422 = vld [vmem:[%s3616 + $0x58] sm:$0xff]
    %v6423 = vld [vmem:[%s3616 + $0x60] sm:$0xff]
    %v6424 = vld [vmem:[%s3616 + $0x68] sm:$0xff]
    %v6425 = vld [vmem:[%s3616 + $0x70] sm:$0xff]
    %v6426 = vld [vmem:[%s3616 + $0x78] sm:$0xff]
    %v6427 = vld [vmem:[%s3616 + $0x80] sm:$0xff]
    %v6428 = vld [vmem:[%s3616 + $0x88] sm:$0xff]
    %v6429 = vld [vmem:[%s3616 + $0x90] sm:$0xff]
    %v6430 = vld [vmem:[%s3616 + $0x98] sm:$0xff]
    %v6431 = vld [vmem:[%s3616 + $0xa0] sm:$0xff]
    %v6432 = vld [vmem:[%s3616 + $0xa8] sm:$0xff]
    %v6433 = vld [vmem:[%s3616 + $0xb0] sm:$0xff]
    %v6434 = vld [vmem:[%s3616 + $0xb8] sm:$0xff]
    %v6435 = vld [vmem:[%s3616 + $0xc0] sm:$0xff]
    %v6436 = vld [vmem:[%s3616 + $0xc8] sm:$0xff]
    %v6437 = vld [vmem:[%s3616 + $0xd0] sm:$0xff]
    %v6438 = vld [vmem:[%s3616 + $0xd8] sm:$0xff]
    %v6439 = vld [vmem:[%s3616 + $0xe0] sm:$0xff]
    %v6440 = vld [vmem:[%s3616 + $0xe8] sm:$0xff]
    %v6441 = vld [vmem:[%s3616 + $0xf0] sm:$0xff]
    %v6442 = vld [vmem:[%s3616 + $0xf8] sm:$0xff]
    %v6443 = vld [vmem:[%s3616 + $0x100] sm:$0xff]
    %v6444 = vld [vmem:[%s3616 + $0x108] sm:$0xff]
    %v6445 = vld [vmem:[%s3616 + $0x110] sm:$0xff]
    %v6446 = vld [vmem:[%s3616 + $0x118] sm:$0xff]
    %v6447 = vld [vmem:[%s3616 + $0x120] sm:$0xff]
    %v6448 = vld [vmem:[%s3616 + $0x128] sm:$0xff]
    %v6449 = vld [vmem:[%s3616 + $0x130] sm:$0xff]
    %v6450 = vld [vmem:[%s3616 + $0x138] sm:$0xff]
    %v6451 = vld [vmem:[%s3616 + $0x140] sm:$0xff]
    %v6452 = vld [vmem:[%s3616 + $0x148] sm:$0xff]
    %v6453 = vld [vmem:[%s3616 + $0x150] sm:$0xff]
    %v6454 = vld [vmem:[%s3616 + $0x158] sm:$0xff]
    %v6455 = vld [vmem:[%s3616 + $0x160] sm:$0xff]
    %v6456 = vld [vmem:[%s3616 + $0x168] sm:$0xff]
    %v6457 = vld [vmem:[%s3616 + $0x170] sm:$0xff]
    %v6458 = vld [vmem:[%s3616 + $0x178] sm:$0xff]
    %v6459 = vld [vmem:[%s3616 + $0x180] sm:$0xff]
    %v6460 = vld [vmem:[%s3616 + $0x188] sm:$0xff]
    %v6461 = vld [vmem:[%s3616 + $0x190] sm:$0xff]
    %v6462 = vld [vmem:[%s3616 + $0x198] sm:$0xff]
    %v6463 = vld [vmem:[%s3616 + $0x1a0] sm:$0xff]
    %v6464 = vld [vmem:[%s3616 + $0x1a8] sm:$0xff]
    %v6465 = vld [vmem:[%s3616 + $0x1b0] sm:$0xff]
    %v6466 = vld [vmem:[%s3616 + $0x1b8] sm:$0xff]
    %v6467 = vld [vmem:[%s3616 + $0x1c0] sm:$0xff]
    %v6468 = vld [vmem:[%s3616 + $0x1c8] sm:$0xff]
    %v6469 = vld [vmem:[%s3616 + $0x1d0] sm:$0xff]
    %v6470 = vld [vmem:[%s3616 + $0x1d8] sm:$0xff]
    %v6471 = vld [vmem:[%s3616 + $0x1e0] sm:$0xff]
    %v6472 = vld [vmem:[%s3616 + $0x1e8] sm:$0xff]
    %v6473 = vld [vmem:[%s3616 + $0x1f0] sm:$0xff]
    %v6474 = vld [vmem:[%s3616 + $0x1f8] sm:$0xff]
    %v6475 = vld [vmem:[%s3616 + $0x200] sm:$0xff]
    %v6476 = vld [vmem:[%s3616 + $0x208] sm:$0xff]
    %v6477 = vld [vmem:[%s3616 + $0x210] sm:$0xff]
    %v6478 = vld [vmem:[%s3616 + $0x218] sm:$0xff]
    %v6479 = vld [vmem:[%s3616 + $0x220] sm:$0xff]
    %v6480 = vld [vmem:[%s3616 + $0x228] sm:$0xff]
    %v6481 = vld [vmem:[%s3616 + $0x230] sm:$0xff]
    %v6482 = vld [vmem:[%s3616 + $0x238] sm:$0xff]
    %v6483 = vld [vmem:[%s3616 + $0x240] sm:$0xff]
    %v6484 = vld [vmem:[%s3616 + $0x248] sm:$0xff]
    %v6485 = vld [vmem:[%s3616 + $0x250] sm:$0xff]
    %v6486 = vld [vmem:[%s3616 + $0x258] sm:$0xff]
    %v6487 = vld [vmem:[%s3616 + $0x260] sm:$0xff]
    %v6488 = vld [vmem:[%s3616 + $0x268] sm:$0xff]
    %v6489 = vld [vmem:[%s3616 + $0x270] sm:$0xff]
    %v6490 = vld [vmem:[%s3616 + $0x278] sm:$0xff]
    %v6491 = vld [vmem:[%s3616 + $0x280] sm:$0xff]
    %v6492 = vld [vmem:[%s3616 + $0x288] sm:$0xff]
    %v6493 = vld [vmem:[%s3616 + $0x290] sm:$0xff]
    %v6494 = vld [vmem:[%s3616 + $0x298] sm:$0xff]
    %v6495 = vld [vmem:[%s3616 + $0x2a0] sm:$0xff]
    %v6496 = vld [vmem:[%s3616 + $0x2a8] sm:$0xff]
    %v6497 = vld [vmem:[%s3616 + $0x2b0] sm:$0xff]
    %v6498 = vld [vmem:[%s3616 + $0x2b8] sm:$0xff]
    %v6499 = vld [vmem:[%s3616 + $0x2c0] sm:$0xff]
    %v6500 = vld [vmem:[%s3616 + $0x2c8] sm:$0xff]
    %v6501 = vld [vmem:[%s3616 + $0x2d0] sm:$0xff]
    %v6502 = vld [vmem:[%s3616 + $0x2d8] sm:$0xff]
    %v6503 = vld [vmem:[%s3616 + $0x2e0] sm:$0xff]
    %v6504 = vld [vmem:[%s3616 + $0x2e8] sm:$0xff]
    %v6505 = vld [vmem:[%s3616 + $0x2f0] sm:$0xff]
    %v6506 = vld [vmem:[%s3616 + $0x2f8] sm:$0xff]
    %v6507 = vld [vmem:[%s3616 + $0x300] sm:$0xff]
    %v6508 = vld [vmem:[%s3616 + $0x308] sm:$0xff]
    %v6509 = vld [vmem:[%s3616 + $0x310] sm:$0xff]
    %v6510 = vld [vmem:[%s3616 + $0x318] sm:$0xff]
    %v6511 = vld [vmem:[%s3616 + $0x320] sm:$0xff]
    %v6512 = vld [vmem:[%s3616 + $0x328] sm:$0xff]
    %v6513 = vld [vmem:[%s3616 + $0x330] sm:$0xff]
    %v6514 = vld [vmem:[%s3616 + $0x338] sm:$0xff]
    %v6515 = vld [vmem:[%s3616 + $0x340] sm:$0xff]
    %v6516 = vld [vmem:[%s3616 + $0x348] sm:$0xff]
    %v6517 = vld [vmem:[%s3616 + $0x350] sm:$0xff]
    %v6518 = vld [vmem:[%s3616 + $0x358] sm:$0xff]
    %v6519 = vld [vmem:[%s3616 + $0x360] sm:$0xff]
    %v6520 = vld [vmem:[%s3616 + $0x368] sm:$0xff]
    %v6521 = vld [vmem:[%s3616 + $0x370] sm:$0xff]
    %v6522 = vld [vmem:[%s3616 + $0x378] sm:$0xff]
    %v6523 = vld [vmem:[%s3616 + $0x380] sm:$0xff]
    %v6524 = vld [vmem:[%s3616 + $0x388] sm:$0xff]
    %v6525 = vld [vmem:[%s3616 + $0x390] sm:$0xff]
    %v6526 = vld [vmem:[%s3616 + $0x398] sm:$0xff]
    %v6527 = vld [vmem:[%s3616 + $0x3a0] sm:$0xff]
    %v6528 = vld [vmem:[%s3616 + $0x3a8] sm:$0xff]
    %v6529 = vld [vmem:[%s3616 + $0x3b0] sm:$0xff]
    %v6530 = vld [vmem:[%s3616 + $0x3b8] sm:$0xff]
    %v6531 = vld [vmem:[%s3616 + $0x3c0] sm:$0xff]
    %v6532 = vld [vmem:[%s3616 + $0x3c8] sm:$0xff]
    %v6533 = vld [vmem:[%s3616 + $0x3d0] sm:$0xff]
    %v6534 = vld [vmem:[%s3616 + $0x3d8] sm:$0xff]
    %v6535 = vld [vmem:[%s3616 + $0x3e0] sm:$0xff]
    %v6536 = vld [vmem:[%s3616 + $0x3e8] sm:$0xff]
    %v6537 = vld [vmem:[%s3616 + $0x3f0] sm:$0xff]
    %v6538 = vld [vmem:[%s3616 + $0x3f8] sm:$0xff]
    %6539 = vmatprep.subr.mxu0 %v6472
    %6540 = vmatpush1.msra.mxu0 %v6471
    %6541 = vmatprep.subr.mxu0 %v6468
    %6542 = vmatpush1.msra.mxu0 %v6467
    %6543 = vmatprep.subr.mxu0 %v6464
    %6544 = vmatpush1.msra.mxu0 %v6463
    %6545 = vmatprep.subr.mxu0 %v6460
    %6546 = vmatpush1.msra.mxu0 %v6459
    %6547 = vmatprep.subr.mxu0 %v6456
    %6548 = vmatpush1.msra.mxu0 %v6455
    %6549 = vmatprep.subr.mxu0 %v6452
    %6550 = vmatpush1.msra.mxu0 %v6451
    %6551 = vmatprep.subr.mxu0 %v6448
    %6552 = vmatpush1.msra.mxu0 %v6447
    %6553 = vmatprep.subr.mxu0 %v6444
    %6554 = vmatpush1.msra.mxu0 %v6443
    %6555 = vmatprep.subr.mxu0 %v6440
    %6556 = vmatpush1.msra.mxu0 %v6439
    %6557 = vmatprep.subr.mxu0 %v6436
    %6558 = vmatpush1.msra.mxu0 %v6435
    %6559 = vmatprep.subr.mxu0 %v6432
    %6560 = vmatpush1.msra.mxu0 %v6431
    %6561 = vmatprep.subr.mxu0 %v6428
    %6562 = vmatpush1.msra.mxu0 %v6427
    %6563 = vmatprep.subr.mxu0 %v6424
    %6564 = vmatpush1.msra.mxu0 %v6423
    %6565 = vmatprep.subr.mxu0 %v6420
    %6566 = vmatpush1.msra.mxu0 %v6419
    %6567 = vmatprep.subr.mxu0 %v6416
    %6568 = vmatpush1.msra.mxu0 %v6415
    %6569 = vmatprep.subr.mxu0 %v6412
    %6570 = vmatpush1.msra.mxu0 %v6411
    %6571 = vmatprep.subr.mxu0 %v6536
    %6572 = vmatpush2.msra.mxu0 %v6535
    %6573 = vmatprep.subr.mxu0 %v6532
    %6574 = vmatpush2.msra.mxu0 %v6531
    %6575 = vmatprep.subr.mxu0 %v6528
    %6576 = vmatpush2.msra.mxu0 %v6527
    %6577 = vmatprep.subr.mxu0 %v6524
    %6578 = vmatpush2.msra.mxu0 %v6523
    %6579 = vmatprep.subr.mxu0 %v6520
    %6580 = vmatpush2.msra.mxu0 %v6519
    %6581 = vmatprep.subr.mxu0 %v6516
    %6582 = vmatpush2.msra.mxu0 %v6515
    %6583 = vmatprep.subr.mxu0 %v6512
    %6584 = vmatpush2.msra.mxu0 %v6511
    %6585 = vmatprep.subr.mxu0 %v6508
    %6586 = vmatpush2.msra.mxu0 %v6507
    %6587 = vmatprep.subr.mxu0 %v6504
    %6588 = vmatpush2.msra.mxu0 %v6503
    %6589 = vmatprep.subr.mxu0 %v6500
    %6590 = vmatpush2.msra.mxu0 %v6499
    %6591 = vmatprep.subr.mxu0 %v6496
    %6592 = vmatpush2.msra.mxu0 %v6495
    %6593 = vmatprep.subr.mxu0 %v6492
    %6594 = vmatpush2.msra.mxu0 %v6491
    %6595 = vmatprep.subr.mxu0 %v6488
    %6596 = vmatpush2.msra.mxu0 %v6487
    %6597 = vmatprep.subr.mxu0 %v6484
    %6598 = vmatpush2.msra.mxu0 %v6483
    %6599 = vmatprep.subr.mxu0 %v6480
    %6600 = vmatpush2.msra.mxu0 %v6479
    %6601 = vmatprep.subr.mxu0 %v6476
    %6602 = vmatpush2.msra.mxu0 %v6475
    %6603 = vmatprep.mubr.f32.mxu0 %v6410
    %6604 = vmatmul.mubr.f32.gmra.mxu0 %v6409
    %v6605 = vpop.f32.mrf.mxu0
    %v6606 = vadd.f32 0.0, %v6605
    %v6607 = vpop.f32.mrf.mxu0
    %v6608 = vadd.f32 0.0, %v6607
    %6609 = vdwg.mxu0
    %6610 = vmatprep.subr.mxu0 %v6474
    %6611 = vmatpush1.msra.mxu0 %v6473
    %6612 = vmatprep.subr.mxu0 %v6470
    %6613 = vmatpush1.msra.mxu0 %v6469
    %6614 = vmatprep.subr.mxu0 %v6466
    %6615 = vmatpush1.msra.mxu0 %v6465
    %6616 = vmatprep.subr.mxu0 %v6462
    %6617 = vmatpush1.msra.mxu0 %v6461
    %6618 = vmatprep.subr.mxu0 %v6458
    %6619 = vmatpush1.msra.mxu0 %v6457
    %6620 = vmatprep.subr.mxu0 %v6454
    %6621 = vmatpush1.msra.mxu0 %v6453
    %6622 = vmatprep.subr.mxu0 %v6450
    %6623 = vmatpush1.msra.mxu0 %v6449
    %6624 = vmatprep.subr.mxu0 %v6446
    %6625 = vmatpush1.msra.mxu0 %v6445
    %6626 = vmatprep.subr.mxu0 %v6442
    %6627 = vmatpush1.msra.mxu0 %v6441
    %6628 = vmatprep.subr.mxu0 %v6438
    %6629 = vmatpush1.msra.mxu0 %v6437
    %6630 = vmatprep.subr.mxu0 %v6434
    %6631 = vmatpush1.msra.mxu0 %v6433
    %6632 = vmatprep.subr.mxu0 %v6430
    %6633 = vmatpush1.msra.mxu0 %v6429
    %6634 = vmatprep.subr.mxu0 %v6426
    %6635 = vmatpush1.msra.mxu0 %v6425
    %6636 = vmatprep.subr.mxu0 %v6422
    %6637 = vmatpush1.msra.mxu0 %v6421
    %6638 = vmatprep.subr.mxu0 %v6418
    %6639 = vmatpush1.msra.mxu0 %v6417
    %6640 = vmatprep.subr.mxu0 %v6414
    %6641 = vmatpush1.msra.mxu0 %v6413
    %6642 = vmatprep.subr.mxu0 %v6538
    %6643 = vmatpush2.msra.mxu0 %v6537
    %6644 = vmatprep.subr.mxu0 %v6534
    %6645 = vmatpush2.msra.mxu0 %v6533
    %6646 = vmatprep.subr.mxu0 %v6530
    %6647 = vmatpush2.msra.mxu0 %v6529
    %6648 = vmatprep.subr.mxu0 %v6526
    %6649 = vmatpush2.msra.mxu0 %v6525
    %6650 = vmatprep.subr.mxu0 %v6522
    %6651 = vmatpush2.msra.mxu0 %v6521
    %6652 = vmatprep.subr.mxu0 %v6518
    %6653 = vmatpush2.msra.mxu0 %v6517
    %6654 = vmatprep.subr.mxu0 %v6514
    %6655 = vmatpush2.msra.mxu0 %v6513
    %6656 = vmatprep.subr.mxu0 %v6510
    %6657 = vmatpush2.msra.mxu0 %v6509
    %6658 = vmatprep.subr.mxu0 %v6506
    %6659 = vmatpush2.msra.mxu0 %v6505
    %6660 = vmatprep.subr.mxu0 %v6502
    %6661 = vmatpush2.msra.mxu0 %v6501
    %6662 = vmatprep.subr.mxu0 %v6498
    %6663 = vmatpush2.msra.mxu0 %v6497
    %6664 = vmatprep.subr.mxu0 %v6494
    %6665 = vmatpush2.msra.mxu0 %v6493
    %6666 = vmatprep.subr.mxu0 %v6490
    %6667 = vmatpush2.msra.mxu0 %v6489
    %6668 = vmatprep.subr.mxu0 %v6486
    %6669 = vmatpush2.msra.mxu0 %v6485
    %6670 = vmatprep.subr.mxu0 %v6482
    %6671 = vmatpush2.msra.mxu0 %v6481
    %6672 = vmatprep.subr.mxu0 %v6478
    %6673 = vmatpush2.msra.mxu0 %v6477
    %6674 = vmatprep.mubr.f32.mxu0 %v6410
    %6675 = vmatmul.mubr.f32.gmra.mxu0 %v6409
    %v6676 = vpop.f32.mrf.mxu0
    %v6677 = vadd.f32 0.0, %v6676
    %v6678 = vpop.f32.mrf.mxu0
    %v6679 = vadd.f32 0.0, %v6678
    %6680 = vdwg.mxu0
    %v6681 = vadd.f32 %v6405, %v6606
    %v6682 = vadd.f32 %v6406, %v6608
    %v6683 = vadd.f32 %v6407, %v6677
    %v6684 = vadd.f32 %v6408, %v6679
    %v6685 = vld [vmem:[#allocation2 + $0xd0] sm:$0xff]
    %v6686 = vld [vmem:[#allocation2 + $0xd8] sm:$0xff]
    %v6687 = vld [vmem:[%s3893] sm:$0xff]
    %v6688 = vld [vmem:[%s3893 + $0x8] sm:$0xff]
    %v6689 = vld [vmem:[%s3893 + $0x10] sm:$0xff]
    %v6690 = vld [vmem:[%s3893 + $0x18] sm:$0xff]
    %v6691 = vld [vmem:[%s3893 + $0x20] sm:$0xff]
    %v6692 = vld [vmem:[%s3893 + $0x28] sm:$0xff]
    %v6693 = vld [vmem:[%s3893 + $0x30] sm:$0xff]
    %v6694 = vld [vmem:[%s3893 + $0x38] sm:$0xff]
    %v6695 = vld [vmem:[%s3893 + $0x40] sm:$0xff]
    %v6696 = vld [vmem:[%s3893 + $0x48] sm:$0xff]
    %v6697 = vld [vmem:[%s3893 + $0x50] sm:$0xff]
    %v6698 = vld [vmem:[%s3893 + $0x58] sm:$0xff]
    %v6699 = vld [vmem:[%s3893 + $0x60] sm:$0xff]
    %v6700 = vld [vmem:[%s3893 + $0x68] sm:$0xff]
    %v6701 = vld [vmem:[%s3893 + $0x70] sm:$0xff]
    %v6702 = vld [vmem:[%s3893 + $0x78] sm:$0xff]
    %v6703 = vld [vmem:[%s3893 + $0x80] sm:$0xff]
    %v6704 = vld [vmem:[%s3893 + $0x88] sm:$0xff]
    %v6705 = vld [vmem:[%s3893 + $0x90] sm:$0xff]
    %v6706 = vld [vmem:[%s3893 + $0x98] sm:$0xff]
    %v6707 = vld [vmem:[%s3893 + $0xa0] sm:$0xff]
    %v6708 = vld [vmem:[%s3893 + $0xa8] sm:$0xff]
    %v6709 = vld [vmem:[%s3893 + $0xb0] sm:$0xff]
    %v6710 = vld [vmem:[%s3893 + $0xb8] sm:$0xff]
    %v6711 = vld [vmem:[%s3893 + $0xc0] sm:$0xff]
    %v6712 = vld [vmem:[%s3893 + $0xc8] sm:$0xff]
    %v6713 = vld [vmem:[%s3893 + $0xd0] sm:$0xff]
    %v6714 = vld [vmem:[%s3893 + $0xd8] sm:$0xff]
    %v6715 = vld [vmem:[%s3893 + $0xe0] sm:$0xff]
    %v6716 = vld [vmem:[%s3893 + $0xe8] sm:$0xff]
    %v6717 = vld [vmem:[%s3893 + $0xf0] sm:$0xff]
    %v6718 = vld [vmem:[%s3893 + $0xf8] sm:$0xff]
    %v6719 = vld [vmem:[%s3893 + $0x100] sm:$0xff]
    %v6720 = vld [vmem:[%s3893 + $0x108] sm:$0xff]
    %v6721 = vld [vmem:[%s3893 + $0x110] sm:$0xff]
    %v6722 = vld [vmem:[%s3893 + $0x118] sm:$0xff]
    %v6723 = vld [vmem:[%s3893 + $0x120] sm:$0xff]
    %v6724 = vld [vmem:[%s3893 + $0x128] sm:$0xff]
    %v6725 = vld [vmem:[%s3893 + $0x130] sm:$0xff]
    %v6726 = vld [vmem:[%s3893 + $0x138] sm:$0xff]
    %v6727 = vld [vmem:[%s3893 + $0x140] sm:$0xff]
    %v6728 = vld [vmem:[%s3893 + $0x148] sm:$0xff]
    %v6729 = vld [vmem:[%s3893 + $0x150] sm:$0xff]
    %v6730 = vld [vmem:[%s3893 + $0x158] sm:$0xff]
    %v6731 = vld [vmem:[%s3893 + $0x160] sm:$0xff]
    %v6732 = vld [vmem:[%s3893 + $0x168] sm:$0xff]
    %v6733 = vld [vmem:[%s3893 + $0x170] sm:$0xff]
    %v6734 = vld [vmem:[%s3893 + $0x178] sm:$0xff]
    %v6735 = vld [vmem:[%s3893 + $0x180] sm:$0xff]
    %v6736 = vld [vmem:[%s3893 + $0x188] sm:$0xff]
    %v6737 = vld [vmem:[%s3893 + $0x190] sm:$0xff]
    %v6738 = vld [vmem:[%s3893 + $0x198] sm:$0xff]
    %v6739 = vld [vmem:[%s3893 + $0x1a0] sm:$0xff]
    %v6740 = vld [vmem:[%s3893 + $0x1a8] sm:$0xff]
    %v6741 = vld [vmem:[%s3893 + $0x1b0] sm:$0xff]
    %v6742 = vld [vmem:[%s3893 + $0x1b8] sm:$0xff]
    %v6743 = vld [vmem:[%s3893 + $0x1c0] sm:$0xff]
    %v6744 = vld [vmem:[%s3893 + $0x1c8] sm:$0xff]
    %v6745 = vld [vmem:[%s3893 + $0x1d0] sm:$0xff]
    %v6746 = vld [vmem:[%s3893 + $0x1d8] sm:$0xff]
    %v6747 = vld [vmem:[%s3893 + $0x1e0] sm:$0xff]
    %v6748 = vld [vmem:[%s3893 + $0x1e8] sm:$0xff]
    %v6749 = vld [vmem:[%s3893 + $0x1f0] sm:$0xff]
    %v6750 = vld [vmem:[%s3893 + $0x1f8] sm:$0xff]
    %v6751 = vld [vmem:[%s3893 + $0x200] sm:$0xff]
    %v6752 = vld [vmem:[%s3893 + $0x208] sm:$0xff]
    %v6753 = vld [vmem:[%s3893 + $0x210] sm:$0xff]
    %v6754 = vld [vmem:[%s3893 + $0x218] sm:$0xff]
    %v6755 = vld [vmem:[%s3893 + $0x220] sm:$0xff]
    %v6756 = vld [vmem:[%s3893 + $0x228] sm:$0xff]
    %v6757 = vld [vmem:[%s3893 + $0x230] sm:$0xff]
    %v6758 = vld [vmem:[%s3893 + $0x238] sm:$0xff]
    %v6759 = vld [vmem:[%s3893 + $0x240] sm:$0xff]
    %v6760 = vld [vmem:[%s3893 + $0x248] sm:$0xff]
    %v6761 = vld [vmem:[%s3893 + $0x250] sm:$0xff]
    %v6762 = vld [vmem:[%s3893 + $0x258] sm:$0xff]
    %v6763 = vld [vmem:[%s3893 + $0x260] sm:$0xff]
    %v6764 = vld [vmem:[%s3893 + $0x268] sm:$0xff]
    %v6765 = vld [vmem:[%s3893 + $0x270] sm:$0xff]
    %v6766 = vld [vmem:[%s3893 + $0x278] sm:$0xff]
    %v6767 = vld [vmem:[%s3893 + $0x280] sm:$0xff]
    %v6768 = vld [vmem:[%s3893 + $0x288] sm:$0xff]
    %v6769 = vld [vmem:[%s3893 + $0x290] sm:$0xff]
    %v6770 = vld [vmem:[%s3893 + $0x298] sm:$0xff]
    %v6771 = vld [vmem:[%s3893 + $0x2a0] sm:$0xff]
    %v6772 = vld [vmem:[%s3893 + $0x2a8] sm:$0xff]
    %v6773 = vld [vmem:[%s3893 + $0x2b0] sm:$0xff]
    %v6774 = vld [vmem:[%s3893 + $0x2b8] sm:$0xff]
    %v6775 = vld [vmem:[%s3893 + $0x2c0] sm:$0xff]
    %v6776 = vld [vmem:[%s3893 + $0x2c8] sm:$0xff]
    %v6777 = vld [vmem:[%s3893 + $0x2d0] sm:$0xff]
    %v6778 = vld [vmem:[%s3893 + $0x2d8] sm:$0xff]
    %v6779 = vld [vmem:[%s3893 + $0x2e0] sm:$0xff]
    %v6780 = vld [vmem:[%s3893 + $0x2e8] sm:$0xff]
    %v6781 = vld [vmem:[%s3893 + $0x2f0] sm:$0xff]
    %v6782 = vld [vmem:[%s3893 + $0x2f8] sm:$0xff]
    %v6783 = vld [vmem:[%s3893 + $0x300] sm:$0xff]
    %v6784 = vld [vmem:[%s3893 + $0x308] sm:$0xff]
    %v6785 = vld [vmem:[%s3893 + $0x310] sm:$0xff]
    %v6786 = vld [vmem:[%s3893 + $0x318] sm:$0xff]
    %v6787 = vld [vmem:[%s3893 + $0x320] sm:$0xff]
    %v6788 = vld [vmem:[%s3893 + $0x328] sm:$0xff]
    %v6789 = vld [vmem:[%s3893 + $0x330] sm:$0xff]
    %v6790 = vld [vmem:[%s3893 + $0x338] sm:$0xff]
    %v6791 = vld [vmem:[%s3893 + $0x340] sm:$0xff]
    %v6792 = vld [vmem:[%s3893 + $0x348] sm:$0xff]
    %v6793 = vld [vmem:[%s3893 + $0x350] sm:$0xff]
    %v6794 = vld [vmem:[%s3893 + $0x358] sm:$0xff]
    %v6795 = vld [vmem:[%s3893 + $0x360] sm:$0xff]
    %v6796 = vld [vmem:[%s3893 + $0x368] sm:$0xff]
    %v6797 = vld [vmem:[%s3893 + $0x370] sm:$0xff]
    %v6798 = vld [vmem:[%s3893 + $0x378] sm:$0xff]
    %v6799 = vld [vmem:[%s3893 + $0x380] sm:$0xff]
    %v6800 = vld [vmem:[%s3893 + $0x388] sm:$0xff]
    %v6801 = vld [vmem:[%s3893 + $0x390] sm:$0xff]
    %v6802 = vld [vmem:[%s3893 + $0x398] sm:$0xff]
    %v6803 = vld [vmem:[%s3893 + $0x3a0] sm:$0xff]
    %v6804 = vld [vmem:[%s3893 + $0x3a8] sm:$0xff]
    %v6805 = vld [vmem:[%s3893 + $0x3b0] sm:$0xff]
    %v6806 = vld [vmem:[%s3893 + $0x3b8] sm:$0xff]
    %v6807 = vld [vmem:[%s3893 + $0x3c0] sm:$0xff]
    %v6808 = vld [vmem:[%s3893 + $0x3c8] sm:$0xff]
    %v6809 = vld [vmem:[%s3893 + $0x3d0] sm:$0xff]
    %v6810 = vld [vmem:[%s3893 + $0x3d8] sm:$0xff]
    %v6811 = vld [vmem:[%s3893 + $0x3e0] sm:$0xff]
    %v6812 = vld [vmem:[%s3893 + $0x3e8] sm:$0xff]
    %v6813 = vld [vmem:[%s3893 + $0x3f0] sm:$0xff]
    %v6814 = vld [vmem:[%s3893 + $0x3f8] sm:$0xff]
    %6815 = vmatprep.subr.mxu0 %v6748
    %6816 = vmatpush1.msra.mxu0 %v6747
    %6817 = vmatprep.subr.mxu0 %v6744
    %6818 = vmatpush1.msra.mxu0 %v6743
    %6819 = vmatprep.subr.mxu0 %v6740
    %6820 = vmatpush1.msra.mxu0 %v6739
    %6821 = vmatprep.subr.mxu0 %v6736
    %6822 = vmatpush1.msra.mxu0 %v6735
    %6823 = vmatprep.subr.mxu0 %v6732
    %6824 = vmatpush1.msra.mxu0 %v6731
    %6825 = vmatprep.subr.mxu0 %v6728
    %6826 = vmatpush1.msra.mxu0 %v6727
    %6827 = vmatprep.subr.mxu0 %v6724
    %6828 = vmatpush1.msra.mxu0 %v6723
    %6829 = vmatprep.subr.mxu0 %v6720
    %6830 = vmatpush1.msra.mxu0 %v6719
    %6831 = vmatprep.subr.mxu0 %v6716
    %6832 = vmatpush1.msra.mxu0 %v6715
    %6833 = vmatprep.subr.mxu0 %v6712
    %6834 = vmatpush1.msra.mxu0 %v6711
    %6835 = vmatprep.subr.mxu0 %v6708
    %6836 = vmatpush1.msra.mxu0 %v6707
    %6837 = vmatprep.subr.mxu0 %v6704
    %6838 = vmatpush1.msra.mxu0 %v6703
    %6839 = vmatprep.subr.mxu0 %v6700
    %6840 = vmatpush1.msra.mxu0 %v6699
    %6841 = vmatprep.subr.mxu0 %v6696
    %6842 = vmatpush1.msra.mxu0 %v6695
    %6843 = vmatprep.subr.mxu0 %v6692
    %6844 = vmatpush1.msra.mxu0 %v6691
    %6845 = vmatprep.subr.mxu0 %v6688
    %6846 = vmatpush1.msra.mxu0 %v6687
    %6847 = vmatprep.subr.mxu0 %v6812
    %6848 = vmatpush2.msra.mxu0 %v6811
    %6849 = vmatprep.subr.mxu0 %v6808
    %6850 = vmatpush2.msra.mxu0 %v6807
    %6851 = vmatprep.subr.mxu0 %v6804
    %6852 = vmatpush2.msra.mxu0 %v6803
    %6853 = vmatprep.subr.mxu0 %v6800
    %6854 = vmatpush2.msra.mxu0 %v6799
    %6855 = vmatprep.subr.mxu0 %v6796
    %6856 = vmatpush2.msra.mxu0 %v6795
    %6857 = vmatprep.subr.mxu0 %v6792
    %6858 = vmatpush2.msra.mxu0 %v6791
    %6859 = vmatprep.subr.mxu0 %v6788
    %6860 = vmatpush2.msra.mxu0 %v6787
    %6861 = vmatprep.subr.mxu0 %v6784
    %6862 = vmatpush2.msra.mxu0 %v6783
    %6863 = vmatprep.subr.mxu0 %v6780
    %6864 = vmatpush2.msra.mxu0 %v6779
    %6865 = vmatprep.subr.mxu0 %v6776
    %6866 = vmatpush2.msra.mxu0 %v6775
    %6867 = vmatprep.subr.mxu0 %v6772
    %6868 = vmatpush2.msra.mxu0 %v6771
    %6869 = vmatprep.subr.mxu0 %v6768
    %6870 = vmatpush2.msra.mxu0 %v6767
    %6871 = vmatprep.subr.mxu0 %v6764
    %6872 = vmatpush2.msra.mxu0 %v6763
    %6873 = vmatprep.subr.mxu0 %v6760
    %6874 = vmatpush2.msra.mxu0 %v6759
    %6875 = vmatprep.subr.mxu0 %v6756
    %6876 = vmatpush2.msra.mxu0 %v6755
    %6877 = vmatprep.subr.mxu0 %v6752
    %6878 = vmatpush2.msra.mxu0 %v6751
    %6879 = vmatprep.mubr.f32.mxu0 %v6686
    %6880 = vmatmul.mubr.f32.gmra.mxu0 %v6685
    %v6881 = vpop.f32.mrf.mxu0
    %v6882 = vadd.f32 0.0, %v6881
    %v6883 = vpop.f32.mrf.mxu0
    %v6884 = vadd.f32 0.0, %v6883
    %6885 = vdwg.mxu0
    %6886 = vmatprep.subr.mxu0 %v6750
    %6887 = vmatpush1.msra.mxu0 %v6749
    %6888 = vmatprep.subr.mxu0 %v6746
    %6889 = vmatpush1.msra.mxu0 %v6745
    %6890 = vmatprep.subr.mxu0 %v6742
    %6891 = vmatpush1.msra.mxu0 %v6741
    %6892 = vmatprep.subr.mxu0 %v6738
    %6893 = vmatpush1.msra.mxu0 %v6737
    %6894 = vmatprep.subr.mxu0 %v6734
    %6895 = vmatpush1.msra.mxu0 %v6733
    %6896 = vmatprep.subr.mxu0 %v6730
    %6897 = vmatpush1.msra.mxu0 %v6729
    %6898 = vmatprep.subr.mxu0 %v6726
    %6899 = vmatpush1.msra.mxu0 %v6725
    %6900 = vmatprep.subr.mxu0 %v6722
    %6901 = vmatpush1.msra.mxu0 %v6721
    %6902 = vmatprep.subr.mxu0 %v6718
    %6903 = vmatpush1.msra.mxu0 %v6717
    %6904 = vmatprep.subr.mxu0 %v6714
    %6905 = vmatpush1.msra.mxu0 %v6713
    %6906 = vmatprep.subr.mxu0 %v6710
    %6907 = vmatpush1.msra.mxu0 %v6709
    %6908 = vmatprep.subr.mxu0 %v6706
    %6909 = vmatpush1.msra.mxu0 %v6705
    %6910 = vmatprep.subr.mxu0 %v6702
    %6911 = vmatpush1.msra.mxu0 %v6701
    %6912 = vmatprep.subr.mxu0 %v6698
    %6913 = vmatpush1.msra.mxu0 %v6697
    %6914 = vmatprep.subr.mxu0 %v6694
    %6915 = vmatpush1.msra.mxu0 %v6693
    %6916 = vmatprep.subr.mxu0 %v6690
    %6917 = vmatpush1.msra.mxu0 %v6689
    %6918 = vmatprep.subr.mxu0 %v6814
    %6919 = vmatpush2.msra.mxu0 %v6813
    %6920 = vmatprep.subr.mxu0 %v6810
    %6921 = vmatpush2.msra.mxu0 %v6809
    %6922 = vmatprep.subr.mxu0 %v6806
    %6923 = vmatpush2.msra.mxu0 %v6805
    %6924 = vmatprep.subr.mxu0 %v6802
    %6925 = vmatpush2.msra.mxu0 %v6801
    %6926 = vmatprep.subr.mxu0 %v6798
    %6927 = vmatpush2.msra.mxu0 %v6797
    %6928 = vmatprep.subr.mxu0 %v6794
    %6929 = vmatpush2.msra.mxu0 %v6793
    %6930 = vmatprep.subr.mxu0 %v6790
    %6931 = vmatpush2.msra.mxu0 %v6789
    %6932 = vmatprep.subr.mxu0 %v6786
    %6933 = vmatpush2.msra.mxu0 %v6785
    %6934 = vmatprep.subr.mxu0 %v6782
    %6935 = vmatpush2.msra.mxu0 %v6781
    %6936 = vmatprep.subr.mxu0 %v6778
    %6937 = vmatpush2.msra.mxu0 %v6777
    %6938 = vmatprep.subr.mxu0 %v6774
    %6939 = vmatpush2.msra.mxu0 %v6773
    %6940 = vmatprep.subr.mxu0 %v6770
    %6941 = vmatpush2.msra.mxu0 %v6769
    %6942 = vmatprep.subr.mxu0 %v6766
    %6943 = vmatpush2.msra.mxu0 %v6765
    %6944 = vmatprep.subr.mxu0 %v6762
    %6945 = vmatpush2.msra.mxu0 %v6761
    %6946 = vmatprep.subr.mxu0 %v6758
    %6947 = vmatpush2.msra.mxu0 %v6757
    %6948 = vmatprep.subr.mxu0 %v6754
    %6949 = vmatpush2.msra.mxu0 %v6753
    %6950 = vmatprep.mubr.f32.mxu0 %v6686
    %6951 = vmatmul.mubr.f32.gmra.mxu0 %v6685
    %v6952 = vpop.f32.mrf.mxu0
    %v6953 = vadd.f32 0.0, %v6952
    %v6954 = vpop.f32.mrf.mxu0
    %v6955 = vadd.f32 0.0, %v6954
    %6956 = vdwg.mxu0
    %v6957 = vadd.f32 %v6681, %v6882
    %v6958 = vadd.f32 %v6682, %v6884
    %v6959 = vadd.f32 %v6683, %v6953
    %v6960 = vadd.f32 %v6684, %v6955
    %v6961 = vld [vmem:[#allocation2 + $0xe0] sm:$0xff]
    %v6962 = vld [vmem:[#allocation2 + $0xe8] sm:$0xff]
    %v6963 = vld [vmem:[%s4170] sm:$0xff]
    %v6964 = vld [vmem:[%s4170 + $0x8] sm:$0xff]
    %v6965 = vld [vmem:[%s4170 + $0x10] sm:$0xff]
    %v6966 = vld [vmem:[%s4170 + $0x18] sm:$0xff]
    %v6967 = vld [vmem:[%s4170 + $0x20] sm:$0xff]
    %v6968 = vld [vmem:[%s4170 + $0x28] sm:$0xff]
    %v6969 = vld [vmem:[%s4170 + $0x30] sm:$0xff]
    %v6970 = vld [vmem:[%s4170 + $0x38] sm:$0xff]
    %v6971 = vld [vmem:[%s4170 + $0x40] sm:$0xff]
    %v6972 = vld [vmem:[%s4170 + $0x48] sm:$0xff]
    %v6973 = vld [vmem:[%s4170 + $0x50] sm:$0xff]
    %v6974 = vld [vmem:[%s4170 + $0x58] sm:$0xff]
    %v6975 = vld [vmem:[%s4170 + $0x60] sm:$0xff]
    %v6976 = vld [vmem:[%s4170 + $0x68] sm:$0xff]
    %v6977 = vld [vmem:[%s4170 + $0x70] sm:$0xff]
    %v6978 = vld [vmem:[%s4170 + $0x78] sm:$0xff]
    %v6979 = vld [vmem:[%s4170 + $0x80] sm:$0xff]
    %v6980 = vld [vmem:[%s4170 + $0x88] sm:$0xff]
    %v6981 = vld [vmem:[%s4170 + $0x90] sm:$0xff]
    %v6982 = vld [vmem:[%s4170 + $0x98] sm:$0xff]
    %v6983 = vld [vmem:[%s4170 + $0xa0] sm:$0xff]
    %v6984 = vld [vmem:[%s4170 + $0xa8] sm:$0xff]
    %v6985 = vld [vmem:[%s4170 + $0xb0] sm:$0xff]
    %v6986 = vld [vmem:[%s4170 + $0xb8] sm:$0xff]
    %v6987 = vld [vmem:[%s4170 + $0xc0] sm:$0xff]
    %v6988 = vld [vmem:[%s4170 + $0xc8] sm:$0xff]
    %v6989 = vld [vmem:[%s4170 + $0xd0] sm:$0xff]
    %v6990 = vld [vmem:[%s4170 + $0xd8] sm:$0xff]
    %v6991 = vld [vmem:[%s4170 + $0xe0] sm:$0xff]
    %v6992 = vld [vmem:[%s4170 + $0xe8] sm:$0xff]
    %v6993 = vld [vmem:[%s4170 + $0xf0] sm:$0xff]
    %v6994 = vld [vmem:[%s4170 + $0xf8] sm:$0xff]
    %v6995 = vld [vmem:[%s4170 + $0x100] sm:$0xff]
    %v6996 = vld [vmem:[%s4170 + $0x108] sm:$0xff]
    %v6997 = vld [vmem:[%s4170 + $0x110] sm:$0xff]
    %v6998 = vld [vmem:[%s4170 + $0x118] sm:$0xff]
    %v6999 = vld [vmem:[%s4170 + $0x120] sm:$0xff]
    %v7000 = vld [vmem:[%s4170 + $0x128] sm:$0xff]
    %v7001 = vld [vmem:[%s4170 + $0x130] sm:$0xff]
    %v7002 = vld [vmem:[%s4170 + $0x138] sm:$0xff]
    %v7003 = vld [vmem:[%s4170 + $0x140] sm:$0xff]
    %v7004 = vld [vmem:[%s4170 + $0x148] sm:$0xff]
    %v7005 = vld [vmem:[%s4170 + $0x150] sm:$0xff]
    %v7006 = vld [vmem:[%s4170 + $0x158] sm:$0xff]
    %v7007 = vld [vmem:[%s4170 + $0x160] sm:$0xff]
    %v7008 = vld [vmem:[%s4170 + $0x168] sm:$0xff]
    %v7009 = vld [vmem:[%s4170 + $0x170] sm:$0xff]
    %v7010 = vld [vmem:[%s4170 + $0x178] sm:$0xff]
    %v7011 = vld [vmem:[%s4170 + $0x180] sm:$0xff]
    %v7012 = vld [vmem:[%s4170 + $0x188] sm:$0xff]
    %v7013 = vld [vmem:[%s4170 + $0x190] sm:$0xff]
    %v7014 = vld [vmem:[%s4170 + $0x198] sm:$0xff]
    %v7015 = vld [vmem:[%s4170 + $0x1a0] sm:$0xff]
    %v7016 = vld [vmem:[%s4170 + $0x1a8] sm:$0xff]
    %v7017 = vld [vmem:[%s4170 + $0x1b0] sm:$0xff]
    %v7018 = vld [vmem:[%s4170 + $0x1b8] sm:$0xff]
    %v7019 = vld [vmem:[%s4170 + $0x1c0] sm:$0xff]
    %v7020 = vld [vmem:[%s4170 + $0x1c8] sm:$0xff]
    %v7021 = vld [vmem:[%s4170 + $0x1d0] sm:$0xff]
    %v7022 = vld [vmem:[%s4170 + $0x1d8] sm:$0xff]
    %v7023 = vld [vmem:[%s4170 + $0x1e0] sm:$0xff]
    %v7024 = vld [vmem:[%s4170 + $0x1e8] sm:$0xff]
    %v7025 = vld [vmem:[%s4170 + $0x1f0] sm:$0xff]
    %v7026 = vld [vmem:[%s4170 + $0x1f8] sm:$0xff]
    %v7027 = vld [vmem:[%s4170 + $0x200] sm:$0xff]
    %v7028 = vld [vmem:[%s4170 + $0x208] sm:$0xff]
    %v7029 = vld [vmem:[%s4170 + $0x210] sm:$0xff]
    %v7030 = vld [vmem:[%s4170 + $0x218] sm:$0xff]
    %v7031 = vld [vmem:[%s4170 + $0x220] sm:$0xff]
    %v7032 = vld [vmem:[%s4170 + $0x228] sm:$0xff]
    %v7033 = vld [vmem:[%s4170 + $0x230] sm:$0xff]
    %v7034 = vld [vmem:[%s4170 + $0x238] sm:$0xff]
    %v7035 = vld [vmem:[%s4170 + $0x240] sm:$0xff]
    %v7036 = vld [vmem:[%s4170 + $0x248] sm:$0xff]
    %v7037 = vld [vmem:[%s4170 + $0x250] sm:$0xff]
    %v7038 = vld [vmem:[%s4170 + $0x258] sm:$0xff]
    %v7039 = vld [vmem:[%s4170 + $0x260] sm:$0xff]
    %v7040 = vld [vmem:[%s4170 + $0x268] sm:$0xff]
    %v7041 = vld [vmem:[%s4170 + $0x270] sm:$0xff]
    %v7042 = vld [vmem:[%s4170 + $0x278] sm:$0xff]
    %v7043 = vld [vmem:[%s4170 + $0x280] sm:$0xff]
    %v7044 = vld [vmem:[%s4170 + $0x288] sm:$0xff]
    %v7045 = vld [vmem:[%s4170 + $0x290] sm:$0xff]
    %v7046 = vld [vmem:[%s4170 + $0x298] sm:$0xff]
    %v7047 = vld [vmem:[%s4170 + $0x2a0] sm:$0xff]
    %v7048 = vld [vmem:[%s4170 + $0x2a8] sm:$0xff]
    %v7049 = vld [vmem:[%s4170 + $0x2b0] sm:$0xff]
    %v7050 = vld [vmem:[%s4170 + $0x2b8] sm:$0xff]
    %v7051 = vld [vmem:[%s4170 + $0x2c0] sm:$0xff]
    %v7052 = vld [vmem:[%s4170 + $0x2c8] sm:$0xff]
    %v7053 = vld [vmem:[%s4170 + $0x2d0] sm:$0xff]
    %v7054 = vld [vmem:[%s4170 + $0x2d8] sm:$0xff]
    %v7055 = vld [vmem:[%s4170 + $0x2e0] sm:$0xff]
    %v7056 = vld [vmem:[%s4170 + $0x2e8] sm:$0xff]
    %v7057 = vld [vmem:[%s4170 + $0x2f0] sm:$0xff]
    %v7058 = vld [vmem:[%s4170 + $0x2f8] sm:$0xff]
    %v7059 = vld [vmem:[%s4170 + $0x300] sm:$0xff]
    %v7060 = vld [vmem:[%s4170 + $0x308] sm:$0xff]
    %v7061 = vld [vmem:[%s4170 + $0x310] sm:$0xff]
    %v7062 = vld [vmem:[%s4170 + $0x318] sm:$0xff]
    %v7063 = vld [vmem:[%s4170 + $0x320] sm:$0xff]
    %v7064 = vld [vmem:[%s4170 + $0x328] sm:$0xff]
    %v7065 = vld [vmem:[%s4170 + $0x330] sm:$0xff]
    %v7066 = vld [vmem:[%s4170 + $0x338] sm:$0xff]
    %v7067 = vld [vmem:[%s4170 + $0x340] sm:$0xff]
    %v7068 = vld [vmem:[%s4170 + $0x348] sm:$0xff]
    %v7069 = vld [vmem:[%s4170 + $0x350] sm:$0xff]
    %v7070 = vld [vmem:[%s4170 + $0x358] sm:$0xff]
    %v7071 = vld [vmem:[%s4170 + $0x360] sm:$0xff]
    %v7072 = vld [vmem:[%s4170 + $0x368] sm:$0xff]
    %v7073 = vld [vmem:[%s4170 + $0x370] sm:$0xff]
    %v7074 = vld [vmem:[%s4170 + $0x378] sm:$0xff]
    %v7075 = vld [vmem:[%s4170 + $0x380] sm:$0xff]
    %v7076 = vld [vmem:[%s4170 + $0x388] sm:$0xff]
    %v7077 = vld [vmem:[%s4170 + $0x390] sm:$0xff]
    %v7078 = vld [vmem:[%s4170 + $0x398] sm:$0xff]
    %v7079 = vld [vmem:[%s4170 + $0x3a0] sm:$0xff]
    %v7080 = vld [vmem:[%s4170 + $0x3a8] sm:$0xff]
    %v7081 = vld [vmem:[%s4170 + $0x3b0] sm:$0xff]
    %v7082 = vld [vmem:[%s4170 + $0x3b8] sm:$0xff]
    %v7083 = vld [vmem:[%s4170 + $0x3c0] sm:$0xff]
    %v7084 = vld [vmem:[%s4170 + $0x3c8] sm:$0xff]
    %v7085 = vld [vmem:[%s4170 + $0x3d0] sm:$0xff]
    %v7086 = vld [vmem:[%s4170 + $0x3d8] sm:$0xff]
    %v7087 = vld [vmem:[%s4170 + $0x3e0] sm:$0xff]
    %v7088 = vld [vmem:[%s4170 + $0x3e8] sm:$0xff]
    %v7089 = vld [vmem:[%s4170 + $0x3f0] sm:$0xff]
    %v7090 = vld [vmem:[%s4170 + $0x3f8] sm:$0xff]
    %7091 = vmatprep.subr.mxu0 %v7024
    %7092 = vmatpush1.msra.mxu0 %v7023
    %7093 = vmatprep.subr.mxu0 %v7020
    %7094 = vmatpush1.msra.mxu0 %v7019
    %7095 = vmatprep.subr.mxu0 %v7016
    %7096 = vmatpush1.msra.mxu0 %v7015
    %7097 = vmatprep.subr.mxu0 %v7012
    %7098 = vmatpush1.msra.mxu0 %v7011
    %7099 = vmatprep.subr.mxu0 %v7008
    %7100 = vmatpush1.msra.mxu0 %v7007
    %7101 = vmatprep.subr.mxu0 %v7004
    %7102 = vmatpush1.msra.mxu0 %v7003
    %7103 = vmatprep.subr.mxu0 %v7000
    %7104 = vmatpush1.msra.mxu0 %v6999
    %7105 = vmatprep.subr.mxu0 %v6996
    %7106 = vmatpush1.msra.mxu0 %v6995
    %7107 = vmatprep.subr.mxu0 %v6992
    %7108 = vmatpush1.msra.mxu0 %v6991
    %7109 = vmatprep.subr.mxu0 %v6988
    %7110 = vmatpush1.msra.mxu0 %v6987
    %7111 = vmatprep.subr.mxu0 %v6984
    %7112 = vmatpush1.msra.mxu0 %v6983
    %7113 = vmatprep.subr.mxu0 %v6980
    %7114 = vmatpush1.msra.mxu0 %v6979
    %7115 = vmatprep.subr.mxu0 %v6976
    %7116 = vmatpush1.msra.mxu0 %v6975
    %7117 = vmatprep.subr.mxu0 %v6972
    %7118 = vmatpush1.msra.mxu0 %v6971
    %7119 = vmatprep.subr.mxu0 %v6968
    %7120 = vmatpush1.msra.mxu0 %v6967
    %7121 = vmatprep.subr.mxu0 %v6964
    %7122 = vmatpush1.msra.mxu0 %v6963
    %7123 = vmatprep.subr.mxu0 %v7088
    %7124 = vmatpush2.msra.mxu0 %v7087
    %7125 = vmatprep.subr.mxu0 %v7084
    %7126 = vmatpush2.msra.mxu0 %v7083
    %7127 = vmatprep.subr.mxu0 %v7080
    %7128 = vmatpush2.msra.mxu0 %v7079
    %7129 = vmatprep.subr.mxu0 %v7076
    %7130 = vmatpush2.msra.mxu0 %v7075
    %7131 = vmatprep.subr.mxu0 %v7072
    %7132 = vmatpush2.msra.mxu0 %v7071
    %7133 = vmatprep.subr.mxu0 %v7068
    %7134 = vmatpush2.msra.mxu0 %v7067
    %7135 = vmatprep.subr.mxu0 %v7064
    %7136 = vmatpush2.msra.mxu0 %v7063
    %7137 = vmatprep.subr.mxu0 %v7060
    %7138 = vmatpush2.msra.mxu0 %v7059
    %7139 = vmatprep.subr.mxu0 %v7056
    %7140 = vmatpush2.msra.mxu0 %v7055
    %7141 = vmatprep.subr.mxu0 %v7052
    %7142 = vmatpush2.msra.mxu0 %v7051
    %7143 = vmatprep.subr.mxu0 %v7048
    %7144 = vmatpush2.msra.mxu0 %v7047
    %7145 = vmatprep.subr.mxu0 %v7044
    %7146 = vmatpush2.msra.mxu0 %v7043
    %7147 = vmatprep.subr.mxu0 %v7040
    %7148 = vmatpush2.msra.mxu0 %v7039
    %7149 = vmatprep.subr.mxu0 %v7036
    %7150 = vmatpush2.msra.mxu0 %v7035
    %7151 = vmatprep.subr.mxu0 %v7032
    %7152 = vmatpush2.msra.mxu0 %v7031
    %7153 = vmatprep.subr.mxu0 %v7028
    %7154 = vmatpush2.msra.mxu0 %v7027
    %7155 = vmatprep.mubr.f32.mxu0 %v6962
    %7156 = vmatmul.mubr.f32.gmra.mxu0 %v6961
    %v7157 = vpop.f32.mrf.mxu0
    %v7158 = vadd.f32 0.0, %v7157
    %v7159 = vpop.f32.mrf.mxu0
    %v7160 = vadd.f32 0.0, %v7159
    %7161 = vdwg.mxu0
    %7162 = vmatprep.subr.mxu0 %v7026
    %7163 = vmatpush1.msra.mxu0 %v7025
    %7164 = vmatprep.subr.mxu0 %v7022
    %7165 = vmatpush1.msra.mxu0 %v7021
    %7166 = vmatprep.subr.mxu0 %v7018
    %7167 = vmatpush1.msra.mxu0 %v7017
    %7168 = vmatprep.subr.mxu0 %v7014
    %7169 = vmatpush1.msra.mxu0 %v7013
    %7170 = vmatprep.subr.mxu0 %v7010
    %7171 = vmatpush1.msra.mxu0 %v7009
    %7172 = vmatprep.subr.mxu0 %v7006
    %7173 = vmatpush1.msra.mxu0 %v7005
    %7174 = vmatprep.subr.mxu0 %v7002
    %7175 = vmatpush1.msra.mxu0 %v7001
    %7176 = vmatprep.subr.mxu0 %v6998
    %7177 = vmatpush1.msra.mxu0 %v6997
    %7178 = vmatprep.subr.mxu0 %v6994
    %7179 = vmatpush1.msra.mxu0 %v6993
    %7180 = vmatprep.subr.mxu0 %v6990
    %7181 = vmatpush1.msra.mxu0 %v6989
    %7182 = vmatprep.subr.mxu0 %v6986
    %7183 = vmatpush1.msra.mxu0 %v6985
    %7184 = vmatprep.subr.mxu0 %v6982
    %7185 = vmatpush1.msra.mxu0 %v6981
    %7186 = vmatprep.subr.mxu0 %v6978
    %7187 = vmatpush1.msra.mxu0 %v6977
    %7188 = vmatprep.subr.mxu0 %v6974
    %7189 = vmatpush1.msra.mxu0 %v6973
    %7190 = vmatprep.subr.mxu0 %v6970
    %7191 = vmatpush1.msra.mxu0 %v6969
    %7192 = vmatprep.subr.mxu0 %v6966
    %7193 = vmatpush1.msra.mxu0 %v6965
    %7194 = vmatprep.subr.mxu0 %v7090
    %7195 = vmatpush2.msra.mxu0 %v7089
    %7196 = vmatprep.subr.mxu0 %v7086
    %7197 = vmatpush2.msra.mxu0 %v7085
    %7198 = vmatprep.subr.mxu0 %v7082
    %7199 = vmatpush2.msra.mxu0 %v7081
    %7200 = vmatprep.subr.mxu0 %v7078
    %7201 = vmatpush2.msra.mxu0 %v7077
    %7202 = vmatprep.subr.mxu0 %v7074
    %7203 = vmatpush2.msra.mxu0 %v7073
    %7204 = vmatprep.subr.mxu0 %v7070
    %7205 = vmatpush2.msra.mxu0 %v7069
    %7206 = vmatprep.subr.mxu0 %v7066
    %7207 = vmatpush2.msra.mxu0 %v7065
    %7208 = vmatprep.subr.mxu0 %v7062
    %7209 = vmatpush2.msra.mxu0 %v7061
    %7210 = vmatprep.subr.mxu0 %v7058
    %7211 = vmatpush2.msra.mxu0 %v7057
    %7212 = vmatprep.subr.mxu0 %v7054
    %7213 = vmatpush2.msra.mxu0 %v7053
    %7214 = vmatprep.subr.mxu0 %v7050
    %7215 = vmatpush2.msra.mxu0 %v7049
    %7216 = vmatprep.subr.mxu0 %v7046
    %7217 = vmatpush2.msra.mxu0 %v7045
    %7218 = vmatprep.subr.mxu0 %v7042
    %7219 = vmatpush2.msra.mxu0 %v7041
    %7220 = vmatprep.subr.mxu0 %v7038
    %7221 = vmatpush2.msra.mxu0 %v7037
    %7222 = vmatprep.subr.mxu0 %v7034
    %7223 = vmatpush2.msra.mxu0 %v7033
    %7224 = vmatprep.subr.mxu0 %v7030
    %7225 = vmatpush2.msra.mxu0 %v7029
    %7226 = vmatprep.mubr.f32.mxu0 %v6962
    %7227 = vmatmul.mubr.f32.gmra.mxu0 %v6961
    %v7228 = vpop.f32.mrf.mxu0
    %v7229 = vadd.f32 0.0, %v7228
    %v7230 = vpop.f32.mrf.mxu0
    %v7231 = vadd.f32 0.0, %v7230
    %7232 = vdwg.mxu0
    %v7233 = vadd.f32 %v6957, %v7158
    %v7234 = vadd.f32 %v6958, %v7160
    %v7235 = vadd.f32 %v6959, %v7229
    %v7236 = vadd.f32 %v6960, %v7231
    %s7237 = sshll.u32 %s3058, 4
    %7238 = dma.done %s255, %s7237
    %v7239 = vld [vmem:[#allocation2 + $0xf0] sm:$0xff]
    %v7240 = vld [vmem:[#allocation2 + $0xf8] sm:$0xff]
    %v7241 = vld [vmem:[%s254] sm:$0xff]
    %v7242 = vld [vmem:[%s254 + $0x8] sm:$0xff]
    %v7243 = vld [vmem:[%s254 + $0x10] sm:$0xff]
    %v7244 = vld [vmem:[%s254 + $0x18] sm:$0xff]
    %v7245 = vld [vmem:[%s254 + $0x20] sm:$0xff]
    %v7246 = vld [vmem:[%s254 + $0x28] sm:$0xff]
    %v7247 = vld [vmem:[%s254 + $0x30] sm:$0xff]
    %v7248 = vld [vmem:[%s254 + $0x38] sm:$0xff]
    %v7249 = vld [vmem:[%s254 + $0x40] sm:$0xff]
    %v7250 = vld [vmem:[%s254 + $0x48] sm:$0xff]
    %v7251 = vld [vmem:[%s254 + $0x50] sm:$0xff]
    %v7252 = vld [vmem:[%s254 + $0x58] sm:$0xff]
    %v7253 = vld [vmem:[%s254 + $0x60] sm:$0xff]
    %v7254 = vld [vmem:[%s254 + $0x68] sm:$0xff]
    %v7255 = vld [vmem:[%s254 + $0x70] sm:$0xff]
    %v7256 = vld [vmem:[%s254 + $0x78] sm:$0xff]
    %v7257 = vld [vmem:[%s254 + $0x80] sm:$0xff]
    %v7258 = vld [vmem:[%s254 + $0x88] sm:$0xff]
    %v7259 = vld [vmem:[%s254 + $0x90] sm:$0xff]
    %v7260 = vld [vmem:[%s254 + $0x98] sm:$0xff]
    %v7261 = vld [vmem:[%s254 + $0xa0] sm:$0xff]
    %v7262 = vld [vmem:[%s254 + $0xa8] sm:$0xff]
    %v7263 = vld [vmem:[%s254 + $0xb0] sm:$0xff]
    %v7264 = vld [vmem:[%s254 + $0xb8] sm:$0xff]
    %v7265 = vld [vmem:[%s254 + $0xc0] sm:$0xff]
    %v7266 = vld [vmem:[%s254 + $0xc8] sm:$0xff]
    %v7267 = vld [vmem:[%s254 + $0xd0] sm:$0xff]
    %v7268 = vld [vmem:[%s254 + $0xd8] sm:$0xff]
    %v7269 = vld [vmem:[%s254 + $0xe0] sm:$0xff]
    %v7270 = vld [vmem:[%s254 + $0xe8] sm:$0xff]
    %v7271 = vld [vmem:[%s254 + $0xf0] sm:$0xff]
    %v7272 = vld [vmem:[%s254 + $0xf8] sm:$0xff]
    %v7273 = vld [vmem:[%s254 + $0x100] sm:$0xff]
    %v7274 = vld [vmem:[%s254 + $0x108] sm:$0xff]
    %v7275 = vld [vmem:[%s254 + $0x110] sm:$0xff]
    %v7276 = vld [vmem:[%s254 + $0x118] sm:$0xff]
    %v7277 = vld [vmem:[%s254 + $0x120] sm:$0xff]
    %v7278 = vld [vmem:[%s254 + $0x128] sm:$0xff]
    %v7279 = vld [vmem:[%s254 + $0x130] sm:$0xff]
    %v7280 = vld [vmem:[%s254 + $0x138] sm:$0xff]
    %v7281 = vld [vmem:[%s254 + $0x140] sm:$0xff]
    %v7282 = vld [vmem:[%s254 + $0x148] sm:$0xff]
    %v7283 = vld [vmem:[%s254 + $0x150] sm:$0xff]
    %v7284 = vld [vmem:[%s254 + $0x158] sm:$0xff]
    %v7285 = vld [vmem:[%s254 + $0x160] sm:$0xff]
    %v7286 = vld [vmem:[%s254 + $0x168] sm:$0xff]
    %v7287 = vld [vmem:[%s254 + $0x170] sm:$0xff]
    %v7288 = vld [vmem:[%s254 + $0x178] sm:$0xff]
    %v7289 = vld [vmem:[%s254 + $0x180] sm:$0xff]
    %v7290 = vld [vmem:[%s254 + $0x188] sm:$0xff]
    %v7291 = vld [vmem:[%s254 + $0x190] sm:$0xff]
    %v7292 = vld [vmem:[%s254 + $0x198] sm:$0xff]
    %v7293 = vld [vmem:[%s254 + $0x1a0] sm:$0xff]
    %v7294 = vld [vmem:[%s254 + $0x1a8] sm:$0xff]
    %v7295 = vld [vmem:[%s254 + $0x1b0] sm:$0xff]
    %v7296 = vld [vmem:[%s254 + $0x1b8] sm:$0xff]
    %v7297 = vld [vmem:[%s254 + $0x1c0] sm:$0xff]
    %v7298 = vld [vmem:[%s254 + $0x1c8] sm:$0xff]
    %v7299 = vld [vmem:[%s254 + $0x1d0] sm:$0xff]
    %v7300 = vld [vmem:[%s254 + $0x1d8] sm:$0xff]
    %v7301 = vld [vmem:[%s254 + $0x1e0] sm:$0xff]
    %v7302 = vld [vmem:[%s254 + $0x1e8] sm:$0xff]
    %v7303 = vld [vmem:[%s254 + $0x1f0] sm:$0xff]
    %v7304 = vld [vmem:[%s254 + $0x1f8] sm:$0xff]
    %v7305 = vld [vmem:[%s254 + $0x200] sm:$0xff]
    %v7306 = vld [vmem:[%s254 + $0x208] sm:$0xff]
    %v7307 = vld [vmem:[%s254 + $0x210] sm:$0xff]
    %v7308 = vld [vmem:[%s254 + $0x218] sm:$0xff]
    %v7309 = vld [vmem:[%s254 + $0x220] sm:$0xff]
    %v7310 = vld [vmem:[%s254 + $0x228] sm:$0xff]
    %v7311 = vld [vmem:[%s254 + $0x230] sm:$0xff]
    %v7312 = vld [vmem:[%s254 + $0x238] sm:$0xff]
    %v7313 = vld [vmem:[%s254 + $0x240] sm:$0xff]
    %v7314 = vld [vmem:[%s254 + $0x248] sm:$0xff]
    %v7315 = vld [vmem:[%s254 + $0x250] sm:$0xff]
    %v7316 = vld [vmem:[%s254 + $0x258] sm:$0xff]
    %v7317 = vld [vmem:[%s254 + $0x260] sm:$0xff]
    %v7318 = vld [vmem:[%s254 + $0x268] sm:$0xff]
    %v7319 = vld [vmem:[%s254 + $0x270] sm:$0xff]
    %v7320 = vld [vmem:[%s254 + $0x278] sm:$0xff]
    %v7321 = vld [vmem:[%s254 + $0x280] sm:$0xff]
    %v7322 = vld [vmem:[%s254 + $0x288] sm:$0xff]
    %v7323 = vld [vmem:[%s254 + $0x290] sm:$0xff]
    %v7324 = vld [vmem:[%s254 + $0x298] sm:$0xff]
    %v7325 = vld [vmem:[%s254 + $0x2a0] sm:$0xff]
    %v7326 = vld [vmem:[%s254 + $0x2a8] sm:$0xff]
    %v7327 = vld [vmem:[%s254 + $0x2b0] sm:$0xff]
    %v7328 = vld [vmem:[%s254 + $0x2b8] sm:$0xff]
    %v7329 = vld [vmem:[%s254 + $0x2c0] sm:$0xff]
    %v7330 = vld [vmem:[%s254 + $0x2c8] sm:$0xff]
    %v7331 = vld [vmem:[%s254 + $0x2d0] sm:$0xff]
    %v7332 = vld [vmem:[%s254 + $0x2d8] sm:$0xff]
    %v7333 = vld [vmem:[%s254 + $0x2e0] sm:$0xff]
    %v7334 = vld [vmem:[%s254 + $0x2e8] sm:$0xff]
    %v7335 = vld [vmem:[%s254 + $0x2f0] sm:$0xff]
    %v7336 = vld [vmem:[%s254 + $0x2f8] sm:$0xff]
    %v7337 = vld [vmem:[%s254 + $0x300] sm:$0xff]
    %v7338 = vld [vmem:[%s254 + $0x308] sm:$0xff]
    %v7339 = vld [vmem:[%s254 + $0x310] sm:$0xff]
    %v7340 = vld [vmem:[%s254 + $0x318] sm:$0xff]
    %v7341 = vld [vmem:[%s254 + $0x320] sm:$0xff]
    %v7342 = vld [vmem:[%s254 + $0x328] sm:$0xff]
    %v7343 = vld [vmem:[%s254 + $0x330] sm:$0xff]
    %v7344 = vld [vmem:[%s254 + $0x338] sm:$0xff]
    %v7345 = vld [vmem:[%s254 + $0x340] sm:$0xff]
    %v7346 = vld [vmem:[%s254 + $0x348] sm:$0xff]
    %v7347 = vld [vmem:[%s254 + $0x350] sm:$0xff]
    %v7348 = vld [vmem:[%s254 + $0x358] sm:$0xff]
    %v7349 = vld [vmem:[%s254 + $0x360] sm:$0xff]
    %v7350 = vld [vmem:[%s254 + $0x368] sm:$0xff]
    %v7351 = vld [vmem:[%s254 + $0x370] sm:$0xff]
    %v7352 = vld [vmem:[%s254 + $0x378] sm:$0xff]
    %v7353 = vld [vmem:[%s254 + $0x380] sm:$0xff]
    %v7354 = vld [vmem:[%s254 + $0x388] sm:$0xff]
    %v7355 = vld [vmem:[%s254 + $0x390] sm:$0xff]
    %v7356 = vld [vmem:[%s254 + $0x398] sm:$0xff]
    %v7357 = vld [vmem:[%s254 + $0x3a0] sm:$0xff]
    %v7358 = vld [vmem:[%s254 + $0x3a8] sm:$0xff]
    %v7359 = vld [vmem:[%s254 + $0x3b0] sm:$0xff]
    %v7360 = vld [vmem:[%s254 + $0x3b8] sm:$0xff]
    %v7361 = vld [vmem:[%s254 + $0x3c0] sm:$0xff]
    %v7362 = vld [vmem:[%s254 + $0x3c8] sm:$0xff]
    %v7363 = vld [vmem:[%s254 + $0x3d0] sm:$0xff]
    %v7364 = vld [vmem:[%s254 + $0x3d8] sm:$0xff]
    %v7365 = vld [vmem:[%s254 + $0x3e0] sm:$0xff]
    %v7366 = vld [vmem:[%s254 + $0x3e8] sm:$0xff]
    %v7367 = vld [vmem:[%s254 + $0x3f0] sm:$0xff]
    %v7368 = vld [vmem:[%s254 + $0x3f8] sm:$0xff]
    %7369 = vmatprep.subr.mxu0 %v7302
    %7370 = vmatpush1.msra.mxu0 %v7301
    %7371 = vmatprep.subr.mxu0 %v7298
    %7372 = vmatpush1.msra.mxu0 %v7297
    %7373 = vmatprep.subr.mxu0 %v7294
    %7374 = vmatpush1.msra.mxu0 %v7293
    %7375 = vmatprep.subr.mxu0 %v7290
    %7376 = vmatpush1.msra.mxu0 %v7289
    %7377 = vmatprep.subr.mxu0 %v7286
    %7378 = vmatpush1.msra.mxu0 %v7285
    %7379 = vmatprep.subr.mxu0 %v7282
    %7380 = vmatpush1.msra.mxu0 %v7281
    %7381 = vmatprep.subr.mxu0 %v7278
    %7382 = vmatpush1.msra.mxu0 %v7277
    %7383 = vmatprep.subr.mxu0 %v7274
    %7384 = vmatpush1.msra.mxu0 %v7273
    %7385 = vmatprep.subr.mxu0 %v7270
    %7386 = vmatpush1.msra.mxu0 %v7269
    %7387 = vmatprep.subr.mxu0 %v7266
    %7388 = vmatpush1.msra.mxu0 %v7265
    %7389 = vmatprep.subr.mxu0 %v7262
    %7390 = vmatpush1.msra.mxu0 %v7261
    %7391 = vmatprep.subr.mxu0 %v7258
    %7392 = vmatpush1.msra.mxu0 %v7257
    %7393 = vmatprep.subr.mxu0 %v7254
    %7394 = vmatpush1.msra.mxu0 %v7253
    %7395 = vmatprep.subr.mxu0 %v7250
    %7396 = vmatpush1.msra.mxu0 %v7249
    %7397 = vmatprep.subr.mxu0 %v7246
    %7398 = vmatpush1.msra.mxu0 %v7245
    %7399 = vmatprep.subr.mxu0 %v7242
    %7400 = vmatpush1.msra.mxu0 %v7241
    %7401 = vmatprep.subr.mxu0 %v7366
    %7402 = vmatpush2.msra.mxu0 %v7365
    %7403 = vmatprep.subr.mxu0 %v7362
    %7404 = vmatpush2.msra.mxu0 %v7361
    %7405 = vmatprep.subr.mxu0 %v7358
    %7406 = vmatpush2.msra.mxu0 %v7357
    %7407 = vmatprep.subr.mxu0 %v7354
    %7408 = vmatpush2.msra.mxu0 %v7353
    %7409 = vmatprep.subr.mxu0 %v7350
    %7410 = vmatpush2.msra.mxu0 %v7349
    %7411 = vmatprep.subr.mxu0 %v7346
    %7412 = vmatpush2.msra.mxu0 %v7345
    %7413 = vmatprep.subr.mxu0 %v7342
    %7414 = vmatpush2.msra.mxu0 %v7341
    %7415 = vmatprep.subr.mxu0 %v7338
    %7416 = vmatpush2.msra.mxu0 %v7337
    %7417 = vmatprep.subr.mxu0 %v7334
    %7418 = vmatpush2.msra.mxu0 %v7333
    %7419 = vmatprep.subr.mxu0 %v7330
    %7420 = vmatpush2.msra.mxu0 %v7329
    %7421 = vmatprep.subr.mxu0 %v7326
    %7422 = vmatpush2.msra.mxu0 %v7325
    %7423 = vmatprep.subr.mxu0 %v7322
    %7424 = vmatpush2.msra.mxu0 %v7321
    %7425 = vmatprep.subr.mxu0 %v7318
    %7426 = vmatpush2.msra.mxu0 %v7317
    %7427 = vmatprep.subr.mxu0 %v7314
    %7428 = vmatpush2.msra.mxu0 %v7313
    %7429 = vmatprep.subr.mxu0 %v7310
    %7430 = vmatpush2.msra.mxu0 %v7309
    %7431 = vmatprep.subr.mxu0 %v7306
    %7432 = vmatpush2.msra.mxu0 %v7305
    %7433 = vmatprep.mubr.f32.mxu0 %v7240
    %7434 = vmatmul.mubr.f32.gmra.mxu0 %v7239
    %v7435 = vpop.f32.mrf.mxu0
    %v7436 = vadd.f32 0.0, %v7435
    %v7437 = vpop.f32.mrf.mxu0
    %v7438 = vadd.f32 0.0, %v7437
    %7439 = vdwg.mxu0
    %7440 = vmatprep.subr.mxu0 %v7304
    %7441 = vmatpush1.msra.mxu0 %v7303
    %7442 = vmatprep.subr.mxu0 %v7300
    %7443 = vmatpush1.msra.mxu0 %v7299
    %7444 = vmatprep.subr.mxu0 %v7296
    %7445 = vmatpush1.msra.mxu0 %v7295
    %7446 = vmatprep.subr.mxu0 %v7292
    %7447 = vmatpush1.msra.mxu0 %v7291
    %7448 = vmatprep.subr.mxu0 %v7288
    %7449 = vmatpush1.msra.mxu0 %v7287
    %7450 = vmatprep.subr.mxu0 %v7284
    %7451 = vmatpush1.msra.mxu0 %v7283
    %7452 = vmatprep.subr.mxu0 %v7280
    %7453 = vmatpush1.msra.mxu0 %v7279
    %7454 = vmatprep.subr.mxu0 %v7276
    %7455 = vmatpush1.msra.mxu0 %v7275
    %7456 = vmatprep.subr.mxu0 %v7272
    %7457 = vmatpush1.msra.mxu0 %v7271
    %7458 = vmatprep.subr.mxu0 %v7268
    %7459 = vmatpush1.msra.mxu0 %v7267
    %7460 = vmatprep.subr.mxu0 %v7264
    %7461 = vmatpush1.msra.mxu0 %v7263
    %7462 = vmatprep.subr.mxu0 %v7260
    %7463 = vmatpush1.msra.mxu0 %v7259
    %7464 = vmatprep.subr.mxu0 %v7256
    %7465 = vmatpush1.msra.mxu0 %v7255
    %7466 = vmatprep.subr.mxu0 %v7252
    %7467 = vmatpush1.msra.mxu0 %v7251
    %7468 = vmatprep.subr.mxu0 %v7248
    %7469 = vmatpush1.msra.mxu0 %v7247
    %7470 = vmatprep.subr.mxu0 %v7244
    %7471 = vmatpush1.msra.mxu0 %v7243
    %7472 = vmatprep.subr.mxu0 %v7368
    %7473 = vmatpush2.msra.mxu0 %v7367
    %7474 = vmatprep.subr.mxu0 %v7364
    %7475 = vmatpush2.msra.mxu0 %v7363
    %7476 = vmatprep.subr.mxu0 %v7360
    %7477 = vmatpush2.msra.mxu0 %v7359
    %7478 = vmatprep.subr.mxu0 %v7356
    %7479 = vmatpush2.msra.mxu0 %v7355
    %7480 = vmatprep.subr.mxu0 %v7352
    %7481 = vmatpush2.msra.mxu0 %v7351
    %7482 = vmatprep.subr.mxu0 %v7348
    %7483 = vmatpush2.msra.mxu0 %v7347
    %7484 = vmatprep.subr.mxu0 %v7344
    %7485 = vmatpush2.msra.mxu0 %v7343
    %7486 = vmatprep.subr.mxu0 %v7340
    %7487 = vmatpush2.msra.mxu0 %v7339
    %7488 = vmatprep.subr.mxu0 %v7336
    %7489 = vmatpush2.msra.mxu0 %v7335
    %7490 = vmatprep.subr.mxu0 %v7332
    %7491 = vmatpush2.msra.mxu0 %v7331
    %7492 = vmatprep.subr.mxu0 %v7328
    %7493 = vmatpush2.msra.mxu0 %v7327
    %7494 = vmatprep.subr.mxu0 %v7324
    %7495 = vmatpush2.msra.mxu0 %v7323
    %7496 = vmatprep.subr.mxu0 %v7320
    %7497 = vmatpush2.msra.mxu0 %v7319
    %7498 = vmatprep.subr.mxu0 %v7316
    %7499 = vmatpush2.msra.mxu0 %v7315
    %7500 = vmatprep.subr.mxu0 %v7312
    %7501 = vmatpush2.msra.mxu0 %v7311
    %7502 = vmatprep.subr.mxu0 %v7308
    %7503 = vmatpush2.msra.mxu0 %v7307
    %7504 = vmatprep.mubr.f32.mxu0 %v7240
    %7505 = vmatmul.mubr.f32.gmra.mxu0 %v7239
    %v7506 = vpop.f32.mrf.mxu0
    %v7507 = vadd.f32 0.0, %v7506
    %v7508 = vpop.f32.mrf.mxu0
    %v7509 = vadd.f32 0.0, %v7508
    %7510 = vdwg.mxu0
    %v7511 = vadd.f32 %v7233, %v7436
    %v7512 = vadd.f32 %v7234, %v7438
    %v7513 = vadd.f32 %v7235, %v7507
    %v7514 = vadd.f32 %v7236, %v7509
    %v7515 = vld [vmem:[#allocation2 + $0x100] sm:$0xff]
    %v7516 = vld [vmem:[#allocation2 + $0x108] sm:$0xff]
    %v7517 = vld [vmem:[%s4737] sm:$0xff]
    %v7518 = vld [vmem:[%s4737 + $0x8] sm:$0xff]
    %v7519 = vld [vmem:[%s4737 + $0x10] sm:$0xff]
    %v7520 = vld [vmem:[%s4737 + $0x18] sm:$0xff]
    %v7521 = vld [vmem:[%s4737 + $0x20] sm:$0xff]
    %v7522 = vld [vmem:[%s4737 + $0x28] sm:$0xff]
    %v7523 = vld [vmem:[%s4737 + $0x30] sm:$0xff]
    %v7524 = vld [vmem:[%s4737 + $0x38] sm:$0xff]
    %v7525 = vld [vmem:[%s4737 + $0x40] sm:$0xff]
    %v7526 = vld [vmem:[%s4737 + $0x48] sm:$0xff]
    %v7527 = vld [vmem:[%s4737 + $0x50] sm:$0xff]
    %v7528 = vld [vmem:[%s4737 + $0x58] sm:$0xff]
    %v7529 = vld [vmem:[%s4737 + $0x60] sm:$0xff]
    %v7530 = vld [vmem:[%s4737 + $0x68] sm:$0xff]
    %v7531 = vld [vmem:[%s4737 + $0x70] sm:$0xff]
    %v7532 = vld [vmem:[%s4737 + $0x78] sm:$0xff]
    %v7533 = vld [vmem:[%s4737 + $0x80] sm:$0xff]
    %v7534 = vld [vmem:[%s4737 + $0x88] sm:$0xff]
    %v7535 = vld [vmem:[%s4737 + $0x90] sm:$0xff]
    %v7536 = vld [vmem:[%s4737 + $0x98] sm:$0xff]
    %v7537 = vld [vmem:[%s4737 + $0xa0] sm:$0xff]
    %v7538 = vld [vmem:[%s4737 + $0xa8] sm:$0xff]
    %v7539 = vld [vmem:[%s4737 + $0xb0] sm:$0xff]
    %v7540 = vld [vmem:[%s4737 + $0xb8] sm:$0xff]
    %v7541 = vld [vmem:[%s4737 + $0xc0] sm:$0xff]
    %v7542 = vld [vmem:[%s4737 + $0xc8] sm:$0xff]
    %v7543 = vld [vmem:[%s4737 + $0xd0] sm:$0xff]
    %v7544 = vld [vmem:[%s4737 + $0xd8] sm:$0xff]
    %v7545 = vld [vmem:[%s4737 + $0xe0] sm:$0xff]
    %v7546 = vld [vmem:[%s4737 + $0xe8] sm:$0xff]
    %v7547 = vld [vmem:[%s4737 + $0xf0] sm:$0xff]
    %v7548 = vld [vmem:[%s4737 + $0xf8] sm:$0xff]
    %v7549 = vld [vmem:[%s4737 + $0x100] sm:$0xff]
    %v7550 = vld [vmem:[%s4737 + $0x108] sm:$0xff]
    %v7551 = vld [vmem:[%s4737 + $0x110] sm:$0xff]
    %v7552 = vld [vmem:[%s4737 + $0x118] sm:$0xff]
    %v7553 = vld [vmem:[%s4737 + $0x120] sm:$0xff]
    %v7554 = vld [vmem:[%s4737 + $0x128] sm:$0xff]
    %v7555 = vld [vmem:[%s4737 + $0x130] sm:$0xff]
    %v7556 = vld [vmem:[%s4737 + $0x138] sm:$0xff]
    %v7557 = vld [vmem:[%s4737 + $0x140] sm:$0xff]
    %v7558 = vld [vmem:[%s4737 + $0x148] sm:$0xff]
    %v7559 = vld [vmem:[%s4737 + $0x150] sm:$0xff]
    %v7560 = vld [vmem:[%s4737 + $0x158] sm:$0xff]
    %v7561 = vld [vmem:[%s4737 + $0x160] sm:$0xff]
    %v7562 = vld [vmem:[%s4737 + $0x168] sm:$0xff]
    %v7563 = vld [vmem:[%s4737 + $0x170] sm:$0xff]
    %v7564 = vld [vmem:[%s4737 + $0x178] sm:$0xff]
    %v7565 = vld [vmem:[%s4737 + $0x180] sm:$0xff]
    %v7566 = vld [vmem:[%s4737 + $0x188] sm:$0xff]
    %v7567 = vld [vmem:[%s4737 + $0x190] sm:$0xff]
    %v7568 = vld [vmem:[%s4737 + $0x198] sm:$0xff]
    %v7569 = vld [vmem:[%s4737 + $0x1a0] sm:$0xff]
    %v7570 = vld [vmem:[%s4737 + $0x1a8] sm:$0xff]
    %v7571 = vld [vmem:[%s4737 + $0x1b0] sm:$0xff]
    %v7572 = vld [vmem:[%s4737 + $0x1b8] sm:$0xff]
    %v7573 = vld [vmem:[%s4737 + $0x1c0] sm:$0xff]
    %v7574 = vld [vmem:[%s4737 + $0x1c8] sm:$0xff]
    %v7575 = vld [vmem:[%s4737 + $0x1d0] sm:$0xff]
    %v7576 = vld [vmem:[%s4737 + $0x1d8] sm:$0xff]
    %v7577 = vld [vmem:[%s4737 + $0x1e0] sm:$0xff]
    %v7578 = vld [vmem:[%s4737 + $0x1e8] sm:$0xff]
    %v7579 = vld [vmem:[%s4737 + $0x1f0] sm:$0xff]
    %v7580 = vld [vmem:[%s4737 + $0x1f8] sm:$0xff]
    %v7581 = vld [vmem:[%s4737 + $0x200] sm:$0xff]
    %v7582 = vld [vmem:[%s4737 + $0x208] sm:$0xff]
    %v7583 = vld [vmem:[%s4737 + $0x210] sm:$0xff]
    %v7584 = vld [vmem:[%s4737 + $0x218] sm:$0xff]
    %v7585 = vld [vmem:[%s4737 + $0x220] sm:$0xff]
    %v7586 = vld [vmem:[%s4737 + $0x228] sm:$0xff]
    %v7587 = vld [vmem:[%s4737 + $0x230] sm:$0xff]
    %v7588 = vld [vmem:[%s4737 + $0x238] sm:$0xff]
    %v7589 = vld [vmem:[%s4737 + $0x240] sm:$0xff]
    %v7590 = vld [vmem:[%s4737 + $0x248] sm:$0xff]
    %v7591 = vld [vmem:[%s4737 + $0x250] sm:$0xff]
    %v7592 = vld [vmem:[%s4737 + $0x258] sm:$0xff]
    %v7593 = vld [vmem:[%s4737 + $0x260] sm:$0xff]
    %v7594 = vld [vmem:[%s4737 + $0x268] sm:$0xff]
    %v7595 = vld [vmem:[%s4737 + $0x270] sm:$0xff]
    %v7596 = vld [vmem:[%s4737 + $0x278] sm:$0xff]
    %v7597 = vld [vmem:[%s4737 + $0x280] sm:$0xff]
    %v7598 = vld [vmem:[%s4737 + $0x288] sm:$0xff]
    %v7599 = vld [vmem:[%s4737 + $0x290] sm:$0xff]
    %v7600 = vld [vmem:[%s4737 + $0x298] sm:$0xff]
    %v7601 = vld [vmem:[%s4737 + $0x2a0] sm:$0xff]
    %v7602 = vld [vmem:[%s4737 + $0x2a8] sm:$0xff]
    %v7603 = vld [vmem:[%s4737 + $0x2b0] sm:$0xff]
    %v7604 = vld [vmem:[%s4737 + $0x2b8] sm:$0xff]
    %v7605 = vld [vmem:[%s4737 + $0x2c0] sm:$0xff]
    %v7606 = vld [vmem:[%s4737 + $0x2c8] sm:$0xff]
    %v7607 = vld [vmem:[%s4737 + $0x2d0] sm:$0xff]
    %v7608 = vld [vmem:[%s4737 + $0x2d8] sm:$0xff]
    %v7609 = vld [vmem:[%s4737 + $0x2e0] sm:$0xff]
    %v7610 = vld [vmem:[%s4737 + $0x2e8] sm:$0xff]
    %v7611 = vld [vmem:[%s4737 + $0x2f0] sm:$0xff]
    %v7612 = vld [vmem:[%s4737 + $0x2f8] sm:$0xff]
    %v7613 = vld [vmem:[%s4737 + $0x300] sm:$0xff]
    %v7614 = vld [vmem:[%s4737 + $0x308] sm:$0xff]
    %v7615 = vld [vmem:[%s4737 + $0x310] sm:$0xff]
    %v7616 = vld [vmem:[%s4737 + $0x318] sm:$0xff]
    %v7617 = vld [vmem:[%s4737 + $0x320] sm:$0xff]
    %v7618 = vld [vmem:[%s4737 + $0x328] sm:$0xff]
    %v7619 = vld [vmem:[%s4737 + $0x330] sm:$0xff]
    %v7620 = vld [vmem:[%s4737 + $0x338] sm:$0xff]
    %v7621 = vld [vmem:[%s4737 + $0x340] sm:$0xff]
    %v7622 = vld [vmem:[%s4737 + $0x348] sm:$0xff]
    %v7623 = vld [vmem:[%s4737 + $0x350] sm:$0xff]
    %v7624 = vld [vmem:[%s4737 + $0x358] sm:$0xff]
    %v7625 = vld [vmem:[%s4737 + $0x360] sm:$0xff]
    %v7626 = vld [vmem:[%s4737 + $0x368] sm:$0xff]
    %v7627 = vld [vmem:[%s4737 + $0x370] sm:$0xff]
    %v7628 = vld [vmem:[%s4737 + $0x378] sm:$0xff]
    %v7629 = vld [vmem:[%s4737 + $0x380] sm:$0xff]
    %v7630 = vld [vmem:[%s4737 + $0x388] sm:$0xff]
    %v7631 = vld [vmem:[%s4737 + $0x390] sm:$0xff]
    %v7632 = vld [vmem:[%s4737 + $0x398] sm:$0xff]
    %v7633 = vld [vmem:[%s4737 + $0x3a0] sm:$0xff]
    %v7634 = vld [vmem:[%s4737 + $0x3a8] sm:$0xff]
    %v7635 = vld [vmem:[%s4737 + $0x3b0] sm:$0xff]
    %v7636 = vld [vmem:[%s4737 + $0x3b8] sm:$0xff]
    %v7637 = vld [vmem:[%s4737 + $0x3c0] sm:$0xff]
    %v7638 = vld [vmem:[%s4737 + $0x3c8] sm:$0xff]
    %v7639 = vld [vmem:[%s4737 + $0x3d0] sm:$0xff]
    %v7640 = vld [vmem:[%s4737 + $0x3d8] sm:$0xff]
    %v7641 = vld [vmem:[%s4737 + $0x3e0] sm:$0xff]
    %v7642 = vld [vmem:[%s4737 + $0x3e8] sm:$0xff]
    %v7643 = vld [vmem:[%s4737 + $0x3f0] sm:$0xff]
    %v7644 = vld [vmem:[%s4737 + $0x3f8] sm:$0xff]
    %7645 = vmatprep.subr.mxu0 %v7578
    %7646 = vmatpush1.msra.mxu0 %v7577
    %7647 = vmatprep.subr.mxu0 %v7574
    %7648 = vmatpush1.msra.mxu0 %v7573
    %7649 = vmatprep.subr.mxu0 %v7570
    %7650 = vmatpush1.msra.mxu0 %v7569
    %7651 = vmatprep.subr.mxu0 %v7566
    %7652 = vmatpush1.msra.mxu0 %v7565
    %7653 = vmatprep.subr.mxu0 %v7562
    %7654 = vmatpush1.msra.mxu0 %v7561
    %7655 = vmatprep.subr.mxu0 %v7558
    %7656 = vmatpush1.msra.mxu0 %v7557
    %7657 = vmatprep.subr.mxu0 %v7554
    %7658 = vmatpush1.msra.mxu0 %v7553
    %7659 = vmatprep.subr.mxu0 %v7550
    %7660 = vmatpush1.msra.mxu0 %v7549
    %7661 = vmatprep.subr.mxu0 %v7546
    %7662 = vmatpush1.msra.mxu0 %v7545
    %7663 = vmatprep.subr.mxu0 %v7542
    %7664 = vmatpush1.msra.mxu0 %v7541
    %7665 = vmatprep.subr.mxu0 %v7538
    %7666 = vmatpush1.msra.mxu0 %v7537
    %7667 = vmatprep.subr.mxu0 %v7534
    %7668 = vmatpush1.msra.mxu0 %v7533
    %7669 = vmatprep.subr.mxu0 %v7530
    %7670 = vmatpush1.msra.mxu0 %v7529
    %7671 = vmatprep.subr.mxu0 %v7526
    %7672 = vmatpush1.msra.mxu0 %v7525
    %7673 = vmatprep.subr.mxu0 %v7522
    %7674 = vmatpush1.msra.mxu0 %v7521
    %7675 = vmatprep.subr.mxu0 %v7518
    %7676 = vmatpush1.msra.mxu0 %v7517
    %7677 = vmatprep.subr.mxu0 %v7642
    %7678 = vmatpush2.msra.mxu0 %v7641
    %7679 = vmatprep.subr.mxu0 %v7638
    %7680 = vmatpush2.msra.mxu0 %v7637
    %7681 = vmatprep.subr.mxu0 %v7634
    %7682 = vmatpush2.msra.mxu0 %v7633
    %7683 = vmatprep.subr.mxu0 %v7630
    %7684 = vmatpush2.msra.mxu0 %v7629
    %7685 = vmatprep.subr.mxu0 %v7626
    %7686 = vmatpush2.msra.mxu0 %v7625
    %7687 = vmatprep.subr.mxu0 %v7622
    %7688 = vmatpush2.msra.mxu0 %v7621
    %7689 = vmatprep.subr.mxu0 %v7618
    %7690 = vmatpush2.msra.mxu0 %v7617
    %7691 = vmatprep.subr.mxu0 %v7614
    %7692 = vmatpush2.msra.mxu0 %v7613
    %7693 = vmatprep.subr.mxu0 %v7610
    %7694 = vmatpush2.msra.mxu0 %v7609
    %7695 = vmatprep.subr.mxu0 %v7606
    %7696 = vmatpush2.msra.mxu0 %v7605
    %7697 = vmatprep.subr.mxu0 %v7602
    %7698 = vmatpush2.msra.mxu0 %v7601
    %7699 = vmatprep.subr.mxu0 %v7598
    %7700 = vmatpush2.msra.mxu0 %v7597
    %7701 = vmatprep.subr.mxu0 %v7594
    %7702 = vmatpush2.msra.mxu0 %v7593
    %7703 = vmatprep.subr.mxu0 %v7590
    %7704 = vmatpush2.msra.mxu0 %v7589
    %7705 = vmatprep.subr.mxu0 %v7586
    %7706 = vmatpush2.msra.mxu0 %v7585
    %7707 = vmatprep.subr.mxu0 %v7582
    %7708 = vmatpush2.msra.mxu0 %v7581
    %7709 = vmatprep.mubr.f32.mxu0 %v7516
    %7710 = vmatmul.mubr.f32.gmra.mxu0 %v7515
    %v7711 = vpop.f32.mrf.mxu0
    %v7712 = vadd.f32 0.0, %v7711
    %v7713 = vpop.f32.mrf.mxu0
    %v7714 = vadd.f32 0.0, %v7713
    %7715 = vdwg.mxu0
    %7716 = vmatprep.subr.mxu0 %v7580
    %7717 = vmatpush1.msra.mxu0 %v7579
    %7718 = vmatprep.subr.mxu0 %v7576
    %7719 = vmatpush1.msra.mxu0 %v7575
    %7720 = vmatprep.subr.mxu0 %v7572
    %7721 = vmatpush1.msra.mxu0 %v7571
    %7722 = vmatprep.subr.mxu0 %v7568
    %7723 = vmatpush1.msra.mxu0 %v7567
    %7724 = vmatprep.subr.mxu0 %v7564
    %7725 = vmatpush1.msra.mxu0 %v7563
    %7726 = vmatprep.subr.mxu0 %v7560
    %7727 = vmatpush1.msra.mxu0 %v7559
    %7728 = vmatprep.subr.mxu0 %v7556
    %7729 = vmatpush1.msra.mxu0 %v7555
    %7730 = vmatprep.subr.mxu0 %v7552
    %7731 = vmatpush1.msra.mxu0 %v7551
    %7732 = vmatprep.subr.mxu0 %v7548
    %7733 = vmatpush1.msra.mxu0 %v7547
    %7734 = vmatprep.subr.mxu0 %v7544
    %7735 = vmatpush1.msra.mxu0 %v7543
    %7736 = vmatprep.subr.mxu0 %v7540
    %7737 = vmatpush1.msra.mxu0 %v7539
    %7738 = vmatprep.subr.mxu0 %v7536
    %7739 = vmatpush1.msra.mxu0 %v7535
    %7740 = vmatprep.subr.mxu0 %v7532
    %7741 = vmatpush1.msra.mxu0 %v7531
    %7742 = vmatprep.subr.mxu0 %v7528
    %7743 = vmatpush1.msra.mxu0 %v7527
    %7744 = vmatprep.subr.mxu0 %v7524
    %7745 = vmatpush1.msra.mxu0 %v7523
    %7746 = vmatprep.subr.mxu0 %v7520
    %7747 = vmatpush1.msra.mxu0 %v7519
    %7748 = vmatprep.subr.mxu0 %v7644
    %7749 = vmatpush2.msra.mxu0 %v7643
    %7750 = vmatprep.subr.mxu0 %v7640
    %7751 = vmatpush2.msra.mxu0 %v7639
    %7752 = vmatprep.subr.mxu0 %v7636
    %7753 = vmatpush2.msra.mxu0 %v7635
    %7754 = vmatprep.subr.mxu0 %v7632
    %7755 = vmatpush2.msra.mxu0 %v7631
    %7756 = vmatprep.subr.mxu0 %v7628
    %7757 = vmatpush2.msra.mxu0 %v7627
    %7758 = vmatprep.subr.mxu0 %v7624
    %7759 = vmatpush2.msra.mxu0 %v7623
    %7760 = vmatprep.subr.mxu0 %v7620
    %7761 = vmatpush2.msra.mxu0 %v7619
    %7762 = vmatprep.subr.mxu0 %v7616
    %7763 = vmatpush2.msra.mxu0 %v7615
    %7764 = vmatprep.subr.mxu0 %v7612
    %7765 = vmatpush2.msra.mxu0 %v7611
    %7766 = vmatprep.subr.mxu0 %v7608
    %7767 = vmatpush2.msra.mxu0 %v7607
    %7768 = vmatprep.subr.mxu0 %v7604
    %7769 = vmatpush2.msra.mxu0 %v7603
    %7770 = vmatprep.subr.mxu0 %v7600
    %7771 = vmatpush2.msra.mxu0 %v7599
    %7772 = vmatprep.subr.mxu0 %v7596
    %7773 = vmatpush2.msra.mxu0 %v7595
    %7774 = vmatprep.subr.mxu0 %v7592
    %7775 = vmatpush2.msra.mxu0 %v7591
    %7776 = vmatprep.subr.mxu0 %v7588
    %7777 = vmatpush2.msra.mxu0 %v7587
    %7778 = vmatprep.subr.mxu0 %v7584
    %7779 = vmatpush2.msra.mxu0 %v7583
    %7780 = vmatprep.mubr.f32.mxu0 %v7516
    %7781 = vmatmul.mubr.f32.gmra.mxu0 %v7515
    %v7782 = vpop.f32.mrf.mxu0
    %v7783 = vadd.f32 0.0, %v7782
    %v7784 = vpop.f32.mrf.mxu0
    %v7785 = vadd.f32 0.0, %v7784
    %7786 = vdwg.mxu0
    %v7787 = vadd.f32 %v7511, %v7712
    %v7788 = vadd.f32 %v7512, %v7714
    %v7789 = vadd.f32 %v7513, %v7783
    %v7790 = vadd.f32 %v7514, %v7785
    %v7791 = vld [vmem:[#allocation2 + $0x110] sm:$0xff]
    %v7792 = vld [vmem:[#allocation2 + $0x118] sm:$0xff]
    %v7793 = vld [vmem:[%s5014] sm:$0xff]
    %v7794 = vld [vmem:[%s5014 + $0x8] sm:$0xff]
    %v7795 = vld [vmem:[%s5014 + $0x10] sm:$0xff]
    %v7796 = vld [vmem:[%s5014 + $0x18] sm:$0xff]
    %v7797 = vld [vmem:[%s5014 + $0x20] sm:$0xff]
    %v7798 = vld [vmem:[%s5014 + $0x28] sm:$0xff]
    %v7799 = vld [vmem:[%s5014 + $0x30] sm:$0xff]
    %v7800 = vld [vmem:[%s5014 + $0x38] sm:$0xff]
    %v7801 = vld [vmem:[%s5014 + $0x40] sm:$0xff]
    %v7802 = vld [vmem:[%s5014 + $0x48] sm:$0xff]
    %v7803 = vld [vmem:[%s5014 + $0x50] sm:$0xff]
    %v7804 = vld [vmem:[%s5014 + $0x58] sm:$0xff]
    %v7805 = vld [vmem:[%s5014 + $0x60] sm:$0xff]
    %v7806 = vld [vmem:[%s5014 + $0x68] sm:$0xff]
    %v7807 = vld [vmem:[%s5014 + $0x70] sm:$0xff]
    %v7808 = vld [vmem:[%s5014 + $0x78] sm:$0xff]
    %v7809 = vld [vmem:[%s5014 + $0x80] sm:$0xff]
    %v7810 = vld [vmem:[%s5014 + $0x88] sm:$0xff]
    %v7811 = vld [vmem:[%s5014 + $0x90] sm:$0xff]
    %v7812 = vld [vmem:[%s5014 + $0x98] sm:$0xff]
    %v7813 = vld [vmem:[%s5014 + $0xa0] sm:$0xff]
    %v7814 = vld [vmem:[%s5014 + $0xa8] sm:$0xff]
    %v7815 = vld [vmem:[%s5014 + $0xb0] sm:$0xff]
    %v7816 = vld [vmem:[%s5014 + $0xb8] sm:$0xff]
    %v7817 = vld [vmem:[%s5014 + $0xc0] sm:$0xff]
    %v7818 = vld [vmem:[%s5014 + $0xc8] sm:$0xff]
    %v7819 = vld [vmem:[%s5014 + $0xd0] sm:$0xff]
    %v7820 = vld [vmem:[%s5014 + $0xd8] sm:$0xff]
    %v7821 = vld [vmem:[%s5014 + $0xe0] sm:$0xff]
    %v7822 = vld [vmem:[%s5014 + $0xe8] sm:$0xff]
    %v7823 = vld [vmem:[%s5014 + $0xf0] sm:$0xff]
    %v7824 = vld [vmem:[%s5014 + $0xf8] sm:$0xff]
    %v7825 = vld [vmem:[%s5014 + $0x100] sm:$0xff]
    %v7826 = vld [vmem:[%s5014 + $0x108] sm:$0xff]
    %v7827 = vld [vmem:[%s5014 + $0x110] sm:$0xff]
    %v7828 = vld [vmem:[%s5014 + $0x118] sm:$0xff]
    %v7829 = vld [vmem:[%s5014 + $0x120] sm:$0xff]
    %v7830 = vld [vmem:[%s5014 + $0x128] sm:$0xff]
    %v7831 = vld [vmem:[%s5014 + $0x130] sm:$0xff]
    %v7832 = vld [vmem:[%s5014 + $0x138] sm:$0xff]
    %v7833 = vld [vmem:[%s5014 + $0x140] sm:$0xff]
    %v7834 = vld [vmem:[%s5014 + $0x148] sm:$0xff]
    %v7835 = vld [vmem:[%s5014 + $0x150] sm:$0xff]
    %v7836 = vld [vmem:[%s5014 + $0x158] sm:$0xff]
    %v7837 = vld [vmem:[%s5014 + $0x160] sm:$0xff]
    %v7838 = vld [vmem:[%s5014 + $0x168] sm:$0xff]
    %v7839 = vld [vmem:[%s5014 + $0x170] sm:$0xff]
    %v7840 = vld [vmem:[%s5014 + $0x178] sm:$0xff]
    %v7841 = vld [vmem:[%s5014 + $0x180] sm:$0xff]
    %v7842 = vld [vmem:[%s5014 + $0x188] sm:$0xff]
    %v7843 = vld [vmem:[%s5014 + $0x190] sm:$0xff]
    %v7844 = vld [vmem:[%s5014 + $0x198] sm:$0xff]
    %v7845 = vld [vmem:[%s5014 + $0x1a0] sm:$0xff]
    %v7846 = vld [vmem:[%s5014 + $0x1a8] sm:$0xff]
    %v7847 = vld [vmem:[%s5014 + $0x1b0] sm:$0xff]
    %v7848 = vld [vmem:[%s5014 + $0x1b8] sm:$0xff]
    %v7849 = vld [vmem:[%s5014 + $0x1c0] sm:$0xff]
    %v7850 = vld [vmem:[%s5014 + $0x1c8] sm:$0xff]
    %v7851 = vld [vmem:[%s5014 + $0x1d0] sm:$0xff]
    %v7852 = vld [vmem:[%s5014 + $0x1d8] sm:$0xff]
    %v7853 = vld [vmem:[%s5014 + $0x1e0] sm:$0xff]
    %v7854 = vld [vmem:[%s5014 + $0x1e8] sm:$0xff]
    %v7855 = vld [vmem:[%s5014 + $0x1f0] sm:$0xff]
    %v7856 = vld [vmem:[%s5014 + $0x1f8] sm:$0xff]
    %v7857 = vld [vmem:[%s5014 + $0x200] sm:$0xff]
    %v7858 = vld [vmem:[%s5014 + $0x208] sm:$0xff]
    %v7859 = vld [vmem:[%s5014 + $0x210] sm:$0xff]
    %v7860 = vld [vmem:[%s5014 + $0x218] sm:$0xff]
    %v7861 = vld [vmem:[%s5014 + $0x220] sm:$0xff]
    %v7862 = vld [vmem:[%s5014 + $0x228] sm:$0xff]
    %v7863 = vld [vmem:[%s5014 + $0x230] sm:$0xff]
    %v7864 = vld [vmem:[%s5014 + $0x238] sm:$0xff]
    %v7865 = vld [vmem:[%s5014 + $0x240] sm:$0xff]
    %v7866 = vld [vmem:[%s5014 + $0x248] sm:$0xff]
    %v7867 = vld [vmem:[%s5014 + $0x250] sm:$0xff]
    %v7868 = vld [vmem:[%s5014 + $0x258] sm:$0xff]
    %v7869 = vld [vmem:[%s5014 + $0x260] sm:$0xff]
    %v7870 = vld [vmem:[%s5014 + $0x268] sm:$0xff]
    %v7871 = vld [vmem:[%s5014 + $0x270] sm:$0xff]
    %v7872 = vld [vmem:[%s5014 + $0x278] sm:$0xff]
    %v7873 = vld [vmem:[%s5014 + $0x280] sm:$0xff]
    %v7874 = vld [vmem:[%s5014 + $0x288] sm:$0xff]
    %v7875 = vld [vmem:[%s5014 + $0x290] sm:$0xff]
    %v7876 = vld [vmem:[%s5014 + $0x298] sm:$0xff]
    %v7877 = vld [vmem:[%s5014 + $0x2a0] sm:$0xff]
    %v7878 = vld [vmem:[%s5014 + $0x2a8] sm:$0xff]
    %v7879 = vld [vmem:[%s5014 + $0x2b0] sm:$0xff]
    %v7880 = vld [vmem:[%s5014 + $0x2b8] sm:$0xff]
    %v7881 = vld [vmem:[%s5014 + $0x2c0] sm:$0xff]
    %v7882 = vld [vmem:[%s5014 + $0x2c8] sm:$0xff]
    %v7883 = vld [vmem:[%s5014 + $0x2d0] sm:$0xff]
    %v7884 = vld [vmem:[%s5014 + $0x2d8] sm:$0xff]
    %v7885 = vld [vmem:[%s5014 + $0x2e0] sm:$0xff]
    %v7886 = vld [vmem:[%s5014 + $0x2e8] sm:$0xff]
    %v7887 = vld [vmem:[%s5014 + $0x2f0] sm:$0xff]
    %v7888 = vld [vmem:[%s5014 + $0x2f8] sm:$0xff]
    %v7889 = vld [vmem:[%s5014 + $0x300] sm:$0xff]
    %v7890 = vld [vmem:[%s5014 + $0x308] sm:$0xff]
    %v7891 = vld [vmem:[%s5014 + $0x310] sm:$0xff]
    %v7892 = vld [vmem:[%s5014 + $0x318] sm:$0xff]
    %v7893 = vld [vmem:[%s5014 + $0x320] sm:$0xff]
    %v7894 = vld [vmem:[%s5014 + $0x328] sm:$0xff]
    %v7895 = vld [vmem:[%s5014 + $0x330] sm:$0xff]
    %v7896 = vld [vmem:[%s5014 + $0x338] sm:$0xff]
    %v7897 = vld [vmem:[%s5014 + $0x340] sm:$0xff]
    %v7898 = vld [vmem:[%s5014 + $0x348] sm:$0xff]
    %v7899 = vld [vmem:[%s5014 + $0x350] sm:$0xff]
    %v7900 = vld [vmem:[%s5014 + $0x358] sm:$0xff]
    %v7901 = vld [vmem:[%s5014 + $0x360] sm:$0xff]
    %v7902 = vld [vmem:[%s5014 + $0x368] sm:$0xff]
    %v7903 = vld [vmem:[%s5014 + $0x370] sm:$0xff]
    %v7904 = vld [vmem:[%s5014 + $0x378] sm:$0xff]
    %v7905 = vld [vmem:[%s5014 + $0x380] sm:$0xff]
    %v7906 = vld [vmem:[%s5014 + $0x388] sm:$0xff]
    %v7907 = vld [vmem:[%s5014 + $0x390] sm:$0xff]
    %v7908 = vld [vmem:[%s5014 + $0x398] sm:$0xff]
    %v7909 = vld [vmem:[%s5014 + $0x3a0] sm:$0xff]
    %v7910 = vld [vmem:[%s5014 + $0x3a8] sm:$0xff]
    %v7911 = vld [vmem:[%s5014 + $0x3b0] sm:$0xff]
    %v7912 = vld [vmem:[%s5014 + $0x3b8] sm:$0xff]
    %v7913 = vld [vmem:[%s5014 + $0x3c0] sm:$0xff]
    %v7914 = vld [vmem:[%s5014 + $0x3c8] sm:$0xff]
    %v7915 = vld [vmem:[%s5014 + $0x3d0] sm:$0xff]
    %v7916 = vld [vmem:[%s5014 + $0x3d8] sm:$0xff]
    %v7917 = vld [vmem:[%s5014 + $0x3e0] sm:$0xff]
    %v7918 = vld [vmem:[%s5014 + $0x3e8] sm:$0xff]
    %v7919 = vld [vmem:[%s5014 + $0x3f0] sm:$0xff]
    %v7920 = vld [vmem:[%s5014 + $0x3f8] sm:$0xff]
    %7921 = vmatprep.subr.mxu0 %v7854
    %7922 = vmatpush1.msra.mxu0 %v7853
    %7923 = vmatprep.subr.mxu0 %v7850
    %7924 = vmatpush1.msra.mxu0 %v7849
    %7925 = vmatprep.subr.mxu0 %v7846
    %7926 = vmatpush1.msra.mxu0 %v7845
    %7927 = vmatprep.subr.mxu0 %v7842
    %7928 = vmatpush1.msra.mxu0 %v7841
    %7929 = vmatprep.subr.mxu0 %v7838
    %7930 = vmatpush1.msra.mxu0 %v7837
    %7931 = vmatprep.subr.mxu0 %v7834
    %7932 = vmatpush1.msra.mxu0 %v7833
    %7933 = vmatprep.subr.mxu0 %v7830
    %7934 = vmatpush1.msra.mxu0 %v7829
    %7935 = vmatprep.subr.mxu0 %v7826
    %7936 = vmatpush1.msra.mxu0 %v7825
    %7937 = vmatprep.subr.mxu0 %v7822
    %7938 = vmatpush1.msra.mxu0 %v7821
    %7939 = vmatprep.subr.mxu0 %v7818
    %7940 = vmatpush1.msra.mxu0 %v7817
    %7941 = vmatprep.subr.mxu0 %v7814
    %7942 = vmatpush1.msra.mxu0 %v7813
    %7943 = vmatprep.subr.mxu0 %v7810
    %7944 = vmatpush1.msra.mxu0 %v7809
    %7945 = vmatprep.subr.mxu0 %v7806
    %7946 = vmatpush1.msra.mxu0 %v7805
    %7947 = vmatprep.subr.mxu0 %v7802
    %7948 = vmatpush1.msra.mxu0 %v7801
    %7949 = vmatprep.subr.mxu0 %v7798
    %7950 = vmatpush1.msra.mxu0 %v7797
    %7951 = vmatprep.subr.mxu0 %v7794
    %7952 = vmatpush1.msra.mxu0 %v7793
    %7953 = vmatprep.subr.mxu0 %v7918
    %7954 = vmatpush2.msra.mxu0 %v7917
    %7955 = vmatprep.subr.mxu0 %v7914
    %7956 = vmatpush2.msra.mxu0 %v7913
    %7957 = vmatprep.subr.mxu0 %v7910
    %7958 = vmatpush2.msra.mxu0 %v7909
    %7959 = vmatprep.subr.mxu0 %v7906
    %7960 = vmatpush2.msra.mxu0 %v7905
    %7961 = vmatprep.subr.mxu0 %v7902
    %7962 = vmatpush2.msra.mxu0 %v7901
    %7963 = vmatprep.subr.mxu0 %v7898
    %7964 = vmatpush2.msra.mxu0 %v7897
    %7965 = vmatprep.subr.mxu0 %v7894
    %7966 = vmatpush2.msra.mxu0 %v7893
    %7967 = vmatprep.subr.mxu0 %v7890
    %7968 = vmatpush2.msra.mxu0 %v7889
    %7969 = vmatprep.subr.mxu0 %v7886
    %7970 = vmatpush2.msra.mxu0 %v7885
    %7971 = vmatprep.subr.mxu0 %v7882
    %7972 = vmatpush2.msra.mxu0 %v7881
    %7973 = vmatprep.subr.mxu0 %v7878
    %7974 = vmatpush2.msra.mxu0 %v7877
    %7975 = vmatprep.subr.mxu0 %v7874
    %7976 = vmatpush2.msra.mxu0 %v7873
    %7977 = vmatprep.subr.mxu0 %v7870
    %7978 = vmatpush2.msra.mxu0 %v7869
    %7979 = vmatprep.subr.mxu0 %v7866
    %7980 = vmatpush2.msra.mxu0 %v7865
    %7981 = vmatprep.subr.mxu0 %v7862
    %7982 = vmatpush2.msra.mxu0 %v7861
    %7983 = vmatprep.subr.mxu0 %v7858
    %7984 = vmatpush2.msra.mxu0 %v7857
    %7985 = vmatprep.mubr.f32.mxu0 %v7792
    %7986 = vmatmul.mubr.f32.gmra.mxu0 %v7791
    %v7987 = vpop.f32.mrf.mxu0
    %v7988 = vadd.f32 0.0, %v7987
    %v7989 = vpop.f32.mrf.mxu0
    %v7990 = vadd.f32 0.0, %v7989
    %7991 = vdwg.mxu0
    %7992 = vmatprep.subr.mxu0 %v7856
    %7993 = vmatpush1.msra.mxu0 %v7855
    %7994 = vmatprep.subr.mxu0 %v7852
    %7995 = vmatpush1.msra.mxu0 %v7851
    %7996 = vmatprep.subr.mxu0 %v7848
    %7997 = vmatpush1.msra.mxu0 %v7847
    %7998 = vmatprep.subr.mxu0 %v7844
    %7999 = vmatpush1.msra.mxu0 %v7843
    %8000 = vmatprep.subr.mxu0 %v7840
    %8001 = vmatpush1.msra.mxu0 %v7839
    %8002 = vmatprep.subr.mxu0 %v7836
    %8003 = vmatpush1.msra.mxu0 %v7835
    %8004 = vmatprep.subr.mxu0 %v7832
    %8005 = vmatpush1.msra.mxu0 %v7831
    %8006 = vmatprep.subr.mxu0 %v7828
    %8007 = vmatpush1.msra.mxu0 %v7827
    %8008 = vmatprep.subr.mxu0 %v7824
    %8009 = vmatpush1.msra.mxu0 %v7823
    %8010 = vmatprep.subr.mxu0 %v7820
    %8011 = vmatpush1.msra.mxu0 %v7819
    %8012 = vmatprep.subr.mxu0 %v7816
    %8013 = vmatpush1.msra.mxu0 %v7815
    %8014 = vmatprep.subr.mxu0 %v7812
    %8015 = vmatpush1.msra.mxu0 %v7811
    %8016 = vmatprep.subr.mxu0 %v7808
    %8017 = vmatpush1.msra.mxu0 %v7807
    %8018 = vmatprep.subr.mxu0 %v7804
    %8019 = vmatpush1.msra.mxu0 %v7803
    %8020 = vmatprep.subr.mxu0 %v7800
    %8021 = vmatpush1.msra.mxu0 %v7799
    %8022 = vmatprep.subr.mxu0 %v7796
    %8023 = vmatpush1.msra.mxu0 %v7795
    %8024 = vmatprep.subr.mxu0 %v7920
    %8025 = vmatpush2.msra.mxu0 %v7919
    %8026 = vmatprep.subr.mxu0 %v7916
    %8027 = vmatpush2.msra.mxu0 %v7915
    %8028 = vmatprep.subr.mxu0 %v7912
    %8029 = vmatpush2.msra.mxu0 %v7911
    %8030 = vmatprep.subr.mxu0 %v7908
    %8031 = vmatpush2.msra.mxu0 %v7907
    %8032 = vmatprep.subr.mxu0 %v7904
    %8033 = vmatpush2.msra.mxu0 %v7903
    %8034 = vmatprep.subr.mxu0 %v7900
    %8035 = vmatpush2.msra.mxu0 %v7899
    %8036 = vmatprep.subr.mxu0 %v7896
    %8037 = vmatpush2.msra.mxu0 %v7895
    %8038 = vmatprep.subr.mxu0 %v7892
    %8039 = vmatpush2.msra.mxu0 %v7891
    %8040 = vmatprep.subr.mxu0 %v7888
    %8041 = vmatpush2.msra.mxu0 %v7887
    %8042 = vmatprep.subr.mxu0 %v7884
    %8043 = vmatpush2.msra.mxu0 %v7883
    %8044 = vmatprep.subr.mxu0 %v7880
    %8045 = vmatpush2.msra.mxu0 %v7879
    %8046 = vmatprep.subr.mxu0 %v7876
    %8047 = vmatpush2.msra.mxu0 %v7875
    %8048 = vmatprep.subr.mxu0 %v7872
    %8049 = vmatpush2.msra.mxu0 %v7871
    %8050 = vmatprep.subr.mxu0 %v7868
    %8051 = vmatpush2.msra.mxu0 %v7867
    %8052 = vmatprep.subr.mxu0 %v7864
    %8053 = vmatpush2.msra.mxu0 %v7863
    %8054 = vmatprep.subr.mxu0 %v7860
    %8055 = vmatpush2.msra.mxu0 %v7859
    %8056 = vmatprep.mubr.f32.mxu0 %v7792
    %8057 = vmatmul.mubr.f32.gmra.mxu0 %v7791
    %v8058 = vpop.f32.mrf.mxu0
    %v8059 = vadd.f32 0.0, %v8058
    %v8060 = vpop.f32.mrf.mxu0
    %v8061 = vadd.f32 0.0, %v8060
    %8062 = vdwg.mxu0
    %v8063 = vadd.f32 %v7787, %v7988
    %v8064 = vadd.f32 %v7788, %v7990
    %v8065 = vadd.f32 %v7789, %v8059
    %v8066 = vadd.f32 %v7790, %v8061
    %v8067 = vld [vmem:[#allocation2 + $0x120] sm:$0xff]
    %v8068 = vld [vmem:[#allocation2 + $0x128] sm:$0xff]
    %v8069 = vld [vmem:[%s5291] sm:$0xff]
    %v8070 = vld [vmem:[%s5291 + $0x8] sm:$0xff]
    %v8071 = vld [vmem:[%s5291 + $0x10] sm:$0xff]
    %v8072 = vld [vmem:[%s5291 + $0x18] sm:$0xff]
    %v8073 = vld [vmem:[%s5291 + $0x20] sm:$0xff]
    %v8074 = vld [vmem:[%s5291 + $0x28] sm:$0xff]
    %v8075 = vld [vmem:[%s5291 + $0x30] sm:$0xff]
    %v8076 = vld [vmem:[%s5291 + $0x38] sm:$0xff]
    %v8077 = vld [vmem:[%s5291 + $0x40] sm:$0xff]
    %v8078 = vld [vmem:[%s5291 + $0x48] sm:$0xff]
    %v8079 = vld [vmem:[%s5291 + $0x50] sm:$0xff]
    %v8080 = vld [vmem:[%s5291 + $0x58] sm:$0xff]
    %v8081 = vld [vmem:[%s5291 + $0x60] sm:$0xff]
    %v8082 = vld [vmem:[%s5291 + $0x68] sm:$0xff]
    %v8083 = vld [vmem:[%s5291 + $0x70] sm:$0xff]
    %v8084 = vld [vmem:[%s5291 + $0x78] sm:$0xff]
    %v8085 = vld [vmem:[%s5291 + $0x80] sm:$0xff]
    %v8086 = vld [vmem:[%s5291 + $0x88] sm:$0xff]
    %v8087 = vld [vmem:[%s5291 + $0x90] sm:$0xff]
    %v8088 = vld [vmem:[%s5291 + $0x98] sm:$0xff]
    %v8089 = vld [vmem:[%s5291 + $0xa0] sm:$0xff]
    %v8090 = vld [vmem:[%s5291 + $0xa8] sm:$0xff]
    %v8091 = vld [vmem:[%s5291 + $0xb0] sm:$0xff]
    %v8092 = vld [vmem:[%s5291 + $0xb8] sm:$0xff]
    %v8093 = vld [vmem:[%s5291 + $0xc0] sm:$0xff]
    %v8094 = vld [vmem:[%s5291 + $0xc8] sm:$0xff]
    %v8095 = vld [vmem:[%s5291 + $0xd0] sm:$0xff]
    %v8096 = vld [vmem:[%s5291 + $0xd8] sm:$0xff]
    %v8097 = vld [vmem:[%s5291 + $0xe0] sm:$0xff]
    %v8098 = vld [vmem:[%s5291 + $0xe8] sm:$0xff]
    %v8099 = vld [vmem:[%s5291 + $0xf0] sm:$0xff]
    %v8100 = vld [vmem:[%s5291 + $0xf8] sm:$0xff]
    %v8101 = vld [vmem:[%s5291 + $0x100] sm:$0xff]
    %v8102 = vld [vmem:[%s5291 + $0x108] sm:$0xff]
    %v8103 = vld [vmem:[%s5291 + $0x110] sm:$0xff]
    %v8104 = vld [vmem:[%s5291 + $0x118] sm:$0xff]
    %v8105 = vld [vmem:[%s5291 + $0x120] sm:$0xff]
    %v8106 = vld [vmem:[%s5291 + $0x128] sm:$0xff]
    %v8107 = vld [vmem:[%s5291 + $0x130] sm:$0xff]
    %v8108 = vld [vmem:[%s5291 + $0x138] sm:$0xff]
    %v8109 = vld [vmem:[%s5291 + $0x140] sm:$0xff]
    %v8110 = vld [vmem:[%s5291 + $0x148] sm:$0xff]
    %v8111 = vld [vmem:[%s5291 + $0x150] sm:$0xff]
    %v8112 = vld [vmem:[%s5291 + $0x158] sm:$0xff]
    %v8113 = vld [vmem:[%s5291 + $0x160] sm:$0xff]
    %v8114 = vld [vmem:[%s5291 + $0x168] sm:$0xff]
    %v8115 = vld [vmem:[%s5291 + $0x170] sm:$0xff]
    %v8116 = vld [vmem:[%s5291 + $0x178] sm:$0xff]
    %v8117 = vld [vmem:[%s5291 + $0x180] sm:$0xff]
    %v8118 = vld [vmem:[%s5291 + $0x188] sm:$0xff]
    %v8119 = vld [vmem:[%s5291 + $0x190] sm:$0xff]
    %v8120 = vld [vmem:[%s5291 + $0x198] sm:$0xff]
    %v8121 = vld [vmem:[%s5291 + $0x1a0] sm:$0xff]
    %v8122 = vld [vmem:[%s5291 + $0x1a8] sm:$0xff]
    %v8123 = vld [vmem:[%s5291 + $0x1b0] sm:$0xff]
    %v8124 = vld [vmem:[%s5291 + $0x1b8] sm:$0xff]
    %v8125 = vld [vmem:[%s5291 + $0x1c0] sm:$0xff]
    %v8126 = vld [vmem:[%s5291 + $0x1c8] sm:$0xff]
    %v8127 = vld [vmem:[%s5291 + $0x1d0] sm:$0xff]
    %v8128 = vld [vmem:[%s5291 + $0x1d8] sm:$0xff]
    %v8129 = vld [vmem:[%s5291 + $0x1e0] sm:$0xff]
    %v8130 = vld [vmem:[%s5291 + $0x1e8] sm:$0xff]
    %v8131 = vld [vmem:[%s5291 + $0x1f0] sm:$0xff]
    %v8132 = vld [vmem:[%s5291 + $0x1f8] sm:$0xff]
    %v8133 = vld [vmem:[%s5291 + $0x200] sm:$0xff]
    %v8134 = vld [vmem:[%s5291 + $0x208] sm:$0xff]
    %v8135 = vld [vmem:[%s5291 + $0x210] sm:$0xff]
    %v8136 = vld [vmem:[%s5291 + $0x218] sm:$0xff]
    %v8137 = vld [vmem:[%s5291 + $0x220] sm:$0xff]
    %v8138 = vld [vmem:[%s5291 + $0x228] sm:$0xff]
    %v8139 = vld [vmem:[%s5291 + $0x230] sm:$0xff]
    %v8140 = vld [vmem:[%s5291 + $0x238] sm:$0xff]
    %v8141 = vld [vmem:[%s5291 + $0x240] sm:$0xff]
    %v8142 = vld [vmem:[%s5291 + $0x248] sm:$0xff]
    %v8143 = vld [vmem:[%s5291 + $0x250] sm:$0xff]
    %v8144 = vld [vmem:[%s5291 + $0x258] sm:$0xff]
    %v8145 = vld [vmem:[%s5291 + $0x260] sm:$0xff]
    %v8146 = vld [vmem:[%s5291 + $0x268] sm:$0xff]
    %v8147 = vld [vmem:[%s5291 + $0x270] sm:$0xff]
    %v8148 = vld [vmem:[%s5291 + $0x278] sm:$0xff]
    %v8149 = vld [vmem:[%s5291 + $0x280] sm:$0xff]
    %v8150 = vld [vmem:[%s5291 + $0x288] sm:$0xff]
    %v8151 = vld [vmem:[%s5291 + $0x290] sm:$0xff]
    %v8152 = vld [vmem:[%s5291 + $0x298] sm:$0xff]
    %v8153 = vld [vmem:[%s5291 + $0x2a0] sm:$0xff]
    %v8154 = vld [vmem:[%s5291 + $0x2a8] sm:$0xff]
    %v8155 = vld [vmem:[%s5291 + $0x2b0] sm:$0xff]
    %v8156 = vld [vmem:[%s5291 + $0x2b8] sm:$0xff]
    %v8157 = vld [vmem:[%s5291 + $0x2c0] sm:$0xff]
    %v8158 = vld [vmem:[%s5291 + $0x2c8] sm:$0xff]
    %v8159 = vld [vmem:[%s5291 + $0x2d0] sm:$0xff]
    %v8160 = vld [vmem:[%s5291 + $0x2d8] sm:$0xff]
    %v8161 = vld [vmem:[%s5291 + $0x2e0] sm:$0xff]
    %v8162 = vld [vmem:[%s5291 + $0x2e8] sm:$0xff]
    %v8163 = vld [vmem:[%s5291 + $0x2f0] sm:$0xff]
    %v8164 = vld [vmem:[%s5291 + $0x2f8] sm:$0xff]
    %v8165 = vld [vmem:[%s5291 + $0x300] sm:$0xff]
    %v8166 = vld [vmem:[%s5291 + $0x308] sm:$0xff]
    %v8167 = vld [vmem:[%s5291 + $0x310] sm:$0xff]
    %v8168 = vld [vmem:[%s5291 + $0x318] sm:$0xff]
    %v8169 = vld [vmem:[%s5291 + $0x320] sm:$0xff]
    %v8170 = vld [vmem:[%s5291 + $0x328] sm:$0xff]
    %v8171 = vld [vmem:[%s5291 + $0x330] sm:$0xff]
    %v8172 = vld [vmem:[%s5291 + $0x338] sm:$0xff]
    %v8173 = vld [vmem:[%s5291 + $0x340] sm:$0xff]
    %v8174 = vld [vmem:[%s5291 + $0x348] sm:$0xff]
    %v8175 = vld [vmem:[%s5291 + $0x350] sm:$0xff]
    %v8176 = vld [vmem:[%s5291 + $0x358] sm:$0xff]
    %v8177 = vld [vmem:[%s5291 + $0x360] sm:$0xff]
    %v8178 = vld [vmem:[%s5291 + $0x368] sm:$0xff]
    %v8179 = vld [vmem:[%s5291 + $0x370] sm:$0xff]
    %v8180 = vld [vmem:[%s5291 + $0x378] sm:$0xff]
    %v8181 = vld [vmem:[%s5291 + $0x380] sm:$0xff]
    %v8182 = vld [vmem:[%s5291 + $0x388] sm:$0xff]
    %v8183 = vld [vmem:[%s5291 + $0x390] sm:$0xff]
    %v8184 = vld [vmem:[%s5291 + $0x398] sm:$0xff]
    %v8185 = vld [vmem:[%s5291 + $0x3a0] sm:$0xff]
    %v8186 = vld [vmem:[%s5291 + $0x3a8] sm:$0xff]
    %v8187 = vld [vmem:[%s5291 + $0x3b0] sm:$0xff]
    %v8188 = vld [vmem:[%s5291 + $0x3b8] sm:$0xff]
    %v8189 = vld [vmem:[%s5291 + $0x3c0] sm:$0xff]
    %v8190 = vld [vmem:[%s5291 + $0x3c8] sm:$0xff]
    %v8191 = vld [vmem:[%s5291 + $0x3d0] sm:$0xff]
    %v8192 = vld [vmem:[%s5291 + $0x3d8] sm:$0xff]
    %v8193 = vld [vmem:[%s5291 + $0x3e0] sm:$0xff]
    %v8194 = vld [vmem:[%s5291 + $0x3e8] sm:$0xff]
    %v8195 = vld [vmem:[%s5291 + $0x3f0] sm:$0xff]
    %v8196 = vld [vmem:[%s5291 + $0x3f8] sm:$0xff]
    %8197 = vmatprep.subr.mxu0 %v8130
    %8198 = vmatpush1.msra.mxu0 %v8129
    %8199 = vmatprep.subr.mxu0 %v8126
    %8200 = vmatpush1.msra.mxu0 %v8125
    %8201 = vmatprep.subr.mxu0 %v8122
    %8202 = vmatpush1.msra.mxu0 %v8121
    %8203 = vmatprep.subr.mxu0 %v8118
    %8204 = vmatpush1.msra.mxu0 %v8117
    %8205 = vmatprep.subr.mxu0 %v8114
    %8206 = vmatpush1.msra.mxu0 %v8113
    %8207 = vmatprep.subr.mxu0 %v8110
    %8208 = vmatpush1.msra.mxu0 %v8109
    %8209 = vmatprep.subr.mxu0 %v8106
    %8210 = vmatpush1.msra.mxu0 %v8105
    %8211 = vmatprep.subr.mxu0 %v8102
    %8212 = vmatpush1.msra.mxu0 %v8101
    %8213 = vmatprep.subr.mxu0 %v8098
    %8214 = vmatpush1.msra.mxu0 %v8097
    %8215 = vmatprep.subr.mxu0 %v8094
    %8216 = vmatpush1.msra.mxu0 %v8093
    %8217 = vmatprep.subr.mxu0 %v8090
    %8218 = vmatpush1.msra.mxu0 %v8089
    %8219 = vmatprep.subr.mxu0 %v8086
    %8220 = vmatpush1.msra.mxu0 %v8085
    %8221 = vmatprep.subr.mxu0 %v8082
    %8222 = vmatpush1.msra.mxu0 %v8081
    %8223 = vmatprep.subr.mxu0 %v8078
    %8224 = vmatpush1.msra.mxu0 %v8077
    %8225 = vmatprep.subr.mxu0 %v8074
    %8226 = vmatpush1.msra.mxu0 %v8073
    %8227 = vmatprep.subr.mxu0 %v8070
    %8228 = vmatpush1.msra.mxu0 %v8069
    %8229 = vmatprep.subr.mxu0 %v8194
    %8230 = vmatpush2.msra.mxu0 %v8193
    %8231 = vmatprep.subr.mxu0 %v8190
    %8232 = vmatpush2.msra.mxu0 %v8189
    %8233 = vmatprep.subr.mxu0 %v8186
    %8234 = vmatpush2.msra.mxu0 %v8185
    %8235 = vmatprep.subr.mxu0 %v8182
    %8236 = vmatpush2.msra.mxu0 %v8181
    %8237 = vmatprep.subr.mxu0 %v8178
    %8238 = vmatpush2.msra.mxu0 %v8177
    %8239 = vmatprep.subr.mxu0 %v8174
    %8240 = vmatpush2.msra.mxu0 %v8173
    %8241 = vmatprep.subr.mxu0 %v8170
    %8242 = vmatpush2.msra.mxu0 %v8169
    %8243 = vmatprep.subr.mxu0 %v8166
    %8244 = vmatpush2.msra.mxu0 %v8165
    %8245 = vmatprep.subr.mxu0 %v8162
    %8246 = vmatpush2.msra.mxu0 %v8161
    %8247 = vmatprep.subr.mxu0 %v8158
    %8248 = vmatpush2.msra.mxu0 %v8157
    %8249 = vmatprep.subr.mxu0 %v8154
    %8250 = vmatpush2.msra.mxu0 %v8153
    %8251 = vmatprep.subr.mxu0 %v8150
    %8252 = vmatpush2.msra.mxu0 %v8149
    %8253 = vmatprep.subr.mxu0 %v8146
    %8254 = vmatpush2.msra.mxu0 %v8145
    %8255 = vmatprep.subr.mxu0 %v8142
    %8256 = vmatpush2.msra.mxu0 %v8141
    %8257 = vmatprep.subr.mxu0 %v8138
    %8258 = vmatpush2.msra.mxu0 %v8137
    %8259 = vmatprep.subr.mxu0 %v8134
    %8260 = vmatpush2.msra.mxu0 %v8133
    %8261 = vmatprep.mubr.f32.mxu0 %v8068
    %8262 = vmatmul.mubr.f32.gmra.mxu0 %v8067
    %v8263 = vpop.f32.mrf.mxu0
    %v8264 = vadd.f32 0.0, %v8263
    %v8265 = vpop.f32.mrf.mxu0
    %v8266 = vadd.f32 0.0, %v8265
    %8267 = vdwg.mxu0
    %8268 = vmatprep.subr.mxu0 %v8132
    %8269 = vmatpush1.msra.mxu0 %v8131
    %8270 = vmatprep.subr.mxu0 %v8128
    %8271 = vmatpush1.msra.mxu0 %v8127
    %8272 = vmatprep.subr.mxu0 %v8124
    %8273 = vmatpush1.msra.mxu0 %v8123
    %8274 = vmatprep.subr.mxu0 %v8120
    %8275 = vmatpush1.msra.mxu0 %v8119
    %8276 = vmatprep.subr.mxu0 %v8116
    %8277 = vmatpush1.msra.mxu0 %v8115
    %8278 = vmatprep.subr.mxu0 %v8112
    %8279 = vmatpush1.msra.mxu0 %v8111
    %8280 = vmatprep.subr.mxu0 %v8108
    %8281 = vmatpush1.msra.mxu0 %v8107
    %8282 = vmatprep.subr.mxu0 %v8104
    %8283 = vmatpush1.msra.mxu0 %v8103
    %8284 = vmatprep.subr.mxu0 %v8100
    %8285 = vmatpush1.msra.mxu0 %v8099
    %8286 = vmatprep.subr.mxu0 %v8096
    %8287 = vmatpush1.msra.mxu0 %v8095
    %8288 = vmatprep.subr.mxu0 %v8092
    %8289 = vmatpush1.msra.mxu0 %v8091
    %8290 = vmatprep.subr.mxu0 %v8088
    %8291 = vmatpush1.msra.mxu0 %v8087
    %8292 = vmatprep.subr.mxu0 %v8084
    %8293 = vmatpush1.msra.mxu0 %v8083
    %8294 = vmatprep.subr.mxu0 %v8080
    %8295 = vmatpush1.msra.mxu0 %v8079
    %8296 = vmatprep.subr.mxu0 %v8076
    %8297 = vmatpush1.msra.mxu0 %v8075
    %8298 = vmatprep.subr.mxu0 %v8072
    %8299 = vmatpush1.msra.mxu0 %v8071
    %8300 = vmatprep.subr.mxu0 %v8196
    %8301 = vmatpush2.msra.mxu0 %v8195
    %8302 = vmatprep.subr.mxu0 %v8192
    %8303 = vmatpush2.msra.mxu0 %v8191
    %8304 = vmatprep.subr.mxu0 %v8188
    %8305 = vmatpush2.msra.mxu0 %v8187
    %8306 = vmatprep.subr.mxu0 %v8184
    %8307 = vmatpush2.msra.mxu0 %v8183
    %8308 = vmatprep.subr.mxu0 %v8180
    %8309 = vmatpush2.msra.mxu0 %v8179
    %8310 = vmatprep.subr.mxu0 %v8176
    %8311 = vmatpush2.msra.mxu0 %v8175
    %8312 = vmatprep.subr.mxu0 %v8172
    %8313 = vmatpush2.msra.mxu0 %v8171
    %8314 = vmatprep.subr.mxu0 %v8168
    %8315 = vmatpush2.msra.mxu0 %v8167
    %8316 = vmatprep.subr.mxu0 %v8164
    %8317 = vmatpush2.msra.mxu0 %v8163
    %8318 = vmatprep.subr.mxu0 %v8160
    %8319 = vmatpush2.msra.mxu0 %v8159
    %8320 = vmatprep.subr.mxu0 %v8156
    %8321 = vmatpush2.msra.mxu0 %v8155
    %8322 = vmatprep.subr.mxu0 %v8152
    %8323 = vmatpush2.msra.mxu0 %v8151
    %8324 = vmatprep.subr.mxu0 %v8148
    %8325 = vmatpush2.msra.mxu0 %v8147
    %8326 = vmatprep.subr.mxu0 %v8144
    %8327 = vmatpush2.msra.mxu0 %v8143
    %8328 = vmatprep.subr.mxu0 %v8140
    %8329 = vmatpush2.msra.mxu0 %v8139
    %8330 = vmatprep.subr.mxu0 %v8136
    %8331 = vmatpush2.msra.mxu0 %v8135
    %8332 = vmatprep.mubr.f32.mxu0 %v8068
    %8333 = vmatmul.mubr.f32.gmra.mxu0 %v8067
    %v8334 = vpop.f32.mrf.mxu0
    %v8335 = vadd.f32 0.0, %v8334
    %v8336 = vpop.f32.mrf.mxu0
    %v8337 = vadd.f32 0.0, %v8336
    %8338 = vdwg.mxu0
    %v8339 = vadd.f32 %v8063, %v8264
    %v8340 = vadd.f32 %v8064, %v8266
    %v8341 = vadd.f32 %v8065, %v8335
    %v8342 = vadd.f32 %v8066, %v8337
    %v8343 = vld [vmem:[#allocation2 + $0x130] sm:$0xff]
    %v8344 = vld [vmem:[#allocation2 + $0x138] sm:$0xff]
    %v8345 = vld [vmem:[%s5568] sm:$0xff]
    %v8346 = vld [vmem:[%s5568 + $0x8] sm:$0xff]
    %v8347 = vld [vmem:[%s5568 + $0x10] sm:$0xff]
    %v8348 = vld [vmem:[%s5568 + $0x18] sm:$0xff]
    %v8349 = vld [vmem:[%s5568 + $0x20] sm:$0xff]
    %v8350 = vld [vmem:[%s5568 + $0x28] sm:$0xff]
    %v8351 = vld [vmem:[%s5568 + $0x30] sm:$0xff]
    %v8352 = vld [vmem:[%s5568 + $0x38] sm:$0xff]
    %v8353 = vld [vmem:[%s5568 + $0x40] sm:$0xff]
    %v8354 = vld [vmem:[%s5568 + $0x48] sm:$0xff]
    %v8355 = vld [vmem:[%s5568 + $0x50] sm:$0xff]
    %v8356 = vld [vmem:[%s5568 + $0x58] sm:$0xff]
    %v8357 = vld [vmem:[%s5568 + $0x60] sm:$0xff]
    %v8358 = vld [vmem:[%s5568 + $0x68] sm:$0xff]
    %v8359 = vld [vmem:[%s5568 + $0x70] sm:$0xff]
    %v8360 = vld [vmem:[%s5568 + $0x78] sm:$0xff]
    %v8361 = vld [vmem:[%s5568 + $0x80] sm:$0xff]
    %v8362 = vld [vmem:[%s5568 + $0x88] sm:$0xff]
    %v8363 = vld [vmem:[%s5568 + $0x90] sm:$0xff]
    %v8364 = vld [vmem:[%s5568 + $0x98] sm:$0xff]
    %v8365 = vld [vmem:[%s5568 + $0xa0] sm:$0xff]
    %v8366 = vld [vmem:[%s5568 + $0xa8] sm:$0xff]
    %v8367 = vld [vmem:[%s5568 + $0xb0] sm:$0xff]
    %v8368 = vld [vmem:[%s5568 + $0xb8] sm:$0xff]
    %v8369 = vld [vmem:[%s5568 + $0xc0] sm:$0xff]
    %v8370 = vld [vmem:[%s5568 + $0xc8] sm:$0xff]
    %v8371 = vld [vmem:[%s5568 + $0xd0] sm:$0xff]
    %v8372 = vld [vmem:[%s5568 + $0xd8] sm:$0xff]
    %v8373 = vld [vmem:[%s5568 + $0xe0] sm:$0xff]
    %v8374 = vld [vmem:[%s5568 + $0xe8] sm:$0xff]
    %v8375 = vld [vmem:[%s5568 + $0xf0] sm:$0xff]
    %v8376 = vld [vmem:[%s5568 + $0xf8] sm:$0xff]
    %v8377 = vld [vmem:[%s5568 + $0x100] sm:$0xff]
    %v8378 = vld [vmem:[%s5568 + $0x108] sm:$0xff]
    %v8379 = vld [vmem:[%s5568 + $0x110] sm:$0xff]
    %v8380 = vld [vmem:[%s5568 + $0x118] sm:$0xff]
    %v8381 = vld [vmem:[%s5568 + $0x120] sm:$0xff]
    %v8382 = vld [vmem:[%s5568 + $0x128] sm:$0xff]
    %v8383 = vld [vmem:[%s5568 + $0x130] sm:$0xff]
    %v8384 = vld [vmem:[%s5568 + $0x138] sm:$0xff]
    %v8385 = vld [vmem:[%s5568 + $0x140] sm:$0xff]
    %v8386 = vld [vmem:[%s5568 + $0x148] sm:$0xff]
    %v8387 = vld [vmem:[%s5568 + $0x150] sm:$0xff]
    %v8388 = vld [vmem:[%s5568 + $0x158] sm:$0xff]
    %v8389 = vld [vmem:[%s5568 + $0x160] sm:$0xff]
    %v8390 = vld [vmem:[%s5568 + $0x168] sm:$0xff]
    %v8391 = vld [vmem:[%s5568 + $0x170] sm:$0xff]
    %v8392 = vld [vmem:[%s5568 + $0x178] sm:$0xff]
    %v8393 = vld [vmem:[%s5568 + $0x180] sm:$0xff]
    %v8394 = vld [vmem:[%s5568 + $0x188] sm:$0xff]
    %v8395 = vld [vmem:[%s5568 + $0x190] sm:$0xff]
    %v8396 = vld [vmem:[%s5568 + $0x198] sm:$0xff]
    %v8397 = vld [vmem:[%s5568 + $0x1a0] sm:$0xff]
    %v8398 = vld [vmem:[%s5568 + $0x1a8] sm:$0xff]
    %v8399 = vld [vmem:[%s5568 + $0x1b0] sm:$0xff]
    %v8400 = vld [vmem:[%s5568 + $0x1b8] sm:$0xff]
    %v8401 = vld [vmem:[%s5568 + $0x1c0] sm:$0xff]
    %v8402 = vld [vmem:[%s5568 + $0x1c8] sm:$0xff]
    %v8403 = vld [vmem:[%s5568 + $0x1d0] sm:$0xff]
    %v8404 = vld [vmem:[%s5568 + $0x1d8] sm:$0xff]
    %v8405 = vld [vmem:[%s5568 + $0x1e0] sm:$0xff]
    %v8406 = vld [vmem:[%s5568 + $0x1e8] sm:$0xff]
    %v8407 = vld [vmem:[%s5568 + $0x1f0] sm:$0xff]
    %v8408 = vld [vmem:[%s5568 + $0x1f8] sm:$0xff]
    %v8409 = vld [vmem:[%s5568 + $0x200] sm:$0xff]
    %v8410 = vld [vmem:[%s5568 + $0x208] sm:$0xff]
    %v8411 = vld [vmem:[%s5568 + $0x210] sm:$0xff]
    %v8412 = vld [vmem:[%s5568 + $0x218] sm:$0xff]
    %v8413 = vld [vmem:[%s5568 + $0x220] sm:$0xff]
    %v8414 = vld [vmem:[%s5568 + $0x228] sm:$0xff]
    %v8415 = vld [vmem:[%s5568 + $0x230] sm:$0xff]
    %v8416 = vld [vmem:[%s5568 + $0x238] sm:$0xff]
    %v8417 = vld [vmem:[%s5568 + $0x240] sm:$0xff]
    %v8418 = vld [vmem:[%s5568 + $0x248] sm:$0xff]
    %v8419 = vld [vmem:[%s5568 + $0x250] sm:$0xff]
    %v8420 = vld [vmem:[%s5568 + $0x258] sm:$0xff]
    %v8421 = vld [vmem:[%s5568 + $0x260] sm:$0xff]
    %v8422 = vld [vmem:[%s5568 + $0x268] sm:$0xff]
    %v8423 = vld [vmem:[%s5568 + $0x270] sm:$0xff]
    %v8424 = vld [vmem:[%s5568 + $0x278] sm:$0xff]
    %v8425 = vld [vmem:[%s5568 + $0x280] sm:$0xff]
    %v8426 = vld [vmem:[%s5568 + $0x288] sm:$0xff]
    %v8427 = vld [vmem:[%s5568 + $0x290] sm:$0xff]
    %v8428 = vld [vmem:[%s5568 + $0x298] sm:$0xff]
    %v8429 = vld [vmem:[%s5568 + $0x2a0] sm:$0xff]
    %v8430 = vld [vmem:[%s5568 + $0x2a8] sm:$0xff]
    %v8431 = vld [vmem:[%s5568 + $0x2b0] sm:$0xff]
    %v8432 = vld [vmem:[%s5568 + $0x2b8] sm:$0xff]
    %v8433 = vld [vmem:[%s5568 + $0x2c0] sm:$0xff]
    %v8434 = vld [vmem:[%s5568 + $0x2c8] sm:$0xff]
    %v8435 = vld [vmem:[%s5568 + $0x2d0] sm:$0xff]
    %v8436 = vld [vmem:[%s5568 + $0x2d8] sm:$0xff]
    %v8437 = vld [vmem:[%s5568 + $0x2e0] sm:$0xff]
    %v8438 = vld [vmem:[%s5568 + $0x2e8] sm:$0xff]
    %v8439 = vld [vmem:[%s5568 + $0x2f0] sm:$0xff]
    %v8440 = vld [vmem:[%s5568 + $0x2f8] sm:$0xff]
    %v8441 = vld [vmem:[%s5568 + $0x300] sm:$0xff]
    %v8442 = vld [vmem:[%s5568 + $0x308] sm:$0xff]
    %v8443 = vld [vmem:[%s5568 + $0x310] sm:$0xff]
    %v8444 = vld [vmem:[%s5568 + $0x318] sm:$0xff]
    %v8445 = vld [vmem:[%s5568 + $0x320] sm:$0xff]
    %v8446 = vld [vmem:[%s5568 + $0x328] sm:$0xff]
    %v8447 = vld [vmem:[%s5568 + $0x330] sm:$0xff]
    %v8448 = vld [vmem:[%s5568 + $0x338] sm:$0xff]
    %v8449 = vld [vmem:[%s5568 + $0x340] sm:$0xff]
    %v8450 = vld [vmem:[%s5568 + $0x348] sm:$0xff]
    %v8451 = vld [vmem:[%s5568 + $0x350] sm:$0xff]
    %v8452 = vld [vmem:[%s5568 + $0x358] sm:$0xff]
    %v8453 = vld [vmem:[%s5568 + $0x360] sm:$0xff]
    %v8454 = vld [vmem:[%s5568 + $0x368] sm:$0xff]
    %v8455 = vld [vmem:[%s5568 + $0x370] sm:$0xff]
    %v8456 = vld [vmem:[%s5568 + $0x378] sm:$0xff]
    %v8457 = vld [vmem:[%s5568 + $0x380] sm:$0xff]
    %v8458 = vld [vmem:[%s5568 + $0x388] sm:$0xff]
    %v8459 = vld [vmem:[%s5568 + $0x390] sm:$0xff]
    %v8460 = vld [vmem:[%s5568 + $0x398] sm:$0xff]
    %v8461 = vld [vmem:[%s5568 + $0x3a0] sm:$0xff]
    %v8462 = vld [vmem:[%s5568 + $0x3a8] sm:$0xff]
    %v8463 = vld [vmem:[%s5568 + $0x3b0] sm:$0xff]
    %v8464 = vld [vmem:[%s5568 + $0x3b8] sm:$0xff]
    %v8465 = vld [vmem:[%s5568 + $0x3c0] sm:$0xff]
    %v8466 = vld [vmem:[%s5568 + $0x3c8] sm:$0xff]
    %v8467 = vld [vmem:[%s5568 + $0x3d0] sm:$0xff]
    %v8468 = vld [vmem:[%s5568 + $0x3d8] sm:$0xff]
    %v8469 = vld [vmem:[%s5568 + $0x3e0] sm:$0xff]
    %v8470 = vld [vmem:[%s5568 + $0x3e8] sm:$0xff]
    %v8471 = vld [vmem:[%s5568 + $0x3f0] sm:$0xff]
    %v8472 = vld [vmem:[%s5568 + $0x3f8] sm:$0xff]
    %8473 = vmatprep.subr.mxu0 %v8406
    %8474 = vmatpush1.msra.mxu0 %v8405
    %8475 = vmatprep.subr.mxu0 %v8402
    %8476 = vmatpush1.msra.mxu0 %v8401
    %8477 = vmatprep.subr.mxu0 %v8398
    %8478 = vmatpush1.msra.mxu0 %v8397
    %8479 = vmatprep.subr.mxu0 %v8394
    %8480 = vmatpush1.msra.mxu0 %v8393
    %8481 = vmatprep.subr.mxu0 %v8390
    %8482 = vmatpush1.msra.mxu0 %v8389
    %8483 = vmatprep.subr.mxu0 %v8386
    %8484 = vmatpush1.msra.mxu0 %v8385
    %8485 = vmatprep.subr.mxu0 %v8382
    %8486 = vmatpush1.msra.mxu0 %v8381
    %8487 = vmatprep.subr.mxu0 %v8378
    %8488 = vmatpush1.msra.mxu0 %v8377
    %8489 = vmatprep.subr.mxu0 %v8374
    %8490 = vmatpush1.msra.mxu0 %v8373
    %8491 = vmatprep.subr.mxu0 %v8370
    %8492 = vmatpush1.msra.mxu0 %v8369
    %8493 = vmatprep.subr.mxu0 %v8366
    %8494 = vmatpush1.msra.mxu0 %v8365
    %8495 = vmatprep.subr.mxu0 %v8362
    %8496 = vmatpush1.msra.mxu0 %v8361
    %8497 = vmatprep.subr.mxu0 %v8358
    %8498 = vmatpush1.msra.mxu0 %v8357
    %8499 = vmatprep.subr.mxu0 %v8354
    %8500 = vmatpush1.msra.mxu0 %v8353
    %8501 = vmatprep.subr.mxu0 %v8350
    %8502 = vmatpush1.msra.mxu0 %v8349
    %8503 = vmatprep.subr.mxu0 %v8346
    %8504 = vmatpush1.msra.mxu0 %v8345
    %8505 = vmatprep.subr.mxu0 %v8470
    %8506 = vmatpush2.msra.mxu0 %v8469
    %8507 = vmatprep.subr.mxu0 %v8466
    %8508 = vmatpush2.msra.mxu0 %v8465
    %8509 = vmatprep.subr.mxu0 %v8462
    %8510 = vmatpush2.msra.mxu0 %v8461
    %8511 = vmatprep.subr.mxu0 %v8458
    %8512 = vmatpush2.msra.mxu0 %v8457
    %8513 = vmatprep.subr.mxu0 %v8454
    %8514 = vmatpush2.msra.mxu0 %v8453
    %8515 = vmatprep.subr.mxu0 %v8450
    %8516 = vmatpush2.msra.mxu0 %v8449
    %8517 = vmatprep.subr.mxu0 %v8446
    %8518 = vmatpush2.msra.mxu0 %v8445
    %8519 = vmatprep.subr.mxu0 %v8442
    %8520 = vmatpush2.msra.mxu0 %v8441
    %8521 = vmatprep.subr.mxu0 %v8438
    %8522 = vmatpush2.msra.mxu0 %v8437
    %8523 = vmatprep.subr.mxu0 %v8434
    %8524 = vmatpush2.msra.mxu0 %v8433
    %8525 = vmatprep.subr.mxu0 %v8430
    %8526 = vmatpush2.msra.mxu0 %v8429
    %8527 = vmatprep.subr.mxu0 %v8426
    %8528 = vmatpush2.msra.mxu0 %v8425
    %8529 = vmatprep.subr.mxu0 %v8422
    %8530 = vmatpush2.msra.mxu0 %v8421
    %8531 = vmatprep.subr.mxu0 %v8418
    %8532 = vmatpush2.msra.mxu0 %v8417
    %8533 = vmatprep.subr.mxu0 %v8414
    %8534 = vmatpush2.msra.mxu0 %v8413
    %8535 = vmatprep.subr.mxu0 %v8410
    %8536 = vmatpush2.msra.mxu0 %v8409
    %8537 = vmatprep.mubr.f32.mxu0 %v8344
    %8538 = vmatmul.mubr.f32.gmra.mxu0 %v8343
    %v8539 = vpop.f32.mrf.mxu0
    %v8540 = vadd.f32 0.0, %v8539
    %v8541 = vpop.f32.mrf.mxu0
    %v8542 = vadd.f32 0.0, %v8541
    %8543 = vdwg.mxu0
    %8544 = vmatprep.subr.mxu0 %v8408
    %8545 = vmatpush1.msra.mxu0 %v8407
    %8546 = vmatprep.subr.mxu0 %v8404
    %8547 = vmatpush1.msra.mxu0 %v8403
    %8548 = vmatprep.subr.mxu0 %v8400
    %8549 = vmatpush1.msra.mxu0 %v8399
    %8550 = vmatprep.subr.mxu0 %v8396
    %8551 = vmatpush1.msra.mxu0 %v8395
    %8552 = vmatprep.subr.mxu0 %v8392
    %8553 = vmatpush1.msra.mxu0 %v8391
    %8554 = vmatprep.subr.mxu0 %v8388
    %8555 = vmatpush1.msra.mxu0 %v8387
    %8556 = vmatprep.subr.mxu0 %v8384
    %8557 = vmatpush1.msra.mxu0 %v8383
    %8558 = vmatprep.subr.mxu0 %v8380
    %8559 = vmatpush1.msra.mxu0 %v8379
    %8560 = vmatprep.subr.mxu0 %v8376
    %8561 = vmatpush1.msra.mxu0 %v8375
    %8562 = vmatprep.subr.mxu0 %v8372
    %8563 = vmatpush1.msra.mxu0 %v8371
    %8564 = vmatprep.subr.mxu0 %v8368
    %8565 = vmatpush1.msra.mxu0 %v8367
    %8566 = vmatprep.subr.mxu0 %v8364
    %8567 = vmatpush1.msra.mxu0 %v8363
    %8568 = vmatprep.subr.mxu0 %v8360
    %8569 = vmatpush1.msra.mxu0 %v8359
    %8570 = vmatprep.subr.mxu0 %v8356
    %8571 = vmatpush1.msra.mxu0 %v8355
    %8572 = vmatprep.subr.mxu0 %v8352
    %8573 = vmatpush1.msra.mxu0 %v8351
    %8574 = vmatprep.subr.mxu0 %v8348
    %8575 = vmatpush1.msra.mxu0 %v8347
    %8576 = vmatprep.subr.mxu0 %v8472
    %8577 = vmatpush2.msra.mxu0 %v8471
    %8578 = vmatprep.subr.mxu0 %v8468
    %8579 = vmatpush2.msra.mxu0 %v8467
    %8580 = vmatprep.subr.mxu0 %v8464
    %8581 = vmatpush2.msra.mxu0 %v8463
    %8582 = vmatprep.subr.mxu0 %v8460
    %8583 = vmatpush2.msra.mxu0 %v8459
    %8584 = vmatprep.subr.mxu0 %v8456
    %8585 = vmatpush2.msra.mxu0 %v8455
    %8586 = vmatprep.subr.mxu0 %v8452
    %8587 = vmatpush2.msra.mxu0 %v8451
    %8588 = vmatprep.subr.mxu0 %v8448
    %8589 = vmatpush2.msra.mxu0 %v8447
    %8590 = vmatprep.subr.mxu0 %v8444
    %8591 = vmatpush2.msra.mxu0 %v8443
    %8592 = vmatprep.subr.mxu0 %v8440
    %8593 = vmatpush2.msra.mxu0 %v8439
    %8594 = vmatprep.subr.mxu0 %v8436
    %8595 = vmatpush2.msra.mxu0 %v8435
    %8596 = vmatprep.subr.mxu0 %v8432
    %8597 = vmatpush2.msra.mxu0 %v8431
    %8598 = vmatprep.subr.mxu0 %v8428
    %8599 = vmatpush2.msra.mxu0 %v8427
    %8600 = vmatprep.subr.mxu0 %v8424
    %8601 = vmatpush2.msra.mxu0 %v8423
    %8602 = vmatprep.subr.mxu0 %v8420
    %8603 = vmatpush2.msra.mxu0 %v8419
    %8604 = vmatprep.subr.mxu0 %v8416
    %8605 = vmatpush2.msra.mxu0 %v8415
    %8606 = vmatprep.subr.mxu0 %v8412
    %8607 = vmatpush2.msra.mxu0 %v8411
    %8608 = vmatprep.mubr.f32.mxu0 %v8344
    %8609 = vmatmul.mubr.f32.gmra.mxu0 %v8343
    %v8610 = vpop.f32.mrf.mxu0
    %v8611 = vadd.f32 0.0, %v8610
    %v8612 = vpop.f32.mrf.mxu0
    %v8613 = vadd.f32 0.0, %v8612
    %8614 = vdwg.mxu0
    %v8615 = vadd.f32 %v8339, %v8540
    %v8616 = vadd.f32 %v8340, %v8542
    %v8617 = vadd.f32 %v8341, %v8611
    %v8618 = vadd.f32 %v8342, %v8613
    %v8619 = vmax.f32 %v8615, 0.0
    %v8620 = vmax.f32 %v8616, 0.0
    %v8621 = vmax.f32 %v8617, 0.0
    %v8622 = vmax.f32 %v8618, 0.0
    %v8623 = vld [vmem:[#allocation23] sm:$0xff]
    %v8624 = vld [vmem:[#allocation23 + $0x8] sm:$0xff]
    %v8625 = vld [vmem:[#allocation23 + $0x10] sm:$0xff]
    %v8626 = vld [vmem:[#allocation23 + $0x18] sm:$0xff]
    %v8627 = vld [vmem:[#allocation23 + $0x20] sm:$0xff]
    %v8628 = vld [vmem:[#allocation23 + $0x28] sm:$0xff]
    %v8629 = vld [vmem:[#allocation23 + $0x30] sm:$0xff]
    %v8630 = vld [vmem:[#allocation23 + $0x38] sm:$0xff]
    %v8631 = vld [vmem:[#allocation23 + $0x40] sm:$0xff]
    %v8632 = vld [vmem:[#allocation23 + $0x48] sm:$0xff]
    %v8633 = vld [vmem:[#allocation23 + $0x50] sm:$0xff]
    %v8634 = vld [vmem:[#allocation23 + $0x58] sm:$0xff]
    %v8635 = vld [vmem:[#allocation23 + $0x60] sm:$0xff]
    %v8636 = vld [vmem:[#allocation23 + $0x68] sm:$0xff]
    %v8637 = vld [vmem:[#allocation23 + $0x70] sm:$0xff]
    %v8638 = vld [vmem:[#allocation23 + $0x78] sm:$0xff]
    %v8639 = vld [vmem:[#allocation23 + $0x80] sm:$0xff]
    %v8640 = vld [vmem:[#allocation23 + $0x88] sm:$0xff]
    %v8641 = vld [vmem:[#allocation23 + $0x90] sm:$0xff]
    %v8642 = vld [vmem:[#allocation23 + $0x98] sm:$0xff]
    %v8643 = vld [vmem:[#allocation23 + $0xa0] sm:$0xff]
    %v8644 = vld [vmem:[#allocation23 + $0xa8] sm:$0xff]
    %v8645 = vld [vmem:[#allocation23 + $0xb0] sm:$0xff]
    %v8646 = vld [vmem:[#allocation23 + $0xb8] sm:$0xff]
    %v8647 = vld [vmem:[#allocation23 + $0xc0] sm:$0xff]
    %v8648 = vld [vmem:[#allocation23 + $0xc8] sm:$0xff]
    %v8649 = vld [vmem:[#allocation23 + $0xd0] sm:$0xff]
    %v8650 = vld [vmem:[#allocation23 + $0xd8] sm:$0xff]
    %v8651 = vld [vmem:[#allocation23 + $0xe0] sm:$0xff]
    %v8652 = vld [vmem:[#allocation23 + $0xe8] sm:$0xff]
    %v8653 = vld [vmem:[#allocation23 + $0xf0] sm:$0xff]
    %v8654 = vld [vmem:[#allocation23 + $0xf8] sm:$0xff]
    %v8655 = vld [vmem:[#allocation23 + $0x100] sm:$0xff]
    %v8656 = vld [vmem:[#allocation23 + $0x108] sm:$0xff]
    %v8657 = vld [vmem:[#allocation23 + $0x110] sm:$0xff]
    %v8658 = vld [vmem:[#allocation23 + $0x118] sm:$0xff]
    %v8659 = vld [vmem:[#allocation23 + $0x120] sm:$0xff]
    %v8660 = vld [vmem:[#allocation23 + $0x128] sm:$0xff]
    %v8661 = vld [vmem:[#allocation23 + $0x130] sm:$0xff]
    %v8662 = vld [vmem:[#allocation23 + $0x138] sm:$0xff]
    %v8663 = vld [vmem:[#allocation23 + $0x140] sm:$0xff]
    %v8664 = vld [vmem:[#allocation23 + $0x148] sm:$0xff]
    %v8665 = vld [vmem:[#allocation23 + $0x150] sm:$0xff]
    %v8666 = vld [vmem:[#allocation23 + $0x158] sm:$0xff]
    %v8667 = vld [vmem:[#allocation23 + $0x160] sm:$0xff]
    %v8668 = vld [vmem:[#allocation23 + $0x168] sm:$0xff]
    %v8669 = vld [vmem:[#allocation23 + $0x170] sm:$0xff]
    %v8670 = vld [vmem:[#allocation23 + $0x178] sm:$0xff]
    %v8671 = vld [vmem:[#allocation23 + $0x180] sm:$0xff]
    %v8672 = vld [vmem:[#allocation23 + $0x188] sm:$0xff]
    %v8673 = vld [vmem:[#allocation23 + $0x190] sm:$0xff]
    %v8674 = vld [vmem:[#allocation23 + $0x198] sm:$0xff]
    %v8675 = vld [vmem:[#allocation23 + $0x1a0] sm:$0xff]
    %v8676 = vld [vmem:[#allocation23 + $0x1a8] sm:$0xff]
    %v8677 = vld [vmem:[#allocation23 + $0x1b0] sm:$0xff]
    %v8678 = vld [vmem:[#allocation23 + $0x1b8] sm:$0xff]
    %v8679 = vld [vmem:[#allocation23 + $0x1c0] sm:$0xff]
    %v8680 = vld [vmem:[#allocation23 + $0x1c8] sm:$0xff]
    %v8681 = vld [vmem:[#allocation23 + $0x1d0] sm:$0xff]
    %v8682 = vld [vmem:[#allocation23 + $0x1d8] sm:$0xff]
    %v8683 = vld [vmem:[#allocation23 + $0x1e0] sm:$0xff]
    %v8684 = vld [vmem:[#allocation23 + $0x1e8] sm:$0xff]
    %v8685 = vld [vmem:[#allocation23 + $0x1f0] sm:$0xff]
    %v8686 = vld [vmem:[#allocation23 + $0x1f8] sm:$0xff]
    %v8687 = vld [vmem:[#allocation23 + $0x200] sm:$0xff]
    %v8688 = vld [vmem:[#allocation23 + $0x208] sm:$0xff]
    %v8689 = vld [vmem:[#allocation23 + $0x210] sm:$0xff]
    %v8690 = vld [vmem:[#allocation23 + $0x218] sm:$0xff]
    %v8691 = vld [vmem:[#allocation23 + $0x220] sm:$0xff]
    %v8692 = vld [vmem:[#allocation23 + $0x228] sm:$0xff]
    %v8693 = vld [vmem:[#allocation23 + $0x230] sm:$0xff]
    %v8694 = vld [vmem:[#allocation23 + $0x238] sm:$0xff]
    %v8695 = vld [vmem:[#allocation23 + $0x240] sm:$0xff]
    %v8696 = vld [vmem:[#allocation23 + $0x248] sm:$0xff]
    %v8697 = vld [vmem:[#allocation23 + $0x250] sm:$0xff]
    %v8698 = vld [vmem:[#allocation23 + $0x258] sm:$0xff]
    %v8699 = vld [vmem:[#allocation23 + $0x260] sm:$0xff]
    %v8700 = vld [vmem:[#allocation23 + $0x268] sm:$0xff]
    %v8701 = vld [vmem:[#allocation23 + $0x270] sm:$0xff]
    %v8702 = vld [vmem:[#allocation23 + $0x278] sm:$0xff]
    %v8703 = vld [vmem:[#allocation23 + $0x280] sm:$0xff]
    %v8704 = vld [vmem:[#allocation23 + $0x288] sm:$0xff]
    %v8705 = vld [vmem:[#allocation23 + $0x290] sm:$0xff]
    %v8706 = vld [vmem:[#allocation23 + $0x298] sm:$0xff]
    %v8707 = vld [vmem:[#allocation23 + $0x2a0] sm:$0xff]
    %v8708 = vld [vmem:[#allocation23 + $0x2a8] sm:$0xff]
    %v8709 = vld [vmem:[#allocation23 + $0x2b0] sm:$0xff]
    %v8710 = vld [vmem:[#allocation23 + $0x2b8] sm:$0xff]
    %v8711 = vld [vmem:[#allocation23 + $0x2c0] sm:$0xff]
    %v8712 = vld [vmem:[#allocation23 + $0x2c8] sm:$0xff]
    %v8713 = vld [vmem:[#allocation23 + $0x2d0] sm:$0xff]
    %v8714 = vld [vmem:[#allocation23 + $0x2d8] sm:$0xff]
    %v8715 = vld [vmem:[#allocation23 + $0x2e0] sm:$0xff]
    %v8716 = vld [vmem:[#allocation23 + $0x2e8] sm:$0xff]
    %v8717 = vld [vmem:[#allocation23 + $0x2f0] sm:$0xff]
    %v8718 = vld [vmem:[#allocation23 + $0x2f8] sm:$0xff]
    %v8719 = vld [vmem:[#allocation23 + $0x300] sm:$0xff]
    %v8720 = vld [vmem:[#allocation23 + $0x308] sm:$0xff]
    %v8721 = vld [vmem:[#allocation23 + $0x310] sm:$0xff]
    %v8722 = vld [vmem:[#allocation23 + $0x318] sm:$0xff]
    %v8723 = vld [vmem:[#allocation23 + $0x320] sm:$0xff]
    %v8724 = vld [vmem:[#allocation23 + $0x328] sm:$0xff]
    %v8725 = vld [vmem:[#allocation23 + $0x330] sm:$0xff]
    %v8726 = vld [vmem:[#allocation23 + $0x338] sm:$0xff]
    %v8727 = vld [vmem:[#allocation23 + $0x340] sm:$0xff]
    %v8728 = vld [vmem:[#allocation23 + $0x348] sm:$0xff]
    %v8729 = vld [vmem:[#allocation23 + $0x350] sm:$0xff]
    %v8730 = vld [vmem:[#allocation23 + $0x358] sm:$0xff]
    %v8731 = vld [vmem:[#allocation23 + $0x360] sm:$0xff]
    %v8732 = vld [vmem:[#allocation23 + $0x368] sm:$0xff]
    %v8733 = vld [vmem:[#allocation23 + $0x370] sm:$0xff]
    %v8734 = vld [vmem:[#allocation23 + $0x378] sm:$0xff]
    %v8735 = vld [vmem:[#allocation23 + $0x380] sm:$0xff]
    %v8736 = vld [vmem:[#allocation23 + $0x388] sm:$0xff]
    %v8737 = vld [vmem:[#allocation23 + $0x390] sm:$0xff]
    %v8738 = vld [vmem:[#allocation23 + $0x398] sm:$0xff]
    %v8739 = vld [vmem:[#allocation23 + $0x3a0] sm:$0xff]
    %v8740 = vld [vmem:[#allocation23 + $0x3a8] sm:$0xff]
    %v8741 = vld [vmem:[#allocation23 + $0x3b0] sm:$0xff]
    %v8742 = vld [vmem:[#allocation23 + $0x3b8] sm:$0xff]
    %v8743 = vld [vmem:[#allocation23 + $0x3c0] sm:$0xff]
    %v8744 = vld [vmem:[#allocation23 + $0x3c8] sm:$0xff]
    %v8745 = vld [vmem:[#allocation23 + $0x3d0] sm:$0xff]
    %v8746 = vld [vmem:[#allocation23 + $0x3d8] sm:$0xff]
    %v8747 = vld [vmem:[#allocation23 + $0x3e0] sm:$0xff]
    %v8748 = vld [vmem:[#allocation23 + $0x3e8] sm:$0xff]
    %v8749 = vld [vmem:[#allocation23 + $0x3f0] sm:$0xff]
    %v8750 = vld [vmem:[#allocation23 + $0x3f8] sm:$0xff]
    %v8751 = vld [vmem:[#allocation24] sm:$0x3]
    %v8753 = vlaneseq
    %v8754 = vshrl.u32 %v8753, 7
    %v8755 = vsub.s32 0, %v8754
    %v8756 = vrot.slane %v8751, %v8755
    %v8757 = vlaneseq
    %v8758 = vshrl.u32 %v8757, 7
    %v8759 = vsub.s32 1, %v8758
    %v8760 = vrot.slane %v8751, %v8759
    %8763 = vmatprep.subr.mxu0 %v8654
    %8764 = vmatpush1.msra.mxu0 %v8653
    %8765 = vmatprep.subr.mxu0 %v8652
    %8766 = vmatpush1.msra.mxu0 %v8651
    %8767 = vmatprep.subr.mxu0 %v8650
    %8768 = vmatpush1.msra.mxu0 %v8649
    %8769 = vmatprep.subr.mxu0 %v8648
    %8770 = vmatpush1.msra.mxu0 %v8647
    %8771 = vmatprep.subr.mxu0 %v8646
    %8772 = vmatpush1.msra.mxu0 %v8645
    %8773 = vmatprep.subr.mxu0 %v8644
    %8774 = vmatpush1.msra.mxu0 %v8643
    %8775 = vmatprep.subr.mxu0 %v8642
    %8776 = vmatpush1.msra.mxu0 %v8641
    %8777 = vmatprep.subr.mxu0 %v8640
    %8778 = vmatpush1.msra.mxu0 %v8639
    %8779 = vmatprep.subr.mxu0 %v8638
    %8780 = vmatpush1.msra.mxu0 %v8637
    %8781 = vmatprep.subr.mxu0 %v8636
    %8782 = vmatpush1.msra.mxu0 %v8635
    %8783 = vmatprep.subr.mxu0 %v8634
    %8784 = vmatpush1.msra.mxu0 %v8633
    %8785 = vmatprep.subr.mxu0 %v8632
    %8786 = vmatpush1.msra.mxu0 %v8631
    %8787 = vmatprep.subr.mxu0 %v8630
    %8788 = vmatpush1.msra.mxu0 %v8629
    %8789 = vmatprep.subr.mxu0 %v8628
    %8790 = vmatpush1.msra.mxu0 %v8627
    %8791 = vmatprep.subr.mxu0 %v8626
    %8792 = vmatpush1.msra.mxu0 %v8625
    %8793 = vmatprep.subr.mxu0 %v8624
    %8794 = vmatpush1.msra.mxu0 %v8623
    %8795 = vmatprep.subr.mxu0 %v8686
    %8796 = vmatpush2.msra.mxu0 %v8685
    %8797 = vmatprep.subr.mxu0 %v8684
    %8798 = vmatpush2.msra.mxu0 %v8683
    %8799 = vmatprep.subr.mxu0 %v8682
    %8800 = vmatpush2.msra.mxu0 %v8681
    %8801 = vmatprep.subr.mxu0 %v8680
    %8802 = vmatpush2.msra.mxu0 %v8679
    %8803 = vmatprep.subr.mxu0 %v8678
    %8804 = vmatpush2.msra.mxu0 %v8677
    %8805 = vmatprep.subr.mxu0 %v8676
    %8806 = vmatpush2.msra.mxu0 %v8675
    %8807 = vmatprep.subr.mxu0 %v8674
    %8808 = vmatpush2.msra.mxu0 %v8673
    %8809 = vmatprep.subr.mxu0 %v8672
    %8810 = vmatpush2.msra.mxu0 %v8671
    %8811 = vmatprep.subr.mxu0 %v8670
    %8812 = vmatpush2.msra.mxu0 %v8669
    %8813 = vmatprep.subr.mxu0 %v8668
    %8814 = vmatpush2.msra.mxu0 %v8667
    %8815 = vmatprep.subr.mxu0 %v8666
    %8816 = vmatpush2.msra.mxu0 %v8665
    %8817 = vmatprep.subr.mxu0 %v8664
    %8818 = vmatpush2.msra.mxu0 %v8663
    %8819 = vmatprep.subr.mxu0 %v8662
    %8820 = vmatpush2.msra.mxu0 %v8661
    %8821 = vmatprep.subr.mxu0 %v8660
    %8822 = vmatpush2.msra.mxu0 %v8659
    %8823 = vmatprep.subr.mxu0 %v8658
    %8824 = vmatpush2.msra.mxu0 %v8657
    %8825 = vmatprep.subr.mxu0 %v8656
    %8826 = vmatpush2.msra.mxu0 %v8655
    %8827 = vmatprep.mubr.f32.mxu0 %v8620
    %8828 = vmatmul.mubr.f32.gmra.mxu0 %v8619
    %v8829 = vpop.f32.mrf.mxu0
    %v8830 = vadd.f32 %v8756, %v8829
    %v8831 = vpop.f32.mrf.mxu0
    %v8832 = vadd.f32 %v8760, %v8831
    %8833 = vdwg.mxu0
    %8834 = vmatprep.subr.mxu0 %v8718
    %8835 = vmatpush1.msra.mxu0 %v8717
    %8836 = vmatprep.subr.mxu0 %v8716
    %8837 = vmatpush1.msra.mxu0 %v8715
    %8838 = vmatprep.subr.mxu0 %v8714
    %8839 = vmatpush1.msra.mxu0 %v8713
    %8840 = vmatprep.subr.mxu0 %v8712
    %8841 = vmatpush1.msra.mxu0 %v8711
    %8842 = vmatprep.subr.mxu0 %v8710
    %8843 = vmatpush1.msra.mxu0 %v8709
    %8844 = vmatprep.subr.mxu0 %v8708
    %8845 = vmatpush1.msra.mxu0 %v8707
    %8846 = vmatprep.subr.mxu0 %v8706
    %8847 = vmatpush1.msra.mxu0 %v8705
    %8848 = vmatprep.subr.mxu0 %v8704
    %8849 = vmatpush1.msra.mxu0 %v8703
    %8850 = vmatprep.subr.mxu0 %v8702
    %8851 = vmatpush1.msra.mxu0 %v8701
    %8852 = vmatprep.subr.mxu0 %v8700
    %8853 = vmatpush1.msra.mxu0 %v8699
    %8854 = vmatprep.subr.mxu0 %v8698
    %8855 = vmatpush1.msra.mxu0 %v8697
    %8856 = vmatprep.subr.mxu0 %v8696
    %8857 = vmatpush1.msra.mxu0 %v8695
    %8858 = vmatprep.subr.mxu0 %v8694
    %8859 = vmatpush1.msra.mxu0 %v8693
    %8860 = vmatprep.subr.mxu0 %v8692
    %8861 = vmatpush1.msra.mxu0 %v8691
    %8862 = vmatprep.subr.mxu0 %v8690
    %8863 = vmatpush1.msra.mxu0 %v8689
    %8864 = vmatprep.subr.mxu0 %v8688
    %8865 = vmatpush1.msra.mxu0 %v8687
    %8866 = vmatprep.subr.mxu0 %v8750
    %8867 = vmatpush2.msra.mxu0 %v8749
    %8868 = vmatprep.subr.mxu0 %v8748
    %8869 = vmatpush2.msra.mxu0 %v8747
    %8870 = vmatprep.subr.mxu0 %v8746
    %8871 = vmatpush2.msra.mxu0 %v8745
    %8872 = vmatprep.subr.mxu0 %v8744
    %8873 = vmatpush2.msra.mxu0 %v8743
    %8874 = vmatprep.subr.mxu0 %v8742
    %8875 = vmatpush2.msra.mxu0 %v8741
    %8876 = vmatprep.subr.mxu0 %v8740
    %8877 = vmatpush2.msra.mxu0 %v8739
    %8878 = vmatprep.subr.mxu0 %v8738
    %8879 = vmatpush2.msra.mxu0 %v8737
    %8880 = vmatprep.subr.mxu0 %v8736
    %8881 = vmatpush2.msra.mxu0 %v8735
    %8882 = vmatprep.subr.mxu0 %v8734
    %8883 = vmatpush2.msra.mxu0 %v8733
    %8884 = vmatprep.subr.mxu0 %v8732
    %8885 = vmatpush2.msra.mxu0 %v8731
    %8886 = vmatprep.subr.mxu0 %v8730
    %8887 = vmatpush2.msra.mxu0 %v8729
    %8888 = vmatprep.subr.mxu0 %v8728
    %8889 = vmatpush2.msra.mxu0 %v8727
    %8890 = vmatprep.subr.mxu0 %v8726
    %8891 = vmatpush2.msra.mxu0 %v8725
    %8892 = vmatprep.subr.mxu0 %v8724
    %8893 = vmatpush2.msra.mxu0 %v8723
    %8894 = vmatprep.subr.mxu0 %v8722
    %8895 = vmatpush2.msra.mxu0 %v8721
    %8896 = vmatprep.subr.mxu0 %v8720
    %8897 = vmatpush2.msra.mxu0 %v8719
    %8898 = vmatprep.mubr.f32.mxu0 %v8622
    %8899 = vmatmul.mubr.f32.gmra.mxu0 %v8621
    %v8900 = vpop.f32.mrf.mxu0
    %v8901 = vadd.f32 %v8830, %v8900
    %v8902 = vpop.f32.mrf.mxu0
    %v8903 = vadd.f32 %v8832, %v8902
    %8904 = vdwg.mxu0
    %v8905 = vmax.f32 %v8901, 0.0
    %v8906 = vmax.f32 %v8903, 0.0
    %v8907 = vld [vmem:[#allocation26] sm:$0xff]
    %v8908 = vld [vmem:[#allocation26 + $0x8] sm:$0xff]
    %v8909 = vld [vmem:[#allocation26 + $0x10] sm:$0xff]
    %v8910 = vld [vmem:[#allocation26 + $0x18] sm:$0xff]
    %v8911 = vld [vmem:[#allocation26 + $0x20] sm:$0xff]
    %v8912 = vld [vmem:[#allocation26 + $0x28] sm:$0xff]
    %v8913 = vld [vmem:[#allocation26 + $0x30] sm:$0xff]
    %v8914 = vld [vmem:[#allocation26 + $0x38] sm:$0xff]
    %v8915 = vld [vmem:[#allocation26 + $0x40] sm:$0xff]
    %v8916 = vld [vmem:[#allocation26 + $0x48] sm:$0xff]
    %v8917 = vld [vmem:[#allocation26 + $0x50] sm:$0xff]
    %v8918 = vld [vmem:[#allocation26 + $0x58] sm:$0xff]
    %v8919 = vld [vmem:[#allocation26 + $0x60] sm:$0xff]
    %v8920 = vld [vmem:[#allocation26 + $0x68] sm:$0xff]
    %v8921 = vld [vmem:[#allocation26 + $0x70] sm:$0xff]
    %v8922 = vld [vmem:[#allocation26 + $0x78] sm:$0xff]
    %v8923 = vld [vmem:[#allocation26 + $0x80] sm:$0xff]
    %v8924 = vld [vmem:[#allocation26 + $0x88] sm:$0xff]
    %v8925 = vld [vmem:[#allocation26 + $0x90] sm:$0xff]
    %v8926 = vld [vmem:[#allocation26 + $0x98] sm:$0xff]
    %v8927 = vld [vmem:[#allocation26 + $0xa0] sm:$0xff]
    %v8928 = vld [vmem:[#allocation26 + $0xa8] sm:$0xff]
    %v8929 = vld [vmem:[#allocation26 + $0xb0] sm:$0xff]
    %v8930 = vld [vmem:[#allocation26 + $0xb8] sm:$0xff]
    %v8931 = vld [vmem:[#allocation26 + $0xc0] sm:$0xff]
    %v8932 = vld [vmem:[#allocation26 + $0xc8] sm:$0xff]
    %v8933 = vld [vmem:[#allocation26 + $0xd0] sm:$0xff]
    %v8934 = vld [vmem:[#allocation26 + $0xd8] sm:$0xff]
    %v8935 = vld [vmem:[#allocation26 + $0xe0] sm:$0xff]
    %v8936 = vld [vmem:[#allocation26 + $0xe8] sm:$0xff]
    %v8937 = vld [vmem:[#allocation26 + $0xf0] sm:$0xff]
    %v8938 = vld [vmem:[#allocation26 + $0xf8] sm:$0xff]
    %v8939 = vld [vmem:[#allocation27] sm:$0x1]
    %v8941 = vlaneseq
    %v8942 = vshrl.u32 %v8941, 7
    %v8943 = vsub.s32 0, %v8942
    %v8944 = vrot.slane %v8939, %v8943
    %8946 = vmatprep.subr.mxu0 0.0
    %8947 = vmatpush1.msra.mxu0 %v8922
    %8948 = vmatprep.subr.mxu0 0.0
    %8949 = vmatpush1.msra.mxu0 %v8921
    %8950 = vmatprep.subr.mxu0 0.0
    %8951 = vmatpush1.msra.mxu0 %v8920
    %8952 = vmatprep.subr.mxu0 0.0
    %8953 = vmatpush1.msra.mxu0 %v8919
    %8954 = vmatprep.subr.mxu0 0.0
    %8955 = vmatpush1.msra.mxu0 %v8918
    %8956 = vmatprep.subr.mxu0 0.0
    %8957 = vmatpush1.msra.mxu0 %v8917
    %8958 = vmatprep.subr.mxu0 0.0
    %8959 = vmatpush1.msra.mxu0 %v8916
    %8960 = vmatprep.subr.mxu0 0.0
    %8961 = vmatpush1.msra.mxu0 %v8915
    %8962 = vmatprep.subr.mxu0 0.0
    %8963 = vmatpush1.msra.mxu0 %v8914
    %8964 = vmatprep.subr.mxu0 0.0
    %8965 = vmatpush1.msra.mxu0 %v8913
    %8966 = vmatprep.subr.mxu0 0.0
    %8967 = vmatpush1.msra.mxu0 %v8912
    %8968 = vmatprep.subr.mxu0 0.0
    %8969 = vmatpush1.msra.mxu0 %v8911
    %8970 = vmatprep.subr.mxu0 0.0
    %8971 = vmatpush1.msra.mxu0 %v8910
    %8972 = vmatprep.subr.mxu0 0.0
    %8973 = vmatpush1.msra.mxu0 %v8909
    %8974 = vmatprep.subr.mxu0 0.0
    %8975 = vmatpush1.msra.mxu0 %v8908
    %8976 = vmatprep.subr.mxu0 0.0
    %8977 = vmatpush1.msra.mxu0 %v8907
    %8978 = vmatprep.subr.mxu0 0.0
    %8979 = vmatpush2.msra.mxu0 %v8938
    %8980 = vmatprep.subr.mxu0 0.0
    %8981 = vmatpush2.msra.mxu0 %v8937
    %8982 = vmatprep.subr.mxu0 0.0
    %8983 = vmatpush2.msra.mxu0 %v8936
    %8984 = vmatprep.subr.mxu0 0.0
    %8985 = vmatpush2.msra.mxu0 %v8935
    %8986 = vmatprep.subr.mxu0 0.0
    %8987 = vmatpush2.msra.mxu0 %v8934
    %8988 = vmatprep.subr.mxu0 0.0
    %8989 = vmatpush2.msra.mxu0 %v8933
    %8990 = vmatprep.subr.mxu0 0.0
    %8991 = vmatpush2.msra.mxu0 %v8932
    %8992 = vmatprep.subr.mxu0 0.0
    %8993 = vmatpush2.msra.mxu0 %v8931
    %8994 = vmatprep.subr.mxu0 0.0
    %8995 = vmatpush2.msra.mxu0 %v8930
    %8996 = vmatprep.subr.mxu0 0.0
    %8997 = vmatpush2.msra.mxu0 %v8929
    %8998 = vmatprep.subr.mxu0 0.0
    %8999 = vmatpush2.msra.mxu0 %v8928
    %9000 = vmatprep.subr.mxu0 0.0
    %9001 = vmatpush2.msra.mxu0 %v8927
    %9002 = vmatprep.subr.mxu0 0.0
    %9003 = vmatpush2.msra.mxu0 %v8926
    %9004 = vmatprep.subr.mxu0 0.0
    %9005 = vmatpush2.msra.mxu0 %v8925
    %9006 = vmatprep.subr.mxu0 0.0
    %9007 = vmatpush2.msra.mxu0 %v8924
    %9008 = vmatprep.subr.mxu0 0.0
    %9009 = vmatpush2.msra.mxu0 %v8923
    %9010 = vmatprep.mubr.f32.mxu0 %v8906
    %9011 = vmatmul.mubr.f32.gmra.mxu0 %v8905
    %v9012 = vpop.f32.mrf.mxu0
    %v9013 = vadd.f32 %v8944, %v9012
    %v9014 = vpop.f32.mrf.mxu0
    %9015 = vdwg.mxu0
    %v9017 = vrot.slane %v9013, 2
    %v9019 = vsub.f32 %v9013, %v9017
    %v9020 = vadd.f32 %v9019, 1e-06
    %v9021 = vmul.f32 %v9020, %v9020
    %vm9022 = vcmask 1041408
    %v9023 = vsel %vm9022, %v9021, 0.0
    %9024 = vadd.xlane.f32.xlu0 %v9023
    %v9025 = vpop.xlane.xlu0 %9024
    %v9026 = vrsqrt.pop %v9025
    %v9027 = vmul.f32 %v9025, %v9026
    %vm9028 = vcmp.eq.f32.partialorder %v9025, inf
    %v9029 = vsel %vm9028, %v9025, %v9027
    %vm9030 = vcmp.eq.f32.partialorder %v9025, 0.0
    %v9031 = vand.u32 %v9025, 2147483648
    %v9032 = vsel %vm9030, %v9031, %v9029
    %v9033 = vld [vmem:[#allocation5] sm:$0x1]
    %v9035 = vlaneseq
    %v9036 = vshrl.u32 %v9035, 7
    %v9037 = vsub.s32 0, %v9036
    %v9038 = vrot.slane %v9033, %v9037
    %v9040 = vmul.f32 %v9032, %v9038
    %v9041 = vld [vmem:[#allocation6] sm:$0x1]
    %v9043 = vlaneseq
    %v9044 = vshrl.u32 %v9043, 7
    %v9045 = vsub.s32 0, %v9044
    %v9046 = vrot.slane %v9041, %v9045
    %v9048 = vadd.f32 %v9040, %v9046
    %v9049 = vsub.f32 0.0, %v9048
    %v9050 = vmul.f32 %v9049, 1.442695
    %v9051 = vpow.pop %v9050
    %v9052 = vadd.f32 %v9051, 1.0
    %v9053 = vrcp.pop %v9052
    %v9054 = vmul.f32 1.0, %v9053
    %vm9055 = vcmask 1024
    %9056 = vst.msk [vmem:[%s21] sm:$0x3] %vm9055, %v9054
    // Predicated region
    $region154: #{tpu_custom_call.1} parent=1 // pred_check
      _
    $region155: #{tpu_custom_call.1} parent=1 // pred_check_branch
      %9058 = sbr.rel (0) target = $region157
    $region156: #{tpu_custom_call.1} parent=1 // pred_region
      _
    $region157: #{tpu_custom_call.1} parent=1 // pred_fallthru
      _
    // Predicated region
    $region158: #{tpu_custom_call.1} parent=1 // pred_check
      _
    $region159: #{tpu_custom_call.1} parent=1 // pred_check_branch
      %9060 = sbr.rel (0) target = $region161
    $region160: #{tpu_custom_call.1} parent=1 // pred_region
      _
    $region161: #{tpu_custom_call.1} parent=1 // pred_fallthru
      _
    %9061 = vsyncpa [#allocation8], 1
    %9062 = vsyncpa [#allocation10], 1
    %9063 = vsyncpa [#allocation13], 1
    %9064 = vsyncpa [#allocation16], 1
    %9065 = vsyncpa [#allocation19], 1
    %9066 = vsyncpa [#allocation22], 1
    %9067 = vsyncpa [#allocation25], 1
    %9068 = vsyncpa [#allocation28], 1
  %9069 = vsyncmov [#allocation4]
  %s9070 = vpop.sfrf %9069
  %p9071 = scmp.eq.s32.totalorder %s9070, 0
  %p9072 = pneg %p9071
  %9074 = shalt.err (%p9072)
  %s9075 = scalar_lea.sflag [#allocation4], 1
  %9076 = vsyncmov %s9075
  %s9077 = vpop.sfrf %9076
  %p9078 = scmp.eq.s32.totalorder %s9077, 0
  %p9079 = pneg %p9078
  %9081 = shalt.err (%p9079)

</llo_original>
